<compile_context>
chip_gen: v5e
topology: v5e:2x2
jax: 0.10.0
libtpu: 0.0.40
codegen_flags: <defaults>
</compile_context>

<pallas_src>
import functools

import numpy as np
import jax
import jax.numpy as jnp
from jax import lax
from jax.experimental import pallas as pl
from jax.experimental.pallas import tpu as pltpu

LANE = 128  # pad channel / class dims to the TPU lane width (lane-dense stores, full MXU N)


# ----------------------------------------------------------------------------
# In-kernel building blocks
# ----------------------------------------------------------------------------
def _conv3x3_s2_stage(x_bf16, row0, col0, base, w_ref, b_ref, *, B, Hin, Win):
    """One fused 3x3 / stride-2 / pad-1 conv + bias + ReLU stage, fully in VMEM.

    x_bf16 : (B*Hin*Win, LANE) bf16  flattened NHWC activations (channel-padded)
    row0   : (P, 1) int32            2*i  for output row i   (P = B*Ho*Wo)
    col0   : (P, 1) int32            2*j  for output col j
    base   : (P, 1) int32            b*Hin*Win (batch offset into flat spatial)
    w_ref  : (9, LANE, LANE) bf16    per-tap weights, tap t = ky*3 + kx
    b_ref  : (1, LANE) f32           bias
    returns (P, LANE) f32 post bias + ReLU.
    """
    Ho, Wo = Hin // 2, Win // 2
    P, S = B * Ho * Wo, B * Hin * Win
    # Flat source index per lane; compared against per-output-row targets to
    # build a one-hot gather matrix (im2col as an MXU matmul, exact selection).
    s_idx = lax.broadcasted_iota(jnp.int32, (P, S), 1)

    acc = jnp.zeros((P, LANE), jnp.float32)
    for ky in range(3):
        for kx in range(3):
            t = ky * 3 + kx
            rr = row0 + (ky - 1)                       # input row of this tap
            cc = col0 + (kx - 1)                       # input col of this tap
            valid = (rr >= 0) & (rr < Hin) & (cc >= 0) & (cc < Win)  # pad=1 zeros
            tgt = base + rr * Win + cc                 # flat source row index
            onehot = jnp.where((s_idx == tgt) & valid, 1.0, 0.0)     # (P, S) f32
            tap = jnp.dot(onehot.astype(jnp.bfloat16), x_bf16,
                          preferred_element_type=jnp.float32)        # (P, LANE)
            acc = acc + jnp.dot(tap.astype(jnp.bfloat16), w_ref[t],
                                preferred_element_type=jnp.float32)  # (P, LANE)
    return jnp.maximum(acc + b_ref[...], 0.0)


def _pool_and_head(feat_f32, wh_ref, bh_ref, *, B, S):
    """Global average pool over spatial (S positions per batch) + Linear head."""
    r_idx = lax.broadcasted_iota(jnp.int32, (B, B * S), 0)
    c_idx = lax.broadcasted_iota(jnp.int32, (B, B * S), 1)
    in_batch = (c_idx >= r_idx * S) & (c_idx < (r_idx + 1) * S)
    pool_mat = jnp.where(in_batch, 1.0 / S, 0.0)                      # (B, B*S) f32
    pooled = jnp.dot(pool_mat, feat_f32, preferred_element_type=jnp.float32)  # (B, LANE)
    logits = jnp.dot(pooled.astype(jnp.bfloat16), wh_ref[...],
                     preferred_element_type=jnp.float32) + bh_ref[...]
    return logits


def _fused_forward_kernel(x_ref,
                          r1, c1, o1, w1, b1,
                          r2, c2, o2, w2, b2,
                          r3, c3, o3, w3, b3,
                          wh, bh,
                          out_ref, *, B, H, W):
    a = _conv3x3_s2_stage(x_ref[...], r1[...], c1[...], o1[...], w1, b1,
                          B=B, Hin=H, Win=W)
    a = _conv3x3_s2_stage(a.astype(jnp.bfloat16), r2[...], c2[...], o2[...], w2, b2,
                          B=B, Hin=H // 2, Win=W // 2)
    a = _conv3x3_s2_stage(a.astype(jnp.bfloat16), r3[...], c3[...], o3[...], w3, b3,
                          B=B, Hin=H // 4, Win=W // 4)
    logits = _pool_and_head(a, wh, bh, B=B, S=(H // 8) * (W // 8))
    out_ref[...] = logits.astype(out_ref.dtype)


# ----------------------------------------------------------------------------
# Host-side helpers
# ----------------------------------------------------------------------------
def _stage_gather_vectors(B, Hin, Win):
    """Tiny per-stage index vectors used to build the in-kernel one-hot gathers."""
    Ho, Wo = Hin // 2, Win // 2
    b = np.repeat(np.arange(B), Ho * Wo)
    i = np.tile(np.repeat(np.arange(Ho), Wo), B)
    j = np.tile(np.arange(Wo), B * Ho)
    row0 = (2 * i).astype(np.int32).reshape(-1, 1)
    col0 = (2 * j).astype(np.int32).reshape(-1, 1)
    base = (b * Hin * Win).astype(np.int32).reshape(-1, 1)
    return jnp.asarray(row0), jnp.asarray(col0), jnp.asarray(base)


_STAGE_CH = [8, 16, 32]  # backbone channel plan; out_dim = 32


def init_params(input_dim=4, output_class=10, seed=0):
    key = jax.random.PRNGKey(seed)
    ks = jax.random.split(key, 4)
    chans = [input_dim] + _STAGE_CH
    stages = []
    for i in range(3):
        cin, cout = chans[i], chans[i + 1]
        w = jax.random.normal(ks[i], (3, 3, cin, cout), jnp.float32) * 0.1
        b = jnp.zeros((cout,), jnp.float32)
        stages.append((w, b))
    head_w = jax.random.normal(ks[3], (chans[-1], output_class), jnp.float32) * 0.1
    head_b = jnp.zeros((output_class,), jnp.float32)
    return {"stages": stages, "head_w": head_w, "head_b": head_b}


def pack_params(params):
    """Pad channels/classes to LANE (lane-dense) and cast matmul weights to bf16."""
    packed = {"stages": []}
    for (w, b) in params["stages"]:
        kh, kw, cin, cout = w.shape
        w9 = w.reshape(kh * kw, cin, cout)
        w9 = jnp.pad(w9, ((0, 0), (0, LANE - cin), (0, LANE - cout))).astype(jnp.bfloat16)
        bp = jnp.pad(b.reshape(1, -1), ((0, 0), (0, LANE - cout))).astype(jnp.float32)
        packed["stages"].append((w9, bp))
    hw, hb = params["head_w"], params["head_b"]
    packed["head_w"] = jnp.pad(
        hw, ((0, LANE - hw.shape[0]), (0, LANE - hw.shape[1]))).astype(jnp.bfloat16)
    packed["head_b"] = jnp.pad(
        hb.reshape(1, -1), ((0, 0), (0, LANE - hb.shape[0]))).astype(jnp.float32)
    return packed


def _forward(packed, x_nchw, *, num_classes):
    B, Cin, H, W = x_nchw.shape
    # PyTorch NCHW -> NHWC, flatten spatial, pad channels to LANE, bf16 for the MXU.
    x = jnp.transpose(x_nchw, (0, 2, 3, 1)).reshape(B * H * W, Cin)
    x = jnp.pad(x, ((0, 0), (0, LANE - Cin))).astype(jnp.bfloat16)

    gv = [_stage_gather_vectors(B, H, W),
          _stage_gather_vectors(B, H // 2, W // 2),
          _stage_gather_vectors(B, H // 4, W // 4)]

    (w1, b1), (w2, b2), (w3, b3) = packed["stages"]
    wh, bh = packed["head_w"], packed["head_b"]

    # Advisory cost estimate for the XLA scheduler.
    stage_dims = [(B * H * W, B * (H // 2) * (W // 2)),
                  (B * (H // 2) * (W // 2), B * (H // 4) * (W // 4)),
                  (B * (H // 4) * (W // 4), B * (H // 8) * (W // 8))]
    flops = 0
    for S, P in stage_dims:
        flops += 9 * (2 * P * S * LANE + 2 * P * LANE * LANE)
    flops += 2 * B * stage_dims[-1][1] * LANE + 2 * B * LANE * LANE
    in_bytes = (x.size * 2
                + sum(w.size * 2 + b.size * 4 for w, b in packed["stages"])
                + wh.size * 2 + bh.size * 4
                + sum(sum(v.size * 4 for v in g) for g in gv))
    cost = pl.CostEstimate(flops=int(flops), transcendentals=0,
                           bytes_accessed=int(in_bytes + B * LANE * 4))

    vmem = pl.BlockSpec(memory_space=pltpu.MemorySpace.VMEM)
    kernel = functools.partial(_fused_forward_kernel, B=B, H=H, W=W)
    logits_padded = pl.pallas_call(
        kernel,
        out_shape=jax.ShapeDtypeStruct((B, LANE), jnp.float32),
        in_specs=[vmem] * 18,
        out_specs=vmem,
        cost_estimate=cost,
    )(x,
      gv[0][0], gv[0][1], gv[0][2], w1, b1,
      gv[1][0], gv[1][1], gv[1][2], w2, b2,
      gv[2][0], gv[2][1], gv[2][2], w3, b3,
      wh, bh)
    return logits_padded[:, :num_classes]


# ----------------------------------------------------------------------------
# Driver
# ----------------------------------------------------------------------------
if __name__ == "__main__":
    B, C_IN, HW = 2, 4, 16
    NUM_CLASSES = 10

    params = init_params(input_dim=C_IN, output_class=NUM_CLASSES, seed=0)
    packed = pack_params(params)

    timm_model_forward = jax.jit(functools.partial(_forward, num_classes=NUM_CLASSES))

    x = jax.random.normal(jax.random.PRNGKey(0), (B, C_IN, HW, HW), jnp.float32)
    logits = timm_model_forward(packed, x)
    jax.block_until_ready(logits)

    assert logits.shape == (B, NUM_CLASSES), logits.shape
    assert logits.dtype == jnp.float32
    print("KERNEL_OK")
</pallas_src>

<mosaic_0001>
module attributes {stable_mosaic.version = 11 : i64} {
  func.func @_fused_forward_kernel(%arg0: memref<512x128xbf16, #tpu.memory_space<vmem>>, %arg1: memref<128x1xi32, #tpu.memory_space<vmem>>, %arg2: memref<128x1xi32, #tpu.memory_space<vmem>>, %arg3: memref<128x1xi32, #tpu.memory_space<vmem>>, %arg4: memref<9x128x128xbf16, #tpu.memory_space<vmem>>, %arg5: memref<1x128xf32, #tpu.memory_space<vmem>>, %arg6: memref<32x1xi32, #tpu.memory_space<vmem>>, %arg7: memref<32x1xi32, #tpu.memory_space<vmem>>, %arg8: memref<32x1xi32, #tpu.memory_space<vmem>>, %arg9: memref<9x128x128xbf16, #tpu.memory_space<vmem>>, %arg10: memref<1x128xf32, #tpu.memory_space<vmem>>, %arg11: memref<8x1xi32, #tpu.memory_space<vmem>>, %arg12: memref<8x1xi32, #tpu.memory_space<vmem>>, %arg13: memref<8x1xi32, #tpu.memory_space<vmem>>, %arg14: memref<9x128x128xbf16, #tpu.memory_space<vmem>>, %arg15: memref<1x128xf32, #tpu.memory_space<vmem>>, %arg16: memref<128x128xbf16, #tpu.memory_space<vmem>>, %arg17: memref<1x128xf32, #tpu.memory_space<vmem>>, %arg18: memref<2x128xf32, #tpu.memory_space<vmem>>) attributes {dimension_semantics = [], scalar_prefetch = 0 : i64, scratch_operands = 0 : i64, tpu.core_type = #tpu.core_type<tc>} {
    %c0 = arith.constant 0 : index
    %c0_0 = arith.constant 0 : index
    %0 = vector.load %arg0[%c0, %c0_0] : memref<512x128xbf16, #tpu.memory_space<vmem>>, vector<512x128xbf16>
    %c0_1 = arith.constant 0 : index
    %c0_2 = arith.constant 0 : index
    %1 = vector.load %arg1[%c0_1, %c0_2] : memref<128x1xi32, #tpu.memory_space<vmem>>, vector<128x1xi32>
    %c0_3 = arith.constant 0 : index
    %c0_4 = arith.constant 0 : index
    %2 = vector.load %arg2[%c0_3, %c0_4] : memref<128x1xi32, #tpu.memory_space<vmem>>, vector<128x1xi32>
    %c0_5 = arith.constant 0 : index
    %c0_6 = arith.constant 0 : index
    %3 = vector.load %arg3[%c0_5, %c0_6] : memref<128x1xi32, #tpu.memory_space<vmem>>, vector<128x1xi32>
    %4 = tpu.iota {dimensions = array<i32: 1>} : vector<128x512xi32>
    %cst = arith.constant 0.000000e+00 : f32
    %5 = vector.broadcast %cst : f32 to vector<128x128xf32>
    %c-1_i32 = arith.constant -1 : i32
    %6 = vector.broadcast %c-1_i32 : i32 to vector<128x1xi32>
    %7 = arith.addi %1, %6 : vector<128x1xi32>
    %c-1_i32_7 = arith.constant -1 : i32
    %8 = vector.broadcast %c-1_i32_7 : i32 to vector<128x1xi32>
    %9 = arith.addi %2, %8 : vector<128x1xi32>
    %c0_i32 = arith.constant 0 : i32
    %10 = vector.broadcast %c0_i32 : i32 to vector<128x1xi32>
    %11 = arith.cmpi sge, %7, %10 : vector<128x1xi32>
    %c16_i32 = arith.constant 16 : i32
    %12 = vector.broadcast %c16_i32 : i32 to vector<128x1xi32>
    %13 = arith.cmpi slt, %7, %12 : vector<128x1xi32>
    %14 = arith.andi %11, %13 : vector<128x1xi1>
    %c0_i32_8 = arith.constant 0 : i32
    %15 = vector.broadcast %c0_i32_8 : i32 to vector<128x1xi32>
    %16 = arith.cmpi sge, %9, %15 : vector<128x1xi32>
    %17 = arith.andi %14, %16 : vector<128x1xi1>
    %c16_i32_9 = arith.constant 16 : i32
    %18 = vector.broadcast %c16_i32_9 : i32 to vector<128x1xi32>
    %19 = arith.cmpi slt, %9, %18 : vector<128x1xi32>
    %20 = arith.andi %17, %19 : vector<128x1xi1>
    %c16_i32_10 = arith.constant 16 : i32
    %21 = vector.broadcast %c16_i32_10 : i32 to vector<128x1xi32>
    %22 = arith.muli %7, %21 : vector<128x1xi32>
    %23 = arith.addi %3, %22 : vector<128x1xi32>
    %24 = arith.addi %23, %9 : vector<128x1xi32>
    %25 = vector.broadcast %24 : vector<128x1xi32> to vector<128x512xi32>
    %26 = arith.cmpi eq, %4, %25 : vector<128x512xi32>
    %27 = vector.broadcast %20 : vector<128x1xi1> to vector<128x512xi1>
    %28 = arith.andi %26, %27 : vector<128x512xi1>
    %cst_11 = arith.constant 1.000000e+00 : f32
    %cst_12 = arith.constant 0.000000e+00 : f32
    %29 = vector.broadcast %cst_11 : f32 to vector<128x512xf32>
    %30 = vector.broadcast %cst_12 : f32 to vector<128x512xf32>
    %31 = arith.select %28, %29, %30 : vector<128x512xi1>, vector<128x512xf32>
    %32 = arith.truncf %31 : vector<128x512xf32> to vector<128x512xbf16>
    %cst_13 = arith.constant dense<0.000000e+00> : vector<128x128xf32>
    %33 = tpu.matmul %32, %0, %cst_13 {dimension_numbers = #tpu.dot_dimension_numbers<[1], [0], [0], [1], [0, 0, 1, 1], [], []>} : vector<128x512xbf16>, vector<512x128xbf16>, vector<128x128xf32> -> vector<128x128xf32>
    %34 = arith.truncf %33 : vector<128x128xf32> to vector<128x128xbf16>
    %c0_14 = arith.constant 0 : index
    %c0_15 = arith.constant 0 : index
    %c0_16 = arith.constant 0 : index
    %35 = vector.load %arg4[%c0_14, %c0_15, %c0_16] : memref<9x128x128xbf16, #tpu.memory_space<vmem>>, vector<1x128x128xbf16>
    %36 = vector.shape_cast %35 : vector<1x128x128xbf16> to vector<128x128xbf16>
    %cst_17 = arith.constant dense<0.000000e+00> : vector<128x128xf32>
    %37 = tpu.matmul %34, %36, %cst_17 {dimension_numbers = #tpu.dot_dimension_numbers<[1], [0], [0], [1], [0, 0, 1, 1], [], []>} : vector<128x128xbf16>, vector<128x128xbf16>, vector<128x128xf32> -> vector<128x128xf32>
    %38 = arith.addf %5, %37 : vector<128x128xf32>
    %c-1_i32_18 = arith.constant -1 : i32
    %39 = vector.broadcast %c-1_i32_18 : i32 to vector<128x1xi32>
    %40 = arith.addi %1, %39 : vector<128x1xi32>
    %c0_i32_19 = arith.constant 0 : i32
    %41 = vector.broadcast %c0_i32_19 : i32 to vector<128x1xi32>
    %42 = arith.addi %2, %41 : vector<128x1xi32>
    %c0_i32_20 = arith.constant 0 : i32
    %43 = vector.broadcast %c0_i32_20 : i32 to vector<128x1xi32>
    %44 = arith.cmpi sge, %40, %43 : vector<128x1xi32>
    %c16_i32_21 = arith.constant 16 : i32
    %45 = vector.broadcast %c16_i32_21 : i32 to vector<128x1xi32>
    %46 = arith.cmpi slt, %40, %45 : vector<128x1xi32>
    %47 = arith.andi %44, %46 : vector<128x1xi1>
    %c0_i32_22 = arith.constant 0 : i32
    %48 = vector.broadcast %c0_i32_22 : i32 to vector<128x1xi32>
    %49 = arith.cmpi sge, %42, %48 : vector<128x1xi32>
    %50 = arith.andi %47, %49 : vector<128x1xi1>
    %c16_i32_23 = arith.constant 16 : i32
    %51 = vector.broadcast %c16_i32_23 : i32 to vector<128x1xi32>
    %52 = arith.cmpi slt, %42, %51 : vector<128x1xi32>
    %53 = arith.andi %50, %52 : vector<128x1xi1>
    %c16_i32_24 = arith.constant 16 : i32
    %54 = vector.broadcast %c16_i32_24 : i32 to vector<128x1xi32>
    %55 = arith.muli %40, %54 : vector<128x1xi32>
    %56 = arith.addi %3, %55 : vector<128x1xi32>
    %57 = arith.addi %56, %42 : vector<128x1xi32>
    %58 = vector.broadcast %57 : vector<128x1xi32> to vector<128x512xi32>
    %59 = arith.cmpi eq, %4, %58 : vector<128x512xi32>
    %60 = vector.broadcast %53 : vector<128x1xi1> to vector<128x512xi1>
    %61 = arith.andi %59, %60 : vector<128x512xi1>
    %cst_25 = arith.constant 1.000000e+00 : f32
    %cst_26 = arith.constant 0.000000e+00 : f32
    %62 = vector.broadcast %cst_25 : f32 to vector<128x512xf32>
    %63 = vector.broadcast %cst_26 : f32 to vector<128x512xf32>
    %64 = arith.select %61, %62, %63 : vector<128x512xi1>, vector<128x512xf32>
    %65 = arith.truncf %64 : vector<128x512xf32> to vector<128x512xbf16>
    %cst_27 = arith.constant dense<0.000000e+00> : vector<128x128xf32>
    %66 = tpu.matmul %65, %0, %cst_27 {dimension_numbers = #tpu.dot_dimension_numbers<[1], [0], [0], [1], [0, 0, 1, 1], [], []>} : vector<128x512xbf16>, vector<512x128xbf16>, vector<128x128xf32> -> vector<128x128xf32>
    %67 = arith.truncf %66 : vector<128x128xf32> to vector<128x128xbf16>
    %c1 = arith.constant 1 : index
    %c0_28 = arith.constant 0 : index
    %c0_29 = arith.constant 0 : index
    %68 = vector.load %arg4[%c1, %c0_28, %c0_29] : memref<9x128x128xbf16, #tpu.memory_space<vmem>>, vector<1x128x128xbf16>
    %69 = vector.shape_cast %68 : vector<1x128x128xbf16> to vector<128x128xbf16>
    %cst_30 = arith.constant dense<0.000000e+00> : vector<128x128xf32>
    %70 = tpu.matmul %67, %69, %cst_30 {dimension_numbers = #tpu.dot_dimension_numbers<[1], [0], [0], [1], [0, 0, 1, 1], [], []>} : vector<128x128xbf16>, vector<128x128xbf16>, vector<128x128xf32> -> vector<128x128xf32>
    %71 = arith.addf %38, %70 : vector<128x128xf32>
    %c-1_i32_31 = arith.constant -1 : i32
    %72 = vector.broadcast %c-1_i32_31 : i32 to vector<128x1xi32>
    %73 = arith.addi %1, %72 : vector<128x1xi32>
    %c1_i32 = arith.constant 1 : i32
    %74 = vector.broadcast %c1_i32 : i32 to vector<128x1xi32>
    %75 = arith.addi %2, %74 : vector<128x1xi32>
    %c0_i32_32 = arith.constant 0 : i32
    %76 = vector.broadcast %c0_i32_32 : i32 to vector<128x1xi32>
    %77 = arith.cmpi sge, %73, %76 : vector<128x1xi32>
    %c16_i32_33 = arith.constant 16 : i32
    %78 = vector.broadcast %c16_i32_33 : i32 to vector<128x1xi32>
    %79 = arith.cmpi slt, %73, %78 : vector<128x1xi32>
    %80 = arith.andi %77, %79 : vector<128x1xi1>
    %c0_i32_34 = arith.constant 0 : i32
    %81 = vector.broadcast %c0_i32_34 : i32 to vector<128x1xi32>
    %82 = arith.cmpi sge, %75, %81 : vector<128x1xi32>
    %83 = arith.andi %80, %82 : vector<128x1xi1>
    %c16_i32_35 = arith.constant 16 : i32
    %84 = vector.broadcast %c16_i32_35 : i32 to vector<128x1xi32>
    %85 = arith.cmpi slt, %75, %84 : vector<128x1xi32>
    %86 = arith.andi %83, %85 : vector<128x1xi1>
    %c16_i32_36 = arith.constant 16 : i32
    %87 = vector.broadcast %c16_i32_36 : i32 to vector<128x1xi32>
    %88 = arith.muli %73, %87 : vector<128x1xi32>
    %89 = arith.addi %3, %88 : vector<128x1xi32>
    %90 = arith.addi %89, %75 : vector<128x1xi32>
    %91 = vector.broadcast %90 : vector<128x1xi32> to vector<128x512xi32>
    %92 = arith.cmpi eq, %4, %91 : vector<128x512xi32>
    %93 = vector.broadcast %86 : vector<128x1xi1> to vector<128x512xi1>
    %94 = arith.andi %92, %93 : vector<128x512xi1>
    %cst_37 = arith.constant 1.000000e+00 : f32
    %cst_38 = arith.constant 0.000000e+00 : f32
    %95 = vector.broadcast %cst_37 : f32 to vector<128x512xf32>
    %96 = vector.broadcast %cst_38 : f32 to vector<128x512xf32>
    %97 = arith.select %94, %95, %96 : vector<128x512xi1>, vector<128x512xf32>
    %98 = arith.truncf %97 : vector<128x512xf32> to vector<128x512xbf16>
    %cst_39 = arith.constant dense<0.000000e+00> : vector<128x128xf32>
    %99 = tpu.matmul %98, %0, %cst_39 {dimension_numbers = #tpu.dot_dimension_numbers<[1], [0], [0], [1], [0, 0, 1, 1], [], []>} : vector<128x512xbf16>, vector<512x128xbf16>, vector<128x128xf32> -> vector<128x128xf32>
    %100 = arith.truncf %99 : vector<128x128xf32> to vector<128x128xbf16>
    %c2 = arith.constant 2 : index
    %c0_40 = arith.constant 0 : index
    %c0_41 = arith.constant 0 : index
    %101 = vector.load %arg4[%c2, %c0_40, %c0_41] : memref<9x128x128xbf16, #tpu.memory_space<vmem>>, vector<1x128x128xbf16>
    %102 = vector.shape_cast %101 : vector<1x128x128xbf16> to vector<128x128xbf16>
    %cst_42 = arith.constant dense<0.000000e+00> : vector<128x128xf32>
    %103 = tpu.matmul %100, %102, %cst_42 {dimension_numbers = #tpu.dot_dimension_numbers<[1], [0], [0], [1], [0, 0, 1, 1], [], []>} : vector<128x128xbf16>, vector<128x128xbf16>, vector<128x128xf32> -> vector<128x128xf32>
    %104 = arith.addf %71, %103 : vector<128x128xf32>
    %c0_i32_43 = arith.constant 0 : i32
    %105 = vector.broadcast %c0_i32_43 : i32 to vector<128x1xi32>
    %106 = arith.addi %1, %105 : vector<128x1xi32>
    %c-1_i32_44 = arith.constant -1 : i32
    %107 = vector.broadcast %c-1_i32_44 : i32 to vector<128x1xi32>
    %108 = arith.addi %2, %107 : vector<128x1xi32>
    %c0_i32_45 = arith.constant 0 : i32
    %109 = vector.broadcast %c0_i32_45 : i32 to vector<128x1xi32>
    %110 = arith.cmpi sge, %106, %109 : vector<128x1xi32>
    %c16_i32_46 = arith.constant 16 : i32
    %111 = vector.broadcast %c16_i32_46 : i32 to vector<128x1xi32>
    %112 = arith.cmpi slt, %106, %111 : vector<128x1xi32>
    %113 = arith.andi %110, %112 : vector<128x1xi1>
    %c0_i32_47 = arith.constant 0 : i32
    %114 = vector.broadcast %c0_i32_47 : i32 to vector<128x1xi32>
    %115 = arith.cmpi sge, %108, %114 : vector<128x1xi32>
    %116 = arith.andi %113, %115 : vector<128x1xi1>
    %c16_i32_48 = arith.constant 16 : i32
    %117 = vector.broadcast %c16_i32_48 : i32 to vector<128x1xi32>
    %118 = arith.cmpi slt, %108, %117 : vector<128x1xi32>
    %119 = arith.andi %116, %118 : vector<128x1xi1>
    %c16_i32_49 = arith.constant 16 : i32
    %120 = vector.broadcast %c16_i32_49 : i32 to vector<128x1xi32>
    %121 = arith.muli %106, %120 : vector<128x1xi32>
    %122 = arith.addi %3, %121 : vector<128x1xi32>
    %123 = arith.addi %122, %108 : vector<128x1xi32>
    %124 = vector.broadcast %123 : vector<128x1xi32> to vector<128x512xi32>
    %125 = arith.cmpi eq, %4, %124 : vector<128x512xi32>
    %126 = vector.broadcast %119 : vector<128x1xi1> to vector<128x512xi1>
    %127 = arith.andi %125, %126 : vector<128x512xi1>
    %cst_50 = arith.constant 1.000000e+00 : f32
    %cst_51 = arith.constant 0.000000e+00 : f32
    %128 = vector.broadcast %cst_50 : f32 to vector<128x512xf32>
    %129 = vector.broadcast %cst_51 : f32 to vector<128x512xf32>
    %130 = arith.select %127, %128, %129 : vector<128x512xi1>, vector<128x512xf32>
    %131 = arith.truncf %130 : vector<128x512xf32> to vector<128x512xbf16>
    %cst_52 = arith.constant dense<0.000000e+00> : vector<128x128xf32>
    %132 = tpu.matmul %131, %0, %cst_52 {dimension_numbers = #tpu.dot_dimension_numbers<[1], [0], [0], [1], [0, 0, 1, 1], [], []>} : vector<128x512xbf16>, vector<512x128xbf16>, vector<128x128xf32> -> vector<128x128xf32>
    %133 = arith.truncf %132 : vector<128x128xf32> to vector<128x128xbf16>
    %c3 = arith.constant 3 : index
    %c0_53 = arith.constant 0 : index
    %c0_54 = arith.constant 0 : index
    %134 = vector.load %arg4[%c3, %c0_53, %c0_54] : memref<9x128x128xbf16, #tpu.memory_space<vmem>>, vector<1x128x128xbf16>
    %135 = vector.shape_cast %134 : vector<1x128x128xbf16> to vector<128x128xbf16>
    %cst_55 = arith.constant dense<0.000000e+00> : vector<128x128xf32>
    %136 = tpu.matmul %133, %135, %cst_55 {dimension_numbers = #tpu.dot_dimension_numbers<[1], [0], [0], [1], [0, 0, 1, 1], [], []>} : vector<128x128xbf16>, vector<128x128xbf16>, vector<128x128xf32> -> vector<128x128xf32>
    %137 = arith.addf %104, %136 : vector<128x128xf32>
    %c0_i32_56 = arith.constant 0 : i32
    %138 = vector.broadcast %c0_i32_56 : i32 to vector<128x1xi32>
    %139 = arith.addi %1, %138 : vector<128x1xi32>
    %c0_i32_57 = arith.constant 0 : i32
    %140 = vector.broadcast %c0_i32_57 : i32 to vector<128x1xi32>
    %141 = arith.addi %2, %140 : vector<128x1xi32>
    %c0_i32_58 = arith.constant 0 : i32
    %142 = vector.broadcast %c0_i32_58 : i32 to vector<128x1xi32>
    %143 = arith.cmpi sge, %139, %142 : vector<128x1xi32>
    %c16_i32_59 = arith.constant 16 : i32
    %144 = vector.broadcast %c16_i32_59 : i32 to vector<128x1xi32>
    %145 = arith.cmpi slt, %139, %144 : vector<128x1xi32>
    %146 = arith.andi %143, %145 : vector<128x1xi1>
    %c0_i32_60 = arith.constant 0 : i32
    %147 = vector.broadcast %c0_i32_60 : i32 to vector<128x1xi32>
    %148 = arith.cmpi sge, %141, %147 : vector<128x1xi32>
    %149 = arith.andi %146, %148 : vector<128x1xi1>
    %c16_i32_61 = arith.constant 16 : i32
    %150 = vector.broadcast %c16_i32_61 : i32 to vector<128x1xi32>
    %151 = arith.cmpi slt, %141, %150 : vector<128x1xi32>
    %152 = arith.andi %149, %151 : vector<128x1xi1>
    %c16_i32_62 = arith.constant 16 : i32
    %153 = vector.broadcast %c16_i32_62 : i32 to vector<128x1xi32>
    %154 = arith.muli %139, %153 : vector<128x1xi32>
    %155 = arith.addi %3, %154 : vector<128x1xi32>
    %156 = arith.addi %155, %141 : vector<128x1xi32>
    %157 = vector.broadcast %156 : vector<128x1xi32> to vector<128x512xi32>
    %158 = arith.cmpi eq, %4, %157 : vector<128x512xi32>
    %159 = vector.broadcast %152 : vector<128x1xi1> to vector<128x512xi1>
    %160 = arith.andi %158, %159 : vector<128x512xi1>
    %cst_63 = arith.constant 1.000000e+00 : f32
    %cst_64 = arith.constant 0.000000e+00 : f32
    %161 = vector.broadcast %cst_63 : f32 to vector<128x512xf32>
    %162 = vector.broadcast %cst_64 : f32 to vector<128x512xf32>
    %163 = arith.select %160, %161, %162 : vector<128x512xi1>, vector<128x512xf32>
    %164 = arith.truncf %163 : vector<128x512xf32> to vector<128x512xbf16>
    %cst_65 = arith.constant dense<0.000000e+00> : vector<128x128xf32>
    %165 = tpu.matmul %164, %0, %cst_65 {dimension_numbers = #tpu.dot_dimension_numbers<[1], [0], [0], [1], [0, 0, 1, 1], [], []>} : vector<128x512xbf16>, vector<512x128xbf16>, vector<128x128xf32> -> vector<128x128xf32>
    %166 = arith.truncf %165 : vector<128x128xf32> to vector<128x128xbf16>
    %c4 = arith.constant 4 : index
    %c0_66 = arith.constant 0 : index
    %c0_67 = arith.constant 0 : index
    %167 = vector.load %arg4[%c4, %c0_66, %c0_67] : memref<9x128x128xbf16, #tpu.memory_space<vmem>>, vector<1x128x128xbf16>
    %168 = vector.shape_cast %167 : vector<1x128x128xbf16> to vector<128x128xbf16>
    %cst_68 = arith.constant dense<0.000000e+00> : vector<128x128xf32>
    %169 = tpu.matmul %166, %168, %cst_68 {dimension_numbers = #tpu.dot_dimension_numbers<[1], [0], [0], [1], [0, 0, 1, 1], [], []>} : vector<128x128xbf16>, vector<128x128xbf16>, vector<128x128xf32> -> vector<128x128xf32>
    %170 = arith.addf %137, %169 : vector<128x128xf32>
    %c0_i32_69 = arith.constant 0 : i32
    %171 = vector.broadcast %c0_i32_69 : i32 to vector<128x1xi32>
    %172 = arith.addi %1, %171 : vector<128x1xi32>
    %c1_i32_70 = arith.constant 1 : i32
    %173 = vector.broadcast %c1_i32_70 : i32 to vector<128x1xi32>
    %174 = arith.addi %2, %173 : vector<128x1xi32>
    %c0_i32_71 = arith.constant 0 : i32
    %175 = vector.broadcast %c0_i32_71 : i32 to vector<128x1xi32>
    %176 = arith.cmpi sge, %172, %175 : vector<128x1xi32>
    %c16_i32_72 = arith.constant 16 : i32
    %177 = vector.broadcast %c16_i32_72 : i32 to vector<128x1xi32>
    %178 = arith.cmpi slt, %172, %177 : vector<128x1xi32>
    %179 = arith.andi %176, %178 : vector<128x1xi1>
    %c0_i32_73 = arith.constant 0 : i32
    %180 = vector.broadcast %c0_i32_73 : i32 to vector<128x1xi32>
    %181 = arith.cmpi sge, %174, %180 : vector<128x1xi32>
    %182 = arith.andi %179, %181 : vector<128x1xi1>
    %c16_i32_74 = arith.constant 16 : i32
    %183 = vector.broadcast %c16_i32_74 : i32 to vector<128x1xi32>
    %184 = arith.cmpi slt, %174, %183 : vector<128x1xi32>
    %185 = arith.andi %182, %184 : vector<128x1xi1>
    %c16_i32_75 = arith.constant 16 : i32
    %186 = vector.broadcast %c16_i32_75 : i32 to vector<128x1xi32>
    %187 = arith.muli %172, %186 : vector<128x1xi32>
    %188 = arith.addi %3, %187 : vector<128x1xi32>
    %189 = arith.addi %188, %174 : vector<128x1xi32>
    %190 = vector.broadcast %189 : vector<128x1xi32> to vector<128x512xi32>
    %191 = arith.cmpi eq, %4, %190 : vector<128x512xi32>
    %192 = vector.broadcast %185 : vector<128x1xi1> to vector<128x512xi1>
    %193 = arith.andi %191, %192 : vector<128x512xi1>
    %cst_76 = arith.constant 1.000000e+00 : f32
    %cst_77 = arith.constant 0.000000e+00 : f32
    %194 = vector.broadcast %cst_76 : f32 to vector<128x512xf32>
    %195 = vector.broadcast %cst_77 : f32 to vector<128x512xf32>
    %196 = arith.select %193, %194, %195 : vector<128x512xi1>, vector<128x512xf32>
    %197 = arith.truncf %196 : vector<128x512xf32> to vector<128x512xbf16>
    %cst_78 = arith.constant dense<0.000000e+00> : vector<128x128xf32>
    %198 = tpu.matmul %197, %0, %cst_78 {dimension_numbers = #tpu.dot_dimension_numbers<[1], [0], [0], [1], [0, 0, 1, 1], [], []>} : vector<128x512xbf16>, vector<512x128xbf16>, vector<128x128xf32> -> vector<128x128xf32>
    %199 = arith.truncf %198 : vector<128x128xf32> to vector<128x128xbf16>
    %c5 = arith.constant 5 : index
    %c0_79 = arith.constant 0 : index
    %c0_80 = arith.constant 0 : index
    %200 = vector.load %arg4[%c5, %c0_79, %c0_80] : memref<9x128x128xbf16, #tpu.memory_space<vmem>>, vector<1x128x128xbf16>
    %201 = vector.shape_cast %200 : vector<1x128x128xbf16> to vector<128x128xbf16>
    %cst_81 = arith.constant dense<0.000000e+00> : vector<128x128xf32>
    %202 = tpu.matmul %199, %201, %cst_81 {dimension_numbers = #tpu.dot_dimension_numbers<[1], [0], [0], [1], [0, 0, 1, 1], [], []>} : vector<128x128xbf16>, vector<128x128xbf16>, vector<128x128xf32> -> vector<128x128xf32>
    %203 = arith.addf %170, %202 : vector<128x128xf32>
    %c1_i32_82 = arith.constant 1 : i32
    %204 = vector.broadcast %c1_i32_82 : i32 to vector<128x1xi32>
    %205 = arith.addi %1, %204 : vector<128x1xi32>
    %c-1_i32_83 = arith.constant -1 : i32
    %206 = vector.broadcast %c-1_i32_83 : i32 to vector<128x1xi32>
    %207 = arith.addi %2, %206 : vector<128x1xi32>
    %c0_i32_84 = arith.constant 0 : i32
    %208 = vector.broadcast %c0_i32_84 : i32 to vector<128x1xi32>
    %209 = arith.cmpi sge, %205, %208 : vector<128x1xi32>
    %c16_i32_85 = arith.constant 16 : i32
    %210 = vector.broadcast %c16_i32_85 : i32 to vector<128x1xi32>
    %211 = arith.cmpi slt, %205, %210 : vector<128x1xi32>
    %212 = arith.andi %209, %211 : vector<128x1xi1>
    %c0_i32_86 = arith.constant 0 : i32
    %213 = vector.broadcast %c0_i32_86 : i32 to vector<128x1xi32>
    %214 = arith.cmpi sge, %207, %213 : vector<128x1xi32>
    %215 = arith.andi %212, %214 : vector<128x1xi1>
    %c16_i32_87 = arith.constant 16 : i32
    %216 = vector.broadcast %c16_i32_87 : i32 to vector<128x1xi32>
    %217 = arith.cmpi slt, %207, %216 : vector<128x1xi32>
    %218 = arith.andi %215, %217 : vector<128x1xi1>
    %c16_i32_88 = arith.constant 16 : i32
    %219 = vector.broadcast %c16_i32_88 : i32 to vector<128x1xi32>
    %220 = arith.muli %205, %219 : vector<128x1xi32>
    %221 = arith.addi %3, %220 : vector<128x1xi32>
    %222 = arith.addi %221, %207 : vector<128x1xi32>
    %223 = vector.broadcast %222 : vector<128x1xi32> to vector<128x512xi32>
    %224 = arith.cmpi eq, %4, %223 : vector<128x512xi32>
    %225 = vector.broadcast %218 : vector<128x1xi1> to vector<128x512xi1>
    %226 = arith.andi %224, %225 : vector<128x512xi1>
    %cst_89 = arith.constant 1.000000e+00 : f32
    %cst_90 = arith.constant 0.000000e+00 : f32
    %227 = vector.broadcast %cst_89 : f32 to vector<128x512xf32>
    %228 = vector.broadcast %cst_90 : f32 to vector<128x512xf32>
    %229 = arith.select %226, %227, %228 : vector<128x512xi1>, vector<128x512xf32>
    %230 = arith.truncf %229 : vector<128x512xf32> to vector<128x512xbf16>
    %cst_91 = arith.constant dense<0.000000e+00> : vector<128x128xf32>
    %231 = tpu.matmul %230, %0, %cst_91 {dimension_numbers = #tpu.dot_dimension_numbers<[1], [0], [0], [1], [0, 0, 1, 1], [], []>} : vector<128x512xbf16>, vector<512x128xbf16>, vector<128x128xf32> -> vector<128x128xf32>
    %232 = arith.truncf %231 : vector<128x128xf32> to vector<128x128xbf16>
    %c6 = arith.constant 6 : index
    %c0_92 = arith.constant 0 : index
    %c0_93 = arith.constant 0 : index
    %233 = vector.load %arg4[%c6, %c0_92, %c0_93] : memref<9x128x128xbf16, #tpu.memory_space<vmem>>, vector<1x128x128xbf16>
    %234 = vector.shape_cast %233 : vector<1x128x128xbf16> to vector<128x128xbf16>
    %cst_94 = arith.constant dense<0.000000e+00> : vector<128x128xf32>
    %235 = tpu.matmul %232, %234, %cst_94 {dimension_numbers = #tpu.dot_dimension_numbers<[1], [0], [0], [1], [0, 0, 1, 1], [], []>} : vector<128x128xbf16>, vector<128x128xbf16>, vector<128x128xf32> -> vector<128x128xf32>
    %236 = arith.addf %203, %235 : vector<128x128xf32>
    %c1_i32_95 = arith.constant 1 : i32
    %237 = vector.broadcast %c1_i32_95 : i32 to vector<128x1xi32>
    %238 = arith.addi %1, %237 : vector<128x1xi32>
    %c0_i32_96 = arith.constant 0 : i32
    %239 = vector.broadcast %c0_i32_96 : i32 to vector<128x1xi32>
    %240 = arith.addi %2, %239 : vector<128x1xi32>
    %c0_i32_97 = arith.constant 0 : i32
    %241 = vector.broadcast %c0_i32_97 : i32 to vector<128x1xi32>
    %242 = arith.cmpi sge, %238, %241 : vector<128x1xi32>
    %c16_i32_98 = arith.constant 16 : i32
    %243 = vector.broadcast %c16_i32_98 : i32 to vector<128x1xi32>
    %244 = arith.cmpi slt, %238, %243 : vector<128x1xi32>
    %245 = arith.andi %242, %244 : vector<128x1xi1>
    %c0_i32_99 = arith.constant 0 : i32
    %246 = vector.broadcast %c0_i32_99 : i32 to vector<128x1xi32>
    %247 = arith.cmpi sge, %240, %246 : vector<128x1xi32>
    %248 = arith.andi %245, %247 : vector<128x1xi1>
    %c16_i32_100 = arith.constant 16 : i32
    %249 = vector.broadcast %c16_i32_100 : i32 to vector<128x1xi32>
    %250 = arith.cmpi slt, %240, %249 : vector<128x1xi32>
    %251 = arith.andi %248, %250 : vector<128x1xi1>
    %c16_i32_101 = arith.constant 16 : i32
    %252 = vector.broadcast %c16_i32_101 : i32 to vector<128x1xi32>
    %253 = arith.muli %238, %252 : vector<128x1xi32>
    %254 = arith.addi %3, %253 : vector<128x1xi32>
    %255 = arith.addi %254, %240 : vector<128x1xi32>
    %256 = vector.broadcast %255 : vector<128x1xi32> to vector<128x512xi32>
    %257 = arith.cmpi eq, %4, %256 : vector<128x512xi32>
    %258 = vector.broadcast %251 : vector<128x1xi1> to vector<128x512xi1>
    %259 = arith.andi %257, %258 : vector<128x512xi1>
    %cst_102 = arith.constant 1.000000e+00 : f32
    %cst_103 = arith.constant 0.000000e+00 : f32
    %260 = vector.broadcast %cst_102 : f32 to vector<128x512xf32>
    %261 = vector.broadcast %cst_103 : f32 to vector<128x512xf32>
    %262 = arith.select %259, %260, %261 : vector<128x512xi1>, vector<128x512xf32>
    %263 = arith.truncf %262 : vector<128x512xf32> to vector<128x512xbf16>
    %cst_104 = arith.constant dense<0.000000e+00> : vector<128x128xf32>
    %264 = tpu.matmul %263, %0, %cst_104 {dimension_numbers = #tpu.dot_dimension_numbers<[1], [0], [0], [1], [0, 0, 1, 1], [], []>} : vector<128x512xbf16>, vector<512x128xbf16>, vector<128x128xf32> -> vector<128x128xf32>
    %265 = arith.truncf %264 : vector<128x128xf32> to vector<128x128xbf16>
    %c7 = arith.constant 7 : index
    %c0_105 = arith.constant 0 : index
    %c0_106 = arith.constant 0 : index
    %266 = vector.load %arg4[%c7, %c0_105, %c0_106] : memref<9x128x128xbf16, #tpu.memory_space<vmem>>, vector<1x128x128xbf16>
    %267 = vector.shape_cast %266 : vector<1x128x128xbf16> to vector<128x128xbf16>
    %cst_107 = arith.constant dense<0.000000e+00> : vector<128x128xf32>
    %268 = tpu.matmul %265, %267, %cst_107 {dimension_numbers = #tpu.dot_dimension_numbers<[1], [0], [0], [1], [0, 0, 1, 1], [], []>} : vector<128x128xbf16>, vector<128x128xbf16>, vector<128x128xf32> -> vector<128x128xf32>
    %269 = arith.addf %236, %268 : vector<128x128xf32>
    %c1_i32_108 = arith.constant 1 : i32
    %270 = vector.broadcast %c1_i32_108 : i32 to vector<128x1xi32>
    %271 = arith.addi %1, %270 : vector<128x1xi32>
    %c1_i32_109 = arith.constant 1 : i32
    %272 = vector.broadcast %c1_i32_109 : i32 to vector<128x1xi32>
    %273 = arith.addi %2, %272 : vector<128x1xi32>
    %c0_i32_110 = arith.constant 0 : i32
    %274 = vector.broadcast %c0_i32_110 : i32 to vector<128x1xi32>
    %275 = arith.cmpi sge, %271, %274 : vector<128x1xi32>
    %c16_i32_111 = arith.constant 16 : i32
    %276 = vector.broadcast %c16_i32_111 : i32 to vector<128x1xi32>
    %277 = arith.cmpi slt, %271, %276 : vector<128x1xi32>
    %278 = arith.andi %275, %277 : vector<128x1xi1>
    %c0_i32_112 = arith.constant 0 : i32
    %279 = vector.broadcast %c0_i32_112 : i32 to vector<128x1xi32>
    %280 = arith.cmpi sge, %273, %279 : vector<128x1xi32>
    %281 = arith.andi %278, %280 : vector<128x1xi1>
    %c16_i32_113 = arith.constant 16 : i32
    %282 = vector.broadcast %c16_i32_113 : i32 to vector<128x1xi32>
    %283 = arith.cmpi slt, %273, %282 : vector<128x1xi32>
    %284 = arith.andi %281, %283 : vector<128x1xi1>
    %c16_i32_114 = arith.constant 16 : i32
    %285 = vector.broadcast %c16_i32_114 : i32 to vector<128x1xi32>
    %286 = arith.muli %271, %285 : vector<128x1xi32>
    %287 = arith.addi %3, %286 : vector<128x1xi32>
    %288 = arith.addi %287, %273 : vector<128x1xi32>
    %289 = vector.broadcast %288 : vector<128x1xi32> to vector<128x512xi32>
    %290 = arith.cmpi eq, %4, %289 : vector<128x512xi32>
    %291 = vector.broadcast %284 : vector<128x1xi1> to vector<128x512xi1>
    %292 = arith.andi %290, %291 : vector<128x512xi1>
    %cst_115 = arith.constant 1.000000e+00 : f32
    %cst_116 = arith.constant 0.000000e+00 : f32
    %293 = vector.broadcast %cst_115 : f32 to vector<128x512xf32>
    %294 = vector.broadcast %cst_116 : f32 to vector<128x512xf32>
    %295 = arith.select %292, %293, %294 : vector<128x512xi1>, vector<128x512xf32>
    %296 = arith.truncf %295 : vector<128x512xf32> to vector<128x512xbf16>
    %cst_117 = arith.constant dense<0.000000e+00> : vector<128x128xf32>
    %297 = tpu.matmul %296, %0, %cst_117 {dimension_numbers = #tpu.dot_dimension_numbers<[1], [0], [0], [1], [0, 0, 1, 1], [], []>} : vector<128x512xbf16>, vector<512x128xbf16>, vector<128x128xf32> -> vector<128x128xf32>
    %298 = arith.truncf %297 : vector<128x128xf32> to vector<128x128xbf16>
    %c8 = arith.constant 8 : index
    %c0_118 = arith.constant 0 : index
    %c0_119 = arith.constant 0 : index
    %299 = vector.load %arg4[%c8, %c0_118, %c0_119] : memref<9x128x128xbf16, #tpu.memory_space<vmem>>, vector<1x128x128xbf16>
    %300 = vector.shape_cast %299 : vector<1x128x128xbf16> to vector<128x128xbf16>
    %cst_120 = arith.constant dense<0.000000e+00> : vector<128x128xf32>
    %301 = tpu.matmul %298, %300, %cst_120 {dimension_numbers = #tpu.dot_dimension_numbers<[1], [0], [0], [1], [0, 0, 1, 1], [], []>} : vector<128x128xbf16>, vector<128x128xbf16>, vector<128x128xf32> -> vector<128x128xf32>
    %302 = arith.addf %269, %301 : vector<128x128xf32>
    %c0_121 = arith.constant 0 : index
    %c0_122 = arith.constant 0 : index
    %303 = vector.load %arg5[%c0_121, %c0_122] : memref<1x128xf32, #tpu.memory_space<vmem>>, vector<1x128xf32>
    %304 = vector.broadcast %303 : vector<1x128xf32> to vector<128x128xf32>
    %305 = arith.addf %302, %304 : vector<128x128xf32>
    %cst_123 = arith.constant 0.000000e+00 : f32
    %306 = vector.broadcast %cst_123 : f32 to vector<128x128xf32>
    %307 = arith.maximumf %305, %306 : vector<128x128xf32>
    %308 = arith.truncf %307 : vector<128x128xf32> to vector<128x128xbf16>
    %c0_124 = arith.constant 0 : index
    %c0_125 = arith.constant 0 : index
    %309 = vector.load %arg6[%c0_124, %c0_125] : memref<32x1xi32, #tpu.memory_space<vmem>>, vector<32x1xi32>
    %c0_126 = arith.constant 0 : index
    %c0_127 = arith.constant 0 : index
    %310 = vector.load %arg7[%c0_126, %c0_127] : memref<32x1xi32, #tpu.memory_space<vmem>>, vector<32x1xi32>
    %c0_128 = arith.constant 0 : index
    %c0_129 = arith.constant 0 : index
    %311 = vector.load %arg8[%c0_128, %c0_129] : memref<32x1xi32, #tpu.memory_space<vmem>>, vector<32x1xi32>
    %312 = tpu.iota {dimensions = array<i32: 1>} : vector<32x128xi32>
    %cst_130 = arith.constant 0.000000e+00 : f32
    %313 = vector.broadcast %cst_130 : f32 to vector<32x128xf32>
    %c-1_i32_131 = arith.constant -1 : i32
    %314 = vector.broadcast %c-1_i32_131 : i32 to vector<32x1xi32>
    %315 = arith.addi %309, %314 : vector<32x1xi32>
    %c-1_i32_132 = arith.constant -1 : i32
    %316 = vector.broadcast %c-1_i32_132 : i32 to vector<32x1xi32>
    %317 = arith.addi %310, %316 : vector<32x1xi32>
    %c0_i32_133 = arith.constant 0 : i32
    %318 = vector.broadcast %c0_i32_133 : i32 to vector<32x1xi32>
    %319 = arith.cmpi sge, %315, %318 : vector<32x1xi32>
    %c8_i32 = arith.constant 8 : i32
    %320 = vector.broadcast %c8_i32 : i32 to vector<32x1xi32>
    %321 = arith.cmpi slt, %315, %320 : vector<32x1xi32>
    %322 = arith.andi %319, %321 : vector<32x1xi1>
    %c0_i32_134 = arith.constant 0 : i32
    %323 = vector.broadcast %c0_i32_134 : i32 to vector<32x1xi32>
    %324 = arith.cmpi sge, %317, %323 : vector<32x1xi32>
    %325 = arith.andi %322, %324 : vector<32x1xi1>
    %c8_i32_135 = arith.constant 8 : i32
    %326 = vector.broadcast %c8_i32_135 : i32 to vector<32x1xi32>
    %327 = arith.cmpi slt, %317, %326 : vector<32x1xi32>
    %328 = arith.andi %325, %327 : vector<32x1xi1>
    %c8_i32_136 = arith.constant 8 : i32
    %329 = vector.broadcast %c8_i32_136 : i32 to vector<32x1xi32>
    %330 = arith.muli %315, %329 : vector<32x1xi32>
    %331 = arith.addi %311, %330 : vector<32x1xi32>
    %332 = arith.addi %331, %317 : vector<32x1xi32>
    %333 = vector.broadcast %332 : vector<32x1xi32> to vector<32x128xi32>
    %334 = arith.cmpi eq, %312, %333 : vector<32x128xi32>
    %335 = vector.broadcast %328 : vector<32x1xi1> to vector<32x128xi1>
    %336 = arith.andi %334, %335 : vector<32x128xi1>
    %cst_137 = arith.constant 1.000000e+00 : f32
    %cst_138 = arith.constant 0.000000e+00 : f32
    %337 = vector.broadcast %cst_137 : f32 to vector<32x128xf32>
    %338 = vector.broadcast %cst_138 : f32 to vector<32x128xf32>
    %339 = arith.select %336, %337, %338 : vector<32x128xi1>, vector<32x128xf32>
    %340 = arith.truncf %339 : vector<32x128xf32> to vector<32x128xbf16>
    %cst_139 = arith.constant dense<0.000000e+00> : vector<32x128xf32>
    %341 = tpu.matmul %340, %308, %cst_139 {dimension_numbers = #tpu.dot_dimension_numbers<[1], [0], [0], [1], [0, 0, 1, 1], [], []>} : vector<32x128xbf16>, vector<128x128xbf16>, vector<32x128xf32> -> vector<32x128xf32>
    %342 = arith.truncf %341 : vector<32x128xf32> to vector<32x128xbf16>
    %c0_140 = arith.constant 0 : index
    %c0_141 = arith.constant 0 : index
    %c0_142 = arith.constant 0 : index
    %343 = vector.load %arg9[%c0_140, %c0_141, %c0_142] : memref<9x128x128xbf16, #tpu.memory_space<vmem>>, vector<1x128x128xbf16>
    %344 = vector.shape_cast %343 : vector<1x128x128xbf16> to vector<128x128xbf16>
    %cst_143 = arith.constant dense<0.000000e+00> : vector<32x128xf32>
    %345 = tpu.matmul %342, %344, %cst_143 {dimension_numbers = #tpu.dot_dimension_numbers<[1], [0], [0], [1], [0, 0, 1, 1], [], []>} : vector<32x128xbf16>, vector<128x128xbf16>, vector<32x128xf32> -> vector<32x128xf32>
    %346 = arith.addf %313, %345 : vector<32x128xf32>
    %c-1_i32_144 = arith.constant -1 : i32
    %347 = vector.broadcast %c-1_i32_144 : i32 to vector<32x1xi32>
    %348 = arith.addi %309, %347 : vector<32x1xi32>
    %c0_i32_145 = arith.constant 0 : i32
    %349 = vector.broadcast %c0_i32_145 : i32 to vector<32x1xi32>
    %350 = arith.addi %310, %349 : vector<32x1xi32>
    %c0_i32_146 = arith.constant 0 : i32
    %351 = vector.broadcast %c0_i32_146 : i32 to vector<32x1xi32>
    %352 = arith.cmpi sge, %348, %351 : vector<32x1xi32>
    %c8_i32_147 = arith.constant 8 : i32
    %353 = vector.broadcast %c8_i32_147 : i32 to vector<32x1xi32>
    %354 = arith.cmpi slt, %348, %353 : vector<32x1xi32>
    %355 = arith.andi %352, %354 : vector<32x1xi1>
    %c0_i32_148 = arith.constant 0 : i32
    %356 = vector.broadcast %c0_i32_148 : i32 to vector<32x1xi32>
    %357 = arith.cmpi sge, %350, %356 : vector<32x1xi32>
    %358 = arith.andi %355, %357 : vector<32x1xi1>
    %c8_i32_149 = arith.constant 8 : i32
    %359 = vector.broadcast %c8_i32_149 : i32 to vector<32x1xi32>
    %360 = arith.cmpi slt, %350, %359 : vector<32x1xi32>
    %361 = arith.andi %358, %360 : vector<32x1xi1>
    %c8_i32_150 = arith.constant 8 : i32
    %362 = vector.broadcast %c8_i32_150 : i32 to vector<32x1xi32>
    %363 = arith.muli %348, %362 : vector<32x1xi32>
    %364 = arith.addi %311, %363 : vector<32x1xi32>
    %365 = arith.addi %364, %350 : vector<32x1xi32>
    %366 = vector.broadcast %365 : vector<32x1xi32> to vector<32x128xi32>
    %367 = arith.cmpi eq, %312, %366 : vector<32x128xi32>
    %368 = vector.broadcast %361 : vector<32x1xi1> to vector<32x128xi1>
    %369 = arith.andi %367, %368 : vector<32x128xi1>
    %cst_151 = arith.constant 1.000000e+00 : f32
    %cst_152 = arith.constant 0.000000e+00 : f32
    %370 = vector.broadcast %cst_151 : f32 to vector<32x128xf32>
    %371 = vector.broadcast %cst_152 : f32 to vector<32x128xf32>
    %372 = arith.select %369, %370, %371 : vector<32x128xi1>, vector<32x128xf32>
    %373 = arith.truncf %372 : vector<32x128xf32> to vector<32x128xbf16>
    %cst_153 = arith.constant dense<0.000000e+00> : vector<32x128xf32>
    %374 = tpu.matmul %373, %308, %cst_153 {dimension_numbers = #tpu.dot_dimension_numbers<[1], [0], [0], [1], [0, 0, 1, 1], [], []>} : vector<32x128xbf16>, vector<128x128xbf16>, vector<32x128xf32> -> vector<32x128xf32>
    %375 = arith.truncf %374 : vector<32x128xf32> to vector<32x128xbf16>
    %c1_154 = arith.constant 1 : index
    %c0_155 = arith.constant 0 : index
    %c0_156 = arith.constant 0 : index
    %376 = vector.load %arg9[%c1_154, %c0_155, %c0_156] : memref<9x128x128xbf16, #tpu.memory_space<vmem>>, vector<1x128x128xbf16>
    %377 = vector.shape_cast %376 : vector<1x128x128xbf16> to vector<128x128xbf16>
    %cst_157 = arith.constant dense<0.000000e+00> : vector<32x128xf32>
    %378 = tpu.matmul %375, %377, %cst_157 {dimension_numbers = #tpu.dot_dimension_numbers<[1], [0], [0], [1], [0, 0, 1, 1], [], []>} : vector<32x128xbf16>, vector<128x128xbf16>, vector<32x128xf32> -> vector<32x128xf32>
    %379 = arith.addf %346, %378 : vector<32x128xf32>
    %c-1_i32_158 = arith.constant -1 : i32
    %380 = vector.broadcast %c-1_i32_158 : i32 to vector<32x1xi32>
    %381 = arith.addi %309, %380 : vector<32x1xi32>
    %c1_i32_159 = arith.constant 1 : i32
    %382 = vector.broadcast %c1_i32_159 : i32 to vector<32x1xi32>
    %383 = arith.addi %310, %382 : vector<32x1xi32>
    %c0_i32_160 = arith.constant 0 : i32
    %384 = vector.broadcast %c0_i32_160 : i32 to vector<32x1xi32>
    %385 = arith.cmpi sge, %381, %384 : vector<32x1xi32>
    %c8_i32_161 = arith.constant 8 : i32
    %386 = vector.broadcast %c8_i32_161 : i32 to vector<32x1xi32>
    %387 = arith.cmpi slt, %381, %386 : vector<32x1xi32>
    %388 = arith.andi %385, %387 : vector<32x1xi1>
    %c0_i32_162 = arith.constant 0 : i32
    %389 = vector.broadcast %c0_i32_162 : i32 to vector<32x1xi32>
    %390 = arith.cmpi sge, %383, %389 : vector<32x1xi32>
    %391 = arith.andi %388, %390 : vector<32x1xi1>
    %c8_i32_163 = arith.constant 8 : i32
    %392 = vector.broadcast %c8_i32_163 : i32 to vector<32x1xi32>
    %393 = arith.cmpi slt, %383, %392 : vector<32x1xi32>
    %394 = arith.andi %391, %393 : vector<32x1xi1>
    %c8_i32_164 = arith.constant 8 : i32
    %395 = vector.broadcast %c8_i32_164 : i32 to vector<32x1xi32>
    %396 = arith.muli %381, %395 : vector<32x1xi32>
    %397 = arith.addi %311, %396 : vector<32x1xi32>
    %398 = arith.addi %397, %383 : vector<32x1xi32>
    %399 = vector.broadcast %398 : vector<32x1xi32> to vector<32x128xi32>
    %400 = arith.cmpi eq, %312, %399 : vector<32x128xi32>
    %401 = vector.broadcast %394 : vector<32x1xi1> to vector<32x128xi1>
    %402 = arith.andi %400, %401 : vector<32x128xi1>
    %cst_165 = arith.constant 1.000000e+00 : f32
    %cst_166 = arith.constant 0.000000e+00 : f32
    %403 = vector.broadcast %cst_165 : f32 to vector<32x128xf32>
    %404 = vector.broadcast %cst_166 : f32 to vector<32x128xf32>
    %405 = arith.select %402, %403, %404 : vector<32x128xi1>, vector<32x128xf32>
    %406 = arith.truncf %405 : vector<32x128xf32> to vector<32x128xbf16>
    %cst_167 = arith.constant dense<0.000000e+00> : vector<32x128xf32>
    %407 = tpu.matmul %406, %308, %cst_167 {dimension_numbers = #tpu.dot_dimension_numbers<[1], [0], [0], [1], [0, 0, 1, 1], [], []>} : vector<32x128xbf16>, vector<128x128xbf16>, vector<32x128xf32> -> vector<32x128xf32>
    %408 = arith.truncf %407 : vector<32x128xf32> to vector<32x128xbf16>
    %c2_168 = arith.constant 2 : index
    %c0_169 = arith.constant 0 : index
    %c0_170 = arith.constant 0 : index
    %409 = vector.load %arg9[%c2_168, %c0_169, %c0_170] : memref<9x128x128xbf16, #tpu.memory_space<vmem>>, vector<1x128x128xbf16>
    %410 = vector.shape_cast %409 : vector<1x128x128xbf16> to vector<128x128xbf16>
    %cst_171 = arith.constant dense<0.000000e+00> : vector<32x128xf32>
    %411 = tpu.matmul %408, %410, %cst_171 {dimension_numbers = #tpu.dot_dimension_numbers<[1], [0], [0], [1], [0, 0, 1, 1], [], []>} : vector<32x128xbf16>, vector<128x128xbf16>, vector<32x128xf32> -> vector<32x128xf32>
    %412 = arith.addf %379, %411 : vector<32x128xf32>
    %c0_i32_172 = arith.constant 0 : i32
    %413 = vector.broadcast %c0_i32_172 : i32 to vector<32x1xi32>
    %414 = arith.addi %309, %413 : vector<32x1xi32>
    %c-1_i32_173 = arith.constant -1 : i32
    %415 = vector.broadcast %c-1_i32_173 : i32 to vector<32x1xi32>
    %416 = arith.addi %310, %415 : vector<32x1xi32>
    %c0_i32_174 = arith.constant 0 : i32
    %417 = vector.broadcast %c0_i32_174 : i32 to vector<32x1xi32>
    %418 = arith.cmpi sge, %414, %417 : vector<32x1xi32>
    %c8_i32_175 = arith.constant 8 : i32
    %419 = vector.broadcast %c8_i32_175 : i32 to vector<32x1xi32>
    %420 = arith.cmpi slt, %414, %419 : vector<32x1xi32>
    %421 = arith.andi %418, %420 : vector<32x1xi1>
    %c0_i32_176 = arith.constant 0 : i32
    %422 = vector.broadcast %c0_i32_176 : i32 to vector<32x1xi32>
    %423 = arith.cmpi sge, %416, %422 : vector<32x1xi32>
    %424 = arith.andi %421, %423 : vector<32x1xi1>
    %c8_i32_177 = arith.constant 8 : i32
    %425 = vector.broadcast %c8_i32_177 : i32 to vector<32x1xi32>
    %426 = arith.cmpi slt, %416, %425 : vector<32x1xi32>
    %427 = arith.andi %424, %426 : vector<32x1xi1>
    %c8_i32_178 = arith.constant 8 : i32
    %428 = vector.broadcast %c8_i32_178 : i32 to vector<32x1xi32>
    %429 = arith.muli %414, %428 : vector<32x1xi32>
    %430 = arith.addi %311, %429 : vector<32x1xi32>
    %431 = arith.addi %430, %416 : vector<32x1xi32>
    %432 = vector.broadcast %431 : vector<32x1xi32> to vector<32x128xi32>
    %433 = arith.cmpi eq, %312, %432 : vector<32x128xi32>
    %434 = vector.broadcast %427 : vector<32x1xi1> to vector<32x128xi1>
    %435 = arith.andi %433, %434 : vector<32x128xi1>
    %cst_179 = arith.constant 1.000000e+00 : f32
    %cst_180 = arith.constant 0.000000e+00 : f32
    %436 = vector.broadcast %cst_179 : f32 to vector<32x128xf32>
    %437 = vector.broadcast %cst_180 : f32 to vector<32x128xf32>
    %438 = arith.select %435, %436, %437 : vector<32x128xi1>, vector<32x128xf32>
    %439 = arith.truncf %438 : vector<32x128xf32> to vector<32x128xbf16>
    %cst_181 = arith.constant dense<0.000000e+00> : vector<32x128xf32>
    %440 = tpu.matmul %439, %308, %cst_181 {dimension_numbers = #tpu.dot_dimension_numbers<[1], [0], [0], [1], [0, 0, 1, 1], [], []>} : vector<32x128xbf16>, vector<128x128xbf16>, vector<32x128xf32> -> vector<32x128xf32>
    %441 = arith.truncf %440 : vector<32x128xf32> to vector<32x128xbf16>
    %c3_182 = arith.constant 3 : index
    %c0_183 = arith.constant 0 : index
    %c0_184 = arith.constant 0 : index
    %442 = vector.load %arg9[%c3_182, %c0_183, %c0_184] : memref<9x128x128xbf16, #tpu.memory_space<vmem>>, vector<1x128x128xbf16>
    %443 = vector.shape_cast %442 : vector<1x128x128xbf16> to vector<128x128xbf16>
    %cst_185 = arith.constant dense<0.000000e+00> : vector<32x128xf32>
    %444 = tpu.matmul %441, %443, %cst_185 {dimension_numbers = #tpu.dot_dimension_numbers<[1], [0], [0], [1], [0, 0, 1, 1], [], []>} : vector<32x128xbf16>, vector<128x128xbf16>, vector<32x128xf32> -> vector<32x128xf32>
    %445 = arith.addf %412, %444 : vector<32x128xf32>
    %c0_i32_186 = arith.constant 0 : i32
    %446 = vector.broadcast %c0_i32_186 : i32 to vector<32x1xi32>
    %447 = arith.addi %309, %446 : vector<32x1xi32>
    %c0_i32_187 = arith.constant 0 : i32
    %448 = vector.broadcast %c0_i32_187 : i32 to vector<32x1xi32>
    %449 = arith.addi %310, %448 : vector<32x1xi32>
    %c0_i32_188 = arith.constant 0 : i32
    %450 = vector.broadcast %c0_i32_188 : i32 to vector<32x1xi32>
    %451 = arith.cmpi sge, %447, %450 : vector<32x1xi32>
    %c8_i32_189 = arith.constant 8 : i32
    %452 = vector.broadcast %c8_i32_189 : i32 to vector<32x1xi32>
    %453 = arith.cmpi slt, %447, %452 : vector<32x1xi32>
    %454 = arith.andi %451, %453 : vector<32x1xi1>
    %c0_i32_190 = arith.constant 0 : i32
    %455 = vector.broadcast %c0_i32_190 : i32 to vector<32x1xi32>
    %456 = arith.cmpi sge, %449, %455 : vector<32x1xi32>
    %457 = arith.andi %454, %456 : vector<32x1xi1>
    %c8_i32_191 = arith.constant 8 : i32
    %458 = vector.broadcast %c8_i32_191 : i32 to vector<32x1xi32>
    %459 = arith.cmpi slt, %449, %458 : vector<32x1xi32>
    %460 = arith.andi %457, %459 : vector<32x1xi1>
    %c8_i32_192 = arith.constant 8 : i32
    %461 = vector.broadcast %c8_i32_192 : i32 to vector<32x1xi32>
    %462 = arith.muli %447, %461 : vector<32x1xi32>
    %463 = arith.addi %311, %462 : vector<32x1xi32>
    %464 = arith.addi %463, %449 : vector<32x1xi32>
    %465 = vector.broadcast %464 : vector<32x1xi32> to vector<32x128xi32>
    %466 = arith.cmpi eq, %312, %465 : vector<32x128xi32>
    %467 = vector.broadcast %460 : vector<32x1xi1> to vector<32x128xi1>
    %468 = arith.andi %466, %467 : vector<32x128xi1>
    %cst_193 = arith.constant 1.000000e+00 : f32
    %cst_194 = arith.constant 0.000000e+00 : f32
    %469 = vector.broadcast %cst_193 : f32 to vector<32x128xf32>
    %470 = vector.broadcast %cst_194 : f32 to vector<32x128xf32>
    %471 = arith.select %468, %469, %470 : vector<32x128xi1>, vector<32x128xf32>
    %472 = arith.truncf %471 : vector<32x128xf32> to vector<32x128xbf16>
    %cst_195 = arith.constant dense<0.000000e+00> : vector<32x128xf32>
    %473 = tpu.matmul %472, %308, %cst_195 {dimension_numbers = #tpu.dot_dimension_numbers<[1], [0], [0], [1], [0, 0, 1, 1], [], []>} : vector<32x128xbf16>, vector<128x128xbf16>, vector<32x128xf32> -> vector<32x128xf32>
    %474 = arith.truncf %473 : vector<32x128xf32> to vector<32x128xbf16>
    %c4_196 = arith.constant 4 : index
    %c0_197 = arith.constant 0 : index
    %c0_198 = arith.constant 0 : index
    %475 = vector.load %arg9[%c4_196, %c0_197, %c0_198] : memref<9x128x128xbf16, #tpu.memory_space<vmem>>, vector<1x128x128xbf16>
    %476 = vector.shape_cast %475 : vector<1x128x128xbf16> to vector<128x128xbf16>
    %cst_199 = arith.constant dense<0.000000e+00> : vector<32x128xf32>
    %477 = tpu.matmul %474, %476, %cst_199 {dimension_numbers = #tpu.dot_dimension_numbers<[1], [0], [0], [1], [0, 0, 1, 1], [], []>} : vector<32x128xbf16>, vector<128x128xbf16>, vector<32x128xf32> -> vector<32x128xf32>
    %478 = arith.addf %445, %477 : vector<32x128xf32>
    %c0_i32_200 = arith.constant 0 : i32
    %479 = vector.broadcast %c0_i32_200 : i32 to vector<32x1xi32>
    %480 = arith.addi %309, %479 : vector<32x1xi32>
    %c1_i32_201 = arith.constant 1 : i32
    %481 = vector.broadcast %c1_i32_201 : i32 to vector<32x1xi32>
    %482 = arith.addi %310, %481 : vector<32x1xi32>
    %c0_i32_202 = arith.constant 0 : i32
    %483 = vector.broadcast %c0_i32_202 : i32 to vector<32x1xi32>
    %484 = arith.cmpi sge, %480, %483 : vector<32x1xi32>
    %c8_i32_203 = arith.constant 8 : i32
    %485 = vector.broadcast %c8_i32_203 : i32 to vector<32x1xi32>
    %486 = arith.cmpi slt, %480, %485 : vector<32x1xi32>
    %487 = arith.andi %484, %486 : vector<32x1xi1>
    %c0_i32_204 = arith.constant 0 : i32
    %488 = vector.broadcast %c0_i32_204 : i32 to vector<32x1xi32>
    %489 = arith.cmpi sge, %482, %488 : vector<32x1xi32>
    %490 = arith.andi %487, %489 : vector<32x1xi1>
    %c8_i32_205 = arith.constant 8 : i32
    %491 = vector.broadcast %c8_i32_205 : i32 to vector<32x1xi32>
    %492 = arith.cmpi slt, %482, %491 : vector<32x1xi32>
    %493 = arith.andi %490, %492 : vector<32x1xi1>
    %c8_i32_206 = arith.constant 8 : i32
    %494 = vector.broadcast %c8_i32_206 : i32 to vector<32x1xi32>
    %495 = arith.muli %480, %494 : vector<32x1xi32>
    %496 = arith.addi %311, %495 : vector<32x1xi32>
    %497 = arith.addi %496, %482 : vector<32x1xi32>
    %498 = vector.broadcast %497 : vector<32x1xi32> to vector<32x128xi32>
    %499 = arith.cmpi eq, %312, %498 : vector<32x128xi32>
    %500 = vector.broadcast %493 : vector<32x1xi1> to vector<32x128xi1>
    %501 = arith.andi %499, %500 : vector<32x128xi1>
    %cst_207 = arith.constant 1.000000e+00 : f32
    %cst_208 = arith.constant 0.000000e+00 : f32
    %502 = vector.broadcast %cst_207 : f32 to vector<32x128xf32>
    %503 = vector.broadcast %cst_208 : f32 to vector<32x128xf32>
    %504 = arith.select %501, %502, %503 : vector<32x128xi1>, vector<32x128xf32>
    %505 = arith.truncf %504 : vector<32x128xf32> to vector<32x128xbf16>
    %cst_209 = arith.constant dense<0.000000e+00> : vector<32x128xf32>
    %506 = tpu.matmul %505, %308, %cst_209 {dimension_numbers = #tpu.dot_dimension_numbers<[1], [0], [0], [1], [0, 0, 1, 1], [], []>} : vector<32x128xbf16>, vector<128x128xbf16>, vector<32x128xf32> -> vector<32x128xf32>
    %507 = arith.truncf %506 : vector<32x128xf32> to vector<32x128xbf16>
    %c5_210 = arith.constant 5 : index
    %c0_211 = arith.constant 0 : index
    %c0_212 = arith.constant 0 : index
    %508 = vector.load %arg9[%c5_210, %c0_211, %c0_212] : memref<9x128x128xbf16, #tpu.memory_space<vmem>>, vector<1x128x128xbf16>
    %509 = vector.shape_cast %508 : vector<1x128x128xbf16> to vector<128x128xbf16>
    %cst_213 = arith.constant dense<0.000000e+00> : vector<32x128xf32>
    %510 = tpu.matmul %507, %509, %cst_213 {dimension_numbers = #tpu.dot_dimension_numbers<[1], [0], [0], [1], [0, 0, 1, 1], [], []>} : vector<32x128xbf16>, vector<128x128xbf16>, vector<32x128xf32> -> vector<32x128xf32>
    %511 = arith.addf %478, %510 : vector<32x128xf32>
    %c1_i32_214 = arith.constant 1 : i32
    %512 = vector.broadcast %c1_i32_214 : i32 to vector<32x1xi32>
    %513 = arith.addi %309, %512 : vector<32x1xi32>
    %c-1_i32_215 = arith.constant -1 : i32
    %514 = vector.broadcast %c-1_i32_215 : i32 to vector<32x1xi32>
    %515 = arith.addi %310, %514 : vector<32x1xi32>
    %c0_i32_216 = arith.constant 0 : i32
    %516 = vector.broadcast %c0_i32_216 : i32 to vector<32x1xi32>
    %517 = arith.cmpi sge, %513, %516 : vector<32x1xi32>
    %c8_i32_217 = arith.constant 8 : i32
    %518 = vector.broadcast %c8_i32_217 : i32 to vector<32x1xi32>
    %519 = arith.cmpi slt, %513, %518 : vector<32x1xi32>
    %520 = arith.andi %517, %519 : vector<32x1xi1>
    %c0_i32_218 = arith.constant 0 : i32
    %521 = vector.broadcast %c0_i32_218 : i32 to vector<32x1xi32>
    %522 = arith.cmpi sge, %515, %521 : vector<32x1xi32>
    %523 = arith.andi %520, %522 : vector<32x1xi1>
    %c8_i32_219 = arith.constant 8 : i32
    %524 = vector.broadcast %c8_i32_219 : i32 to vector<32x1xi32>
    %525 = arith.cmpi slt, %515, %524 : vector<32x1xi32>
    %526 = arith.andi %523, %525 : vector<32x1xi1>
    %c8_i32_220 = arith.constant 8 : i32
    %527 = vector.broadcast %c8_i32_220 : i32 to vector<32x1xi32>
    %528 = arith.muli %513, %527 : vector<32x1xi32>
    %529 = arith.addi %311, %528 : vector<32x1xi32>
    %530 = arith.addi %529, %515 : vector<32x1xi32>
    %531 = vector.broadcast %530 : vector<32x1xi32> to vector<32x128xi32>
    %532 = arith.cmpi eq, %312, %531 : vector<32x128xi32>
    %533 = vector.broadcast %526 : vector<32x1xi1> to vector<32x128xi1>
    %534 = arith.andi %532, %533 : vector<32x128xi1>
    %cst_221 = arith.constant 1.000000e+00 : f32
    %cst_222 = arith.constant 0.000000e+00 : f32
    %535 = vector.broadcast %cst_221 : f32 to vector<32x128xf32>
    %536 = vector.broadcast %cst_222 : f32 to vector<32x128xf32>
    %537 = arith.select %534, %535, %536 : vector<32x128xi1>, vector<32x128xf32>
    %538 = arith.truncf %537 : vector<32x128xf32> to vector<32x128xbf16>
    %cst_223 = arith.constant dense<0.000000e+00> : vector<32x128xf32>
    %539 = tpu.matmul %538, %308, %cst_223 {dimension_numbers = #tpu.dot_dimension_numbers<[1], [0], [0], [1], [0, 0, 1, 1], [], []>} : vector<32x128xbf16>, vector<128x128xbf16>, vector<32x128xf32> -> vector<32x128xf32>
    %540 = arith.truncf %539 : vector<32x128xf32> to vector<32x128xbf16>
    %c6_224 = arith.constant 6 : index
    %c0_225 = arith.constant 0 : index
    %c0_226 = arith.constant 0 : index
    %541 = vector.load %arg9[%c6_224, %c0_225, %c0_226] : memref<9x128x128xbf16, #tpu.memory_space<vmem>>, vector<1x128x128xbf16>
    %542 = vector.shape_cast %541 : vector<1x128x128xbf16> to vector<128x128xbf16>
    %cst_227 = arith.constant dense<0.000000e+00> : vector<32x128xf32>
    %543 = tpu.matmul %540, %542, %cst_227 {dimension_numbers = #tpu.dot_dimension_numbers<[1], [0], [0], [1], [0, 0, 1, 1], [], []>} : vector<32x128xbf16>, vector<128x128xbf16>, vector<32x128xf32> -> vector<32x128xf32>
    %544 = arith.addf %511, %543 : vector<32x128xf32>
    %c1_i32_228 = arith.constant 1 : i32
    %545 = vector.broadcast %c1_i32_228 : i32 to vector<32x1xi32>
    %546 = arith.addi %309, %545 : vector<32x1xi32>
    %c0_i32_229 = arith.constant 0 : i32
    %547 = vector.broadcast %c0_i32_229 : i32 to vector<32x1xi32>
    %548 = arith.addi %310, %547 : vector<32x1xi32>
    %c0_i32_230 = arith.constant 0 : i32
    %549 = vector.broadcast %c0_i32_230 : i32 to vector<32x1xi32>
    %550 = arith.cmpi sge, %546, %549 : vector<32x1xi32>
    %c8_i32_231 = arith.constant 8 : i32
    %551 = vector.broadcast %c8_i32_231 : i32 to vector<32x1xi32>
    %552 = arith.cmpi slt, %546, %551 : vector<32x1xi32>
    %553 = arith.andi %550, %552 : vector<32x1xi1>
    %c0_i32_232 = arith.constant 0 : i32
    %554 = vector.broadcast %c0_i32_232 : i32 to vector<32x1xi32>
    %555 = arith.cmpi sge, %548, %554 : vector<32x1xi32>
    %556 = arith.andi %553, %555 : vector<32x1xi1>
    %c8_i32_233 = arith.constant 8 : i32
    %557 = vector.broadcast %c8_i32_233 : i32 to vector<32x1xi32>
    %558 = arith.cmpi slt, %548, %557 : vector<32x1xi32>
    %559 = arith.andi %556, %558 : vector<32x1xi1>
    %c8_i32_234 = arith.constant 8 : i32
    %560 = vector.broadcast %c8_i32_234 : i32 to vector<32x1xi32>
    %561 = arith.muli %546, %560 : vector<32x1xi32>
    %562 = arith.addi %311, %561 : vector<32x1xi32>
    %563 = arith.addi %562, %548 : vector<32x1xi32>
    %564 = vector.broadcast %563 : vector<32x1xi32> to vector<32x128xi32>
    %565 = arith.cmpi eq, %312, %564 : vector<32x128xi32>
    %566 = vector.broadcast %559 : vector<32x1xi1> to vector<32x128xi1>
    %567 = arith.andi %565, %566 : vector<32x128xi1>
    %cst_235 = arith.constant 1.000000e+00 : f32
    %cst_236 = arith.constant 0.000000e+00 : f32
    %568 = vector.broadcast %cst_235 : f32 to vector<32x128xf32>
    %569 = vector.broadcast %cst_236 : f32 to vector<32x128xf32>
    %570 = arith.select %567, %568, %569 : vector<32x128xi1>, vector<32x128xf32>
    %571 = arith.truncf %570 : vector<32x128xf32> to vector<32x128xbf16>
    %cst_237 = arith.constant dense<0.000000e+00> : vector<32x128xf32>
    %572 = tpu.matmul %571, %308, %cst_237 {dimension_numbers = #tpu.dot_dimension_numbers<[1], [0], [0], [1], [0, 0, 1, 1], [], []>} : vector<32x128xbf16>, vector<128x128xbf16>, vector<32x128xf32> -> vector<32x128xf32>
    %573 = arith.truncf %572 : vector<32x128xf32> to vector<32x128xbf16>
    %c7_238 = arith.constant 7 : index
    %c0_239 = arith.constant 0 : index
    %c0_240 = arith.constant 0 : index
    %574 = vector.load %arg9[%c7_238, %c0_239, %c0_240] : memref<9x128x128xbf16, #tpu.memory_space<vmem>>, vector<1x128x128xbf16>
    %575 = vector.shape_cast %574 : vector<1x128x128xbf16> to vector<128x128xbf16>
    %cst_241 = arith.constant dense<0.000000e+00> : vector<32x128xf32>
    %576 = tpu.matmul %573, %575, %cst_241 {dimension_numbers = #tpu.dot_dimension_numbers<[1], [0], [0], [1], [0, 0, 1, 1], [], []>} : vector<32x128xbf16>, vector<128x128xbf16>, vector<32x128xf32> -> vector<32x128xf32>
    %577 = arith.addf %544, %576 : vector<32x128xf32>
    %c1_i32_242 = arith.constant 1 : i32
    %578 = vector.broadcast %c1_i32_242 : i32 to vector<32x1xi32>
    %579 = arith.addi %309, %578 : vector<32x1xi32>
    %c1_i32_243 = arith.constant 1 : i32
    %580 = vector.broadcast %c1_i32_243 : i32 to vector<32x1xi32>
    %581 = arith.addi %310, %580 : vector<32x1xi32>
    %c0_i32_244 = arith.constant 0 : i32
    %582 = vector.broadcast %c0_i32_244 : i32 to vector<32x1xi32>
    %583 = arith.cmpi sge, %579, %582 : vector<32x1xi32>
    %c8_i32_245 = arith.constant 8 : i32
    %584 = vector.broadcast %c8_i32_245 : i32 to vector<32x1xi32>
    %585 = arith.cmpi slt, %579, %584 : vector<32x1xi32>
    %586 = arith.andi %583, %585 : vector<32x1xi1>
    %c0_i32_246 = arith.constant 0 : i32
    %587 = vector.broadcast %c0_i32_246 : i32 to vector<32x1xi32>
    %588 = arith.cmpi sge, %581, %587 : vector<32x1xi32>
    %589 = arith.andi %586, %588 : vector<32x1xi1>
    %c8_i32_247 = arith.constant 8 : i32
    %590 = vector.broadcast %c8_i32_247 : i32 to vector<32x1xi32>
    %591 = arith.cmpi slt, %581, %590 : vector<32x1xi32>
    %592 = arith.andi %589, %591 : vector<32x1xi1>
    %c8_i32_248 = arith.constant 8 : i32
    %593 = vector.broadcast %c8_i32_248 : i32 to vector<32x1xi32>
    %594 = arith.muli %579, %593 : vector<32x1xi32>
    %595 = arith.addi %311, %594 : vector<32x1xi32>
    %596 = arith.addi %595, %581 : vector<32x1xi32>
    %597 = vector.broadcast %596 : vector<32x1xi32> to vector<32x128xi32>
    %598 = arith.cmpi eq, %312, %597 : vector<32x128xi32>
    %599 = vector.broadcast %592 : vector<32x1xi1> to vector<32x128xi1>
    %600 = arith.andi %598, %599 : vector<32x128xi1>
    %cst_249 = arith.constant 1.000000e+00 : f32
    %cst_250 = arith.constant 0.000000e+00 : f32
    %601 = vector.broadcast %cst_249 : f32 to vector<32x128xf32>
    %602 = vector.broadcast %cst_250 : f32 to vector<32x128xf32>
    %603 = arith.select %600, %601, %602 : vector<32x128xi1>, vector<32x128xf32>
    %604 = arith.truncf %603 : vector<32x128xf32> to vector<32x128xbf16>
    %cst_251 = arith.constant dense<0.000000e+00> : vector<32x128xf32>
    %605 = tpu.matmul %604, %308, %cst_251 {dimension_numbers = #tpu.dot_dimension_numbers<[1], [0], [0], [1], [0, 0, 1, 1], [], []>} : vector<32x128xbf16>, vector<128x128xbf16>, vector<32x128xf32> -> vector<32x128xf32>
    %606 = arith.truncf %605 : vector<32x128xf32> to vector<32x128xbf16>
    %c8_252 = arith.constant 8 : index
    %c0_253 = arith.constant 0 : index
    %c0_254 = arith.constant 0 : index
    %607 = vector.load %arg9[%c8_252, %c0_253, %c0_254] : memref<9x128x128xbf16, #tpu.memory_space<vmem>>, vector<1x128x128xbf16>
    %608 = vector.shape_cast %607 : vector<1x128x128xbf16> to vector<128x128xbf16>
    %cst_255 = arith.constant dense<0.000000e+00> : vector<32x128xf32>
    %609 = tpu.matmul %606, %608, %cst_255 {dimension_numbers = #tpu.dot_dimension_numbers<[1], [0], [0], [1], [0, 0, 1, 1], [], []>} : vector<32x128xbf16>, vector<128x128xbf16>, vector<32x128xf32> -> vector<32x128xf32>
    %610 = arith.addf %577, %609 : vector<32x128xf32>
    %c0_256 = arith.constant 0 : index
    %c0_257 = arith.constant 0 : index
    %611 = vector.load %arg10[%c0_256, %c0_257] : memref<1x128xf32, #tpu.memory_space<vmem>>, vector<1x128xf32>
    %612 = vector.broadcast %611 : vector<1x128xf32> to vector<32x128xf32>
    %613 = arith.addf %610, %612 : vector<32x128xf32>
    %cst_258 = arith.constant 0.000000e+00 : f32
    %614 = vector.broadcast %cst_258 : f32 to vector<32x128xf32>
    %615 = arith.maximumf %613, %614 : vector<32x128xf32>
    %616 = arith.truncf %615 : vector<32x128xf32> to vector<32x128xbf16>
    %c0_259 = arith.constant 0 : index
    %c0_260 = arith.constant 0 : index
    %617 = vector.load %arg11[%c0_259, %c0_260] : memref<8x1xi32, #tpu.memory_space<vmem>>, vector<8x1xi32>
    %c0_261 = arith.constant 0 : index
    %c0_262 = arith.constant 0 : index
    %618 = vector.load %arg12[%c0_261, %c0_262] : memref<8x1xi32, #tpu.memory_space<vmem>>, vector<8x1xi32>
    %c0_263 = arith.constant 0 : index
    %c0_264 = arith.constant 0 : index
    %619 = vector.load %arg13[%c0_263, %c0_264] : memref<8x1xi32, #tpu.memory_space<vmem>>, vector<8x1xi32>
    %620 = tpu.iota {dimensions = array<i32: 1>} : vector<8x32xi32>
    %cst_265 = arith.constant 0.000000e+00 : f32
    %621 = vector.broadcast %cst_265 : f32 to vector<8x128xf32>
    %c-1_i32_266 = arith.constant -1 : i32
    %622 = vector.broadcast %c-1_i32_266 : i32 to vector<8x1xi32>
    %623 = arith.addi %617, %622 : vector<8x1xi32>
    %c-1_i32_267 = arith.constant -1 : i32
    %624 = vector.broadcast %c-1_i32_267 : i32 to vector<8x1xi32>
    %625 = arith.addi %618, %624 : vector<8x1xi32>
    %c0_i32_268 = arith.constant 0 : i32
    %626 = vector.broadcast %c0_i32_268 : i32 to vector<8x1xi32>
    %627 = arith.cmpi sge, %623, %626 : vector<8x1xi32>
    %c4_i32 = arith.constant 4 : i32
    %628 = vector.broadcast %c4_i32 : i32 to vector<8x1xi32>
    %629 = arith.cmpi slt, %623, %628 : vector<8x1xi32>
    %630 = arith.andi %627, %629 : vector<8x1xi1>
    %c0_i32_269 = arith.constant 0 : i32
    %631 = vector.broadcast %c0_i32_269 : i32 to vector<8x1xi32>
    %632 = arith.cmpi sge, %625, %631 : vector<8x1xi32>
    %633 = arith.andi %630, %632 : vector<8x1xi1>
    %c4_i32_270 = arith.constant 4 : i32
    %634 = vector.broadcast %c4_i32_270 : i32 to vector<8x1xi32>
    %635 = arith.cmpi slt, %625, %634 : vector<8x1xi32>
    %636 = arith.andi %633, %635 : vector<8x1xi1>
    %c4_i32_271 = arith.constant 4 : i32
    %637 = vector.broadcast %c4_i32_271 : i32 to vector<8x1xi32>
    %638 = arith.muli %623, %637 : vector<8x1xi32>
    %639 = arith.addi %619, %638 : vector<8x1xi32>
    %640 = arith.addi %639, %625 : vector<8x1xi32>
    %641 = vector.broadcast %640 : vector<8x1xi32> to vector<8x32xi32>
    %642 = arith.cmpi eq, %620, %641 : vector<8x32xi32>
    %643 = vector.broadcast %636 : vector<8x1xi1> to vector<8x32xi1>
    %644 = arith.andi %642, %643 : vector<8x32xi1>
    %cst_272 = arith.constant 1.000000e+00 : f32
    %cst_273 = arith.constant 0.000000e+00 : f32
    %645 = vector.broadcast %cst_272 : f32 to vector<8x32xf32>
    %646 = vector.broadcast %cst_273 : f32 to vector<8x32xf32>
    %647 = arith.select %644, %645, %646 : vector<8x32xi1>, vector<8x32xf32>
    %648 = arith.truncf %647 : vector<8x32xf32> to vector<8x32xbf16>
    %cst_274 = arith.constant dense<0.000000e+00> : vector<8x128xf32>
    %649 = tpu.matmul %648, %616, %cst_274 {dimension_numbers = #tpu.dot_dimension_numbers<[1], [0], [0], [1], [0, 0, 1, 1], [], []>} : vector<8x32xbf16>, vector<32x128xbf16>, vector<8x128xf32> -> vector<8x128xf32>
    %650 = arith.truncf %649 : vector<8x128xf32> to vector<8x128xbf16>
    %c0_275 = arith.constant 0 : index
    %c0_276 = arith.constant 0 : index
    %c0_277 = arith.constant 0 : index
    %651 = vector.load %arg14[%c0_275, %c0_276, %c0_277] : memref<9x128x128xbf16, #tpu.memory_space<vmem>>, vector<1x128x128xbf16>
    %652 = vector.shape_cast %651 : vector<1x128x128xbf16> to vector<128x128xbf16>
    %cst_278 = arith.constant dense<0.000000e+00> : vector<8x128xf32>
    %653 = tpu.matmul %650, %652, %cst_278 {dimension_numbers = #tpu.dot_dimension_numbers<[1], [0], [0], [1], [0, 0, 1, 1], [], []>} : vector<8x128xbf16>, vector<128x128xbf16>, vector<8x128xf32> -> vector<8x128xf32>
    %654 = arith.addf %621, %653 : vector<8x128xf32>
    %c-1_i32_279 = arith.constant -1 : i32
    %655 = vector.broadcast %c-1_i32_279 : i32 to vector<8x1xi32>
    %656 = arith.addi %617, %655 : vector<8x1xi32>
    %c0_i32_280 = arith.constant 0 : i32
    %657 = vector.broadcast %c0_i32_280 : i32 to vector<8x1xi32>
    %658 = arith.addi %618, %657 : vector<8x1xi32>
    %c0_i32_281 = arith.constant 0 : i32
    %659 = vector.broadcast %c0_i32_281 : i32 to vector<8x1xi32>
    %660 = arith.cmpi sge, %656, %659 : vector<8x1xi32>
    %c4_i32_282 = arith.constant 4 : i32
    %661 = vector.broadcast %c4_i32_282 : i32 to vector<8x1xi32>
    %662 = arith.cmpi slt, %656, %661 : vector<8x1xi32>
    %663 = arith.andi %660, %662 : vector<8x1xi1>
    %c0_i32_283 = arith.constant 0 : i32
    %664 = vector.broadcast %c0_i32_283 : i32 to vector<8x1xi32>
    %665 = arith.cmpi sge, %658, %664 : vector<8x1xi32>
    %666 = arith.andi %663, %665 : vector<8x1xi1>
    %c4_i32_284 = arith.constant 4 : i32
    %667 = vector.broadcast %c4_i32_284 : i32 to vector<8x1xi32>
    %668 = arith.cmpi slt, %658, %667 : vector<8x1xi32>
    %669 = arith.andi %666, %668 : vector<8x1xi1>
    %c4_i32_285 = arith.constant 4 : i32
    %670 = vector.broadcast %c4_i32_285 : i32 to vector<8x1xi32>
    %671 = arith.muli %656, %670 : vector<8x1xi32>
    %672 = arith.addi %619, %671 : vector<8x1xi32>
    %673 = arith.addi %672, %658 : vector<8x1xi32>
    %674 = vector.broadcast %673 : vector<8x1xi32> to vector<8x32xi32>
    %675 = arith.cmpi eq, %620, %674 : vector<8x32xi32>
    %676 = vector.broadcast %669 : vector<8x1xi1> to vector<8x32xi1>
    %677 = arith.andi %675, %676 : vector<8x32xi1>
    %cst_286 = arith.constant 1.000000e+00 : f32
    %cst_287 = arith.constant 0.000000e+00 : f32
    %678 = vector.broadcast %cst_286 : f32 to vector<8x32xf32>
    %679 = vector.broadcast %cst_287 : f32 to vector<8x32xf32>
    %680 = arith.select %677, %678, %679 : vector<8x32xi1>, vector<8x32xf32>
    %681 = arith.truncf %680 : vector<8x32xf32> to vector<8x32xbf16>
    %cst_288 = arith.constant dense<0.000000e+00> : vector<8x128xf32>
    %682 = tpu.matmul %681, %616, %cst_288 {dimension_numbers = #tpu.dot_dimension_numbers<[1], [0], [0], [1], [0, 0, 1, 1], [], []>} : vector<8x32xbf16>, vector<32x128xbf16>, vector<8x128xf32> -> vector<8x128xf32>
    %683 = arith.truncf %682 : vector<8x128xf32> to vector<8x128xbf16>
    %c1_289 = arith.constant 1 : index
    %c0_290 = arith.constant 0 : index
    %c0_291 = arith.constant 0 : index
    %684 = vector.load %arg14[%c1_289, %c0_290, %c0_291] : memref<9x128x128xbf16, #tpu.memory_space<vmem>>, vector<1x128x128xbf16>
    %685 = vector.shape_cast %684 : vector<1x128x128xbf16> to vector<128x128xbf16>
    %cst_292 = arith.constant dense<0.000000e+00> : vector<8x128xf32>
    %686 = tpu.matmul %683, %685, %cst_292 {dimension_numbers = #tpu.dot_dimension_numbers<[1], [0], [0], [1], [0, 0, 1, 1], [], []>} : vector<8x128xbf16>, vector<128x128xbf16>, vector<8x128xf32> -> vector<8x128xf32>
    %687 = arith.addf %654, %686 : vector<8x128xf32>
    %c-1_i32_293 = arith.constant -1 : i32
    %688 = vector.broadcast %c-1_i32_293 : i32 to vector<8x1xi32>
    %689 = arith.addi %617, %688 : vector<8x1xi32>
    %c1_i32_294 = arith.constant 1 : i32
    %690 = vector.broadcast %c1_i32_294 : i32 to vector<8x1xi32>
    %691 = arith.addi %618, %690 : vector<8x1xi32>
    %c0_i32_295 = arith.constant 0 : i32
    %692 = vector.broadcast %c0_i32_295 : i32 to vector<8x1xi32>
    %693 = arith.cmpi sge, %689, %692 : vector<8x1xi32>
    %c4_i32_296 = arith.constant 4 : i32
    %694 = vector.broadcast %c4_i32_296 : i32 to vector<8x1xi32>
    %695 = arith.cmpi slt, %689, %694 : vector<8x1xi32>
    %696 = arith.andi %693, %695 : vector<8x1xi1>
    %c0_i32_297 = arith.constant 0 : i32
    %697 = vector.broadcast %c0_i32_297 : i32 to vector<8x1xi32>
    %698 = arith.cmpi sge, %691, %697 : vector<8x1xi32>
    %699 = arith.andi %696, %698 : vector<8x1xi1>
    %c4_i32_298 = arith.constant 4 : i32
    %700 = vector.broadcast %c4_i32_298 : i32 to vector<8x1xi32>
    %701 = arith.cmpi slt, %691, %700 : vector<8x1xi32>
    %702 = arith.andi %699, %701 : vector<8x1xi1>
    %c4_i32_299 = arith.constant 4 : i32
    %703 = vector.broadcast %c4_i32_299 : i32 to vector<8x1xi32>
    %704 = arith.muli %689, %703 : vector<8x1xi32>
    %705 = arith.addi %619, %704 : vector<8x1xi32>
    %706 = arith.addi %705, %691 : vector<8x1xi32>
    %707 = vector.broadcast %706 : vector<8x1xi32> to vector<8x32xi32>
    %708 = arith.cmpi eq, %620, %707 : vector<8x32xi32>
    %709 = vector.broadcast %702 : vector<8x1xi1> to vector<8x32xi1>
    %710 = arith.andi %708, %709 : vector<8x32xi1>
    %cst_300 = arith.constant 1.000000e+00 : f32
    %cst_301 = arith.constant 0.000000e+00 : f32
    %711 = vector.broadcast %cst_300 : f32 to vector<8x32xf32>
    %712 = vector.broadcast %cst_301 : f32 to vector<8x32xf32>
    %713 = arith.select %710, %711, %712 : vector<8x32xi1>, vector<8x32xf32>
    %714 = arith.truncf %713 : vector<8x32xf32> to vector<8x32xbf16>
    %cst_302 = arith.constant dense<0.000000e+00> : vector<8x128xf32>
    %715 = tpu.matmul %714, %616, %cst_302 {dimension_numbers = #tpu.dot_dimension_numbers<[1], [0], [0], [1], [0, 0, 1, 1], [], []>} : vector<8x32xbf16>, vector<32x128xbf16>, vector<8x128xf32> -> vector<8x128xf32>
    %716 = arith.truncf %715 : vector<8x128xf32> to vector<8x128xbf16>
    %c2_303 = arith.constant 2 : index
    %c0_304 = arith.constant 0 : index
    %c0_305 = arith.constant 0 : index
    %717 = vector.load %arg14[%c2_303, %c0_304, %c0_305] : memref<9x128x128xbf16, #tpu.memory_space<vmem>>, vector<1x128x128xbf16>
    %718 = vector.shape_cast %717 : vector<1x128x128xbf16> to vector<128x128xbf16>
    %cst_306 = arith.constant dense<0.000000e+00> : vector<8x128xf32>
    %719 = tpu.matmul %716, %718, %cst_306 {dimension_numbers = #tpu.dot_dimension_numbers<[1], [0], [0], [1], [0, 0, 1, 1], [], []>} : vector<8x128xbf16>, vector<128x128xbf16>, vector<8x128xf32> -> vector<8x128xf32>
    %720 = arith.addf %687, %719 : vector<8x128xf32>
    %c0_i32_307 = arith.constant 0 : i32
    %721 = vector.broadcast %c0_i32_307 : i32 to vector<8x1xi32>
    %722 = arith.addi %617, %721 : vector<8x1xi32>
    %c-1_i32_308 = arith.constant -1 : i32
    %723 = vector.broadcast %c-1_i32_308 : i32 to vector<8x1xi32>
    %724 = arith.addi %618, %723 : vector<8x1xi32>
    %c0_i32_309 = arith.constant 0 : i32
    %725 = vector.broadcast %c0_i32_309 : i32 to vector<8x1xi32>
    %726 = arith.cmpi sge, %722, %725 : vector<8x1xi32>
    %c4_i32_310 = arith.constant 4 : i32
    %727 = vector.broadcast %c4_i32_310 : i32 to vector<8x1xi32>
    %728 = arith.cmpi slt, %722, %727 : vector<8x1xi32>
    %729 = arith.andi %726, %728 : vector<8x1xi1>
    %c0_i32_311 = arith.constant 0 : i32
    %730 = vector.broadcast %c0_i32_311 : i32 to vector<8x1xi32>
    %731 = arith.cmpi sge, %724, %730 : vector<8x1xi32>
    %732 = arith.andi %729, %731 : vector<8x1xi1>
    %c4_i32_312 = arith.constant 4 : i32
    %733 = vector.broadcast %c4_i32_312 : i32 to vector<8x1xi32>
    %734 = arith.cmpi slt, %724, %733 : vector<8x1xi32>
    %735 = arith.andi %732, %734 : vector<8x1xi1>
    %c4_i32_313 = arith.constant 4 : i32
    %736 = vector.broadcast %c4_i32_313 : i32 to vector<8x1xi32>
    %737 = arith.muli %722, %736 : vector<8x1xi32>
    %738 = arith.addi %619, %737 : vector<8x1xi32>
    %739 = arith.addi %738, %724 : vector<8x1xi32>
    %740 = vector.broadcast %739 : vector<8x1xi32> to vector<8x32xi32>
    %741 = arith.cmpi eq, %620, %740 : vector<8x32xi32>
    %742 = vector.broadcast %735 : vector<8x1xi1> to vector<8x32xi1>
    %743 = arith.andi %741, %742 : vector<8x32xi1>
    %cst_314 = arith.constant 1.000000e+00 : f32
    %cst_315 = arith.constant 0.000000e+00 : f32
    %744 = vector.broadcast %cst_314 : f32 to vector<8x32xf32>
    %745 = vector.broadcast %cst_315 : f32 to vector<8x32xf32>
    %746 = arith.select %743, %744, %745 : vector<8x32xi1>, vector<8x32xf32>
    %747 = arith.truncf %746 : vector<8x32xf32> to vector<8x32xbf16>
    %cst_316 = arith.constant dense<0.000000e+00> : vector<8x128xf32>
    %748 = tpu.matmul %747, %616, %cst_316 {dimension_numbers = #tpu.dot_dimension_numbers<[1], [0], [0], [1], [0, 0, 1, 1], [], []>} : vector<8x32xbf16>, vector<32x128xbf16>, vector<8x128xf32> -> vector<8x128xf32>
    %749 = arith.truncf %748 : vector<8x128xf32> to vector<8x128xbf16>
    %c3_317 = arith.constant 3 : index
    %c0_318 = arith.constant 0 : index
    %c0_319 = arith.constant 0 : index
    %750 = vector.load %arg14[%c3_317, %c0_318, %c0_319] : memref<9x128x128xbf16, #tpu.memory_space<vmem>>, vector<1x128x128xbf16>
    %751 = vector.shape_cast %750 : vector<1x128x128xbf16> to vector<128x128xbf16>
    %cst_320 = arith.constant dense<0.000000e+00> : vector<8x128xf32>
    %752 = tpu.matmul %749, %751, %cst_320 {dimension_numbers = #tpu.dot_dimension_numbers<[1], [0], [0], [1], [0, 0, 1, 1], [], []>} : vector<8x128xbf16>, vector<128x128xbf16>, vector<8x128xf32> -> vector<8x128xf32>
    %753 = arith.addf %720, %752 : vector<8x128xf32>
    %c0_i32_321 = arith.constant 0 : i32
    %754 = vector.broadcast %c0_i32_321 : i32 to vector<8x1xi32>
    %755 = arith.addi %617, %754 : vector<8x1xi32>
    %c0_i32_322 = arith.constant 0 : i32
    %756 = vector.broadcast %c0_i32_322 : i32 to vector<8x1xi32>
    %757 = arith.addi %618, %756 : vector<8x1xi32>
    %c0_i32_323 = arith.constant 0 : i32
    %758 = vector.broadcast %c0_i32_323 : i32 to vector<8x1xi32>
    %759 = arith.cmpi sge, %755, %758 : vector<8x1xi32>
    %c4_i32_324 = arith.constant 4 : i32
    %760 = vector.broadcast %c4_i32_324 : i32 to vector<8x1xi32>
    %761 = arith.cmpi slt, %755, %760 : vector<8x1xi32>
    %762 = arith.andi %759, %761 : vector<8x1xi1>
    %c0_i32_325 = arith.constant 0 : i32
    %763 = vector.broadcast %c0_i32_325 : i32 to vector<8x1xi32>
    %764 = arith.cmpi sge, %757, %763 : vector<8x1xi32>
    %765 = arith.andi %762, %764 : vector<8x1xi1>
    %c4_i32_326 = arith.constant 4 : i32
    %766 = vector.broadcast %c4_i32_326 : i32 to vector<8x1xi32>
    %767 = arith.cmpi slt, %757, %766 : vector<8x1xi32>
    %768 = arith.andi %765, %767 : vector<8x1xi1>
    %c4_i32_327 = arith.constant 4 : i32
    %769 = vector.broadcast %c4_i32_327 : i32 to vector<8x1xi32>
    %770 = arith.muli %755, %769 : vector<8x1xi32>
    %771 = arith.addi %619, %770 : vector<8x1xi32>
    %772 = arith.addi %771, %757 : vector<8x1xi32>
    %773 = vector.broadcast %772 : vector<8x1xi32> to vector<8x32xi32>
    %774 = arith.cmpi eq, %620, %773 : vector<8x32xi32>
    %775 = vector.broadcast %768 : vector<8x1xi1> to vector<8x32xi1>
    %776 = arith.andi %774, %775 : vector<8x32xi1>
    %cst_328 = arith.constant 1.000000e+00 : f32
    %cst_329 = arith.constant 0.000000e+00 : f32
    %777 = vector.broadcast %cst_328 : f32 to vector<8x32xf32>
    %778 = vector.broadcast %cst_329 : f32 to vector<8x32xf32>
    %779 = arith.select %776, %777, %778 : vector<8x32xi1>, vector<8x32xf32>
    %780 = arith.truncf %779 : vector<8x32xf32> to vector<8x32xbf16>
    %cst_330 = arith.constant dense<0.000000e+00> : vector<8x128xf32>
    %781 = tpu.matmul %780, %616, %cst_330 {dimension_numbers = #tpu.dot_dimension_numbers<[1], [0], [0], [1], [0, 0, 1, 1], [], []>} : vector<8x32xbf16>, vector<32x128xbf16>, vector<8x128xf32> -> vector<8x128xf32>
    %782 = arith.truncf %781 : vector<8x128xf32> to vector<8x128xbf16>
    %c4_331 = arith.constant 4 : index
    %c0_332 = arith.constant 0 : index
    %c0_333 = arith.constant 0 : index
    %783 = vector.load %arg14[%c4_331, %c0_332, %c0_333] : memref<9x128x128xbf16, #tpu.memory_space<vmem>>, vector<1x128x128xbf16>
    %784 = vector.shape_cast %783 : vector<1x128x128xbf16> to vector<128x128xbf16>
    %cst_334 = arith.constant dense<0.000000e+00> : vector<8x128xf32>
    %785 = tpu.matmul %782, %784, %cst_334 {dimension_numbers = #tpu.dot_dimension_numbers<[1], [0], [0], [1], [0, 0, 1, 1], [], []>} : vector<8x128xbf16>, vector<128x128xbf16>, vector<8x128xf32> -> vector<8x128xf32>
    %786 = arith.addf %753, %785 : vector<8x128xf32>
    %c0_i32_335 = arith.constant 0 : i32
    %787 = vector.broadcast %c0_i32_335 : i32 to vector<8x1xi32>
    %788 = arith.addi %617, %787 : vector<8x1xi32>
    %c1_i32_336 = arith.constant 1 : i32
    %789 = vector.broadcast %c1_i32_336 : i32 to vector<8x1xi32>
    %790 = arith.addi %618, %789 : vector<8x1xi32>
    %c0_i32_337 = arith.constant 0 : i32
    %791 = vector.broadcast %c0_i32_337 : i32 to vector<8x1xi32>
    %792 = arith.cmpi sge, %788, %791 : vector<8x1xi32>
    %c4_i32_338 = arith.constant 4 : i32
    %793 = vector.broadcast %c4_i32_338 : i32 to vector<8x1xi32>
    %794 = arith.cmpi slt, %788, %793 : vector<8x1xi32>
    %795 = arith.andi %792, %794 : vector<8x1xi1>
    %c0_i32_339 = arith.constant 0 : i32
    %796 = vector.broadcast %c0_i32_339 : i32 to vector<8x1xi32>
    %797 = arith.cmpi sge, %790, %796 : vector<8x1xi32>
    %798 = arith.andi %795, %797 : vector<8x1xi1>
    %c4_i32_340 = arith.constant 4 : i32
    %799 = vector.broadcast %c4_i32_340 : i32 to vector<8x1xi32>
    %800 = arith.cmpi slt, %790, %799 : vector<8x1xi32>
    %801 = arith.andi %798, %800 : vector<8x1xi1>
    %c4_i32_341 = arith.constant 4 : i32
    %802 = vector.broadcast %c4_i32_341 : i32 to vector<8x1xi32>
    %803 = arith.muli %788, %802 : vector<8x1xi32>
    %804 = arith.addi %619, %803 : vector<8x1xi32>
    %805 = arith.addi %804, %790 : vector<8x1xi32>
    %806 = vector.broadcast %805 : vector<8x1xi32> to vector<8x32xi32>
    %807 = arith.cmpi eq, %620, %806 : vector<8x32xi32>
    %808 = vector.broadcast %801 : vector<8x1xi1> to vector<8x32xi1>
    %809 = arith.andi %807, %808 : vector<8x32xi1>
    %cst_342 = arith.constant 1.000000e+00 : f32
    %cst_343 = arith.constant 0.000000e+00 : f32
    %810 = vector.broadcast %cst_342 : f32 to vector<8x32xf32>
    %811 = vector.broadcast %cst_343 : f32 to vector<8x32xf32>
    %812 = arith.select %809, %810, %811 : vector<8x32xi1>, vector<8x32xf32>
    %813 = arith.truncf %812 : vector<8x32xf32> to vector<8x32xbf16>
    %cst_344 = arith.constant dense<0.000000e+00> : vector<8x128xf32>
    %814 = tpu.matmul %813, %616, %cst_344 {dimension_numbers = #tpu.dot_dimension_numbers<[1], [0], [0], [1], [0, 0, 1, 1], [], []>} : vector<8x32xbf16>, vector<32x128xbf16>, vector<8x128xf32> -> vector<8x128xf32>
    %815 = arith.truncf %814 : vector<8x128xf32> to vector<8x128xbf16>
    %c5_345 = arith.constant 5 : index
    %c0_346 = arith.constant 0 : index
    %c0_347 = arith.constant 0 : index
    %816 = vector.load %arg14[%c5_345, %c0_346, %c0_347] : memref<9x128x128xbf16, #tpu.memory_space<vmem>>, vector<1x128x128xbf16>
    %817 = vector.shape_cast %816 : vector<1x128x128xbf16> to vector<128x128xbf16>
    %cst_348 = arith.constant dense<0.000000e+00> : vector<8x128xf32>
    %818 = tpu.matmul %815, %817, %cst_348 {dimension_numbers = #tpu.dot_dimension_numbers<[1], [0], [0], [1], [0, 0, 1, 1], [], []>} : vector<8x128xbf16>, vector<128x128xbf16>, vector<8x128xf32> -> vector<8x128xf32>
    %819 = arith.addf %786, %818 : vector<8x128xf32>
    %c1_i32_349 = arith.constant 1 : i32
    %820 = vector.broadcast %c1_i32_349 : i32 to vector<8x1xi32>
    %821 = arith.addi %617, %820 : vector<8x1xi32>
    %c-1_i32_350 = arith.constant -1 : i32
    %822 = vector.broadcast %c-1_i32_350 : i32 to vector<8x1xi32>
    %823 = arith.addi %618, %822 : vector<8x1xi32>
    %c0_i32_351 = arith.constant 0 : i32
    %824 = vector.broadcast %c0_i32_351 : i32 to vector<8x1xi32>
    %825 = arith.cmpi sge, %821, %824 : vector<8x1xi32>
    %c4_i32_352 = arith.constant 4 : i32
    %826 = vector.broadcast %c4_i32_352 : i32 to vector<8x1xi32>
    %827 = arith.cmpi slt, %821, %826 : vector<8x1xi32>
    %828 = arith.andi %825, %827 : vector<8x1xi1>
    %c0_i32_353 = arith.constant 0 : i32
    %829 = vector.broadcast %c0_i32_353 : i32 to vector<8x1xi32>
    %830 = arith.cmpi sge, %823, %829 : vector<8x1xi32>
    %831 = arith.andi %828, %830 : vector<8x1xi1>
    %c4_i32_354 = arith.constant 4 : i32
    %832 = vector.broadcast %c4_i32_354 : i32 to vector<8x1xi32>
    %833 = arith.cmpi slt, %823, %832 : vector<8x1xi32>
    %834 = arith.andi %831, %833 : vector<8x1xi1>
    %c4_i32_355 = arith.constant 4 : i32
    %835 = vector.broadcast %c4_i32_355 : i32 to vector<8x1xi32>
    %836 = arith.muli %821, %835 : vector<8x1xi32>
    %837 = arith.addi %619, %836 : vector<8x1xi32>
    %838 = arith.addi %837, %823 : vector<8x1xi32>
    %839 = vector.broadcast %838 : vector<8x1xi32> to vector<8x32xi32>
    %840 = arith.cmpi eq, %620, %839 : vector<8x32xi32>
    %841 = vector.broadcast %834 : vector<8x1xi1> to vector<8x32xi1>
    %842 = arith.andi %840, %841 : vector<8x32xi1>
    %cst_356 = arith.constant 1.000000e+00 : f32
    %cst_357 = arith.constant 0.000000e+00 : f32
    %843 = vector.broadcast %cst_356 : f32 to vector<8x32xf32>
    %844 = vector.broadcast %cst_357 : f32 to vector<8x32xf32>
    %845 = arith.select %842, %843, %844 : vector<8x32xi1>, vector<8x32xf32>
    %846 = arith.truncf %845 : vector<8x32xf32> to vector<8x32xbf16>
    %cst_358 = arith.constant dense<0.000000e+00> : vector<8x128xf32>
    %847 = tpu.matmul %846, %616, %cst_358 {dimension_numbers = #tpu.dot_dimension_numbers<[1], [0], [0], [1], [0, 0, 1, 1], [], []>} : vector<8x32xbf16>, vector<32x128xbf16>, vector<8x128xf32> -> vector<8x128xf32>
    %848 = arith.truncf %847 : vector<8x128xf32> to vector<8x128xbf16>
    %c6_359 = arith.constant 6 : index
    %c0_360 = arith.constant 0 : index
    %c0_361 = arith.constant 0 : index
    %849 = vector.load %arg14[%c6_359, %c0_360, %c0_361] : memref<9x128x128xbf16, #tpu.memory_space<vmem>>, vector<1x128x128xbf16>
    %850 = vector.shape_cast %849 : vector<1x128x128xbf16> to vector<128x128xbf16>
    %cst_362 = arith.constant dense<0.000000e+00> : vector<8x128xf32>
    %851 = tpu.matmul %848, %850, %cst_362 {dimension_numbers = #tpu.dot_dimension_numbers<[1], [0], [0], [1], [0, 0, 1, 1], [], []>} : vector<8x128xbf16>, vector<128x128xbf16>, vector<8x128xf32> -> vector<8x128xf32>
    %852 = arith.addf %819, %851 : vector<8x128xf32>
    %c1_i32_363 = arith.constant 1 : i32
    %853 = vector.broadcast %c1_i32_363 : i32 to vector<8x1xi32>
    %854 = arith.addi %617, %853 : vector<8x1xi32>
    %c0_i32_364 = arith.constant 0 : i32
    %855 = vector.broadcast %c0_i32_364 : i32 to vector<8x1xi32>
    %856 = arith.addi %618, %855 : vector<8x1xi32>
    %c0_i32_365 = arith.constant 0 : i32
    %857 = vector.broadcast %c0_i32_365 : i32 to vector<8x1xi32>
    %858 = arith.cmpi sge, %854, %857 : vector<8x1xi32>
    %c4_i32_366 = arith.constant 4 : i32
    %859 = vector.broadcast %c4_i32_366 : i32 to vector<8x1xi32>
    %860 = arith.cmpi slt, %854, %859 : vector<8x1xi32>
    %861 = arith.andi %858, %860 : vector<8x1xi1>
    %c0_i32_367 = arith.constant 0 : i32
    %862 = vector.broadcast %c0_i32_367 : i32 to vector<8x1xi32>
    %863 = arith.cmpi sge, %856, %862 : vector<8x1xi32>
    %864 = arith.andi %861, %863 : vector<8x1xi1>
    %c4_i32_368 = arith.constant 4 : i32
    %865 = vector.broadcast %c4_i32_368 : i32 to vector<8x1xi32>
    %866 = arith.cmpi slt, %856, %865 : vector<8x1xi32>
    %867 = arith.andi %864, %866 : vector<8x1xi1>
    %c4_i32_369 = arith.constant 4 : i32
    %868 = vector.broadcast %c4_i32_369 : i32 to vector<8x1xi32>
    %869 = arith.muli %854, %868 : vector<8x1xi32>
    %870 = arith.addi %619, %869 : vector<8x1xi32>
    %871 = arith.addi %870, %856 : vector<8x1xi32>
    %872 = vector.broadcast %871 : vector<8x1xi32> to vector<8x32xi32>
    %873 = arith.cmpi eq, %620, %872 : vector<8x32xi32>
    %874 = vector.broadcast %867 : vector<8x1xi1> to vector<8x32xi1>
    %875 = arith.andi %873, %874 : vector<8x32xi1>
    %cst_370 = arith.constant 1.000000e+00 : f32
    %cst_371 = arith.constant 0.000000e+00 : f32
    %876 = vector.broadcast %cst_370 : f32 to vector<8x32xf32>
    %877 = vector.broadcast %cst_371 : f32 to vector<8x32xf32>
    %878 = arith.select %875, %876, %877 : vector<8x32xi1>, vector<8x32xf32>
    %879 = arith.truncf %878 : vector<8x32xf32> to vector<8x32xbf16>
    %cst_372 = arith.constant dense<0.000000e+00> : vector<8x128xf32>
    %880 = tpu.matmul %879, %616, %cst_372 {dimension_numbers = #tpu.dot_dimension_numbers<[1], [0], [0], [1], [0, 0, 1, 1], [], []>} : vector<8x32xbf16>, vector<32x128xbf16>, vector<8x128xf32> -> vector<8x128xf32>
    %881 = arith.truncf %880 : vector<8x128xf32> to vector<8x128xbf16>
    %c7_373 = arith.constant 7 : index
    %c0_374 = arith.constant 0 : index
    %c0_375 = arith.constant 0 : index
    %882 = vector.load %arg14[%c7_373, %c0_374, %c0_375] : memref<9x128x128xbf16, #tpu.memory_space<vmem>>, vector<1x128x128xbf16>
    %883 = vector.shape_cast %882 : vector<1x128x128xbf16> to vector<128x128xbf16>
    %cst_376 = arith.constant dense<0.000000e+00> : vector<8x128xf32>
    %884 = tpu.matmul %881, %883, %cst_376 {dimension_numbers = #tpu.dot_dimension_numbers<[1], [0], [0], [1], [0, 0, 1, 1], [], []>} : vector<8x128xbf16>, vector<128x128xbf16>, vector<8x128xf32> -> vector<8x128xf32>
    %885 = arith.addf %852, %884 : vector<8x128xf32>
    %c1_i32_377 = arith.constant 1 : i32
    %886 = vector.broadcast %c1_i32_377 : i32 to vector<8x1xi32>
    %887 = arith.addi %617, %886 : vector<8x1xi32>
    %c1_i32_378 = arith.constant 1 : i32
    %888 = vector.broadcast %c1_i32_378 : i32 to vector<8x1xi32>
    %889 = arith.addi %618, %888 : vector<8x1xi32>
    %c0_i32_379 = arith.constant 0 : i32
    %890 = vector.broadcast %c0_i32_379 : i32 to vector<8x1xi32>
    %891 = arith.cmpi sge, %887, %890 : vector<8x1xi32>
    %c4_i32_380 = arith.constant 4 : i32
    %892 = vector.broadcast %c4_i32_380 : i32 to vector<8x1xi32>
    %893 = arith.cmpi slt, %887, %892 : vector<8x1xi32>
    %894 = arith.andi %891, %893 : vector<8x1xi1>
    %c0_i32_381 = arith.constant 0 : i32
    %895 = vector.broadcast %c0_i32_381 : i32 to vector<8x1xi32>
    %896 = arith.cmpi sge, %889, %895 : vector<8x1xi32>
    %897 = arith.andi %894, %896 : vector<8x1xi1>
    %c4_i32_382 = arith.constant 4 : i32
    %898 = vector.broadcast %c4_i32_382 : i32 to vector<8x1xi32>
    %899 = arith.cmpi slt, %889, %898 : vector<8x1xi32>
    %900 = arith.andi %897, %899 : vector<8x1xi1>
    %c4_i32_383 = arith.constant 4 : i32
    %901 = vector.broadcast %c4_i32_383 : i32 to vector<8x1xi32>
    %902 = arith.muli %887, %901 : vector<8x1xi32>
    %903 = arith.addi %619, %902 : vector<8x1xi32>
    %904 = arith.addi %903, %889 : vector<8x1xi32>
    %905 = vector.broadcast %904 : vector<8x1xi32> to vector<8x32xi32>
    %906 = arith.cmpi eq, %620, %905 : vector<8x32xi32>
    %907 = vector.broadcast %900 : vector<8x1xi1> to vector<8x32xi1>
    %908 = arith.andi %906, %907 : vector<8x32xi1>
    %cst_384 = arith.constant 1.000000e+00 : f32
    %cst_385 = arith.constant 0.000000e+00 : f32
    %909 = vector.broadcast %cst_384 : f32 to vector<8x32xf32>
    %910 = vector.broadcast %cst_385 : f32 to vector<8x32xf32>
    %911 = arith.select %908, %909, %910 : vector<8x32xi1>, vector<8x32xf32>
    %912 = arith.truncf %911 : vector<8x32xf32> to vector<8x32xbf16>
    %cst_386 = arith.constant dense<0.000000e+00> : vector<8x128xf32>
    %913 = tpu.matmul %912, %616, %cst_386 {dimension_numbers = #tpu.dot_dimension_numbers<[1], [0], [0], [1], [0, 0, 1, 1], [], []>} : vector<8x32xbf16>, vector<32x128xbf16>, vector<8x128xf32> -> vector<8x128xf32>
    %914 = arith.truncf %913 : vector<8x128xf32> to vector<8x128xbf16>
    %c8_387 = arith.constant 8 : index
    %c0_388 = arith.constant 0 : index
    %c0_389 = arith.constant 0 : index
    %915 = vector.load %arg14[%c8_387, %c0_388, %c0_389] : memref<9x128x128xbf16, #tpu.memory_space<vmem>>, vector<1x128x128xbf16>
    %916 = vector.shape_cast %915 : vector<1x128x128xbf16> to vector<128x128xbf16>
    %cst_390 = arith.constant dense<0.000000e+00> : vector<8x128xf32>
    %917 = tpu.matmul %914, %916, %cst_390 {dimension_numbers = #tpu.dot_dimension_numbers<[1], [0], [0], [1], [0, 0, 1, 1], [], []>} : vector<8x128xbf16>, vector<128x128xbf16>, vector<8x128xf32> -> vector<8x128xf32>
    %918 = arith.addf %885, %917 : vector<8x128xf32>
    %c0_391 = arith.constant 0 : index
    %c0_392 = arith.constant 0 : index
    %919 = vector.load %arg15[%c0_391, %c0_392] : memref<1x128xf32, #tpu.memory_space<vmem>>, vector<1x128xf32>
    %920 = vector.broadcast %919 : vector<1x128xf32> to vector<8x128xf32>
    %921 = arith.addf %918, %920 : vector<8x128xf32>
    %cst_393 = arith.constant 0.000000e+00 : f32
    %922 = vector.broadcast %cst_393 : f32 to vector<8x128xf32>
    %923 = arith.maximumf %921, %922 : vector<8x128xf32>
    %924 = tpu.iota {dimensions = array<i32: 0>} : vector<2x8xi32>
    %925 = tpu.iota {dimensions = array<i32: 1>} : vector<2x8xi32>
    %c4_i32_394 = arith.constant 4 : i32
    %926 = vector.broadcast %c4_i32_394 : i32 to vector<2x8xi32>
    %927 = arith.muli %924, %926 : vector<2x8xi32>
    %928 = arith.cmpi sge, %925, %927 : vector<2x8xi32>
    %c1_i32_395 = arith.constant 1 : i32
    %929 = vector.broadcast %c1_i32_395 : i32 to vector<2x8xi32>
    %930 = arith.addi %924, %929 : vector<2x8xi32>
    %c4_i32_396 = arith.constant 4 : i32
    %931 = vector.broadcast %c4_i32_396 : i32 to vector<2x8xi32>
    %932 = arith.muli %930, %931 : vector<2x8xi32>
    %933 = arith.cmpi slt, %925, %932 : vector<2x8xi32>
    %934 = arith.andi %928, %933 : vector<2x8xi1>
    %cst_397 = arith.constant 2.500000e-01 : f32
    %cst_398 = arith.constant 0.000000e+00 : f32
    %935 = vector.broadcast %cst_397 : f32 to vector<2x8xf32>
    %936 = vector.broadcast %cst_398 : f32 to vector<2x8xf32>
    %937 = arith.select %934, %935, %936 : vector<2x8xi1>, vector<2x8xf32>
    %cst_399 = arith.constant dense<0.000000e+00> : vector<2x128xf32>
    %938 = tpu.matmul %937, %923, %cst_399 {dimension_numbers = #tpu.dot_dimension_numbers<[1], [0], [0], [1], [0, 0, 1, 1], [], []>} : vector<2x8xf32>, vector<8x128xf32>, vector<2x128xf32> -> vector<2x128xf32>
    %939 = arith.truncf %938 : vector<2x128xf32> to vector<2x128xbf16>
    %c0_400 = arith.constant 0 : index
    %c0_401 = arith.constant 0 : index
    %940 = vector.load %arg16[%c0_400, %c0_401] : memref<128x128xbf16, #tpu.memory_space<vmem>>, vector<128x128xbf16>
    %cst_402 = arith.constant dense<0.000000e+00> : vector<2x128xf32>
    %941 = tpu.matmul %939, %940, %cst_402 {dimension_numbers = #tpu.dot_dimension_numbers<[1], [0], [0], [1], [0, 0, 1, 1], [], []>} : vector<2x128xbf16>, vector<128x128xbf16>, vector<2x128xf32> -> vector<2x128xf32>
    %c0_403 = arith.constant 0 : index
    %c0_404 = arith.constant 0 : index
    %942 = vector.load %arg17[%c0_403, %c0_404] : memref<1x128xf32, #tpu.memory_space<vmem>>, vector<1x128xf32>
    %943 = vector.broadcast %942 : vector<1x128xf32> to vector<2x128xf32>
    %944 = arith.addf %941, %943 : vector<2x128xf32>
    %c0_405 = arith.constant 0 : index
    %c0_406 = arith.constant 0 : index
    %945 = vector.load %arg18[%c0_405, %c0_406] : memref<2x128xf32, #tpu.memory_space<vmem>>, vector<2x128xf32>
    tpu.vector_store %arg18[%c0_405, %c0_406], %944 {strides = array<i32>} : memref<2x128xf32, #tpu.memory_space<vmem>>, vector<2x128xf32>,
    return
  }
}

</mosaic_0001>

<llo_original>
// kernel: _forward.1
$region0: #{_forward.1}
  #allocation0 [shape = 'u32[]', space=smem, size = 0x4, offset = 0x4, fixed_abs, tag = 'smem constant byte address 0x4 - core index']
  #allocation1 [shape = 'u32[72,128]{1,0:T(1,128)}', space=vmem, size = 0x9000, scoped, tag = 'internal scratch']
  %s0 = inlined_call_operand.vmem [shape: bf16[512,128], index: 0, kind: input, shape index: {}]
  %s1 = inlined_call_operand.vmem [shape: s32[128,1], index: 1, kind: input, shape index: {}]
  %s2 = inlined_call_operand.vmem [shape: s32[128,1], index: 2, kind: input, shape index: {}]
  %s3 = inlined_call_operand.vmem [shape: s32[128,1], index: 3, kind: input, shape index: {}]
  %s4 = inlined_call_operand.vmem [shape: bf16[9,128,128], index: 4, kind: input, shape index: {}]
  %s5 = inlined_call_operand.vmem [shape: f32[1,128], index: 5, kind: input, shape index: {}]
  %s6 = inlined_call_operand.hbm [shape: s32[32,1], index: 6, kind: input, shape index: {}]
  %s7 = inlined_call_operand.hbm [shape: s32[32,1], index: 7, kind: input, shape index: {}]
  %s8 = inlined_call_operand.hbm [shape: s32[32,1], index: 8, kind: input, shape index: {}]
  %s9 = inlined_call_operand.hbm [shape: bf16[9,128,128], index: 9, kind: input, shape index: {}]
  %s10 = inlined_call_operand.vmem [shape: f32[1,128], index: 10, kind: input, shape index: {}]
  %s11 = inlined_call_operand.hbm [shape: s32[8,1], index: 11, kind: input, shape index: {}]
  %s12 = inlined_call_operand.hbm [shape: s32[8,1], index: 12, kind: input, shape index: {}]
  %s13 = inlined_call_operand.vmem [shape: s32[8,1], index: 13, kind: input, shape index: {}]
  %s14 = inlined_call_operand.hbm [shape: bf16[9,128,128], index: 14, kind: input, shape index: {}]
  %s15 = inlined_call_operand.vmem [shape: f32[1,128], index: 15, kind: input, shape index: {}]
  %s16 = inlined_call_operand.vmem [shape: bf16[128,128], index: 16, kind: input, shape index: {}]
  %s17 = inlined_call_operand.hbm [shape: f32[1,128], index: 17, kind: input, shape index: {}]
  %s18 = inlined_call_operand.hbm [shape: f32[2,128], index: 18, kind: output, shape index: {}]
  %s19 = sld [smem:[#allocation0]]
  $region114: #{_forward.1} parent=0
    _
  %s21 = ssub.s32 1, %s19
  %s22 = scalar_select 0, %s21, %s19
  $region1: #{_forward.1} parent=0
    #allocation2 [shape = 'u8[16384]{0}', space=vmem, size = 0x4000, scoped, tag = 'input window, operand 6, single buffered']
    #allocation3 [shape = 's32[1]{0}', space=sflag, size = 0x4, scoped, tag = 'scoped memory for _forward.1']
    #allocation4 [shape = 's32[1]{0}', space=sflag, size = 0x4, scoped, tag = 'scoped memory for _forward.1']
    #allocation5 [shape = 'u8[16384]{0}', space=vmem, size = 0x4000, scoped, tag = 'input window, operand 7, single buffered']
    #allocation6 [shape = 's32[1]{0}', space=sflag, size = 0x4, scoped, tag = 'scoped memory for _forward.1']
    #allocation7 [shape = 'u8[16384]{0}', space=vmem, size = 0x4000, scoped, tag = 'input window, operand 8, single buffered']
    #allocation8 [shape = 'u8[294912]{0}', space=vmem, size = 0x48000, scoped, tag = 'input window, operand 9, single buffered']
    #allocation9 [shape = 's32[1]{0}', space=sflag, size = 0x4, scoped, tag = 'scoped memory for _forward.1']
    #allocation10 [shape = 'u8[4096]{0}', space=vmem, size = 0x1000, scoped, tag = 'input window, operand 11, single buffered']
    #allocation11 [shape = 'u8[4096]{0}', space=vmem, size = 0x1000, scoped, tag = 'input window, operand 12, single buffered']
    #allocation12 [shape = 's32[1]{0}', space=sflag, size = 0x4, scoped, tag = 'scoped memory for _forward.1']
    #allocation13 [shape = 'u8[294912]{0}', space=vmem, size = 0x48000, scoped, tag = 'input window, operand 14, single buffered']
    #allocation14 [shape = 'u8[512]{0}', space=vmem, size = 0x400, scoped, tag = 'input window, operand 17, single buffered']
    #allocation15 [shape = 's32[1]{0}', space=sflag, size = 0x4, scoped, tag = 'scoped memory for _forward.1']
    #allocation16 [shape = 'u8[1024]{0}', space=vmem, size = 0x400, scoped, tag = 'output window, operand 0, single buffered']
    %23 = vsyncpa [#allocation3], 0
    %24 = vsyncpa [#allocation6], 0
    %25 = vsyncpa [#allocation9], 0
    %26 = vsyncpa [#allocation12], 0
    %27 = vsyncpa [#allocation15], 0
    %28 = vsyncpa [#allocation4], 0
    // Predicated region
    $region2: #{_forward.1} parent=1 // pred_check
      _
    $region3: #{_forward.1} parent=1 // pred_check_branch
      %30 = sbr.rel (0) target = $region5
    $region4: #{_forward.1} parent=1 // pred_region
      _
    $region5: #{_forward.1} parent=1 // pred_fallthru
      _
    // Predicated region
    $region6: #{_forward.1} parent=1 // pred_check
      _
    $region7: #{_forward.1} parent=1 // pred_check_branch
      %32 = sbr.rel (0) target = $region9
    $region8: #{_forward.1} parent=1 // pred_region
      _
    $region9: #{_forward.1} parent=1 // pred_fallthru
      _
    // Predicated region
    $region10: #{_forward.1} parent=1 // pred_check
      _
    $region11: #{_forward.1} parent=1 // pred_check_branch
      %34 = sbr.rel (0) target = $region13
    $region12: #{_forward.1} parent=1 // pred_region
      _
    $region13: #{_forward.1} parent=1 // pred_fallthru
      _
    // Predicated region
    $region14: #{_forward.1} parent=1 // pred_check
      _
    $region15: #{_forward.1} parent=1 // pred_check_branch
      %36 = sbr.rel (0) target = $region17
    $region16: #{_forward.1} parent=1 // pred_region
      _
    $region17: #{_forward.1} parent=1 // pred_fallthru
      _
    // Predicated region
    $region18: #{_forward.1} parent=1 // pred_check
      _
    $region19: #{_forward.1} parent=1 // pred_check_branch
      %38 = sbr.rel (0) target = $region21
    $region20: #{_forward.1} parent=1 // pred_region
      _
    $region21: #{_forward.1} parent=1 // pred_fallthru
      _
    // Predicated region
    $region22: #{_forward.1} parent=1 // pred_check
      _
    $region23: #{_forward.1} parent=1 // pred_check_branch
      %40 = sbr.rel (0) target = $region25
    $region24: #{_forward.1} parent=1 // pred_region
      _
    $region25: #{_forward.1} parent=1 // pred_fallthru
      _
    // Predicated region
    $region26: #{_forward.1} parent=1 // pred_check
      _
    $region27: #{_forward.1} parent=1 // pred_check_branch
      %42 = sbr.rel (0) target = $region29
    $region28: #{_forward.1} parent=1 // pred_region
      %44 = vsyncadd [#allocation3], 0
      %s45 = sshll.u32 %s6, 4
      %s46 = int_to_ptr.hbm [resolvable:$true] %s45
      %s47 = sshll.u32 [#allocation2], 4
      %s48 = int_to_ptr.vmem [resolvable:$true] %s47
      %53 = dma.hbm_to_vmem [thread:$0]  %s46, 512, %s48, [#allocation3], 128, 128, 8
    $region29: #{_forward.1} parent=1 // pred_fallthru
      _
    // Predicated region
    $region30: #{_forward.1} parent=1 // pred_check
      _
    $region31: #{_forward.1} parent=1 // pred_check_branch
      %55 = sbr.rel (0) target = $region33
    $region32: #{_forward.1} parent=1 // pred_region
      %57 = vsyncadd [#allocation6], 0
      %s58 = sshll.u32 %s7, 4
      %s59 = int_to_ptr.hbm [resolvable:$true] %s58
      %s60 = sshll.u32 [#allocation5], 4
      %s61 = int_to_ptr.vmem [resolvable:$true] %s60
      %66 = dma.hbm_to_vmem [thread:$0]  %s59, 512, %s61, [#allocation6], 128, 128, 8
    $region33: #{_forward.1} parent=1 // pred_fallthru
      _
    // Predicated region
    $region34: #{_forward.1} parent=1 // pred_check
      _
    $region35: #{_forward.1} parent=1 // pred_check_branch
      %68 = sbr.rel (0) target = $region37
    $region36: #{_forward.1} parent=1 // pred_region
      %70 = vsyncadd [#allocation6], 0
      %s71 = sshll.u32 %s8, 4
      %s72 = int_to_ptr.hbm [resolvable:$true] %s71
      %s73 = sshll.u32 [#allocation7], 4
      %s74 = int_to_ptr.vmem [resolvable:$true] %s73
      %79 = dma.hbm_to_vmem [thread:$0]  %s72, 512, %s74, [#allocation6], 128, 128, 8
    $region37: #{_forward.1} parent=1 // pred_fallthru
      _
    // Predicated region
    $region38: #{_forward.1} parent=1 // pred_check
      _
    $region39: #{_forward.1} parent=1 // pred_check_branch
      %81 = sbr.rel (0) target = $region41
    $region40: #{_forward.1} parent=1 // pred_region
      %83 = vsyncadd [#allocation9], 0
      %s84 = sshll.u32 %s9, 4
      %s85 = int_to_ptr.hbm [resolvable:$true] %s84
      %s86 = sshll.u32 [#allocation8], 4
      %s87 = int_to_ptr.vmem [resolvable:$true] %s86
      %92 = dma.hbm_to_vmem [thread:$0]  %s85, 9216, %s87, [#allocation9], 64, 64, 4
    $region41: #{_forward.1} parent=1 // pred_fallthru
      _
    // Predicated region
    $region42: #{_forward.1} parent=1 // pred_check
      _
    $region43: #{_forward.1} parent=1 // pred_check_branch
      %94 = sbr.rel (0) target = $region45
    $region44: #{_forward.1} parent=1 // pred_region
      _
    $region45: #{_forward.1} parent=1 // pred_fallthru
      _
    // Predicated region
    $region46: #{_forward.1} parent=1 // pred_check
      _
    $region47: #{_forward.1} parent=1 // pred_check_branch
      %96 = sbr.rel (0) target = $region49
    $region48: #{_forward.1} parent=1 // pred_region
      %98 = vsyncadd [#allocation9], 0
      %s100 = sshll.u32 %s11, 4
      %s101 = int_to_ptr.hbm [resolvable:$true] %s100
      %s102 = sshll.u32 [#allocation10], 4
      %s103 = int_to_ptr.vmem [resolvable:$true] %s102
      %105 = dma.hbm_to_vmem [thread:$0]  %s101, 128, %s103, [#allocation9]
    $region49: #{_forward.1} parent=1 // pred_fallthru
      _
    // Predicated region
    $region50: #{_forward.1} parent=1 // pred_check
      _
    $region51: #{_forward.1} parent=1 // pred_check_branch
      %107 = sbr.rel (0) target = $region53
    $region52: #{_forward.1} parent=1 // pred_region
      %109 = vsyncadd [#allocation12], 0
      %s111 = sshll.u32 %s12, 4
      %s112 = int_to_ptr.hbm [resolvable:$true] %s111
      %s113 = sshll.u32 [#allocation11], 4
      %s114 = int_to_ptr.vmem [resolvable:$true] %s113
      %116 = dma.hbm_to_vmem [thread:$0]  %s112, 128, %s114, [#allocation12]
    $region53: #{_forward.1} parent=1 // pred_fallthru
      _
    // Predicated region
    $region54: #{_forward.1} parent=1 // pred_check
      _
    $region55: #{_forward.1} parent=1 // pred_check_branch
      %118 = sbr.rel (0) target = $region57
    $region56: #{_forward.1} parent=1 // pred_region
      _
    $region57: #{_forward.1} parent=1 // pred_fallthru
      _
    // Predicated region
    $region58: #{_forward.1} parent=1 // pred_check
      _
    $region59: #{_forward.1} parent=1 // pred_check_branch
      %120 = sbr.rel (0) target = $region61
    $region60: #{_forward.1} parent=1 // pred_region
      %122 = vsyncadd [#allocation12], 0
      %s123 = sshll.u32 %s14, 4
      %s124 = int_to_ptr.hbm [resolvable:$true] %s123
      %s125 = sshll.u32 [#allocation13], 4
      %s126 = int_to_ptr.vmem [resolvable:$true] %s125
      %131 = dma.hbm_to_vmem [thread:$0]  %s124, 9216, %s126, [#allocation12], 64, 64, 4
    $region61: #{_forward.1} parent=1 // pred_fallthru
      _
    // Predicated region
    $region62: #{_forward.1} parent=1 // pred_check
      _
    $region63: #{_forward.1} parent=1 // pred_check_branch
      %133 = sbr.rel (0) target = $region65
    $region64: #{_forward.1} parent=1 // pred_region
      _
    $region65: #{_forward.1} parent=1 // pred_fallthru
      _
    // Predicated region
    $region66: #{_forward.1} parent=1 // pred_check
      _
    $region67: #{_forward.1} parent=1 // pred_check_branch
      %135 = sbr.rel (0) target = $region69
    $region68: #{_forward.1} parent=1 // pred_region
      _
    $region69: #{_forward.1} parent=1 // pred_fallthru
      _
    // Predicated region
    $region70: #{_forward.1} parent=1 // pred_check
      _
    $region71: #{_forward.1} parent=1 // pred_check_branch
      %137 = sbr.rel (0) target = $region73
    $region72: #{_forward.1} parent=1 // pred_region
      %139 = vsyncadd [#allocation15], 0
      %s141 = sshll.u32 %s17, 4
      %s142 = int_to_ptr.hbm [resolvable:$true] %s141
      %s143 = sshll.u32 [#allocation14], 4
      %s144 = int_to_ptr.vmem [resolvable:$true] %s143
      %146 = dma.hbm_to_vmem [thread:$0]  %s142, 16, %s144, [#allocation15]
    $region73: #{_forward.1} parent=1 // pred_fallthru
      _
    // Predicated region
    $region74: #{_forward.1} parent=1 // pred_check
      _
    $region75: #{_forward.1} parent=1 // pred_check_branch
      %148 = sbr.rel (0) target = $region77
    $region76: #{_forward.1} parent=1 // pred_region
      %150 = dma.done [#allocation3], 512
    $region77: #{_forward.1} parent=1 // pred_fallthru
      _
    // Predicated region
    $region78: #{_forward.1} parent=1 // pred_check
      _
    $region79: #{_forward.1} parent=1 // pred_check_branch
      %152 = sbr.rel (0) target = $region81
    $region80: #{_forward.1} parent=1 // pred_region
      %154 = dma.done [#allocation6], 512
    $region81: #{_forward.1} parent=1 // pred_fallthru
      _
    // Predicated region
    $region82: #{_forward.1} parent=1 // pred_check
      _
    $region83: #{_forward.1} parent=1 // pred_check_branch
      %156 = sbr.rel (0) target = $region85
    $region84: #{_forward.1} parent=1 // pred_region
      %158 = dma.done [#allocation6], 512
    $region85: #{_forward.1} parent=1 // pred_fallthru
      _
    // Predicated region
    $region86: #{_forward.1} parent=1 // pred_check
      _
    $region87: #{_forward.1} parent=1 // pred_check_branch
      %160 = sbr.rel (0) target = $region89
    $region88: #{_forward.1} parent=1 // pred_region
      %162 = dma.done [#allocation9], 9216
    $region89: #{_forward.1} parent=1 // pred_fallthru
      _
    // Predicated region
    $region90: #{_forward.1} parent=1 // pred_check
      _
    $region91: #{_forward.1} parent=1 // pred_check_branch
      %164 = sbr.rel (0) target = $region93
    $region92: #{_forward.1} parent=1 // pred_region
      %166 = dma.done [#allocation9], 128
    $region93: #{_forward.1} parent=1 // pred_fallthru
      _
    // Predicated region
    $region94: #{_forward.1} parent=1 // pred_check
      _
    $region95: #{_forward.1} parent=1 // pred_check_branch
      %168 = sbr.rel (0) target = $region97
    $region96: #{_forward.1} parent=1 // pred_region
      %170 = dma.done [#allocation12], 128
    $region97: #{_forward.1} parent=1 // pred_fallthru
      _
    // Predicated region
    $region98: #{_forward.1} parent=1 // pred_check
      _
    $region99: #{_forward.1} parent=1 // pred_check_branch
      %172 = sbr.rel (0) target = $region101
    $region100: #{_forward.1} parent=1 // pred_region
      %174 = dma.done [#allocation12], 9216
    $region101: #{_forward.1} parent=1 // pred_fallthru
      _
    // Predicated region
    $region102: #{_forward.1} parent=1 // pred_check
      _
    $region103: #{_forward.1} parent=1 // pred_check_branch
      %176 = sbr.rel (0) target = $region105
    $region104: #{_forward.1} parent=1 // pred_region
      %178 = dma.done [#allocation15], 16
    $region105: #{_forward.1} parent=1 // pred_fallthru
      _
    %v180 = vld [vmem:[%s0] sm:$0xf]
    %v181 = vld [vmem:[%s0 + $0x4] sm:$0xf]
    %v182 = vld [vmem:[%s0 + $0x8] sm:$0xf]
    %v183 = vld [vmem:[%s0 + $0xc] sm:$0xf]
    %v184 = vld [vmem:[%s0 + $0x10] sm:$0xf]
    %v185 = vld [vmem:[%s0 + $0x14] sm:$0xf]
    %v186 = vld [vmem:[%s0 + $0x18] sm:$0xf]
    %v187 = vld [vmem:[%s0 + $0x1c] sm:$0xf]
    %v188 = vld [vmem:[%s0 + $0x20] sm:$0xf]
    %v189 = vld [vmem:[%s0 + $0x24] sm:$0xf]
    %v190 = vld [vmem:[%s0 + $0x28] sm:$0xf]
    %v191 = vld [vmem:[%s0 + $0x2c] sm:$0xf]
    %v192 = vld [vmem:[%s0 + $0x30] sm:$0xf]
    %v193 = vld [vmem:[%s0 + $0x34] sm:$0xf]
    %v194 = vld [vmem:[%s0 + $0x38] sm:$0xf]
    %v195 = vld [vmem:[%s0 + $0x3c] sm:$0xf]
    %v196 = vld [vmem:[%s0 + $0x40] sm:$0xf]
    %v197 = vld [vmem:[%s0 + $0x44] sm:$0xf]
    %v198 = vld [vmem:[%s0 + $0x48] sm:$0xf]
    %v199 = vld [vmem:[%s0 + $0x4c] sm:$0xf]
    %v200 = vld [vmem:[%s0 + $0x50] sm:$0xf]
    %v201 = vld [vmem:[%s0 + $0x54] sm:$0xf]
    %v202 = vld [vmem:[%s0 + $0x58] sm:$0xf]
    %v203 = vld [vmem:[%s0 + $0x5c] sm:$0xf]
    %v204 = vld [vmem:[%s0 + $0x60] sm:$0xf]
    %v205 = vld [vmem:[%s0 + $0x64] sm:$0xf]
    %v206 = vld [vmem:[%s0 + $0x68] sm:$0xf]
    %v207 = vld [vmem:[%s0 + $0x6c] sm:$0xf]
    %v208 = vld [vmem:[%s0 + $0x70] sm:$0xf]
    %v209 = vld [vmem:[%s0 + $0x74] sm:$0xf]
    %v210 = vld [vmem:[%s0 + $0x78] sm:$0xf]
    %v211 = vld [vmem:[%s0 + $0x7c] sm:$0xf]
    %v212 = vld [vmem:[%s0 + $0x80] sm:$0xf]
    %v213 = vld [vmem:[%s0 + $0x84] sm:$0xf]
    %v214 = vld [vmem:[%s0 + $0x88] sm:$0xf]
    %v215 = vld [vmem:[%s0 + $0x8c] sm:$0xf]
    %v216 = vld [vmem:[%s0 + $0x90] sm:$0xf]
    %v217 = vld [vmem:[%s0 + $0x94] sm:$0xf]
    %v218 = vld [vmem:[%s0 + $0x98] sm:$0xf]
    %v219 = vld [vmem:[%s0 + $0x9c] sm:$0xf]
    %v220 = vld [vmem:[%s0 + $0xa0] sm:$0xf]
    %v221 = vld [vmem:[%s0 + $0xa4] sm:$0xf]
    %v222 = vld [vmem:[%s0 + $0xa8] sm:$0xf]
    %v223 = vld [vmem:[%s0 + $0xac] sm:$0xf]
    %v224 = vld [vmem:[%s0 + $0xb0] sm:$0xf]
    %v225 = vld [vmem:[%s0 + $0xb4] sm:$0xf]
    %v226 = vld [vmem:[%s0 + $0xb8] sm:$0xf]
    %v227 = vld [vmem:[%s0 + $0xbc] sm:$0xf]
    %v228 = vld [vmem:[%s0 + $0xc0] sm:$0xf]
    %v229 = vld [vmem:[%s0 + $0xc4] sm:$0xf]
    %v230 = vld [vmem:[%s0 + $0xc8] sm:$0xf]
    %v231 = vld [vmem:[%s0 + $0xcc] sm:$0xf]
    %v232 = vld [vmem:[%s0 + $0xd0] sm:$0xf]
    %v233 = vld [vmem:[%s0 + $0xd4] sm:$0xf]
    %v234 = vld [vmem:[%s0 + $0xd8] sm:$0xf]
    %v235 = vld [vmem:[%s0 + $0xdc] sm:$0xf]
    %v236 = vld [vmem:[%s0 + $0xe0] sm:$0xf]
    %v237 = vld [vmem:[%s0 + $0xe4] sm:$0xf]
    %v238 = vld [vmem:[%s0 + $0xe8] sm:$0xf]
    %v239 = vld [vmem:[%s0 + $0xec] sm:$0xf]
    %v240 = vld [vmem:[%s0 + $0xf0] sm:$0xf]
    %v241 = vld [vmem:[%s0 + $0xf4] sm:$0xf]
    %v242 = vld [vmem:[%s0 + $0xf8] sm:$0xf]
    %v243 = vld [vmem:[%s0 + $0xfc] sm:$0xf]
    %v244 = vld [vmem:[%s1] sm:$0xff]
    %v245 = vld [vmem:[%s1 + $0x8] sm:$0xff]
    %v246 = vld [vmem:[%s1 + $0x10] sm:$0xff]
    %v247 = vld [vmem:[%s1 + $0x18] sm:$0xff]
    %v248 = vld [vmem:[%s1 + $0x20] sm:$0xff]
    %v249 = vld [vmem:[%s1 + $0x28] sm:$0xff]
    %v250 = vld [vmem:[%s1 + $0x30] sm:$0xff]
    %v251 = vld [vmem:[%s1 + $0x38] sm:$0xff]
    %v252 = vld [vmem:[%s1 + $0x40] sm:$0xff]
    %v253 = vld [vmem:[%s1 + $0x48] sm:$0xff]
    %v254 = vld [vmem:[%s1 + $0x50] sm:$0xff]
    %v255 = vld [vmem:[%s1 + $0x58] sm:$0xff]
    %v256 = vld [vmem:[%s1 + $0x60] sm:$0xff]
    %v257 = vld [vmem:[%s1 + $0x68] sm:$0xff]
    %v258 = vld [vmem:[%s1 + $0x70] sm:$0xff]
    %v259 = vld [vmem:[%s1 + $0x78] sm:$0xff]
    %v260 = vld [vmem:[%s2] sm:$0xff]
    %v261 = vld [vmem:[%s2 + $0x8] sm:$0xff]
    %v262 = vld [vmem:[%s2 + $0x10] sm:$0xff]
    %v263 = vld [vmem:[%s2 + $0x18] sm:$0xff]
    %v264 = vld [vmem:[%s2 + $0x20] sm:$0xff]
    %v265 = vld [vmem:[%s2 + $0x28] sm:$0xff]
    %v266 = vld [vmem:[%s2 + $0x30] sm:$0xff]
    %v267 = vld [vmem:[%s2 + $0x38] sm:$0xff]
    %v268 = vld [vmem:[%s2 + $0x40] sm:$0xff]
    %v269 = vld [vmem:[%s2 + $0x48] sm:$0xff]
    %v270 = vld [vmem:[%s2 + $0x50] sm:$0xff]
    %v271 = vld [vmem:[%s2 + $0x58] sm:$0xff]
    %v272 = vld [vmem:[%s2 + $0x60] sm:$0xff]
    %v273 = vld [vmem:[%s2 + $0x68] sm:$0xff]
    %v274 = vld [vmem:[%s2 + $0x70] sm:$0xff]
    %v275 = vld [vmem:[%s2 + $0x78] sm:$0xff]
    %v276 = vld [vmem:[%s3] sm:$0xff]
    %v277 = vld [vmem:[%s3 + $0x8] sm:$0xff]
    %v278 = vld [vmem:[%s3 + $0x10] sm:$0xff]
    %v279 = vld [vmem:[%s3 + $0x18] sm:$0xff]
    %v280 = vld [vmem:[%s3 + $0x20] sm:$0xff]
    %v281 = vld [vmem:[%s3 + $0x28] sm:$0xff]
    %v282 = vld [vmem:[%s3 + $0x30] sm:$0xff]
    %v283 = vld [vmem:[%s3 + $0x38] sm:$0xff]
    %v284 = vld [vmem:[%s3 + $0x40] sm:$0xff]
    %v285 = vld [vmem:[%s3 + $0x48] sm:$0xff]
    %v286 = vld [vmem:[%s3 + $0x50] sm:$0xff]
    %v287 = vld [vmem:[%s3 + $0x58] sm:$0xff]
    %v288 = vld [vmem:[%s3 + $0x60] sm:$0xff]
    %v289 = vld [vmem:[%s3 + $0x68] sm:$0xff]
    %v290 = vld [vmem:[%s3 + $0x70] sm:$0xff]
    %v291 = vld [vmem:[%s3 + $0x78] sm:$0xff]
    %v292 = vlaneseq
    %v293 = vand.u32 %v292, 127
    %v294 = vadd.s32 %v293, 128
    %v295 = vadd.s32 %v293, 256
    %v296 = vadd.s32 %v293, 384
    %v297 = vadd.s32 %v244, 4294967295
    %v298 = vadd.s32 %v245, 4294967295
    %v299 = vadd.s32 %v246, 4294967295
    %v300 = vadd.s32 %v247, 4294967295
    %v301 = vadd.s32 %v248, 4294967295
    %v302 = vadd.s32 %v249, 4294967295
    %v303 = vadd.s32 %v250, 4294967295
    %v304 = vadd.s32 %v251, 4294967295
    %v305 = vadd.s32 %v252, 4294967295
    %v306 = vadd.s32 %v253, 4294967295
    %v307 = vadd.s32 %v254, 4294967295
    %v308 = vadd.s32 %v255, 4294967295
    %v309 = vadd.s32 %v256, 4294967295
    %v310 = vadd.s32 %v257, 4294967295
    %v311 = vadd.s32 %v258, 4294967295
    %v312 = vadd.s32 %v259, 4294967295
    %v313 = vadd.s32 %v260, 4294967295
    %v314 = vadd.s32 %v261, 4294967295
    %v315 = vadd.s32 %v262, 4294967295
    %v316 = vadd.s32 %v263, 4294967295
    %v317 = vadd.s32 %v264, 4294967295
    %v318 = vadd.s32 %v265, 4294967295
    %v319 = vadd.s32 %v266, 4294967295
    %v320 = vadd.s32 %v267, 4294967295
    %v321 = vadd.s32 %v268, 4294967295
    %v322 = vadd.s32 %v269, 4294967295
    %v323 = vadd.s32 %v270, 4294967295
    %v324 = vadd.s32 %v271, 4294967295
    %v325 = vadd.s32 %v272, 4294967295
    %v326 = vadd.s32 %v273, 4294967295
    %v327 = vadd.s32 %v274, 4294967295
    %v328 = vadd.s32 %v275, 4294967295
    %vm329 = vcmp.ge.s32.totalorder %v297, 0
    %vm330 = vcmp.ge.s32.totalorder %v298, 0
    %vm331 = vcmp.ge.s32.totalorder %v299, 0
    %vm332 = vcmp.ge.s32.totalorder %v300, 0
    %vm333 = vcmp.ge.s32.totalorder %v301, 0
    %vm334 = vcmp.ge.s32.totalorder %v302, 0
    %vm335 = vcmp.ge.s32.totalorder %v303, 0
    %vm336 = vcmp.ge.s32.totalorder %v304, 0
    %vm337 = vcmp.ge.s32.totalorder %v305, 0
    %vm338 = vcmp.ge.s32.totalorder %v306, 0
    %vm339 = vcmp.ge.s32.totalorder %v307, 0
    %vm340 = vcmp.ge.s32.totalorder %v308, 0
    %vm341 = vcmp.ge.s32.totalorder %v309, 0
    %vm342 = vcmp.ge.s32.totalorder %v310, 0
    %vm343 = vcmp.ge.s32.totalorder %v311, 0
    %vm344 = vcmp.ge.s32.totalorder %v312, 0
    %vm345 = vcmp.lt.s32.totalorder %v297, 16
    %vm346 = vcmp.lt.s32.totalorder %v298, 16
    %vm347 = vcmp.lt.s32.totalorder %v299, 16
    %vm348 = vcmp.lt.s32.totalorder %v300, 16
    %vm349 = vcmp.lt.s32.totalorder %v301, 16
    %vm350 = vcmp.lt.s32.totalorder %v302, 16
    %vm351 = vcmp.lt.s32.totalorder %v303, 16
    %vm352 = vcmp.lt.s32.totalorder %v304, 16
    %vm353 = vcmp.lt.s32.totalorder %v305, 16
    %vm354 = vcmp.lt.s32.totalorder %v306, 16
    %vm355 = vcmp.lt.s32.totalorder %v307, 16
    %vm356 = vcmp.lt.s32.totalorder %v308, 16
    %vm357 = vcmp.lt.s32.totalorder %v309, 16
    %vm358 = vcmp.lt.s32.totalorder %v310, 16
    %vm359 = vcmp.lt.s32.totalorder %v311, 16
    %vm360 = vcmp.lt.s32.totalorder %v312, 16
    %vm361 = vmand %vm329, %vm345
    %vm362 = vmand %vm330, %vm346
    %vm363 = vmand %vm331, %vm347
    %vm364 = vmand %vm332, %vm348
    %vm365 = vmand %vm333, %vm349
    %vm366 = vmand %vm334, %vm350
    %vm367 = vmand %vm335, %vm351
    %vm368 = vmand %vm336, %vm352
    %vm369 = vmand %vm337, %vm353
    %vm370 = vmand %vm338, %vm354
    %vm371 = vmand %vm339, %vm355
    %vm372 = vmand %vm340, %vm356
    %vm373 = vmand %vm341, %vm357
    %vm374 = vmand %vm342, %vm358
    %vm375 = vmand %vm343, %vm359
    %vm376 = vmand %vm344, %vm360
    %vm377 = vcmp.ge.s32.totalorder %v313, 0
    %vm378 = vcmp.ge.s32.totalorder %v314, 0
    %vm379 = vcmp.ge.s32.totalorder %v315, 0
    %vm380 = vcmp.ge.s32.totalorder %v316, 0
    %vm381 = vcmp.ge.s32.totalorder %v317, 0
    %vm382 = vcmp.ge.s32.totalorder %v318, 0
    %vm383 = vcmp.ge.s32.totalorder %v319, 0
    %vm384 = vcmp.ge.s32.totalorder %v320, 0
    %vm385 = vcmp.ge.s32.totalorder %v321, 0
    %vm386 = vcmp.ge.s32.totalorder %v322, 0
    %vm387 = vcmp.ge.s32.totalorder %v323, 0
    %vm388 = vcmp.ge.s32.totalorder %v324, 0
    %vm389 = vcmp.ge.s32.totalorder %v325, 0
    %vm390 = vcmp.ge.s32.totalorder %v326, 0
    %vm391 = vcmp.ge.s32.totalorder %v327, 0
    %vm392 = vcmp.ge.s32.totalorder %v328, 0
    %vm393 = vmand %vm361, %vm377
    %vm394 = vmand %vm362, %vm378
    %vm395 = vmand %vm363, %vm379
    %vm396 = vmand %vm364, %vm380
    %vm397 = vmand %vm365, %vm381
    %vm398 = vmand %vm366, %vm382
    %vm399 = vmand %vm367, %vm383
    %vm400 = vmand %vm368, %vm384
    %vm401 = vmand %vm369, %vm385
    %vm402 = vmand %vm370, %vm386
    %vm403 = vmand %vm371, %vm387
    %vm404 = vmand %vm372, %vm388
    %vm405 = vmand %vm373, %vm389
    %vm406 = vmand %vm374, %vm390
    %vm407 = vmand %vm375, %vm391
    %vm408 = vmand %vm376, %vm392
    %vm409 = vcmp.lt.s32.totalorder %v313, 16
    %vm410 = vcmp.lt.s32.totalorder %v314, 16
    %vm411 = vcmp.lt.s32.totalorder %v315, 16
    %vm412 = vcmp.lt.s32.totalorder %v316, 16
    %vm413 = vcmp.lt.s32.totalorder %v317, 16
    %vm414 = vcmp.lt.s32.totalorder %v318, 16
    %vm415 = vcmp.lt.s32.totalorder %v319, 16
    %vm416 = vcmp.lt.s32.totalorder %v320, 16
    %vm417 = vcmp.lt.s32.totalorder %v321, 16
    %vm418 = vcmp.lt.s32.totalorder %v322, 16
    %vm419 = vcmp.lt.s32.totalorder %v323, 16
    %vm420 = vcmp.lt.s32.totalorder %v324, 16
    %vm421 = vcmp.lt.s32.totalorder %v325, 16
    %vm422 = vcmp.lt.s32.totalorder %v326, 16
    %vm423 = vcmp.lt.s32.totalorder %v327, 16
    %vm424 = vcmp.lt.s32.totalorder %v328, 16
    %vm425 = vmand %vm393, %vm409
    %vm426 = vmand %vm394, %vm410
    %vm427 = vmand %vm395, %vm411
    %vm428 = vmand %vm396, %vm412
    %vm429 = vmand %vm397, %vm413
    %vm430 = vmand %vm398, %vm414
    %vm431 = vmand %vm399, %vm415
    %vm432 = vmand %vm400, %vm416
    %vm433 = vmand %vm401, %vm417
    %vm434 = vmand %vm402, %vm418
    %vm435 = vmand %vm403, %vm419
    %vm436 = vmand %vm404, %vm420
    %vm437 = vmand %vm405, %vm421
    %vm438 = vmand %vm406, %vm422
    %vm439 = vmand %vm407, %vm423
    %vm440 = vmand %vm408, %vm424
    %v441 = vmul.u32 %v297, 16
    %v442 = vmul.u32 %v298, 16
    %v443 = vmul.u32 %v299, 16
    %v444 = vmul.u32 %v300, 16
    %v445 = vmul.u32 %v301, 16
    %v446 = vmul.u32 %v302, 16
    %v447 = vmul.u32 %v303, 16
    %v448 = vmul.u32 %v304, 16
    %v449 = vmul.u32 %v305, 16
    %v450 = vmul.u32 %v306, 16
    %v451 = vmul.u32 %v307, 16
    %v452 = vmul.u32 %v308, 16
    %v453 = vmul.u32 %v309, 16
    %v454 = vmul.u32 %v310, 16
    %v455 = vmul.u32 %v311, 16
    %v456 = vmul.u32 %v312, 16
    %v457 = vadd.s32 %v276, %v441
    %v458 = vadd.s32 %v277, %v442
    %v459 = vadd.s32 %v278, %v443
    %v460 = vadd.s32 %v279, %v444
    %v461 = vadd.s32 %v280, %v445
    %v462 = vadd.s32 %v281, %v446
    %v463 = vadd.s32 %v282, %v447
    %v464 = vadd.s32 %v283, %v448
    %v465 = vadd.s32 %v284, %v449
    %v466 = vadd.s32 %v285, %v450
    %v467 = vadd.s32 %v286, %v451
    %v468 = vadd.s32 %v287, %v452
    %v469 = vadd.s32 %v288, %v453
    %v470 = vadd.s32 %v289, %v454
    %v471 = vadd.s32 %v290, %v455
    %v472 = vadd.s32 %v291, %v456
    %v473 = vadd.s32 %v457, %v313
    %v474 = vadd.s32 %v458, %v314
    %v475 = vadd.s32 %v459, %v315
    %v476 = vadd.s32 %v460, %v316
    %v477 = vadd.s32 %v461, %v317
    %v478 = vadd.s32 %v462, %v318
    %v479 = vadd.s32 %v463, %v319
    %v480 = vadd.s32 %v464, %v320
    %v481 = vadd.s32 %v465, %v321
    %v482 = vadd.s32 %v466, %v322
    %v483 = vadd.s32 %v467, %v323
    %v484 = vadd.s32 %v468, %v324
    %v485 = vadd.s32 %v469, %v325
    %v486 = vadd.s32 %v470, %v326
    %v487 = vadd.s32 %v471, %v327
    %v488 = vadd.s32 %v472, %v328
    %489 = vset.pattern.permute.xlu0 0
    %490 = vperm.xlu0 %489, %v473
    %v491 = vpop.permute.xlu0 %490
    %492 = vset.pattern.permute.xlu0 0
    %493 = vperm.xlu0 %492, %v474
    %v494 = vpop.permute.xlu0 %493
    %495 = vset.pattern.permute.xlu0 0
    %496 = vperm.xlu0 %495, %v475
    %v497 = vpop.permute.xlu0 %496
    %498 = vset.pattern.permute.xlu0 0
    %499 = vperm.xlu0 %498, %v476
    %v500 = vpop.permute.xlu0 %499
    %501 = vset.pattern.permute.xlu0 0
    %502 = vperm.xlu0 %501, %v477
    %v503 = vpop.permute.xlu0 %502
    %504 = vset.pattern.permute.xlu0 0
    %505 = vperm.xlu0 %504, %v478
    %v506 = vpop.permute.xlu0 %505
    %507 = vset.pattern.permute.xlu0 0
    %508 = vperm.xlu0 %507, %v479
    %v509 = vpop.permute.xlu0 %508
    %510 = vset.pattern.permute.xlu0 0
    %511 = vperm.xlu0 %510, %v480
    %v512 = vpop.permute.xlu0 %511
    %513 = vset.pattern.permute.xlu0 0
    %514 = vperm.xlu0 %513, %v481
    %v515 = vpop.permute.xlu0 %514
    %516 = vset.pattern.permute.xlu0 0
    %517 = vperm.xlu0 %516, %v482
    %v518 = vpop.permute.xlu0 %517
    %519 = vset.pattern.permute.xlu0 0
    %520 = vperm.xlu0 %519, %v483
    %v521 = vpop.permute.xlu0 %520
    %522 = vset.pattern.permute.xlu0 0
    %523 = vperm.xlu0 %522, %v484
    %v524 = vpop.permute.xlu0 %523
    %525 = vset.pattern.permute.xlu0 0
    %526 = vperm.xlu0 %525, %v485
    %v527 = vpop.permute.xlu0 %526
    %528 = vset.pattern.permute.xlu0 0
    %529 = vperm.xlu0 %528, %v486
    %v530 = vpop.permute.xlu0 %529
    %531 = vset.pattern.permute.xlu0 0
    %532 = vperm.xlu0 %531, %v487
    %v533 = vpop.permute.xlu0 %532
    %534 = vset.pattern.permute.xlu0 0
    %535 = vperm.xlu0 %534, %v488
    %v536 = vpop.permute.xlu0 %535
    %vm537 = vcmp.eq.s32.totalorder %v293, %v491
    %vm538 = vcmp.eq.s32.totalorder %v294, %v491
    %vm539 = vcmp.eq.s32.totalorder %v295, %v491
    %vm540 = vcmp.eq.s32.totalorder %v296, %v491
    %vm541 = vcmp.eq.s32.totalorder %v293, %v494
    %vm542 = vcmp.eq.s32.totalorder %v294, %v494
    %vm543 = vcmp.eq.s32.totalorder %v295, %v494
    %vm544 = vcmp.eq.s32.totalorder %v296, %v494
    %vm545 = vcmp.eq.s32.totalorder %v293, %v497
    %vm546 = vcmp.eq.s32.totalorder %v294, %v497
    %vm547 = vcmp.eq.s32.totalorder %v295, %v497
    %vm548 = vcmp.eq.s32.totalorder %v296, %v497
    %vm549 = vcmp.eq.s32.totalorder %v293, %v500
    %vm550 = vcmp.eq.s32.totalorder %v294, %v500
    %vm551 = vcmp.eq.s32.totalorder %v295, %v500
    %vm552 = vcmp.eq.s32.totalorder %v296, %v500
    %vm553 = vcmp.eq.s32.totalorder %v293, %v503
    %vm554 = vcmp.eq.s32.totalorder %v294, %v503
    %vm555 = vcmp.eq.s32.totalorder %v295, %v503
    %vm556 = vcmp.eq.s32.totalorder %v296, %v503
    %vm557 = vcmp.eq.s32.totalorder %v293, %v506
    %vm558 = vcmp.eq.s32.totalorder %v294, %v506
    %vm559 = vcmp.eq.s32.totalorder %v295, %v506
    %vm560 = vcmp.eq.s32.totalorder %v296, %v506
    %vm561 = vcmp.eq.s32.totalorder %v293, %v509
    %vm562 = vcmp.eq.s32.totalorder %v294, %v509
    %vm563 = vcmp.eq.s32.totalorder %v295, %v509
    %vm564 = vcmp.eq.s32.totalorder %v296, %v509
    %vm565 = vcmp.eq.s32.totalorder %v293, %v512
    %vm566 = vcmp.eq.s32.totalorder %v294, %v512
    %vm567 = vcmp.eq.s32.totalorder %v295, %v512
    %vm568 = vcmp.eq.s32.totalorder %v296, %v512
    %vm569 = vcmp.eq.s32.totalorder %v293, %v515
    %vm570 = vcmp.eq.s32.totalorder %v294, %v515
    %vm571 = vcmp.eq.s32.totalorder %v295, %v515
    %vm572 = vcmp.eq.s32.totalorder %v296, %v515
    %vm573 = vcmp.eq.s32.totalorder %v293, %v518
    %vm574 = vcmp.eq.s32.totalorder %v294, %v518
    %vm575 = vcmp.eq.s32.totalorder %v295, %v518
    %vm576 = vcmp.eq.s32.totalorder %v296, %v518
    %vm577 = vcmp.eq.s32.totalorder %v293, %v521
    %vm578 = vcmp.eq.s32.totalorder %v294, %v521
    %vm579 = vcmp.eq.s32.totalorder %v295, %v521
    %vm580 = vcmp.eq.s32.totalorder %v296, %v521
    %vm581 = vcmp.eq.s32.totalorder %v293, %v524
    %vm582 = vcmp.eq.s32.totalorder %v294, %v524
    %vm583 = vcmp.eq.s32.totalorder %v295, %v524
    %vm584 = vcmp.eq.s32.totalorder %v296, %v524
    %vm585 = vcmp.eq.s32.totalorder %v293, %v527
    %vm586 = vcmp.eq.s32.totalorder %v294, %v527
    %vm587 = vcmp.eq.s32.totalorder %v295, %v527
    %vm588 = vcmp.eq.s32.totalorder %v296, %v527
    %vm589 = vcmp.eq.s32.totalorder %v293, %v530
    %vm590 = vcmp.eq.s32.totalorder %v294, %v530
    %vm591 = vcmp.eq.s32.totalorder %v295, %v530
    %vm592 = vcmp.eq.s32.totalorder %v296, %v530
    %vm593 = vcmp.eq.s32.totalorder %v293, %v533
    %vm594 = vcmp.eq.s32.totalorder %v294, %v533
    %vm595 = vcmp.eq.s32.totalorder %v295, %v533
    %vm596 = vcmp.eq.s32.totalorder %v296, %v533
    %vm597 = vcmp.eq.s32.totalorder %v293, %v536
    %vm598 = vcmp.eq.s32.totalorder %v294, %v536
    %vm599 = vcmp.eq.s32.totalorder %v295, %v536
    %vm600 = vcmp.eq.s32.totalorder %v296, %v536
    %v601 = vsel %vm425, 1, 0
    %v602 = vsel %vm426, 1, 0
    %v603 = vsel %vm427, 1, 0
    %v604 = vsel %vm428, 1, 0
    %v605 = vsel %vm429, 1, 0
    %v606 = vsel %vm430, 1, 0
    %v607 = vsel %vm431, 1, 0
    %v608 = vsel %vm432, 1, 0
    %v609 = vsel %vm433, 1, 0
    %v610 = vsel %vm434, 1, 0
    %v611 = vsel %vm435, 1, 0
    %v612 = vsel %vm436, 1, 0
    %v613 = vsel %vm437, 1, 0
    %v614 = vsel %vm438, 1, 0
    %v615 = vsel %vm439, 1, 0
    %v616 = vsel %vm440, 1, 0
    %617 = vset.pattern.permute.xlu0 0
    %618 = vperm.xlu0 %617, %v601
    %v619 = vpop.permute.xlu0 %618
    %620 = vset.pattern.permute.xlu0 0
    %621 = vperm.xlu0 %620, %v602
    %v622 = vpop.permute.xlu0 %621
    %623 = vset.pattern.permute.xlu0 0
    %624 = vperm.xlu0 %623, %v603
    %v625 = vpop.permute.xlu0 %624
    %626 = vset.pattern.permute.xlu0 0
    %627 = vperm.xlu0 %626, %v604
    %v628 = vpop.permute.xlu0 %627
    %629 = vset.pattern.permute.xlu0 0
    %630 = vperm.xlu0 %629, %v605
    %v631 = vpop.permute.xlu0 %630
    %632 = vset.pattern.permute.xlu0 0
    %633 = vperm.xlu0 %632, %v606
    %v634 = vpop.permute.xlu0 %633
    %635 = vset.pattern.permute.xlu0 0
    %636 = vperm.xlu0 %635, %v607
    %v637 = vpop.permute.xlu0 %636
    %638 = vset.pattern.permute.xlu0 0
    %639 = vperm.xlu0 %638, %v608
    %v640 = vpop.permute.xlu0 %639
    %641 = vset.pattern.permute.xlu0 0
    %642 = vperm.xlu0 %641, %v609
    %v643 = vpop.permute.xlu0 %642
    %644 = vset.pattern.permute.xlu0 0
    %645 = vperm.xlu0 %644, %v610
    %v646 = vpop.permute.xlu0 %645
    %647 = vset.pattern.permute.xlu0 0
    %648 = vperm.xlu0 %647, %v611
    %v649 = vpop.permute.xlu0 %648
    %650 = vset.pattern.permute.xlu0 0
    %651 = vperm.xlu0 %650, %v612
    %v652 = vpop.permute.xlu0 %651
    %653 = vset.pattern.permute.xlu0 0
    %654 = vperm.xlu0 %653, %v613
    %v655 = vpop.permute.xlu0 %654
    %656 = vset.pattern.permute.xlu0 0
    %657 = vperm.xlu0 %656, %v614
    %v658 = vpop.permute.xlu0 %657
    %659 = vset.pattern.permute.xlu0 0
    %660 = vperm.xlu0 %659, %v615
    %v661 = vpop.permute.xlu0 %660
    %662 = vset.pattern.permute.xlu0 0
    %663 = vperm.xlu0 %662, %v616
    %v664 = vpop.permute.xlu0 %663
    %vm665 = vcmp.eq.s32.totalorder %v619, 1
    %vm666 = vcmp.eq.s32.totalorder %v622, 1
    %vm667 = vcmp.eq.s32.totalorder %v625, 1
    %vm668 = vcmp.eq.s32.totalorder %v628, 1
    %vm669 = vcmp.eq.s32.totalorder %v631, 1
    %vm670 = vcmp.eq.s32.totalorder %v634, 1
    %vm671 = vcmp.eq.s32.totalorder %v637, 1
    %vm672 = vcmp.eq.s32.totalorder %v640, 1
    %vm673 = vcmp.eq.s32.totalorder %v643, 1
    %vm674 = vcmp.eq.s32.totalorder %v646, 1
    %vm675 = vcmp.eq.s32.totalorder %v649, 1
    %vm676 = vcmp.eq.s32.totalorder %v652, 1
    %vm677 = vcmp.eq.s32.totalorder %v655, 1
    %vm678 = vcmp.eq.s32.totalorder %v658, 1
    %vm679 = vcmp.eq.s32.totalorder %v661, 1
    %vm680 = vcmp.eq.s32.totalorder %v664, 1
    %vm681 = vmand %vm537, %vm665
    %vm682 = vmand %vm538, %vm665
    %vm683 = vmand %vm539, %vm665
    %vm684 = vmand %vm540, %vm665
    %vm685 = vmand %vm541, %vm666
    %vm686 = vmand %vm542, %vm666
    %vm687 = vmand %vm543, %vm666
    %vm688 = vmand %vm544, %vm666
    %vm689 = vmand %vm545, %vm667
    %vm690 = vmand %vm546, %vm667
    %vm691 = vmand %vm547, %vm667
    %vm692 = vmand %vm548, %vm667
    %vm693 = vmand %vm549, %vm668
    %vm694 = vmand %vm550, %vm668
    %vm695 = vmand %vm551, %vm668
    %vm696 = vmand %vm552, %vm668
    %vm697 = vmand %vm553, %vm669
    %vm698 = vmand %vm554, %vm669
    %vm699 = vmand %vm555, %vm669
    %vm700 = vmand %vm556, %vm669
    %vm701 = vmand %vm557, %vm670
    %vm702 = vmand %vm558, %vm670
    %vm703 = vmand %vm559, %vm670
    %vm704 = vmand %vm560, %vm670
    %vm705 = vmand %vm561, %vm671
    %vm706 = vmand %vm562, %vm671
    %vm707 = vmand %vm563, %vm671
    %vm708 = vmand %vm564, %vm671
    %vm709 = vmand %vm565, %vm672
    %vm710 = vmand %vm566, %vm672
    %vm711 = vmand %vm567, %vm672
    %vm712 = vmand %vm568, %vm672
    %vm713 = vmand %vm569, %vm673
    %vm714 = vmand %vm570, %vm673
    %vm715 = vmand %vm571, %vm673
    %vm716 = vmand %vm572, %vm673
    %vm717 = vmand %vm573, %vm674
    %vm718 = vmand %vm574, %vm674
    %vm719 = vmand %vm575, %vm674
    %vm720 = vmand %vm576, %vm674
    %vm721 = vmand %vm577, %vm675
    %vm722 = vmand %vm578, %vm675
    %vm723 = vmand %vm579, %vm675
    %vm724 = vmand %vm580, %vm675
    %vm725 = vmand %vm581, %vm676
    %vm726 = vmand %vm582, %vm676
    %vm727 = vmand %vm583, %vm676
    %vm728 = vmand %vm584, %vm676
    %vm729 = vmand %vm585, %vm677
    %vm730 = vmand %vm586, %vm677
    %vm731 = vmand %vm587, %vm677
    %vm732 = vmand %vm588, %vm677
    %vm733 = vmand %vm589, %vm678
    %vm734 = vmand %vm590, %vm678
    %vm735 = vmand %vm591, %vm678
    %vm736 = vmand %vm592, %vm678
    %vm737 = vmand %vm593, %vm679
    %vm738 = vmand %vm594, %vm679
    %vm739 = vmand %vm595, %vm679
    %vm740 = vmand %vm596, %vm679
    %vm741 = vmand %vm597, %vm680
    %vm742 = vmand %vm598, %vm680
    %vm743 = vmand %vm599, %vm680
    %vm744 = vmand %vm600, %vm680
    %v745 = vsel %vm681, 1.0, 0.0
    %v746 = vsel %vm682, 1.0, 0.0
    %v747 = vsel %vm683, 1.0, 0.0
    %v748 = vsel %vm684, 1.0, 0.0
    %v749 = vsel %vm685, 1.0, 0.0
    %v750 = vsel %vm686, 1.0, 0.0
    %v751 = vsel %vm687, 1.0, 0.0
    %v752 = vsel %vm688, 1.0, 0.0
    %v753 = vsel %vm689, 1.0, 0.0
    %v754 = vsel %vm690, 1.0, 0.0
    %v755 = vsel %vm691, 1.0, 0.0
    %v756 = vsel %vm692, 1.0, 0.0
    %v757 = vsel %vm693, 1.0, 0.0
    %v758 = vsel %vm694, 1.0, 0.0
    %v759 = vsel %vm695, 1.0, 0.0
    %v760 = vsel %vm696, 1.0, 0.0
    %v761 = vsel %vm697, 1.0, 0.0
    %v762 = vsel %vm698, 1.0, 0.0
    %v763 = vsel %vm699, 1.0, 0.0
    %v764 = vsel %vm700, 1.0, 0.0
    %v765 = vsel %vm701, 1.0, 0.0
    %v766 = vsel %vm702, 1.0, 0.0
    %v767 = vsel %vm703, 1.0, 0.0
    %v768 = vsel %vm704, 1.0, 0.0
    %v769 = vsel %vm705, 1.0, 0.0
    %v770 = vsel %vm706, 1.0, 0.0
    %v771 = vsel %vm707, 1.0, 0.0
    %v772 = vsel %vm708, 1.0, 0.0
    %v773 = vsel %vm709, 1.0, 0.0
    %v774 = vsel %vm710, 1.0, 0.0
    %v775 = vsel %vm711, 1.0, 0.0
    %v776 = vsel %vm712, 1.0, 0.0
    %v777 = vsel %vm713, 1.0, 0.0
    %v778 = vsel %vm714, 1.0, 0.0
    %v779 = vsel %vm715, 1.0, 0.0
    %v780 = vsel %vm716, 1.0, 0.0
    %v781 = vsel %vm717, 1.0, 0.0
    %v782 = vsel %vm718, 1.0, 0.0
    %v783 = vsel %vm719, 1.0, 0.0
    %v784 = vsel %vm720, 1.0, 0.0
    %v785 = vsel %vm721, 1.0, 0.0
    %v786 = vsel %vm722, 1.0, 0.0
    %v787 = vsel %vm723, 1.0, 0.0
    %v788 = vsel %vm724, 1.0, 0.0
    %v789 = vsel %vm725, 1.0, 0.0
    %v790 = vsel %vm726, 1.0, 0.0
    %v791 = vsel %vm727, 1.0, 0.0
    %v792 = vsel %vm728, 1.0, 0.0
    %v793 = vsel %vm729, 1.0, 0.0
    %v794 = vsel %vm730, 1.0, 0.0
    %v795 = vsel %vm731, 1.0, 0.0
    %v796 = vsel %vm732, 1.0, 0.0
    %v797 = vsel %vm733, 1.0, 0.0
    %v798 = vsel %vm734, 1.0, 0.0
    %v799 = vsel %vm735, 1.0, 0.0
    %v800 = vsel %vm736, 1.0, 0.0
    %v801 = vsel %vm737, 1.0, 0.0
    %v802 = vsel %vm738, 1.0, 0.0
    %v803 = vsel %vm739, 1.0, 0.0
    %v804 = vsel %vm740, 1.0, 0.0
    %v805 = vsel %vm741, 1.0, 0.0
    %v806 = vsel %vm742, 1.0, 0.0
    %v807 = vsel %vm743, 1.0, 0.0
    %v808 = vsel %vm744, 1.0, 0.0
    %v809 = vpack.c.bf16 %v749, %v745
    %v810 = vpack.c.bf16 %v750, %v746
    %v811 = vpack.c.bf16 %v751, %v747
    %v812 = vpack.c.bf16 %v752, %v748
    %v813 = vpack.c.bf16 %v757, %v753
    %v814 = vpack.c.bf16 %v758, %v754
    %v815 = vpack.c.bf16 %v759, %v755
    %v816 = vpack.c.bf16 %v760, %v756
    %v817 = vpack.c.bf16 %v765, %v761
    %v818 = vpack.c.bf16 %v766, %v762
    %v819 = vpack.c.bf16 %v767, %v763
    %v820 = vpack.c.bf16 %v768, %v764
    %v821 = vpack.c.bf16 %v773, %v769
    %v822 = vpack.c.bf16 %v774, %v770
    %v823 = vpack.c.bf16 %v775, %v771
    %v824 = vpack.c.bf16 %v776, %v772
    %v825 = vpack.c.bf16 %v781, %v777
    %v826 = vpack.c.bf16 %v782, %v778
    %v827 = vpack.c.bf16 %v783, %v779
    %v828 = vpack.c.bf16 %v784, %v780
    %v829 = vpack.c.bf16 %v789, %v785
    %v830 = vpack.c.bf16 %v790, %v786
    %v831 = vpack.c.bf16 %v791, %v787
    %v832 = vpack.c.bf16 %v792, %v788
    %v833 = vpack.c.bf16 %v797, %v793
    %v834 = vpack.c.bf16 %v798, %v794
    %v835 = vpack.c.bf16 %v799, %v795
    %v836 = vpack.c.bf16 %v800, %v796
    %v837 = vpack.c.bf16 %v805, %v801
    %v838 = vpack.c.bf16 %v806, %v802
    %v839 = vpack.c.bf16 %v807, %v803
    %v840 = vpack.c.bf16 %v808, %v804
    %v905 = vunpack.c.l.b16 %v180
    %v906 = vunpack.c.l.b16 %v181
    %v907 = vunpack.c.l.b16 %v182
    %v908 = vunpack.c.l.b16 %v183
    %v909 = vunpack.c.l.b16 %v184
    %v910 = vunpack.c.l.b16 %v185
    %v911 = vunpack.c.l.b16 %v186
    %v912 = vunpack.c.l.b16 %v187
    %v913 = vunpack.c.l.b16 %v188
    %v914 = vunpack.c.l.b16 %v189
    %v915 = vunpack.c.l.b16 %v190
    %v916 = vunpack.c.l.b16 %v191
    %v917 = vunpack.c.l.b16 %v192
    %v918 = vunpack.c.l.b16 %v193
    %v919 = vunpack.c.l.b16 %v194
    %v920 = vunpack.c.l.b16 %v195
    %v921 = vunpack.c.l.b16 %v196
    %v922 = vunpack.c.l.b16 %v197
    %v923 = vunpack.c.l.b16 %v198
    %v924 = vunpack.c.l.b16 %v199
    %v925 = vunpack.c.l.b16 %v200
    %v926 = vunpack.c.l.b16 %v201
    %v927 = vunpack.c.l.b16 %v202
    %v928 = vunpack.c.l.b16 %v203
    %v929 = vunpack.c.l.b16 %v204
    %v930 = vunpack.c.l.b16 %v205
    %v931 = vunpack.c.l.b16 %v206
    %v932 = vunpack.c.l.b16 %v207
    %v933 = vunpack.c.l.b16 %v208
    %v934 = vunpack.c.l.b16 %v209
    %v935 = vunpack.c.l.b16 %v210
    %v936 = vunpack.c.l.b16 %v211
    %v937 = vunpack.c.l.b16 %v212
    %v938 = vunpack.c.l.b16 %v213
    %v939 = vunpack.c.l.b16 %v214
    %v940 = vunpack.c.l.b16 %v215
    %v941 = vunpack.c.l.b16 %v216
    %v942 = vunpack.c.l.b16 %v217
    %v943 = vunpack.c.l.b16 %v218
    %v944 = vunpack.c.l.b16 %v219
    %v945 = vunpack.c.l.b16 %v220
    %v946 = vunpack.c.l.b16 %v221
    %v947 = vunpack.c.l.b16 %v222
    %v948 = vunpack.c.l.b16 %v223
    %v949 = vunpack.c.l.b16 %v224
    %v950 = vunpack.c.l.b16 %v225
    %v951 = vunpack.c.l.b16 %v226
    %v952 = vunpack.c.l.b16 %v227
    %v953 = vunpack.c.l.b16 %v228
    %v954 = vunpack.c.l.b16 %v229
    %v955 = vunpack.c.l.b16 %v230
    %v956 = vunpack.c.l.b16 %v231
    %v957 = vunpack.c.l.b16 %v232
    %v958 = vunpack.c.l.b16 %v233
    %v959 = vunpack.c.l.b16 %v234
    %v960 = vunpack.c.l.b16 %v235
    %v961 = vunpack.c.l.b16 %v236
    %v962 = vunpack.c.l.b16 %v237
    %v963 = vunpack.c.l.b16 %v238
    %v964 = vunpack.c.l.b16 %v239
    %v965 = vunpack.c.l.b16 %v240
    %v966 = vunpack.c.l.b16 %v241
    %v967 = vunpack.c.l.b16 %v242
    %v968 = vunpack.c.l.b16 %v243
    %v969 = vpack.c.b16 %v906, %v905
    %v970 = vpack.c.b16 %v908, %v907
    %v971 = vpack.c.b16 %v910, %v909
    %v972 = vpack.c.b16 %v912, %v911
    %v973 = vpack.c.b16 %v914, %v913
    %v974 = vpack.c.b16 %v916, %v915
    %v975 = vpack.c.b16 %v918, %v917
    %v976 = vpack.c.b16 %v920, %v919
    %v977 = vpack.c.b16 %v922, %v921
    %v978 = vpack.c.b16 %v924, %v923
    %v979 = vpack.c.b16 %v926, %v925
    %v980 = vpack.c.b16 %v928, %v927
    %v981 = vpack.c.b16 %v930, %v929
    %v982 = vpack.c.b16 %v932, %v931
    %v983 = vpack.c.b16 %v934, %v933
    %v984 = vpack.c.b16 %v936, %v935
    %v985 = vpack.c.b16 %v938, %v937
    %v986 = vpack.c.b16 %v940, %v939
    %v987 = vpack.c.b16 %v942, %v941
    %v988 = vpack.c.b16 %v944, %v943
    %v989 = vpack.c.b16 %v946, %v945
    %v990 = vpack.c.b16 %v948, %v947
    %v991 = vpack.c.b16 %v950, %v949
    %v992 = vpack.c.b16 %v952, %v951
    %v993 = vpack.c.b16 %v954, %v953
    %v994 = vpack.c.b16 %v956, %v955
    %v995 = vpack.c.b16 %v958, %v957
    %v996 = vpack.c.b16 %v960, %v959
    %v997 = vpack.c.b16 %v962, %v961
    %v998 = vpack.c.b16 %v964, %v963
    %v999 = vpack.c.b16 %v966, %v965
    %v1000 = vpack.c.b16 %v968, %v967
    %1033 = vmatpush.bf16.msra.mxu0 %v976
    %1034 = vmatpush.bf16.msra.mxu0 %v975
    %1035 = vmatpush.bf16.msra.mxu0 %v974
    %1036 = vmatpush.bf16.msra.mxu0 %v973
    %1037 = vmatpush.bf16.msra.mxu0 %v972
    %1038 = vmatpush.bf16.msra.mxu0 %v971
    %1039 = vmatpush.bf16.msra.mxu0 %v970
    %1040 = vmatpush.bf16.msra.mxu0 %v969
    %1041 = vmatmul.bf16.gmra.mxu0 %v809
    %v1042 = vpop.f32.mrf.mxu0
    %v1043 = vadd.f32 0.0, %v1042
    %v1044 = vpop.f32.mrf.mxu0
    %v1045 = vadd.f32 0.0, %v1044
    %1046 = vmatmul.bf16.gmra.mxu0 %v813
    %v1047 = vpop.f32.mrf.mxu0
    %v1048 = vadd.f32 0.0, %v1047
    %v1049 = vpop.f32.mrf.mxu0
    %v1050 = vadd.f32 0.0, %v1049
    %1051 = vmatmul.bf16.gmra.mxu0 %v817
    %v1052 = vpop.f32.mrf.mxu0
    %v1053 = vadd.f32 0.0, %v1052
    %v1054 = vpop.f32.mrf.mxu0
    %v1055 = vadd.f32 0.0, %v1054
    %1056 = vmatmul.bf16.gmra.mxu0 %v821
    %v1057 = vpop.f32.mrf.mxu0
    %v1058 = vadd.f32 0.0, %v1057
    %v1059 = vpop.f32.mrf.mxu0
    %v1060 = vadd.f32 0.0, %v1059
    %1061 = vmatmul.bf16.gmra.mxu0 %v825
    %v1062 = vpop.f32.mrf.mxu0
    %v1063 = vadd.f32 0.0, %v1062
    %v1064 = vpop.f32.mrf.mxu0
    %v1065 = vadd.f32 0.0, %v1064
    %1066 = vmatmul.bf16.gmra.mxu0 %v829
    %v1067 = vpop.f32.mrf.mxu0
    %v1068 = vadd.f32 0.0, %v1067
    %v1069 = vpop.f32.mrf.mxu0
    %v1070 = vadd.f32 0.0, %v1069
    %1071 = vmatmul.bf16.gmra.mxu0 %v833
    %v1072 = vpop.f32.mrf.mxu0
    %v1073 = vadd.f32 0.0, %v1072
    %v1074 = vpop.f32.mrf.mxu0
    %v1075 = vadd.f32 0.0, %v1074
    %1076 = vmatmul.bf16.gmra.mxu0 %v837
    %v1077 = vpop.f32.mrf.mxu0
    %v1078 = vadd.f32 0.0, %v1077
    %v1079 = vpop.f32.mrf.mxu0
    %v1080 = vadd.f32 0.0, %v1079
    %1081 = vdwg.mxu0
    %1082 = vmatpush.bf16.msra.mxu0 %v984
    %1083 = vmatpush.bf16.msra.mxu0 %v983
    %1084 = vmatpush.bf16.msra.mxu0 %v982
    %1085 = vmatpush.bf16.msra.mxu0 %v981
    %1086 = vmatpush.bf16.msra.mxu0 %v980
    %1087 = vmatpush.bf16.msra.mxu0 %v979
    %1088 = vmatpush.bf16.msra.mxu0 %v978
    %1089 = vmatpush.bf16.msra.mxu0 %v977
    %1090 = vmatmul.bf16.gmra.mxu0 %v810
    %v1091 = vpop.f32.mrf.mxu0
    %v1092 = vadd.f32 %v1043, %v1091
    %v1093 = vpop.f32.mrf.mxu0
    %v1094 = vadd.f32 %v1045, %v1093
    %1095 = vmatmul.bf16.gmra.mxu0 %v814
    %v1096 = vpop.f32.mrf.mxu0
    %v1097 = vadd.f32 %v1048, %v1096
    %v1098 = vpop.f32.mrf.mxu0
    %v1099 = vadd.f32 %v1050, %v1098
    %1100 = vmatmul.bf16.gmra.mxu0 %v818
    %v1101 = vpop.f32.mrf.mxu0
    %v1102 = vadd.f32 %v1053, %v1101
    %v1103 = vpop.f32.mrf.mxu0
    %v1104 = vadd.f32 %v1055, %v1103
    %1105 = vmatmul.bf16.gmra.mxu0 %v822
    %v1106 = vpop.f32.mrf.mxu0
    %v1107 = vadd.f32 %v1058, %v1106
    %v1108 = vpop.f32.mrf.mxu0
    %v1109 = vadd.f32 %v1060, %v1108
    %1110 = vmatmul.bf16.gmra.mxu0 %v826
    %v1111 = vpop.f32.mrf.mxu0
    %v1112 = vadd.f32 %v1063, %v1111
    %v1113 = vpop.f32.mrf.mxu0
    %v1114 = vadd.f32 %v1065, %v1113
    %1115 = vmatmul.bf16.gmra.mxu0 %v830
    %v1116 = vpop.f32.mrf.mxu0
    %v1117 = vadd.f32 %v1068, %v1116
    %v1118 = vpop.f32.mrf.mxu0
    %v1119 = vadd.f32 %v1070, %v1118
    %1120 = vmatmul.bf16.gmra.mxu0 %v834
    %v1121 = vpop.f32.mrf.mxu0
    %v1122 = vadd.f32 %v1073, %v1121
    %v1123 = vpop.f32.mrf.mxu0
    %v1124 = vadd.f32 %v1075, %v1123
    %1125 = vmatmul.bf16.gmra.mxu0 %v838
    %v1126 = vpop.f32.mrf.mxu0
    %v1127 = vadd.f32 %v1078, %v1126
    %v1128 = vpop.f32.mrf.mxu0
    %v1129 = vadd.f32 %v1080, %v1128
    %1130 = vdwg.mxu0
    %1131 = vmatpush.bf16.msra.mxu0 %v992
    %1132 = vmatpush.bf16.msra.mxu0 %v991
    %1133 = vmatpush.bf16.msra.mxu0 %v990
    %1134 = vmatpush.bf16.msra.mxu0 %v989
    %1135 = vmatpush.bf16.msra.mxu0 %v988
    %1136 = vmatpush.bf16.msra.mxu0 %v987
    %1137 = vmatpush.bf16.msra.mxu0 %v986
    %1138 = vmatpush.bf16.msra.mxu0 %v985
    %1139 = vmatmul.bf16.gmra.mxu0 %v811
    %v1140 = vpop.f32.mrf.mxu0
    %v1141 = vadd.f32 %v1092, %v1140
    %v1142 = vpop.f32.mrf.mxu0
    %v1143 = vadd.f32 %v1094, %v1142
    %1144 = vmatmul.bf16.gmra.mxu0 %v815
    %v1145 = vpop.f32.mrf.mxu0
    %v1146 = vadd.f32 %v1097, %v1145
    %v1147 = vpop.f32.mrf.mxu0
    %v1148 = vadd.f32 %v1099, %v1147
    %1149 = vmatmul.bf16.gmra.mxu0 %v819
    %v1150 = vpop.f32.mrf.mxu0
    %v1151 = vadd.f32 %v1102, %v1150
    %v1152 = vpop.f32.mrf.mxu0
    %v1153 = vadd.f32 %v1104, %v1152
    %1154 = vmatmul.bf16.gmra.mxu0 %v823
    %v1155 = vpop.f32.mrf.mxu0
    %v1156 = vadd.f32 %v1107, %v1155
    %v1157 = vpop.f32.mrf.mxu0
    %v1158 = vadd.f32 %v1109, %v1157
    %1159 = vmatmul.bf16.gmra.mxu0 %v827
    %v1160 = vpop.f32.mrf.mxu0
    %v1161 = vadd.f32 %v1112, %v1160
    %v1162 = vpop.f32.mrf.mxu0
    %v1163 = vadd.f32 %v1114, %v1162
    %1164 = vmatmul.bf16.gmra.mxu0 %v831
    %v1165 = vpop.f32.mrf.mxu0
    %v1166 = vadd.f32 %v1117, %v1165
    %v1167 = vpop.f32.mrf.mxu0
    %v1168 = vadd.f32 %v1119, %v1167
    %1169 = vmatmul.bf16.gmra.mxu0 %v835
    %v1170 = vpop.f32.mrf.mxu0
    %v1171 = vadd.f32 %v1122, %v1170
    %v1172 = vpop.f32.mrf.mxu0
    %v1173 = vadd.f32 %v1124, %v1172
    %1174 = vmatmul.bf16.gmra.mxu0 %v839
    %v1175 = vpop.f32.mrf.mxu0
    %v1176 = vadd.f32 %v1127, %v1175
    %v1177 = vpop.f32.mrf.mxu0
    %v1178 = vadd.f32 %v1129, %v1177
    %1179 = vdwg.mxu0
    %1180 = vmatpush.bf16.msra.mxu0 %v1000
    %1181 = vmatpush.bf16.msra.mxu0 %v999
    %1182 = vmatpush.bf16.msra.mxu0 %v998
    %1183 = vmatpush.bf16.msra.mxu0 %v997
    %1184 = vmatpush.bf16.msra.mxu0 %v996
    %1185 = vmatpush.bf16.msra.mxu0 %v995
    %1186 = vmatpush.bf16.msra.mxu0 %v994
    %1187 = vmatpush.bf16.msra.mxu0 %v993
    %1188 = vmatmul.bf16.gmra.mxu0 %v812
    %v1189 = vpop.f32.mrf.mxu0
    %v1190 = vadd.f32 %v1141, %v1189
    %v1191 = vpop.f32.mrf.mxu0
    %v1192 = vadd.f32 %v1143, %v1191
    %1193 = vmatmul.bf16.gmra.mxu0 %v816
    %v1194 = vpop.f32.mrf.mxu0
    %v1195 = vadd.f32 %v1146, %v1194
    %v1196 = vpop.f32.mrf.mxu0
    %v1197 = vadd.f32 %v1148, %v1196
    %1198 = vmatmul.bf16.gmra.mxu0 %v820
    %v1199 = vpop.f32.mrf.mxu0
    %v1200 = vadd.f32 %v1151, %v1199
    %v1201 = vpop.f32.mrf.mxu0
    %v1202 = vadd.f32 %v1153, %v1201
    %1203 = vmatmul.bf16.gmra.mxu0 %v824
    %v1204 = vpop.f32.mrf.mxu0
    %v1205 = vadd.f32 %v1156, %v1204
    %v1206 = vpop.f32.mrf.mxu0
    %v1207 = vadd.f32 %v1158, %v1206
    %1208 = vmatmul.bf16.gmra.mxu0 %v828
    %v1209 = vpop.f32.mrf.mxu0
    %v1210 = vadd.f32 %v1161, %v1209
    %v1211 = vpop.f32.mrf.mxu0
    %v1212 = vadd.f32 %v1163, %v1211
    %1213 = vmatmul.bf16.gmra.mxu0 %v832
    %v1214 = vpop.f32.mrf.mxu0
    %v1215 = vadd.f32 %v1166, %v1214
    %v1216 = vpop.f32.mrf.mxu0
    %v1217 = vadd.f32 %v1168, %v1216
    %1218 = vmatmul.bf16.gmra.mxu0 %v836
    %v1219 = vpop.f32.mrf.mxu0
    %v1220 = vadd.f32 %v1171, %v1219
    %v1221 = vpop.f32.mrf.mxu0
    %v1222 = vadd.f32 %v1173, %v1221
    %1223 = vmatmul.bf16.gmra.mxu0 %v840
    %v1224 = vpop.f32.mrf.mxu0
    %v1225 = vadd.f32 %v1176, %v1224
    %v1226 = vpop.f32.mrf.mxu0
    %v1227 = vadd.f32 %v1178, %v1226
    %1228 = vdwg.mxu0
    %v1229 = vpack.c.bf16 %v1192, %v1190
    %v1230 = vpack.c.bf16 %v1197, %v1195
    %v1231 = vpack.c.bf16 %v1202, %v1200
    %v1232 = vpack.c.bf16 %v1207, %v1205
    %v1233 = vpack.c.bf16 %v1212, %v1210
    %v1234 = vpack.c.bf16 %v1217, %v1215
    %v1235 = vpack.c.bf16 %v1222, %v1220
    %v1236 = vpack.c.bf16 %v1227, %v1225
    %v1237 = vld [vmem:[%s4] sm:$0xf]
    %v1238 = vld [vmem:[%s4 + $0x4] sm:$0xf]
    %v1239 = vld [vmem:[%s4 + $0x8] sm:$0xf]
    %v1240 = vld [vmem:[%s4 + $0xc] sm:$0xf]
    %v1241 = vld [vmem:[%s4 + $0x10] sm:$0xf]
    %v1242 = vld [vmem:[%s4 + $0x14] sm:$0xf]
    %v1243 = vld [vmem:[%s4 + $0x18] sm:$0xf]
    %v1244 = vld [vmem:[%s4 + $0x1c] sm:$0xf]
    %v1245 = vld [vmem:[%s4 + $0x20] sm:$0xf]
    %v1246 = vld [vmem:[%s4 + $0x24] sm:$0xf]
    %v1247 = vld [vmem:[%s4 + $0x28] sm:$0xf]
    %v1248 = vld [vmem:[%s4 + $0x2c] sm:$0xf]
    %v1249 = vld [vmem:[%s4 + $0x30] sm:$0xf]
    %v1250 = vld [vmem:[%s4 + $0x34] sm:$0xf]
    %v1251 = vld [vmem:[%s4 + $0x38] sm:$0xf]
    %v1252 = vld [vmem:[%s4 + $0x3c] sm:$0xf]
    %vm1253 = vcmp.ge.s32.totalorder %v260, 0
    %vm1254 = vcmp.ge.s32.totalorder %v261, 0
    %vm1255 = vcmp.ge.s32.totalorder %v262, 0
    %vm1256 = vcmp.ge.s32.totalorder %v263, 0
    %vm1257 = vcmp.ge.s32.totalorder %v264, 0
    %vm1258 = vcmp.ge.s32.totalorder %v265, 0
    %vm1259 = vcmp.ge.s32.totalorder %v266, 0
    %vm1260 = vcmp.ge.s32.totalorder %v267, 0
    %vm1261 = vcmp.ge.s32.totalorder %v268, 0
    %vm1262 = vcmp.ge.s32.totalorder %v269, 0
    %vm1263 = vcmp.ge.s32.totalorder %v270, 0
    %vm1264 = vcmp.ge.s32.totalorder %v271, 0
    %vm1265 = vcmp.ge.s32.totalorder %v272, 0
    %vm1266 = vcmp.ge.s32.totalorder %v273, 0
    %vm1267 = vcmp.ge.s32.totalorder %v274, 0
    %vm1268 = vcmp.ge.s32.totalorder %v275, 0
    %vm1269 = vmand %vm361, %vm1253
    %vm1270 = vmand %vm362, %vm1254
    %vm1271 = vmand %vm363, %vm1255
    %vm1272 = vmand %vm364, %vm1256
    %vm1273 = vmand %vm365, %vm1257
    %vm1274 = vmand %vm366, %vm1258
    %vm1275 = vmand %vm367, %vm1259
    %vm1276 = vmand %vm368, %vm1260
    %vm1277 = vmand %vm369, %vm1261
    %vm1278 = vmand %vm370, %vm1262
    %vm1279 = vmand %vm371, %vm1263
    %vm1280 = vmand %vm372, %vm1264
    %vm1281 = vmand %vm373, %vm1265
    %vm1282 = vmand %vm374, %vm1266
    %vm1283 = vmand %vm375, %vm1267
    %vm1284 = vmand %vm376, %vm1268
    %vm1285 = vcmp.lt.s32.totalorder %v260, 16
    %vm1286 = vcmp.lt.s32.totalorder %v261, 16
    %vm1287 = vcmp.lt.s32.totalorder %v262, 16
    %vm1288 = vcmp.lt.s32.totalorder %v263, 16
    %vm1289 = vcmp.lt.s32.totalorder %v264, 16
    %vm1290 = vcmp.lt.s32.totalorder %v265, 16
    %vm1291 = vcmp.lt.s32.totalorder %v266, 16
    %vm1292 = vcmp.lt.s32.totalorder %v267, 16
    %vm1293 = vcmp.lt.s32.totalorder %v268, 16
    %vm1294 = vcmp.lt.s32.totalorder %v269, 16
    %vm1295 = vcmp.lt.s32.totalorder %v270, 16
    %vm1296 = vcmp.lt.s32.totalorder %v271, 16
    %vm1297 = vcmp.lt.s32.totalorder %v272, 16
    %vm1298 = vcmp.lt.s32.totalorder %v273, 16
    %vm1299 = vcmp.lt.s32.totalorder %v274, 16
    %vm1300 = vcmp.lt.s32.totalorder %v275, 16
    %vm1301 = vmand %vm1269, %vm1285
    %vm1302 = vmand %vm1270, %vm1286
    %vm1303 = vmand %vm1271, %vm1287
    %vm1304 = vmand %vm1272, %vm1288
    %vm1305 = vmand %vm1273, %vm1289
    %vm1306 = vmand %vm1274, %vm1290
    %vm1307 = vmand %vm1275, %vm1291
    %vm1308 = vmand %vm1276, %vm1292
    %vm1309 = vmand %vm1277, %vm1293
    %vm1310 = vmand %vm1278, %vm1294
    %vm1311 = vmand %vm1279, %vm1295
    %vm1312 = vmand %vm1280, %vm1296
    %vm1313 = vmand %vm1281, %vm1297
    %vm1314 = vmand %vm1282, %vm1298
    %vm1315 = vmand %vm1283, %vm1299
    %vm1316 = vmand %vm1284, %vm1300
    %v1317 = vadd.s32 %v457, %v260
    %v1318 = vadd.s32 %v458, %v261
    %v1319 = vadd.s32 %v459, %v262
    %v1320 = vadd.s32 %v460, %v263
    %v1321 = vadd.s32 %v461, %v264
    %v1322 = vadd.s32 %v462, %v265
    %v1323 = vadd.s32 %v463, %v266
    %v1324 = vadd.s32 %v464, %v267
    %v1325 = vadd.s32 %v465, %v268
    %v1326 = vadd.s32 %v466, %v269
    %v1327 = vadd.s32 %v467, %v270
    %v1328 = vadd.s32 %v468, %v271
    %v1329 = vadd.s32 %v469, %v272
    %v1330 = vadd.s32 %v470, %v273
    %v1331 = vadd.s32 %v471, %v274
    %v1332 = vadd.s32 %v472, %v275
    %1333 = vset.pattern.permute.xlu0 0
    %1334 = vperm.xlu0 %1333, %v1317
    %v1335 = vpop.permute.xlu0 %1334
    %1336 = vset.pattern.permute.xlu0 0
    %1337 = vperm.xlu0 %1336, %v1318
    %v1338 = vpop.permute.xlu0 %1337
    %1339 = vset.pattern.permute.xlu0 0
    %1340 = vperm.xlu0 %1339, %v1319
    %v1341 = vpop.permute.xlu0 %1340
    %1342 = vset.pattern.permute.xlu0 0
    %1343 = vperm.xlu0 %1342, %v1320
    %v1344 = vpop.permute.xlu0 %1343
    %1345 = vset.pattern.permute.xlu0 0
    %1346 = vperm.xlu0 %1345, %v1321
    %v1347 = vpop.permute.xlu0 %1346
    %1348 = vset.pattern.permute.xlu0 0
    %1349 = vperm.xlu0 %1348, %v1322
    %v1350 = vpop.permute.xlu0 %1349
    %1351 = vset.pattern.permute.xlu0 0
    %1352 = vperm.xlu0 %1351, %v1323
    %v1353 = vpop.permute.xlu0 %1352
    %1354 = vset.pattern.permute.xlu0 0
    %1355 = vperm.xlu0 %1354, %v1324
    %v1356 = vpop.permute.xlu0 %1355
    %1357 = vset.pattern.permute.xlu0 0
    %1358 = vperm.xlu0 %1357, %v1325
    %v1359 = vpop.permute.xlu0 %1358
    %1360 = vset.pattern.permute.xlu0 0
    %1361 = vperm.xlu0 %1360, %v1326
    %v1362 = vpop.permute.xlu0 %1361
    %1363 = vset.pattern.permute.xlu0 0
    %1364 = vperm.xlu0 %1363, %v1327
    %v1365 = vpop.permute.xlu0 %1364
    %1366 = vset.pattern.permute.xlu0 0
    %1367 = vperm.xlu0 %1366, %v1328
    %v1368 = vpop.permute.xlu0 %1367
    %1369 = vset.pattern.permute.xlu0 0
    %1370 = vperm.xlu0 %1369, %v1329
    %v1371 = vpop.permute.xlu0 %1370
    %1372 = vset.pattern.permute.xlu0 0
    %1373 = vperm.xlu0 %1372, %v1330
    %v1374 = vpop.permute.xlu0 %1373
    %1375 = vset.pattern.permute.xlu0 0
    %1376 = vperm.xlu0 %1375, %v1331
    %v1377 = vpop.permute.xlu0 %1376
    %1378 = vset.pattern.permute.xlu0 0
    %1379 = vperm.xlu0 %1378, %v1332
    %v1380 = vpop.permute.xlu0 %1379
    %vm1381 = vcmp.eq.s32.totalorder %v293, %v1335
    %vm1382 = vcmp.eq.s32.totalorder %v294, %v1335
    %vm1383 = vcmp.eq.s32.totalorder %v295, %v1335
    %vm1384 = vcmp.eq.s32.totalorder %v296, %v1335
    %vm1385 = vcmp.eq.s32.totalorder %v293, %v1338
    %vm1386 = vcmp.eq.s32.totalorder %v294, %v1338
    %vm1387 = vcmp.eq.s32.totalorder %v295, %v1338
    %vm1388 = vcmp.eq.s32.totalorder %v296, %v1338
    %vm1389 = vcmp.eq.s32.totalorder %v293, %v1341
    %vm1390 = vcmp.eq.s32.totalorder %v294, %v1341
    %vm1391 = vcmp.eq.s32.totalorder %v295, %v1341
    %vm1392 = vcmp.eq.s32.totalorder %v296, %v1341
    %vm1393 = vcmp.eq.s32.totalorder %v293, %v1344
    %vm1394 = vcmp.eq.s32.totalorder %v294, %v1344
    %vm1395 = vcmp.eq.s32.totalorder %v295, %v1344
    %vm1396 = vcmp.eq.s32.totalorder %v296, %v1344
    %vm1397 = vcmp.eq.s32.totalorder %v293, %v1347
    %vm1398 = vcmp.eq.s32.totalorder %v294, %v1347
    %vm1399 = vcmp.eq.s32.totalorder %v295, %v1347
    %vm1400 = vcmp.eq.s32.totalorder %v296, %v1347
    %vm1401 = vcmp.eq.s32.totalorder %v293, %v1350
    %vm1402 = vcmp.eq.s32.totalorder %v294, %v1350
    %vm1403 = vcmp.eq.s32.totalorder %v295, %v1350
    %vm1404 = vcmp.eq.s32.totalorder %v296, %v1350
    %vm1405 = vcmp.eq.s32.totalorder %v293, %v1353
    %vm1406 = vcmp.eq.s32.totalorder %v294, %v1353
    %vm1407 = vcmp.eq.s32.totalorder %v295, %v1353
    %vm1408 = vcmp.eq.s32.totalorder %v296, %v1353
    %vm1409 = vcmp.eq.s32.totalorder %v293, %v1356
    %vm1410 = vcmp.eq.s32.totalorder %v294, %v1356
    %vm1411 = vcmp.eq.s32.totalorder %v295, %v1356
    %vm1412 = vcmp.eq.s32.totalorder %v296, %v1356
    %vm1413 = vcmp.eq.s32.totalorder %v293, %v1359
    %vm1414 = vcmp.eq.s32.totalorder %v294, %v1359
    %vm1415 = vcmp.eq.s32.totalorder %v295, %v1359
    %vm1416 = vcmp.eq.s32.totalorder %v296, %v1359
    %vm1417 = vcmp.eq.s32.totalorder %v293, %v1362
    %vm1418 = vcmp.eq.s32.totalorder %v294, %v1362
    %vm1419 = vcmp.eq.s32.totalorder %v295, %v1362
    %vm1420 = vcmp.eq.s32.totalorder %v296, %v1362
    %vm1421 = vcmp.eq.s32.totalorder %v293, %v1365
    %vm1422 = vcmp.eq.s32.totalorder %v294, %v1365
    %vm1423 = vcmp.eq.s32.totalorder %v295, %v1365
    %vm1424 = vcmp.eq.s32.totalorder %v296, %v1365
    %vm1425 = vcmp.eq.s32.totalorder %v293, %v1368
    %vm1426 = vcmp.eq.s32.totalorder %v294, %v1368
    %vm1427 = vcmp.eq.s32.totalorder %v295, %v1368
    %vm1428 = vcmp.eq.s32.totalorder %v296, %v1368
    %vm1429 = vcmp.eq.s32.totalorder %v293, %v1371
    %vm1430 = vcmp.eq.s32.totalorder %v294, %v1371
    %vm1431 = vcmp.eq.s32.totalorder %v295, %v1371
    %vm1432 = vcmp.eq.s32.totalorder %v296, %v1371
    %vm1433 = vcmp.eq.s32.totalorder %v293, %v1374
    %vm1434 = vcmp.eq.s32.totalorder %v294, %v1374
    %vm1435 = vcmp.eq.s32.totalorder %v295, %v1374
    %vm1436 = vcmp.eq.s32.totalorder %v296, %v1374
    %vm1437 = vcmp.eq.s32.totalorder %v293, %v1377
    %vm1438 = vcmp.eq.s32.totalorder %v294, %v1377
    %vm1439 = vcmp.eq.s32.totalorder %v295, %v1377
    %vm1440 = vcmp.eq.s32.totalorder %v296, %v1377
    %vm1441 = vcmp.eq.s32.totalorder %v293, %v1380
    %vm1442 = vcmp.eq.s32.totalorder %v294, %v1380
    %vm1443 = vcmp.eq.s32.totalorder %v295, %v1380
    %vm1444 = vcmp.eq.s32.totalorder %v296, %v1380
    %v1445 = vsel %vm1301, 1, 0
    %v1446 = vsel %vm1302, 1, 0
    %v1447 = vsel %vm1303, 1, 0
    %v1448 = vsel %vm1304, 1, 0
    %v1449 = vsel %vm1305, 1, 0
    %v1450 = vsel %vm1306, 1, 0
    %v1451 = vsel %vm1307, 1, 0
    %v1452 = vsel %vm1308, 1, 0
    %v1453 = vsel %vm1309, 1, 0
    %v1454 = vsel %vm1310, 1, 0
    %v1455 = vsel %vm1311, 1, 0
    %v1456 = vsel %vm1312, 1, 0
    %v1457 = vsel %vm1313, 1, 0
    %v1458 = vsel %vm1314, 1, 0
    %v1459 = vsel %vm1315, 1, 0
    %v1460 = vsel %vm1316, 1, 0
    %1461 = vset.pattern.permute.xlu0 0
    %1462 = vperm.xlu0 %1461, %v1445
    %v1463 = vpop.permute.xlu0 %1462
    %1464 = vset.pattern.permute.xlu0 0
    %1465 = vperm.xlu0 %1464, %v1446
    %v1466 = vpop.permute.xlu0 %1465
    %1467 = vset.pattern.permute.xlu0 0
    %1468 = vperm.xlu0 %1467, %v1447
    %v1469 = vpop.permute.xlu0 %1468
    %1470 = vset.pattern.permute.xlu0 0
    %1471 = vperm.xlu0 %1470, %v1448
    %v1472 = vpop.permute.xlu0 %1471
    %1473 = vset.pattern.permute.xlu0 0
    %1474 = vperm.xlu0 %1473, %v1449
    %v1475 = vpop.permute.xlu0 %1474
    %1476 = vset.pattern.permute.xlu0 0
    %1477 = vperm.xlu0 %1476, %v1450
    %v1478 = vpop.permute.xlu0 %1477
    %1479 = vset.pattern.permute.xlu0 0
    %1480 = vperm.xlu0 %1479, %v1451
    %v1481 = vpop.permute.xlu0 %1480
    %1482 = vset.pattern.permute.xlu0 0
    %1483 = vperm.xlu0 %1482, %v1452
    %v1484 = vpop.permute.xlu0 %1483
    %1485 = vset.pattern.permute.xlu0 0
    %1486 = vperm.xlu0 %1485, %v1453
    %v1487 = vpop.permute.xlu0 %1486
    %1488 = vset.pattern.permute.xlu0 0
    %1489 = vperm.xlu0 %1488, %v1454
    %v1490 = vpop.permute.xlu0 %1489
    %1491 = vset.pattern.permute.xlu0 0
    %1492 = vperm.xlu0 %1491, %v1455
    %v1493 = vpop.permute.xlu0 %1492
    %1494 = vset.pattern.permute.xlu0 0
    %1495 = vperm.xlu0 %1494, %v1456
    %v1496 = vpop.permute.xlu0 %1495
    %1497 = vset.pattern.permute.xlu0 0
    %1498 = vperm.xlu0 %1497, %v1457
    %v1499 = vpop.permute.xlu0 %1498
    %1500 = vset.pattern.permute.xlu0 0
    %1501 = vperm.xlu0 %1500, %v1458
    %v1502 = vpop.permute.xlu0 %1501
    %1503 = vset.pattern.permute.xlu0 0
    %1504 = vperm.xlu0 %1503, %v1459
    %v1505 = vpop.permute.xlu0 %1504
    %1506 = vset.pattern.permute.xlu0 0
    %1507 = vperm.xlu0 %1506, %v1460
    %v1508 = vpop.permute.xlu0 %1507
    %vm1509 = vcmp.eq.s32.totalorder %v1463, 1
    %vm1510 = vcmp.eq.s32.totalorder %v1466, 1
    %vm1511 = vcmp.eq.s32.totalorder %v1469, 1
    %vm1512 = vcmp.eq.s32.totalorder %v1472, 1
    %vm1513 = vcmp.eq.s32.totalorder %v1475, 1
    %vm1514 = vcmp.eq.s32.totalorder %v1478, 1
    %vm1515 = vcmp.eq.s32.totalorder %v1481, 1
    %vm1516 = vcmp.eq.s32.totalorder %v1484, 1
    %vm1517 = vcmp.eq.s32.totalorder %v1487, 1
    %vm1518 = vcmp.eq.s32.totalorder %v1490, 1
    %vm1519 = vcmp.eq.s32.totalorder %v1493, 1
    %vm1520 = vcmp.eq.s32.totalorder %v1496, 1
    %vm1521 = vcmp.eq.s32.totalorder %v1499, 1
    %vm1522 = vcmp.eq.s32.totalorder %v1502, 1
    %vm1523 = vcmp.eq.s32.totalorder %v1505, 1
    %vm1524 = vcmp.eq.s32.totalorder %v1508, 1
    %vm1525 = vmand %vm1381, %vm1509
    %vm1526 = vmand %vm1382, %vm1509
    %vm1527 = vmand %vm1383, %vm1509
    %vm1528 = vmand %vm1384, %vm1509
    %vm1529 = vmand %vm1385, %vm1510
    %vm1530 = vmand %vm1386, %vm1510
    %vm1531 = vmand %vm1387, %vm1510
    %vm1532 = vmand %vm1388, %vm1510
    %vm1533 = vmand %vm1389, %vm1511
    %vm1534 = vmand %vm1390, %vm1511
    %vm1535 = vmand %vm1391, %vm1511
    %vm1536 = vmand %vm1392, %vm1511
    %vm1537 = vmand %vm1393, %vm1512
    %vm1538 = vmand %vm1394, %vm1512
    %vm1539 = vmand %vm1395, %vm1512
    %vm1540 = vmand %vm1396, %vm1512
    %vm1541 = vmand %vm1397, %vm1513
    %vm1542 = vmand %vm1398, %vm1513
    %vm1543 = vmand %vm1399, %vm1513
    %vm1544 = vmand %vm1400, %vm1513
    %vm1545 = vmand %vm1401, %vm1514
    %vm1546 = vmand %vm1402, %vm1514
    %vm1547 = vmand %vm1403, %vm1514
    %vm1548 = vmand %vm1404, %vm1514
    %vm1549 = vmand %vm1405, %vm1515
    %vm1550 = vmand %vm1406, %vm1515
    %vm1551 = vmand %vm1407, %vm1515
    %vm1552 = vmand %vm1408, %vm1515
    %vm1553 = vmand %vm1409, %vm1516
    %vm1554 = vmand %vm1410, %vm1516
    %vm1555 = vmand %vm1411, %vm1516
    %vm1556 = vmand %vm1412, %vm1516
    %vm1557 = vmand %vm1413, %vm1517
    %vm1558 = vmand %vm1414, %vm1517
    %vm1559 = vmand %vm1415, %vm1517
    %vm1560 = vmand %vm1416, %vm1517
    %vm1561 = vmand %vm1417, %vm1518
    %vm1562 = vmand %vm1418, %vm1518
    %vm1563 = vmand %vm1419, %vm1518
    %vm1564 = vmand %vm1420, %vm1518
    %vm1565 = vmand %vm1421, %vm1519
    %vm1566 = vmand %vm1422, %vm1519
    %vm1567 = vmand %vm1423, %vm1519
    %vm1568 = vmand %vm1424, %vm1519
    %vm1569 = vmand %vm1425, %vm1520
    %vm1570 = vmand %vm1426, %vm1520
    %vm1571 = vmand %vm1427, %vm1520
    %vm1572 = vmand %vm1428, %vm1520
    %vm1573 = vmand %vm1429, %vm1521
    %vm1574 = vmand %vm1430, %vm1521
    %vm1575 = vmand %vm1431, %vm1521
    %vm1576 = vmand %vm1432, %vm1521
    %vm1577 = vmand %vm1433, %vm1522
    %vm1578 = vmand %vm1434, %vm1522
    %vm1579 = vmand %vm1435, %vm1522
    %vm1580 = vmand %vm1436, %vm1522
    %vm1581 = vmand %vm1437, %vm1523
    %vm1582 = vmand %vm1438, %vm1523
    %vm1583 = vmand %vm1439, %vm1523
    %vm1584 = vmand %vm1440, %vm1523
    %vm1585 = vmand %vm1441, %vm1524
    %vm1586 = vmand %vm1442, %vm1524
    %vm1587 = vmand %vm1443, %vm1524
    %vm1588 = vmand %vm1444, %vm1524
    %v1589 = vsel %vm1525, 1.0, 0.0
    %v1590 = vsel %vm1526, 1.0, 0.0
    %v1591 = vsel %vm1527, 1.0, 0.0
    %v1592 = vsel %vm1528, 1.0, 0.0
    %v1593 = vsel %vm1529, 1.0, 0.0
    %v1594 = vsel %vm1530, 1.0, 0.0
    %v1595 = vsel %vm1531, 1.0, 0.0
    %v1596 = vsel %vm1532, 1.0, 0.0
    %v1597 = vsel %vm1533, 1.0, 0.0
    %v1598 = vsel %vm1534, 1.0, 0.0
    %v1599 = vsel %vm1535, 1.0, 0.0
    %v1600 = vsel %vm1536, 1.0, 0.0
    %v1601 = vsel %vm1537, 1.0, 0.0
    %v1602 = vsel %vm1538, 1.0, 0.0
    %v1603 = vsel %vm1539, 1.0, 0.0
    %v1604 = vsel %vm1540, 1.0, 0.0
    %v1605 = vsel %vm1541, 1.0, 0.0
    %v1606 = vsel %vm1542, 1.0, 0.0
    %v1607 = vsel %vm1543, 1.0, 0.0
    %v1608 = vsel %vm1544, 1.0, 0.0
    %v1609 = vsel %vm1545, 1.0, 0.0
    %v1610 = vsel %vm1546, 1.0, 0.0
    %v1611 = vsel %vm1547, 1.0, 0.0
    %v1612 = vsel %vm1548, 1.0, 0.0
    %v1613 = vsel %vm1549, 1.0, 0.0
    %v1614 = vsel %vm1550, 1.0, 0.0
    %v1615 = vsel %vm1551, 1.0, 0.0
    %v1616 = vsel %vm1552, 1.0, 0.0
    %v1617 = vsel %vm1553, 1.0, 0.0
    %v1618 = vsel %vm1554, 1.0, 0.0
    %v1619 = vsel %vm1555, 1.0, 0.0
    %v1620 = vsel %vm1556, 1.0, 0.0
    %v1621 = vsel %vm1557, 1.0, 0.0
    %v1622 = vsel %vm1558, 1.0, 0.0
    %v1623 = vsel %vm1559, 1.0, 0.0
    %v1624 = vsel %vm1560, 1.0, 0.0
    %v1625 = vsel %vm1561, 1.0, 0.0
    %v1626 = vsel %vm1562, 1.0, 0.0
    %v1627 = vsel %vm1563, 1.0, 0.0
    %v1628 = vsel %vm1564, 1.0, 0.0
    %v1629 = vsel %vm1565, 1.0, 0.0
    %v1630 = vsel %vm1566, 1.0, 0.0
    %v1631 = vsel %vm1567, 1.0, 0.0
    %v1632 = vsel %vm1568, 1.0, 0.0
    %v1633 = vsel %vm1569, 1.0, 0.0
    %v1634 = vsel %vm1570, 1.0, 0.0
    %v1635 = vsel %vm1571, 1.0, 0.0
    %v1636 = vsel %vm1572, 1.0, 0.0
    %v1637 = vsel %vm1573, 1.0, 0.0
    %v1638 = vsel %vm1574, 1.0, 0.0
    %v1639 = vsel %vm1575, 1.0, 0.0
    %v1640 = vsel %vm1576, 1.0, 0.0
    %v1641 = vsel %vm1577, 1.0, 0.0
    %v1642 = vsel %vm1578, 1.0, 0.0
    %v1643 = vsel %vm1579, 1.0, 0.0
    %v1644 = vsel %vm1580, 1.0, 0.0
    %v1645 = vsel %vm1581, 1.0, 0.0
    %v1646 = vsel %vm1582, 1.0, 0.0
    %v1647 = vsel %vm1583, 1.0, 0.0
    %v1648 = vsel %vm1584, 1.0, 0.0
    %v1649 = vsel %vm1585, 1.0, 0.0
    %v1650 = vsel %vm1586, 1.0, 0.0
    %v1651 = vsel %vm1587, 1.0, 0.0
    %v1652 = vsel %vm1588, 1.0, 0.0
    %v1653 = vpack.c.bf16 %v1593, %v1589
    %v1654 = vpack.c.bf16 %v1594, %v1590
    %v1655 = vpack.c.bf16 %v1595, %v1591
    %v1656 = vpack.c.bf16 %v1596, %v1592
    %v1657 = vpack.c.bf16 %v1601, %v1597
    %v1658 = vpack.c.bf16 %v1602, %v1598
    %v1659 = vpack.c.bf16 %v1603, %v1599
    %v1660 = vpack.c.bf16 %v1604, %v1600
    %v1661 = vpack.c.bf16 %v1609, %v1605
    %v1662 = vpack.c.bf16 %v1610, %v1606
    %v1663 = vpack.c.bf16 %v1611, %v1607
    %v1664 = vpack.c.bf16 %v1612, %v1608
    %v1665 = vpack.c.bf16 %v1617, %v1613
    %v1666 = vpack.c.bf16 %v1618, %v1614
    %v1667 = vpack.c.bf16 %v1619, %v1615
    %v1668 = vpack.c.bf16 %v1620, %v1616
    %v1669 = vpack.c.bf16 %v1625, %v1621
    %v1670 = vpack.c.bf16 %v1626, %v1622
    %v1671 = vpack.c.bf16 %v1627, %v1623
    %v1672 = vpack.c.bf16 %v1628, %v1624
    %v1673 = vpack.c.bf16 %v1633, %v1629
    %v1674 = vpack.c.bf16 %v1634, %v1630
    %v1675 = vpack.c.bf16 %v1635, %v1631
    %v1676 = vpack.c.bf16 %v1636, %v1632
    %v1677 = vpack.c.bf16 %v1641, %v1637
    %v1678 = vpack.c.bf16 %v1642, %v1638
    %v1679 = vpack.c.bf16 %v1643, %v1639
    %v1680 = vpack.c.bf16 %v1644, %v1640
    %v1681 = vpack.c.bf16 %v1649, %v1645
    %v1682 = vpack.c.bf16 %v1650, %v1646
    %v1683 = vpack.c.bf16 %v1651, %v1647
    %v1684 = vpack.c.bf16 %v1652, %v1648
    %1685 = vmatpush.bf16.msra.mxu0 %v976
    %1686 = vmatpush.bf16.msra.mxu0 %v975
    %1687 = vmatpush.bf16.msra.mxu0 %v974
    %1688 = vmatpush.bf16.msra.mxu0 %v973
    %1689 = vmatpush.bf16.msra.mxu0 %v972
    %1690 = vmatpush.bf16.msra.mxu0 %v971
    %1691 = vmatpush.bf16.msra.mxu0 %v970
    %1692 = vmatpush.bf16.msra.mxu0 %v969
    %1693 = vmatmul.bf16.gmra.mxu0 %v1653
    %v1694 = vpop.f32.mrf.mxu0
    %v1695 = vadd.f32 0.0, %v1694
    %v1696 = vpop.f32.mrf.mxu0
    %v1697 = vadd.f32 0.0, %v1696
    %1698 = vmatmul.bf16.gmra.mxu0 %v1657
    %v1699 = vpop.f32.mrf.mxu0
    %v1700 = vadd.f32 0.0, %v1699
    %v1701 = vpop.f32.mrf.mxu0
    %v1702 = vadd.f32 0.0, %v1701
    %1703 = vmatmul.bf16.gmra.mxu0 %v1661
    %v1704 = vpop.f32.mrf.mxu0
    %v1705 = vadd.f32 0.0, %v1704
    %v1706 = vpop.f32.mrf.mxu0
    %v1707 = vadd.f32 0.0, %v1706
    %1708 = vmatmul.bf16.gmra.mxu0 %v1665
    %v1709 = vpop.f32.mrf.mxu0
    %v1710 = vadd.f32 0.0, %v1709
    %v1711 = vpop.f32.mrf.mxu0
    %v1712 = vadd.f32 0.0, %v1711
    %1713 = vmatmul.bf16.gmra.mxu0 %v1669
    %v1714 = vpop.f32.mrf.mxu0
    %v1715 = vadd.f32 0.0, %v1714
    %v1716 = vpop.f32.mrf.mxu0
    %v1717 = vadd.f32 0.0, %v1716
    %1718 = vmatmul.bf16.gmra.mxu0 %v1673
    %v1719 = vpop.f32.mrf.mxu0
    %v1720 = vadd.f32 0.0, %v1719
    %v1721 = vpop.f32.mrf.mxu0
    %v1722 = vadd.f32 0.0, %v1721
    %1723 = vmatmul.bf16.gmra.mxu0 %v1677
    %v1724 = vpop.f32.mrf.mxu0
    %v1725 = vadd.f32 0.0, %v1724
    %v1726 = vpop.f32.mrf.mxu0
    %v1727 = vadd.f32 0.0, %v1726
    %1728 = vmatmul.bf16.gmra.mxu0 %v1681
    %v1729 = vpop.f32.mrf.mxu0
    %v1730 = vadd.f32 0.0, %v1729
    %v1731 = vpop.f32.mrf.mxu0
    %v1732 = vadd.f32 0.0, %v1731
    %1733 = vdwg.mxu0
    %1734 = vmatpush.bf16.msra.mxu0 %v984
    %1735 = vmatpush.bf16.msra.mxu0 %v983
    %1736 = vmatpush.bf16.msra.mxu0 %v982
    %1737 = vmatpush.bf16.msra.mxu0 %v981
    %1738 = vmatpush.bf16.msra.mxu0 %v980
    %1739 = vmatpush.bf16.msra.mxu0 %v979
    %1740 = vmatpush.bf16.msra.mxu0 %v978
    %1741 = vmatpush.bf16.msra.mxu0 %v977
    %1742 = vmatmul.bf16.gmra.mxu0 %v1654
    %v1743 = vpop.f32.mrf.mxu0
    %v1744 = vadd.f32 %v1695, %v1743
    %v1745 = vpop.f32.mrf.mxu0
    %v1746 = vadd.f32 %v1697, %v1745
    %1747 = vmatmul.bf16.gmra.mxu0 %v1658
    %v1748 = vpop.f32.mrf.mxu0
    %v1749 = vadd.f32 %v1700, %v1748
    %v1750 = vpop.f32.mrf.mxu0
    %v1751 = vadd.f32 %v1702, %v1750
    %1752 = vmatmul.bf16.gmra.mxu0 %v1662
    %v1753 = vpop.f32.mrf.mxu0
    %v1754 = vadd.f32 %v1705, %v1753
    %v1755 = vpop.f32.mrf.mxu0
    %v1756 = vadd.f32 %v1707, %v1755
    %1757 = vmatmul.bf16.gmra.mxu0 %v1666
    %v1758 = vpop.f32.mrf.mxu0
    %v1759 = vadd.f32 %v1710, %v1758
    %v1760 = vpop.f32.mrf.mxu0
    %v1761 = vadd.f32 %v1712, %v1760
    %1762 = vmatmul.bf16.gmra.mxu0 %v1670
    %v1763 = vpop.f32.mrf.mxu0
    %v1764 = vadd.f32 %v1715, %v1763
    %v1765 = vpop.f32.mrf.mxu0
    %v1766 = vadd.f32 %v1717, %v1765
    %1767 = vmatmul.bf16.gmra.mxu0 %v1674
    %v1768 = vpop.f32.mrf.mxu0
    %v1769 = vadd.f32 %v1720, %v1768
    %v1770 = vpop.f32.mrf.mxu0
    %v1771 = vadd.f32 %v1722, %v1770
    %1772 = vmatmul.bf16.gmra.mxu0 %v1678
    %v1773 = vpop.f32.mrf.mxu0
    %v1774 = vadd.f32 %v1725, %v1773
    %v1775 = vpop.f32.mrf.mxu0
    %v1776 = vadd.f32 %v1727, %v1775
    %1777 = vmatmul.bf16.gmra.mxu0 %v1682
    %v1778 = vpop.f32.mrf.mxu0
    %v1779 = vadd.f32 %v1730, %v1778
    %v1780 = vpop.f32.mrf.mxu0
    %v1781 = vadd.f32 %v1732, %v1780
    %1782 = vdwg.mxu0
    %1783 = vmatpush.bf16.msra.mxu0 %v992
    %1784 = vmatpush.bf16.msra.mxu0 %v991
    %1785 = vmatpush.bf16.msra.mxu0 %v990
    %1786 = vmatpush.bf16.msra.mxu0 %v989
    %1787 = vmatpush.bf16.msra.mxu0 %v988
    %1788 = vmatpush.bf16.msra.mxu0 %v987
    %1789 = vmatpush.bf16.msra.mxu0 %v986
    %1790 = vmatpush.bf16.msra.mxu0 %v985
    %1791 = vmatmul.bf16.gmra.mxu0 %v1655
    %v1792 = vpop.f32.mrf.mxu0
    %v1793 = vadd.f32 %v1744, %v1792
    %v1794 = vpop.f32.mrf.mxu0
    %v1795 = vadd.f32 %v1746, %v1794
    %1796 = vmatmul.bf16.gmra.mxu0 %v1659
    %v1797 = vpop.f32.mrf.mxu0
    %v1798 = vadd.f32 %v1749, %v1797
    %v1799 = vpop.f32.mrf.mxu0
    %v1800 = vadd.f32 %v1751, %v1799
    %1801 = vmatmul.bf16.gmra.mxu0 %v1663
    %v1802 = vpop.f32.mrf.mxu0
    %v1803 = vadd.f32 %v1754, %v1802
    %v1804 = vpop.f32.mrf.mxu0
    %v1805 = vadd.f32 %v1756, %v1804
    %1806 = vmatmul.bf16.gmra.mxu0 %v1667
    %v1807 = vpop.f32.mrf.mxu0
    %v1808 = vadd.f32 %v1759, %v1807
    %v1809 = vpop.f32.mrf.mxu0
    %v1810 = vadd.f32 %v1761, %v1809
    %1811 = vmatmul.bf16.gmra.mxu0 %v1671
    %v1812 = vpop.f32.mrf.mxu0
    %v1813 = vadd.f32 %v1764, %v1812
    %v1814 = vpop.f32.mrf.mxu0
    %v1815 = vadd.f32 %v1766, %v1814
    %1816 = vmatmul.bf16.gmra.mxu0 %v1675
    %v1817 = vpop.f32.mrf.mxu0
    %v1818 = vadd.f32 %v1769, %v1817
    %v1819 = vpop.f32.mrf.mxu0
    %v1820 = vadd.f32 %v1771, %v1819
    %1821 = vmatmul.bf16.gmra.mxu0 %v1679
    %v1822 = vpop.f32.mrf.mxu0
    %v1823 = vadd.f32 %v1774, %v1822
    %v1824 = vpop.f32.mrf.mxu0
    %v1825 = vadd.f32 %v1776, %v1824
    %1826 = vmatmul.bf16.gmra.mxu0 %v1683
    %v1827 = vpop.f32.mrf.mxu0
    %v1828 = vadd.f32 %v1779, %v1827
    %v1829 = vpop.f32.mrf.mxu0
    %v1830 = vadd.f32 %v1781, %v1829
    %1831 = vdwg.mxu0
    %1832 = vmatpush.bf16.msra.mxu0 %v1000
    %1833 = vmatpush.bf16.msra.mxu0 %v999
    %1834 = vmatpush.bf16.msra.mxu0 %v998
    %1835 = vmatpush.bf16.msra.mxu0 %v997
    %1836 = vmatpush.bf16.msra.mxu0 %v996
    %1837 = vmatpush.bf16.msra.mxu0 %v995
    %1838 = vmatpush.bf16.msra.mxu0 %v994
    %1839 = vmatpush.bf16.msra.mxu0 %v993
    %1840 = vmatmul.bf16.gmra.mxu0 %v1656
    %v1841 = vpop.f32.mrf.mxu0
    %v1842 = vadd.f32 %v1793, %v1841
    %v1843 = vpop.f32.mrf.mxu0
    %v1844 = vadd.f32 %v1795, %v1843
    %1845 = vmatmul.bf16.gmra.mxu0 %v1660
    %v1846 = vpop.f32.mrf.mxu0
    %v1847 = vadd.f32 %v1798, %v1846
    %v1848 = vpop.f32.mrf.mxu0
    %v1849 = vadd.f32 %v1800, %v1848
    %1850 = vmatmul.bf16.gmra.mxu0 %v1664
    %v1851 = vpop.f32.mrf.mxu0
    %v1852 = vadd.f32 %v1803, %v1851
    %v1853 = vpop.f32.mrf.mxu0
    %v1854 = vadd.f32 %v1805, %v1853
    %1855 = vmatmul.bf16.gmra.mxu0 %v1668
    %v1856 = vpop.f32.mrf.mxu0
    %v1857 = vadd.f32 %v1808, %v1856
    %v1858 = vpop.f32.mrf.mxu0
    %v1859 = vadd.f32 %v1810, %v1858
    %1860 = vmatmul.bf16.gmra.mxu0 %v1672
    %v1861 = vpop.f32.mrf.mxu0
    %v1862 = vadd.f32 %v1813, %v1861
    %v1863 = vpop.f32.mrf.mxu0
    %v1864 = vadd.f32 %v1815, %v1863
    %1865 = vmatmul.bf16.gmra.mxu0 %v1676
    %v1866 = vpop.f32.mrf.mxu0
    %v1867 = vadd.f32 %v1818, %v1866
    %v1868 = vpop.f32.mrf.mxu0
    %v1869 = vadd.f32 %v1820, %v1868
    %1870 = vmatmul.bf16.gmra.mxu0 %v1680
    %v1871 = vpop.f32.mrf.mxu0
    %v1872 = vadd.f32 %v1823, %v1871
    %v1873 = vpop.f32.mrf.mxu0
    %v1874 = vadd.f32 %v1825, %v1873
    %1875 = vmatmul.bf16.gmra.mxu0 %v1684
    %v1876 = vpop.f32.mrf.mxu0
    %v1877 = vadd.f32 %v1828, %v1876
    %v1878 = vpop.f32.mrf.mxu0
    %v1879 = vadd.f32 %v1830, %v1878
    %1880 = vdwg.mxu0
    %v1881 = vpack.c.bf16 %v1844, %v1842
    %v1882 = vpack.c.bf16 %v1849, %v1847
    %v1883 = vpack.c.bf16 %v1854, %v1852
    %v1884 = vpack.c.bf16 %v1859, %v1857
    %v1885 = vpack.c.bf16 %v1864, %v1862
    %v1886 = vpack.c.bf16 %v1869, %v1867
    %v1887 = vpack.c.bf16 %v1874, %v1872
    %v1888 = vpack.c.bf16 %v1879, %v1877
    %s1889 = scalar_lea.vmem %s4, 64
    %v1890 = vld [vmem:[%s1889] sm:$0xf]
    %v1891 = vld [vmem:[%s1889 + $0x4] sm:$0xf]
    %v1892 = vld [vmem:[%s1889 + $0x8] sm:$0xf]
    %v1893 = vld [vmem:[%s1889 + $0xc] sm:$0xf]
    %v1894 = vld [vmem:[%s1889 + $0x10] sm:$0xf]
    %v1895 = vld [vmem:[%s1889 + $0x14] sm:$0xf]
    %v1896 = vld [vmem:[%s1889 + $0x18] sm:$0xf]
    %v1897 = vld [vmem:[%s1889 + $0x1c] sm:$0xf]
    %v1898 = vld [vmem:[%s1889 + $0x20] sm:$0xf]
    %v1899 = vld [vmem:[%s1889 + $0x24] sm:$0xf]
    %v1900 = vld [vmem:[%s1889 + $0x28] sm:$0xf]
    %v1901 = vld [vmem:[%s1889 + $0x2c] sm:$0xf]
    %v1902 = vld [vmem:[%s1889 + $0x30] sm:$0xf]
    %v1903 = vld [vmem:[%s1889 + $0x34] sm:$0xf]
    %v1904 = vld [vmem:[%s1889 + $0x38] sm:$0xf]
    %v1905 = vld [vmem:[%s1889 + $0x3c] sm:$0xf]
    %v1922 = vunpack.c.l.b16 %v1890
    %v1923 = vunpack.c.l.b16 %v1891
    %v1924 = vunpack.c.l.b16 %v1892
    %v1925 = vunpack.c.l.b16 %v1893
    %v1926 = vunpack.c.l.b16 %v1894
    %v1927 = vunpack.c.l.b16 %v1895
    %v1928 = vunpack.c.l.b16 %v1896
    %v1929 = vunpack.c.l.b16 %v1897
    %v1930 = vunpack.c.l.b16 %v1898
    %v1931 = vunpack.c.l.b16 %v1899
    %v1932 = vunpack.c.l.b16 %v1900
    %v1933 = vunpack.c.l.b16 %v1901
    %v1934 = vunpack.c.l.b16 %v1902
    %v1935 = vunpack.c.l.b16 %v1903
    %v1936 = vunpack.c.l.b16 %v1904
    %v1937 = vunpack.c.l.b16 %v1905
    %v1938 = vpack.c.b16 %v1923, %v1922
    %v1939 = vpack.c.b16 %v1925, %v1924
    %v1940 = vpack.c.b16 %v1927, %v1926
    %v1941 = vpack.c.b16 %v1929, %v1928
    %v1942 = vpack.c.b16 %v1931, %v1930
    %v1943 = vpack.c.b16 %v1933, %v1932
    %v1944 = vpack.c.b16 %v1935, %v1934
    %v1945 = vpack.c.b16 %v1937, %v1936
    %1954 = vmatpush.bf16.msra.mxu0 %v1945
    %1955 = vmatpush.bf16.msra.mxu0 %v1944
    %1956 = vmatpush.bf16.msra.mxu0 %v1943
    %1957 = vmatpush.bf16.msra.mxu0 %v1942
    %1958 = vmatpush.bf16.msra.mxu0 %v1941
    %1959 = vmatpush.bf16.msra.mxu0 %v1940
    %1960 = vmatpush.bf16.msra.mxu0 %v1939
    %1961 = vmatpush.bf16.msra.mxu0 %v1938
    %1962 = vmatmul.bf16.gmra.mxu0 %v1881
    %v1963 = vpop.f32.mrf.mxu0
    %v1964 = vadd.f32 0.0, %v1963
    %v1965 = vpop.f32.mrf.mxu0
    %v1966 = vadd.f32 0.0, %v1965
    %1967 = vmatmul.bf16.gmra.mxu0 %v1882
    %v1968 = vpop.f32.mrf.mxu0
    %v1969 = vadd.f32 0.0, %v1968
    %v1970 = vpop.f32.mrf.mxu0
    %v1971 = vadd.f32 0.0, %v1970
    %1972 = vmatmul.bf16.gmra.mxu0 %v1883
    %v1973 = vpop.f32.mrf.mxu0
    %v1974 = vadd.f32 0.0, %v1973
    %v1975 = vpop.f32.mrf.mxu0
    %v1976 = vadd.f32 0.0, %v1975
    %1977 = vmatmul.bf16.gmra.mxu0 %v1884
    %v1978 = vpop.f32.mrf.mxu0
    %v1979 = vadd.f32 0.0, %v1978
    %v1980 = vpop.f32.mrf.mxu0
    %v1981 = vadd.f32 0.0, %v1980
    %1982 = vmatmul.bf16.gmra.mxu0 %v1885
    %v1983 = vpop.f32.mrf.mxu0
    %v1984 = vadd.f32 0.0, %v1983
    %v1985 = vpop.f32.mrf.mxu0
    %v1986 = vadd.f32 0.0, %v1985
    %1987 = vmatmul.bf16.gmra.mxu0 %v1886
    %v1988 = vpop.f32.mrf.mxu0
    %v1989 = vadd.f32 0.0, %v1988
    %v1990 = vpop.f32.mrf.mxu0
    %v1991 = vadd.f32 0.0, %v1990
    %1992 = vmatmul.bf16.gmra.mxu0 %v1887
    %v1993 = vpop.f32.mrf.mxu0
    %v1994 = vadd.f32 0.0, %v1993
    %v1995 = vpop.f32.mrf.mxu0
    %v1996 = vadd.f32 0.0, %v1995
    %1997 = vmatmul.bf16.gmra.mxu0 %v1888
    %v1998 = vpop.f32.mrf.mxu0
    %v1999 = vadd.f32 0.0, %v1998
    %v2000 = vpop.f32.mrf.mxu0
    %v2001 = vadd.f32 0.0, %v2000
    %2002 = vdwg.mxu0
    %v2019 = vunpack.c.l.b16 %v1237
    %v2020 = vunpack.c.l.b16 %v1238
    %v2021 = vunpack.c.l.b16 %v1239
    %v2022 = vunpack.c.l.b16 %v1240
    %v2023 = vunpack.c.l.b16 %v1241
    %v2024 = vunpack.c.l.b16 %v1242
    %v2025 = vunpack.c.l.b16 %v1243
    %v2026 = vunpack.c.l.b16 %v1244
    %v2027 = vunpack.c.l.b16 %v1245
    %v2028 = vunpack.c.l.b16 %v1246
    %v2029 = vunpack.c.l.b16 %v1247
    %v2030 = vunpack.c.l.b16 %v1248
    %v2031 = vunpack.c.l.b16 %v1249
    %v2032 = vunpack.c.l.b16 %v1250
    %v2033 = vunpack.c.l.b16 %v1251
    %v2034 = vunpack.c.l.b16 %v1252
    %v2035 = vpack.c.b16 %v2020, %v2019
    %v2036 = vpack.c.b16 %v2022, %v2021
    %v2037 = vpack.c.b16 %v2024, %v2023
    %v2038 = vpack.c.b16 %v2026, %v2025
    %v2039 = vpack.c.b16 %v2028, %v2027
    %v2040 = vpack.c.b16 %v2030, %v2029
    %v2041 = vpack.c.b16 %v2032, %v2031
    %v2042 = vpack.c.b16 %v2034, %v2033
    %2051 = vmatpush.bf16.msra.mxu0 %v2042
    %2052 = vmatpush.bf16.msra.mxu0 %v2041
    %2053 = vmatpush.bf16.msra.mxu0 %v2040
    %2054 = vmatpush.bf16.msra.mxu0 %v2039
    %2055 = vmatpush.bf16.msra.mxu0 %v2038
    %2056 = vmatpush.bf16.msra.mxu0 %v2037
    %2057 = vmatpush.bf16.msra.mxu0 %v2036
    %2058 = vmatpush.bf16.msra.mxu0 %v2035
    %2059 = vmatmul.bf16.gmra.mxu0 %v1229
    %v2060 = vpop.f32.mrf.mxu0
    %v2061 = vadd.f32 %v1964, %v2060
    %v2062 = vpop.f32.mrf.mxu0
    %v2063 = vadd.f32 %v1966, %v2062
    %2064 = vmatmul.bf16.gmra.mxu0 %v1230
    %v2065 = vpop.f32.mrf.mxu0
    %v2066 = vadd.f32 %v1969, %v2065
    %v2067 = vpop.f32.mrf.mxu0
    %v2068 = vadd.f32 %v1971, %v2067
    %2069 = vmatmul.bf16.gmra.mxu0 %v1231
    %v2070 = vpop.f32.mrf.mxu0
    %v2071 = vadd.f32 %v1974, %v2070
    %v2072 = vpop.f32.mrf.mxu0
    %v2073 = vadd.f32 %v1976, %v2072
    %2074 = vmatmul.bf16.gmra.mxu0 %v1232
    %v2075 = vpop.f32.mrf.mxu0
    %v2076 = vadd.f32 %v1979, %v2075
    %v2077 = vpop.f32.mrf.mxu0
    %v2078 = vadd.f32 %v1981, %v2077
    %2079 = vmatmul.bf16.gmra.mxu0 %v1233
    %v2080 = vpop.f32.mrf.mxu0
    %v2081 = vadd.f32 %v1984, %v2080
    %v2082 = vpop.f32.mrf.mxu0
    %v2083 = vadd.f32 %v1986, %v2082
    %2084 = vmatmul.bf16.gmra.mxu0 %v1234
    %v2085 = vpop.f32.mrf.mxu0
    %v2086 = vadd.f32 %v1989, %v2085
    %v2087 = vpop.f32.mrf.mxu0
    %v2088 = vadd.f32 %v1991, %v2087
    %2089 = vmatmul.bf16.gmra.mxu0 %v1235
    %v2090 = vpop.f32.mrf.mxu0
    %v2091 = vadd.f32 %v1994, %v2090
    %v2092 = vpop.f32.mrf.mxu0
    %v2093 = vadd.f32 %v1996, %v2092
    %2094 = vmatmul.bf16.gmra.mxu0 %v1236
    %v2095 = vpop.f32.mrf.mxu0
    %v2096 = vadd.f32 %v1999, %v2095
    %v2097 = vpop.f32.mrf.mxu0
    %v2098 = vadd.f32 %v2001, %v2097
    %2099 = vdwg.mxu0
    %v2100 = vadd.s32 %v260, 1
    %v2101 = vadd.s32 %v261, 1
    %v2102 = vadd.s32 %v262, 1
    %v2103 = vadd.s32 %v263, 1
    %v2104 = vadd.s32 %v264, 1
    %v2105 = vadd.s32 %v265, 1
    %v2106 = vadd.s32 %v266, 1
    %v2107 = vadd.s32 %v267, 1
    %v2108 = vadd.s32 %v268, 1
    %v2109 = vadd.s32 %v269, 1
    %v2110 = vadd.s32 %v270, 1
    %v2111 = vadd.s32 %v271, 1
    %v2112 = vadd.s32 %v272, 1
    %v2113 = vadd.s32 %v273, 1
    %v2114 = vadd.s32 %v274, 1
    %v2115 = vadd.s32 %v275, 1
    %vm2116 = vcmp.ge.s32.totalorder %v2100, 0
    %vm2117 = vcmp.ge.s32.totalorder %v2101, 0
    %vm2118 = vcmp.ge.s32.totalorder %v2102, 0
    %vm2119 = vcmp.ge.s32.totalorder %v2103, 0
    %vm2120 = vcmp.ge.s32.totalorder %v2104, 0
    %vm2121 = vcmp.ge.s32.totalorder %v2105, 0
    %vm2122 = vcmp.ge.s32.totalorder %v2106, 0
    %vm2123 = vcmp.ge.s32.totalorder %v2107, 0
    %vm2124 = vcmp.ge.s32.totalorder %v2108, 0
    %vm2125 = vcmp.ge.s32.totalorder %v2109, 0
    %vm2126 = vcmp.ge.s32.totalorder %v2110, 0
    %vm2127 = vcmp.ge.s32.totalorder %v2111, 0
    %vm2128 = vcmp.ge.s32.totalorder %v2112, 0
    %vm2129 = vcmp.ge.s32.totalorder %v2113, 0
    %vm2130 = vcmp.ge.s32.totalorder %v2114, 0
    %vm2131 = vcmp.ge.s32.totalorder %v2115, 0
    %vm2132 = vmand %vm361, %vm2116
    %vm2133 = vmand %vm362, %vm2117
    %vm2134 = vmand %vm363, %vm2118
    %vm2135 = vmand %vm364, %vm2119
    %vm2136 = vmand %vm365, %vm2120
    %vm2137 = vmand %vm366, %vm2121
    %vm2138 = vmand %vm367, %vm2122
    %vm2139 = vmand %vm368, %vm2123
    %vm2140 = vmand %vm369, %vm2124
    %vm2141 = vmand %vm370, %vm2125
    %vm2142 = vmand %vm371, %vm2126
    %vm2143 = vmand %vm372, %vm2127
    %vm2144 = vmand %vm373, %vm2128
    %vm2145 = vmand %vm374, %vm2129
    %vm2146 = vmand %vm375, %vm2130
    %vm2147 = vmand %vm376, %vm2131
    %vm2148 = vcmp.lt.s32.totalorder %v2100, 16
    %vm2149 = vcmp.lt.s32.totalorder %v2101, 16
    %vm2150 = vcmp.lt.s32.totalorder %v2102, 16
    %vm2151 = vcmp.lt.s32.totalorder %v2103, 16
    %vm2152 = vcmp.lt.s32.totalorder %v2104, 16
    %vm2153 = vcmp.lt.s32.totalorder %v2105, 16
    %vm2154 = vcmp.lt.s32.totalorder %v2106, 16
    %vm2155 = vcmp.lt.s32.totalorder %v2107, 16
    %vm2156 = vcmp.lt.s32.totalorder %v2108, 16
    %vm2157 = vcmp.lt.s32.totalorder %v2109, 16
    %vm2158 = vcmp.lt.s32.totalorder %v2110, 16
    %vm2159 = vcmp.lt.s32.totalorder %v2111, 16
    %vm2160 = vcmp.lt.s32.totalorder %v2112, 16
    %vm2161 = vcmp.lt.s32.totalorder %v2113, 16
    %vm2162 = vcmp.lt.s32.totalorder %v2114, 16
    %vm2163 = vcmp.lt.s32.totalorder %v2115, 16
    %vm2164 = vmand %vm2132, %vm2148
    %vm2165 = vmand %vm2133, %vm2149
    %vm2166 = vmand %vm2134, %vm2150
    %vm2167 = vmand %vm2135, %vm2151
    %vm2168 = vmand %vm2136, %vm2152
    %vm2169 = vmand %vm2137, %vm2153
    %vm2170 = vmand %vm2138, %vm2154
    %vm2171 = vmand %vm2139, %vm2155
    %vm2172 = vmand %vm2140, %vm2156
    %vm2173 = vmand %vm2141, %vm2157
    %vm2174 = vmand %vm2142, %vm2158
    %vm2175 = vmand %vm2143, %vm2159
    %vm2176 = vmand %vm2144, %vm2160
    %vm2177 = vmand %vm2145, %vm2161
    %vm2178 = vmand %vm2146, %vm2162
    %vm2179 = vmand %vm2147, %vm2163
    %v2180 = vadd.s32 %v457, %v2100
    %v2181 = vadd.s32 %v458, %v2101
    %v2182 = vadd.s32 %v459, %v2102
    %v2183 = vadd.s32 %v460, %v2103
    %v2184 = vadd.s32 %v461, %v2104
    %v2185 = vadd.s32 %v462, %v2105
    %v2186 = vadd.s32 %v463, %v2106
    %v2187 = vadd.s32 %v464, %v2107
    %v2188 = vadd.s32 %v465, %v2108
    %v2189 = vadd.s32 %v466, %v2109
    %v2190 = vadd.s32 %v467, %v2110
    %v2191 = vadd.s32 %v468, %v2111
    %v2192 = vadd.s32 %v469, %v2112
    %v2193 = vadd.s32 %v470, %v2113
    %v2194 = vadd.s32 %v471, %v2114
    %v2195 = vadd.s32 %v472, %v2115
    %2196 = vset.pattern.permute.xlu0 0
    %2197 = vperm.xlu0 %2196, %v2180
    %v2198 = vpop.permute.xlu0 %2197
    %2199 = vset.pattern.permute.xlu0 0
    %2200 = vperm.xlu0 %2199, %v2181
    %v2201 = vpop.permute.xlu0 %2200
    %2202 = vset.pattern.permute.xlu0 0
    %2203 = vperm.xlu0 %2202, %v2182
    %v2204 = vpop.permute.xlu0 %2203
    %2205 = vset.pattern.permute.xlu0 0
    %2206 = vperm.xlu0 %2205, %v2183
    %v2207 = vpop.permute.xlu0 %2206
    %2208 = vset.pattern.permute.xlu0 0
    %2209 = vperm.xlu0 %2208, %v2184
    %v2210 = vpop.permute.xlu0 %2209
    %2211 = vset.pattern.permute.xlu0 0
    %2212 = vperm.xlu0 %2211, %v2185
    %v2213 = vpop.permute.xlu0 %2212
    %2214 = vset.pattern.permute.xlu0 0
    %2215 = vperm.xlu0 %2214, %v2186
    %v2216 = vpop.permute.xlu0 %2215
    %2217 = vset.pattern.permute.xlu0 0
    %2218 = vperm.xlu0 %2217, %v2187
    %v2219 = vpop.permute.xlu0 %2218
    %2220 = vset.pattern.permute.xlu0 0
    %2221 = vperm.xlu0 %2220, %v2188
    %v2222 = vpop.permute.xlu0 %2221
    %2223 = vset.pattern.permute.xlu0 0
    %2224 = vperm.xlu0 %2223, %v2189
    %v2225 = vpop.permute.xlu0 %2224
    %2226 = vset.pattern.permute.xlu0 0
    %2227 = vperm.xlu0 %2226, %v2190
    %v2228 = vpop.permute.xlu0 %2227
    %2229 = vset.pattern.permute.xlu0 0
    %2230 = vperm.xlu0 %2229, %v2191
    %v2231 = vpop.permute.xlu0 %2230
    %2232 = vset.pattern.permute.xlu0 0
    %2233 = vperm.xlu0 %2232, %v2192
    %v2234 = vpop.permute.xlu0 %2233
    %2235 = vset.pattern.permute.xlu0 0
    %2236 = vperm.xlu0 %2235, %v2193
    %v2237 = vpop.permute.xlu0 %2236
    %2238 = vset.pattern.permute.xlu0 0
    %2239 = vperm.xlu0 %2238, %v2194
    %v2240 = vpop.permute.xlu0 %2239
    %2241 = vset.pattern.permute.xlu0 0
    %2242 = vperm.xlu0 %2241, %v2195
    %v2243 = vpop.permute.xlu0 %2242
    %vm2244 = vcmp.eq.s32.totalorder %v293, %v2198
    %vm2245 = vcmp.eq.s32.totalorder %v294, %v2198
    %vm2246 = vcmp.eq.s32.totalorder %v295, %v2198
    %vm2247 = vcmp.eq.s32.totalorder %v296, %v2198
    %vm2248 = vcmp.eq.s32.totalorder %v293, %v2201
    %vm2249 = vcmp.eq.s32.totalorder %v294, %v2201
    %vm2250 = vcmp.eq.s32.totalorder %v295, %v2201
    %vm2251 = vcmp.eq.s32.totalorder %v296, %v2201
    %vm2252 = vcmp.eq.s32.totalorder %v293, %v2204
    %vm2253 = vcmp.eq.s32.totalorder %v294, %v2204
    %vm2254 = vcmp.eq.s32.totalorder %v295, %v2204
    %vm2255 = vcmp.eq.s32.totalorder %v296, %v2204
    %vm2256 = vcmp.eq.s32.totalorder %v293, %v2207
    %vm2257 = vcmp.eq.s32.totalorder %v294, %v2207
    %vm2258 = vcmp.eq.s32.totalorder %v295, %v2207
    %vm2259 = vcmp.eq.s32.totalorder %v296, %v2207
    %vm2260 = vcmp.eq.s32.totalorder %v293, %v2210
    %vm2261 = vcmp.eq.s32.totalorder %v294, %v2210
    %vm2262 = vcmp.eq.s32.totalorder %v295, %v2210
    %vm2263 = vcmp.eq.s32.totalorder %v296, %v2210
    %vm2264 = vcmp.eq.s32.totalorder %v293, %v2213
    %vm2265 = vcmp.eq.s32.totalorder %v294, %v2213
    %vm2266 = vcmp.eq.s32.totalorder %v295, %v2213
    %vm2267 = vcmp.eq.s32.totalorder %v296, %v2213
    %vm2268 = vcmp.eq.s32.totalorder %v293, %v2216
    %vm2269 = vcmp.eq.s32.totalorder %v294, %v2216
    %vm2270 = vcmp.eq.s32.totalorder %v295, %v2216
    %vm2271 = vcmp.eq.s32.totalorder %v296, %v2216
    %vm2272 = vcmp.eq.s32.totalorder %v293, %v2219
    %vm2273 = vcmp.eq.s32.totalorder %v294, %v2219
    %vm2274 = vcmp.eq.s32.totalorder %v295, %v2219
    %vm2275 = vcmp.eq.s32.totalorder %v296, %v2219
    %vm2276 = vcmp.eq.s32.totalorder %v293, %v2222
    %vm2277 = vcmp.eq.s32.totalorder %v294, %v2222
    %vm2278 = vcmp.eq.s32.totalorder %v295, %v2222
    %vm2279 = vcmp.eq.s32.totalorder %v296, %v2222
    %vm2280 = vcmp.eq.s32.totalorder %v293, %v2225
    %vm2281 = vcmp.eq.s32.totalorder %v294, %v2225
    %vm2282 = vcmp.eq.s32.totalorder %v295, %v2225
    %vm2283 = vcmp.eq.s32.totalorder %v296, %v2225
    %vm2284 = vcmp.eq.s32.totalorder %v293, %v2228
    %vm2285 = vcmp.eq.s32.totalorder %v294, %v2228
    %vm2286 = vcmp.eq.s32.totalorder %v295, %v2228
    %vm2287 = vcmp.eq.s32.totalorder %v296, %v2228
    %vm2288 = vcmp.eq.s32.totalorder %v293, %v2231
    %vm2289 = vcmp.eq.s32.totalorder %v294, %v2231
    %vm2290 = vcmp.eq.s32.totalorder %v295, %v2231
    %vm2291 = vcmp.eq.s32.totalorder %v296, %v2231
    %vm2292 = vcmp.eq.s32.totalorder %v293, %v2234
    %vm2293 = vcmp.eq.s32.totalorder %v294, %v2234
    %vm2294 = vcmp.eq.s32.totalorder %v295, %v2234
    %vm2295 = vcmp.eq.s32.totalorder %v296, %v2234
    %vm2296 = vcmp.eq.s32.totalorder %v293, %v2237
    %vm2297 = vcmp.eq.s32.totalorder %v294, %v2237
    %vm2298 = vcmp.eq.s32.totalorder %v295, %v2237
    %vm2299 = vcmp.eq.s32.totalorder %v296, %v2237
    %vm2300 = vcmp.eq.s32.totalorder %v293, %v2240
    %vm2301 = vcmp.eq.s32.totalorder %v294, %v2240
    %vm2302 = vcmp.eq.s32.totalorder %v295, %v2240
    %vm2303 = vcmp.eq.s32.totalorder %v296, %v2240
    %vm2304 = vcmp.eq.s32.totalorder %v293, %v2243
    %vm2305 = vcmp.eq.s32.totalorder %v294, %v2243
    %vm2306 = vcmp.eq.s32.totalorder %v295, %v2243
    %vm2307 = vcmp.eq.s32.totalorder %v296, %v2243
    %v2308 = vsel %vm2164, 1, 0
    %v2309 = vsel %vm2165, 1, 0
    %v2310 = vsel %vm2166, 1, 0
    %v2311 = vsel %vm2167, 1, 0
    %v2312 = vsel %vm2168, 1, 0
    %v2313 = vsel %vm2169, 1, 0
    %v2314 = vsel %vm2170, 1, 0
    %v2315 = vsel %vm2171, 1, 0
    %v2316 = vsel %vm2172, 1, 0
    %v2317 = vsel %vm2173, 1, 0
    %v2318 = vsel %vm2174, 1, 0
    %v2319 = vsel %vm2175, 1, 0
    %v2320 = vsel %vm2176, 1, 0
    %v2321 = vsel %vm2177, 1, 0
    %v2322 = vsel %vm2178, 1, 0
    %v2323 = vsel %vm2179, 1, 0
    %2324 = vset.pattern.permute.xlu0 0
    %2325 = vperm.xlu0 %2324, %v2308
    %v2326 = vpop.permute.xlu0 %2325
    %2327 = vset.pattern.permute.xlu0 0
    %2328 = vperm.xlu0 %2327, %v2309
    %v2329 = vpop.permute.xlu0 %2328
    %2330 = vset.pattern.permute.xlu0 0
    %2331 = vperm.xlu0 %2330, %v2310
    %v2332 = vpop.permute.xlu0 %2331
    %2333 = vset.pattern.permute.xlu0 0
    %2334 = vperm.xlu0 %2333, %v2311
    %v2335 = vpop.permute.xlu0 %2334
    %2336 = vset.pattern.permute.xlu0 0
    %2337 = vperm.xlu0 %2336, %v2312
    %v2338 = vpop.permute.xlu0 %2337
    %2339 = vset.pattern.permute.xlu0 0
    %2340 = vperm.xlu0 %2339, %v2313
    %v2341 = vpop.permute.xlu0 %2340
    %2342 = vset.pattern.permute.xlu0 0
    %2343 = vperm.xlu0 %2342, %v2314
    %v2344 = vpop.permute.xlu0 %2343
    %2345 = vset.pattern.permute.xlu0 0
    %2346 = vperm.xlu0 %2345, %v2315
    %v2347 = vpop.permute.xlu0 %2346
    %2348 = vset.pattern.permute.xlu0 0
    %2349 = vperm.xlu0 %2348, %v2316
    %v2350 = vpop.permute.xlu0 %2349
    %2351 = vset.pattern.permute.xlu0 0
    %2352 = vperm.xlu0 %2351, %v2317
    %v2353 = vpop.permute.xlu0 %2352
    %2354 = vset.pattern.permute.xlu0 0
    %2355 = vperm.xlu0 %2354, %v2318
    %v2356 = vpop.permute.xlu0 %2355
    %2357 = vset.pattern.permute.xlu0 0
    %2358 = vperm.xlu0 %2357, %v2319
    %v2359 = vpop.permute.xlu0 %2358
    %2360 = vset.pattern.permute.xlu0 0
    %2361 = vperm.xlu0 %2360, %v2320
    %v2362 = vpop.permute.xlu0 %2361
    %2363 = vset.pattern.permute.xlu0 0
    %2364 = vperm.xlu0 %2363, %v2321
    %v2365 = vpop.permute.xlu0 %2364
    %2366 = vset.pattern.permute.xlu0 0
    %2367 = vperm.xlu0 %2366, %v2322
    %v2368 = vpop.permute.xlu0 %2367
    %2369 = vset.pattern.permute.xlu0 0
    %2370 = vperm.xlu0 %2369, %v2323
    %v2371 = vpop.permute.xlu0 %2370
    %vm2372 = vcmp.eq.s32.totalorder %v2326, 1
    %vm2373 = vcmp.eq.s32.totalorder %v2329, 1
    %vm2374 = vcmp.eq.s32.totalorder %v2332, 1
    %vm2375 = vcmp.eq.s32.totalorder %v2335, 1
    %vm2376 = vcmp.eq.s32.totalorder %v2338, 1
    %vm2377 = vcmp.eq.s32.totalorder %v2341, 1
    %vm2378 = vcmp.eq.s32.totalorder %v2344, 1
    %vm2379 = vcmp.eq.s32.totalorder %v2347, 1
    %vm2380 = vcmp.eq.s32.totalorder %v2350, 1
    %vm2381 = vcmp.eq.s32.totalorder %v2353, 1
    %vm2382 = vcmp.eq.s32.totalorder %v2356, 1
    %vm2383 = vcmp.eq.s32.totalorder %v2359, 1
    %vm2384 = vcmp.eq.s32.totalorder %v2362, 1
    %vm2385 = vcmp.eq.s32.totalorder %v2365, 1
    %vm2386 = vcmp.eq.s32.totalorder %v2368, 1
    %vm2387 = vcmp.eq.s32.totalorder %v2371, 1
    %vm2388 = vmand %vm2244, %vm2372
    %vm2389 = vmand %vm2245, %vm2372
    %vm2390 = vmand %vm2246, %vm2372
    %vm2391 = vmand %vm2247, %vm2372
    %vm2392 = vmand %vm2248, %vm2373
    %vm2393 = vmand %vm2249, %vm2373
    %vm2394 = vmand %vm2250, %vm2373
    %vm2395 = vmand %vm2251, %vm2373
    %vm2396 = vmand %vm2252, %vm2374
    %vm2397 = vmand %vm2253, %vm2374
    %vm2398 = vmand %vm2254, %vm2374
    %vm2399 = vmand %vm2255, %vm2374
    %vm2400 = vmand %vm2256, %vm2375
    %vm2401 = vmand %vm2257, %vm2375
    %vm2402 = vmand %vm2258, %vm2375
    %vm2403 = vmand %vm2259, %vm2375
    %vm2404 = vmand %vm2260, %vm2376
    %vm2405 = vmand %vm2261, %vm2376
    %vm2406 = vmand %vm2262, %vm2376
    %vm2407 = vmand %vm2263, %vm2376
    %vm2408 = vmand %vm2264, %vm2377
    %vm2409 = vmand %vm2265, %vm2377
    %vm2410 = vmand %vm2266, %vm2377
    %vm2411 = vmand %vm2267, %vm2377
    %vm2412 = vmand %vm2268, %vm2378
    %vm2413 = vmand %vm2269, %vm2378
    %vm2414 = vmand %vm2270, %vm2378
    %vm2415 = vmand %vm2271, %vm2378
    %vm2416 = vmand %vm2272, %vm2379
    %vm2417 = vmand %vm2273, %vm2379
    %vm2418 = vmand %vm2274, %vm2379
    %vm2419 = vmand %vm2275, %vm2379
    %vm2420 = vmand %vm2276, %vm2380
    %vm2421 = vmand %vm2277, %vm2380
    %vm2422 = vmand %vm2278, %vm2380
    %vm2423 = vmand %vm2279, %vm2380
    %vm2424 = vmand %vm2280, %vm2381
    %vm2425 = vmand %vm2281, %vm2381
    %vm2426 = vmand %vm2282, %vm2381
    %vm2427 = vmand %vm2283, %vm2381
    %vm2428 = vmand %vm2284, %vm2382
    %vm2429 = vmand %vm2285, %vm2382
    %vm2430 = vmand %vm2286, %vm2382
    %vm2431 = vmand %vm2287, %vm2382
    %vm2432 = vmand %vm2288, %vm2383
    %vm2433 = vmand %vm2289, %vm2383
    %vm2434 = vmand %vm2290, %vm2383
    %vm2435 = vmand %vm2291, %vm2383
    %vm2436 = vmand %vm2292, %vm2384
    %vm2437 = vmand %vm2293, %vm2384
    %vm2438 = vmand %vm2294, %vm2384
    %vm2439 = vmand %vm2295, %vm2384
    %vm2440 = vmand %vm2296, %vm2385
    %vm2441 = vmand %vm2297, %vm2385
    %vm2442 = vmand %vm2298, %vm2385
    %vm2443 = vmand %vm2299, %vm2385
    %vm2444 = vmand %vm2300, %vm2386
    %vm2445 = vmand %vm2301, %vm2386
    %vm2446 = vmand %vm2302, %vm2386
    %vm2447 = vmand %vm2303, %vm2386
    %vm2448 = vmand %vm2304, %vm2387
    %vm2449 = vmand %vm2305, %vm2387
    %vm2450 = vmand %vm2306, %vm2387
    %vm2451 = vmand %vm2307, %vm2387
    %v2452 = vsel %vm2388, 1.0, 0.0
    %v2453 = vsel %vm2389, 1.0, 0.0
    %v2454 = vsel %vm2390, 1.0, 0.0
    %v2455 = vsel %vm2391, 1.0, 0.0
    %v2456 = vsel %vm2392, 1.0, 0.0
    %v2457 = vsel %vm2393, 1.0, 0.0
    %v2458 = vsel %vm2394, 1.0, 0.0
    %v2459 = vsel %vm2395, 1.0, 0.0
    %v2460 = vsel %vm2396, 1.0, 0.0
    %v2461 = vsel %vm2397, 1.0, 0.0
    %v2462 = vsel %vm2398, 1.0, 0.0
    %v2463 = vsel %vm2399, 1.0, 0.0
    %v2464 = vsel %vm2400, 1.0, 0.0
    %v2465 = vsel %vm2401, 1.0, 0.0
    %v2466 = vsel %vm2402, 1.0, 0.0
    %v2467 = vsel %vm2403, 1.0, 0.0
    %v2468 = vsel %vm2404, 1.0, 0.0
    %v2469 = vsel %vm2405, 1.0, 0.0
    %v2470 = vsel %vm2406, 1.0, 0.0
    %v2471 = vsel %vm2407, 1.0, 0.0
    %v2472 = vsel %vm2408, 1.0, 0.0
    %v2473 = vsel %vm2409, 1.0, 0.0
    %v2474 = vsel %vm2410, 1.0, 0.0
    %v2475 = vsel %vm2411, 1.0, 0.0
    %v2476 = vsel %vm2412, 1.0, 0.0
    %v2477 = vsel %vm2413, 1.0, 0.0
    %v2478 = vsel %vm2414, 1.0, 0.0
    %v2479 = vsel %vm2415, 1.0, 0.0
    %v2480 = vsel %vm2416, 1.0, 0.0
    %v2481 = vsel %vm2417, 1.0, 0.0
    %v2482 = vsel %vm2418, 1.0, 0.0
    %v2483 = vsel %vm2419, 1.0, 0.0
    %v2484 = vsel %vm2420, 1.0, 0.0
    %v2485 = vsel %vm2421, 1.0, 0.0
    %v2486 = vsel %vm2422, 1.0, 0.0
    %v2487 = vsel %vm2423, 1.0, 0.0
    %v2488 = vsel %vm2424, 1.0, 0.0
    %v2489 = vsel %vm2425, 1.0, 0.0
    %v2490 = vsel %vm2426, 1.0, 0.0
    %v2491 = vsel %vm2427, 1.0, 0.0
    %v2492 = vsel %vm2428, 1.0, 0.0
    %v2493 = vsel %vm2429, 1.0, 0.0
    %v2494 = vsel %vm2430, 1.0, 0.0
    %v2495 = vsel %vm2431, 1.0, 0.0
    %v2496 = vsel %vm2432, 1.0, 0.0
    %v2497 = vsel %vm2433, 1.0, 0.0
    %v2498 = vsel %vm2434, 1.0, 0.0
    %v2499 = vsel %vm2435, 1.0, 0.0
    %v2500 = vsel %vm2436, 1.0, 0.0
    %v2501 = vsel %vm2437, 1.0, 0.0
    %v2502 = vsel %vm2438, 1.0, 0.0
    %v2503 = vsel %vm2439, 1.0, 0.0
    %v2504 = vsel %vm2440, 1.0, 0.0
    %v2505 = vsel %vm2441, 1.0, 0.0
    %v2506 = vsel %vm2442, 1.0, 0.0
    %v2507 = vsel %vm2443, 1.0, 0.0
    %v2508 = vsel %vm2444, 1.0, 0.0
    %v2509 = vsel %vm2445, 1.0, 0.0
    %v2510 = vsel %vm2446, 1.0, 0.0
    %v2511 = vsel %vm2447, 1.0, 0.0
    %v2512 = vsel %vm2448, 1.0, 0.0
    %v2513 = vsel %vm2449, 1.0, 0.0
    %v2514 = vsel %vm2450, 1.0, 0.0
    %v2515 = vsel %vm2451, 1.0, 0.0
    %v2516 = vpack.c.bf16 %v2456, %v2452
    %v2517 = vpack.c.bf16 %v2457, %v2453
    %v2518 = vpack.c.bf16 %v2458, %v2454
    %v2519 = vpack.c.bf16 %v2459, %v2455
    %v2520 = vpack.c.bf16 %v2464, %v2460
    %v2521 = vpack.c.bf16 %v2465, %v2461
    %v2522 = vpack.c.bf16 %v2466, %v2462
    %v2523 = vpack.c.bf16 %v2467, %v2463
    %v2524 = vpack.c.bf16 %v2472, %v2468
    %v2525 = vpack.c.bf16 %v2473, %v2469
    %v2526 = vpack.c.bf16 %v2474, %v2470
    %v2527 = vpack.c.bf16 %v2475, %v2471
    %v2528 = vpack.c.bf16 %v2480, %v2476
    %v2529 = vpack.c.bf16 %v2481, %v2477
    %v2530 = vpack.c.bf16 %v2482, %v2478
    %v2531 = vpack.c.bf16 %v2483, %v2479
    %v2532 = vpack.c.bf16 %v2488, %v2484
    %v2533 = vpack.c.bf16 %v2489, %v2485
    %v2534 = vpack.c.bf16 %v2490, %v2486
    %v2535 = vpack.c.bf16 %v2491, %v2487
    %v2536 = vpack.c.bf16 %v2496, %v2492
    %v2537 = vpack.c.bf16 %v2497, %v2493
    %v2538 = vpack.c.bf16 %v2498, %v2494
    %v2539 = vpack.c.bf16 %v2499, %v2495
    %v2540 = vpack.c.bf16 %v2504, %v2500
    %v2541 = vpack.c.bf16 %v2505, %v2501
    %v2542 = vpack.c.bf16 %v2506, %v2502
    %v2543 = vpack.c.bf16 %v2507, %v2503
    %v2544 = vpack.c.bf16 %v2512, %v2508
    %v2545 = vpack.c.bf16 %v2513, %v2509
    %v2546 = vpack.c.bf16 %v2514, %v2510
    %v2547 = vpack.c.bf16 %v2515, %v2511
    %2548 = vmatpush.bf16.msra.mxu0 %v976
    %2549 = vmatpush.bf16.msra.mxu0 %v975
    %2550 = vmatpush.bf16.msra.mxu0 %v974
    %2551 = vmatpush.bf16.msra.mxu0 %v973
    %2552 = vmatpush.bf16.msra.mxu0 %v972
    %2553 = vmatpush.bf16.msra.mxu0 %v971
    %2554 = vmatpush.bf16.msra.mxu0 %v970
    %2555 = vmatpush.bf16.msra.mxu0 %v969
    %2556 = vmatmul.bf16.gmra.mxu0 %v2516
    %v2557 = vpop.f32.mrf.mxu0
    %v2558 = vadd.f32 0.0, %v2557
    %v2559 = vpop.f32.mrf.mxu0
    %v2560 = vadd.f32 0.0, %v2559
    %2561 = vmatmul.bf16.gmra.mxu0 %v2520
    %v2562 = vpop.f32.mrf.mxu0
    %v2563 = vadd.f32 0.0, %v2562
    %v2564 = vpop.f32.mrf.mxu0
    %v2565 = vadd.f32 0.0, %v2564
    %2566 = vmatmul.bf16.gmra.mxu0 %v2524
    %v2567 = vpop.f32.mrf.mxu0
    %v2568 = vadd.f32 0.0, %v2567
    %v2569 = vpop.f32.mrf.mxu0
    %v2570 = vadd.f32 0.0, %v2569
    %2571 = vmatmul.bf16.gmra.mxu0 %v2528
    %v2572 = vpop.f32.mrf.mxu0
    %v2573 = vadd.f32 0.0, %v2572
    %v2574 = vpop.f32.mrf.mxu0
    %v2575 = vadd.f32 0.0, %v2574
    %2576 = vmatmul.bf16.gmra.mxu0 %v2532
    %v2577 = vpop.f32.mrf.mxu0
    %v2578 = vadd.f32 0.0, %v2577
    %v2579 = vpop.f32.mrf.mxu0
    %v2580 = vadd.f32 0.0, %v2579
    %2581 = vmatmul.bf16.gmra.mxu0 %v2536
    %v2582 = vpop.f32.mrf.mxu0
    %v2583 = vadd.f32 0.0, %v2582
    %v2584 = vpop.f32.mrf.mxu0
    %v2585 = vadd.f32 0.0, %v2584
    %2586 = vmatmul.bf16.gmra.mxu0 %v2540
    %v2587 = vpop.f32.mrf.mxu0
    %v2588 = vadd.f32 0.0, %v2587
    %v2589 = vpop.f32.mrf.mxu0
    %v2590 = vadd.f32 0.0, %v2589
    %2591 = vmatmul.bf16.gmra.mxu0 %v2544
    %v2592 = vpop.f32.mrf.mxu0
    %v2593 = vadd.f32 0.0, %v2592
    %v2594 = vpop.f32.mrf.mxu0
    %v2595 = vadd.f32 0.0, %v2594
    %2596 = vdwg.mxu0
    %2597 = vmatpush.bf16.msra.mxu0 %v984
    %2598 = vmatpush.bf16.msra.mxu0 %v983
    %2599 = vmatpush.bf16.msra.mxu0 %v982
    %2600 = vmatpush.bf16.msra.mxu0 %v981
    %2601 = vmatpush.bf16.msra.mxu0 %v980
    %2602 = vmatpush.bf16.msra.mxu0 %v979
    %2603 = vmatpush.bf16.msra.mxu0 %v978
    %2604 = vmatpush.bf16.msra.mxu0 %v977
    %2605 = vmatmul.bf16.gmra.mxu0 %v2517
    %v2606 = vpop.f32.mrf.mxu0
    %v2607 = vadd.f32 %v2558, %v2606
    %v2608 = vpop.f32.mrf.mxu0
    %v2609 = vadd.f32 %v2560, %v2608
    %2610 = vmatmul.bf16.gmra.mxu0 %v2521
    %v2611 = vpop.f32.mrf.mxu0
    %v2612 = vadd.f32 %v2563, %v2611
    %v2613 = vpop.f32.mrf.mxu0
    %v2614 = vadd.f32 %v2565, %v2613
    %2615 = vmatmul.bf16.gmra.mxu0 %v2525
    %v2616 = vpop.f32.mrf.mxu0
    %v2617 = vadd.f32 %v2568, %v2616
    %v2618 = vpop.f32.mrf.mxu0
    %v2619 = vadd.f32 %v2570, %v2618
    %2620 = vmatmul.bf16.gmra.mxu0 %v2529
    %v2621 = vpop.f32.mrf.mxu0
    %v2622 = vadd.f32 %v2573, %v2621
    %v2623 = vpop.f32.mrf.mxu0
    %v2624 = vadd.f32 %v2575, %v2623
    %2625 = vmatmul.bf16.gmra.mxu0 %v2533
    %v2626 = vpop.f32.mrf.mxu0
    %v2627 = vadd.f32 %v2578, %v2626
    %v2628 = vpop.f32.mrf.mxu0
    %v2629 = vadd.f32 %v2580, %v2628
    %2630 = vmatmul.bf16.gmra.mxu0 %v2537
    %v2631 = vpop.f32.mrf.mxu0
    %v2632 = vadd.f32 %v2583, %v2631
    %v2633 = vpop.f32.mrf.mxu0
    %v2634 = vadd.f32 %v2585, %v2633
    %2635 = vmatmul.bf16.gmra.mxu0 %v2541
    %v2636 = vpop.f32.mrf.mxu0
    %v2637 = vadd.f32 %v2588, %v2636
    %v2638 = vpop.f32.mrf.mxu0
    %v2639 = vadd.f32 %v2590, %v2638
    %2640 = vmatmul.bf16.gmra.mxu0 %v2545
    %v2641 = vpop.f32.mrf.mxu0
    %v2642 = vadd.f32 %v2593, %v2641
    %v2643 = vpop.f32.mrf.mxu0
    %v2644 = vadd.f32 %v2595, %v2643
    %2645 = vdwg.mxu0
    %2646 = vmatpush.bf16.msra.mxu0 %v992
    %2647 = vmatpush.bf16.msra.mxu0 %v991
    %2648 = vmatpush.bf16.msra.mxu0 %v990
    %2649 = vmatpush.bf16.msra.mxu0 %v989
    %2650 = vmatpush.bf16.msra.mxu0 %v988
    %2651 = vmatpush.bf16.msra.mxu0 %v987
    %2652 = vmatpush.bf16.msra.mxu0 %v986
    %2653 = vmatpush.bf16.msra.mxu0 %v985
    %2654 = vmatmul.bf16.gmra.mxu0 %v2518
    %v2655 = vpop.f32.mrf.mxu0
    %v2656 = vadd.f32 %v2607, %v2655
    %v2657 = vpop.f32.mrf.mxu0
    %v2658 = vadd.f32 %v2609, %v2657
    %2659 = vmatmul.bf16.gmra.mxu0 %v2522
    %v2660 = vpop.f32.mrf.mxu0
    %v2661 = vadd.f32 %v2612, %v2660
    %v2662 = vpop.f32.mrf.mxu0
    %v2663 = vadd.f32 %v2614, %v2662
    %2664 = vmatmul.bf16.gmra.mxu0 %v2526
    %v2665 = vpop.f32.mrf.mxu0
    %v2666 = vadd.f32 %v2617, %v2665
    %v2667 = vpop.f32.mrf.mxu0
    %v2668 = vadd.f32 %v2619, %v2667
    %2669 = vmatmul.bf16.gmra.mxu0 %v2530
    %v2670 = vpop.f32.mrf.mxu0
    %v2671 = vadd.f32 %v2622, %v2670
    %v2672 = vpop.f32.mrf.mxu0
    %v2673 = vadd.f32 %v2624, %v2672
    %2674 = vmatmul.bf16.gmra.mxu0 %v2534
    %v2675 = vpop.f32.mrf.mxu0
    %v2676 = vadd.f32 %v2627, %v2675
    %v2677 = vpop.f32.mrf.mxu0
    %v2678 = vadd.f32 %v2629, %v2677
    %2679 = vmatmul.bf16.gmra.mxu0 %v2538
    %v2680 = vpop.f32.mrf.mxu0
    %v2681 = vadd.f32 %v2632, %v2680
    %v2682 = vpop.f32.mrf.mxu0
    %v2683 = vadd.f32 %v2634, %v2682
    %2684 = vmatmul.bf16.gmra.mxu0 %v2542
    %v2685 = vpop.f32.mrf.mxu0
    %v2686 = vadd.f32 %v2637, %v2685
    %v2687 = vpop.f32.mrf.mxu0
    %v2688 = vadd.f32 %v2639, %v2687
    %2689 = vmatmul.bf16.gmra.mxu0 %v2546
    %v2690 = vpop.f32.mrf.mxu0
    %v2691 = vadd.f32 %v2642, %v2690
    %v2692 = vpop.f32.mrf.mxu0
    %v2693 = vadd.f32 %v2644, %v2692
    %2694 = vdwg.mxu0
    %2695 = vmatpush.bf16.msra.mxu0 %v1000
    %2696 = vmatpush.bf16.msra.mxu0 %v999
    %2697 = vmatpush.bf16.msra.mxu0 %v998
    %2698 = vmatpush.bf16.msra.mxu0 %v997
    %2699 = vmatpush.bf16.msra.mxu0 %v996
    %2700 = vmatpush.bf16.msra.mxu0 %v995
    %2701 = vmatpush.bf16.msra.mxu0 %v994
    %2702 = vmatpush.bf16.msra.mxu0 %v993
    %2703 = vmatmul.bf16.gmra.mxu0 %v2519
    %v2704 = vpop.f32.mrf.mxu0
    %v2705 = vadd.f32 %v2656, %v2704
    %v2706 = vpop.f32.mrf.mxu0
    %v2707 = vadd.f32 %v2658, %v2706
    %2708 = vmatmul.bf16.gmra.mxu0 %v2523
    %v2709 = vpop.f32.mrf.mxu0
    %v2710 = vadd.f32 %v2661, %v2709
    %v2711 = vpop.f32.mrf.mxu0
    %v2712 = vadd.f32 %v2663, %v2711
    %2713 = vmatmul.bf16.gmra.mxu0 %v2527
    %v2714 = vpop.f32.mrf.mxu0
    %v2715 = vadd.f32 %v2666, %v2714
    %v2716 = vpop.f32.mrf.mxu0
    %v2717 = vadd.f32 %v2668, %v2716
    %2718 = vmatmul.bf16.gmra.mxu0 %v2531
    %v2719 = vpop.f32.mrf.mxu0
    %v2720 = vadd.f32 %v2671, %v2719
    %v2721 = vpop.f32.mrf.mxu0
    %v2722 = vadd.f32 %v2673, %v2721
    %2723 = vmatmul.bf16.gmra.mxu0 %v2535
    %v2724 = vpop.f32.mrf.mxu0
    %v2725 = vadd.f32 %v2676, %v2724
    %v2726 = vpop.f32.mrf.mxu0
    %v2727 = vadd.f32 %v2678, %v2726
    %2728 = vmatmul.bf16.gmra.mxu0 %v2539
    %v2729 = vpop.f32.mrf.mxu0
    %v2730 = vadd.f32 %v2681, %v2729
    %v2731 = vpop.f32.mrf.mxu0
    %v2732 = vadd.f32 %v2683, %v2731
    %2733 = vmatmul.bf16.gmra.mxu0 %v2543
    %v2734 = vpop.f32.mrf.mxu0
    %v2735 = vadd.f32 %v2686, %v2734
    %v2736 = vpop.f32.mrf.mxu0
    %v2737 = vadd.f32 %v2688, %v2736
    %2738 = vmatmul.bf16.gmra.mxu0 %v2547
    %v2739 = vpop.f32.mrf.mxu0
    %v2740 = vadd.f32 %v2691, %v2739
    %v2741 = vpop.f32.mrf.mxu0
    %v2742 = vadd.f32 %v2693, %v2741
    %2743 = vdwg.mxu0
    %v2744 = vpack.c.bf16 %v2707, %v2705
    %v2745 = vpack.c.bf16 %v2712, %v2710
    %v2746 = vpack.c.bf16 %v2717, %v2715
    %v2747 = vpack.c.bf16 %v2722, %v2720
    %v2748 = vpack.c.bf16 %v2727, %v2725
    %v2749 = vpack.c.bf16 %v2732, %v2730
    %v2750 = vpack.c.bf16 %v2737, %v2735
    %v2751 = vpack.c.bf16 %v2742, %v2740
    %s2752 = scalar_lea.vmem %s4, 128
    %v2753 = vld [vmem:[%s2752] sm:$0xf]
    %v2754 = vld [vmem:[%s2752 + $0x4] sm:$0xf]
    %v2755 = vld [vmem:[%s2752 + $0x8] sm:$0xf]
    %v2756 = vld [vmem:[%s2752 + $0xc] sm:$0xf]
    %v2757 = vld [vmem:[%s2752 + $0x10] sm:$0xf]
    %v2758 = vld [vmem:[%s2752 + $0x14] sm:$0xf]
    %v2759 = vld [vmem:[%s2752 + $0x18] sm:$0xf]
    %v2760 = vld [vmem:[%s2752 + $0x1c] sm:$0xf]
    %v2761 = vld [vmem:[%s2752 + $0x20] sm:$0xf]
    %v2762 = vld [vmem:[%s2752 + $0x24] sm:$0xf]
    %v2763 = vld [vmem:[%s2752 + $0x28] sm:$0xf]
    %v2764 = vld [vmem:[%s2752 + $0x2c] sm:$0xf]
    %v2765 = vld [vmem:[%s2752 + $0x30] sm:$0xf]
    %v2766 = vld [vmem:[%s2752 + $0x34] sm:$0xf]
    %v2767 = vld [vmem:[%s2752 + $0x38] sm:$0xf]
    %v2768 = vld [vmem:[%s2752 + $0x3c] sm:$0xf]
    %v2785 = vunpack.c.l.b16 %v2753
    %v2786 = vunpack.c.l.b16 %v2754
    %v2787 = vunpack.c.l.b16 %v2755
    %v2788 = vunpack.c.l.b16 %v2756
    %v2789 = vunpack.c.l.b16 %v2757
    %v2790 = vunpack.c.l.b16 %v2758
    %v2791 = vunpack.c.l.b16 %v2759
    %v2792 = vunpack.c.l.b16 %v2760
    %v2793 = vunpack.c.l.b16 %v2761
    %v2794 = vunpack.c.l.b16 %v2762
    %v2795 = vunpack.c.l.b16 %v2763
    %v2796 = vunpack.c.l.b16 %v2764
    %v2797 = vunpack.c.l.b16 %v2765
    %v2798 = vunpack.c.l.b16 %v2766
    %v2799 = vunpack.c.l.b16 %v2767
    %v2800 = vunpack.c.l.b16 %v2768
    %v2801 = vpack.c.b16 %v2786, %v2785
    %v2802 = vpack.c.b16 %v2788, %v2787
    %v2803 = vpack.c.b16 %v2790, %v2789
    %v2804 = vpack.c.b16 %v2792, %v2791
    %v2805 = vpack.c.b16 %v2794, %v2793
    %v2806 = vpack.c.b16 %v2796, %v2795
    %v2807 = vpack.c.b16 %v2798, %v2797
    %v2808 = vpack.c.b16 %v2800, %v2799
    %2817 = vmatpush.bf16.msra.mxu0 %v2808
    %2818 = vmatpush.bf16.msra.mxu0 %v2807
    %2819 = vmatpush.bf16.msra.mxu0 %v2806
    %2820 = vmatpush.bf16.msra.mxu0 %v2805
    %2821 = vmatpush.bf16.msra.mxu0 %v2804
    %2822 = vmatpush.bf16.msra.mxu0 %v2803
    %2823 = vmatpush.bf16.msra.mxu0 %v2802
    %2824 = vmatpush.bf16.msra.mxu0 %v2801
    %2825 = vmatmul.bf16.gmra.mxu0 %v2744
    %v2826 = vpop.f32.mrf.mxu0
    %v2827 = vadd.f32 0.0, %v2826
    %v2828 = vpop.f32.mrf.mxu0
    %v2829 = vadd.f32 0.0, %v2828
    %2830 = vmatmul.bf16.gmra.mxu0 %v2745
    %v2831 = vpop.f32.mrf.mxu0
    %v2832 = vadd.f32 0.0, %v2831
    %v2833 = vpop.f32.mrf.mxu0
    %v2834 = vadd.f32 0.0, %v2833
    %2835 = vmatmul.bf16.gmra.mxu0 %v2746
    %v2836 = vpop.f32.mrf.mxu0
    %v2837 = vadd.f32 0.0, %v2836
    %v2838 = vpop.f32.mrf.mxu0
    %v2839 = vadd.f32 0.0, %v2838
    %2840 = vmatmul.bf16.gmra.mxu0 %v2747
    %v2841 = vpop.f32.mrf.mxu0
    %v2842 = vadd.f32 0.0, %v2841
    %v2843 = vpop.f32.mrf.mxu0
    %v2844 = vadd.f32 0.0, %v2843
    %2845 = vmatmul.bf16.gmra.mxu0 %v2748
    %v2846 = vpop.f32.mrf.mxu0
    %v2847 = vadd.f32 0.0, %v2846
    %v2848 = vpop.f32.mrf.mxu0
    %v2849 = vadd.f32 0.0, %v2848
    %2850 = vmatmul.bf16.gmra.mxu0 %v2749
    %v2851 = vpop.f32.mrf.mxu0
    %v2852 = vadd.f32 0.0, %v2851
    %v2853 = vpop.f32.mrf.mxu0
    %v2854 = vadd.f32 0.0, %v2853
    %2855 = vmatmul.bf16.gmra.mxu0 %v2750
    %v2856 = vpop.f32.mrf.mxu0
    %v2857 = vadd.f32 0.0, %v2856
    %v2858 = vpop.f32.mrf.mxu0
    %v2859 = vadd.f32 0.0, %v2858
    %2860 = vmatmul.bf16.gmra.mxu0 %v2751
    %v2861 = vpop.f32.mrf.mxu0
    %v2862 = vadd.f32 0.0, %v2861
    %v2863 = vpop.f32.mrf.mxu0
    %v2864 = vadd.f32 0.0, %v2863
    %2865 = vdwg.mxu0
    %v2866 = vadd.f32 %v2061, %v2827
    %v2867 = vadd.f32 %v2063, %v2829
    %v2868 = vadd.f32 %v2066, %v2832
    %v2869 = vadd.f32 %v2068, %v2834
    %v2870 = vadd.f32 %v2071, %v2837
    %v2871 = vadd.f32 %v2073, %v2839
    %v2872 = vadd.f32 %v2076, %v2842
    %v2873 = vadd.f32 %v2078, %v2844
    %v2874 = vadd.f32 %v2081, %v2847
    %v2875 = vadd.f32 %v2083, %v2849
    %v2876 = vadd.f32 %v2086, %v2852
    %v2877 = vadd.f32 %v2088, %v2854
    %v2878 = vadd.f32 %v2091, %v2857
    %v2879 = vadd.f32 %v2093, %v2859
    %v2880 = vadd.f32 %v2096, %v2862
    %v2881 = vadd.f32 %v2098, %v2864
    %vm2882 = vcmp.ge.s32.totalorder %v244, 0
    %vm2883 = vcmp.ge.s32.totalorder %v245, 0
    %vm2884 = vcmp.ge.s32.totalorder %v246, 0
    %vm2885 = vcmp.ge.s32.totalorder %v247, 0
    %vm2886 = vcmp.ge.s32.totalorder %v248, 0
    %vm2887 = vcmp.ge.s32.totalorder %v249, 0
    %vm2888 = vcmp.ge.s32.totalorder %v250, 0
    %vm2889 = vcmp.ge.s32.totalorder %v251, 0
    %vm2890 = vcmp.ge.s32.totalorder %v252, 0
    %vm2891 = vcmp.ge.s32.totalorder %v253, 0
    %vm2892 = vcmp.ge.s32.totalorder %v254, 0
    %vm2893 = vcmp.ge.s32.totalorder %v255, 0
    %vm2894 = vcmp.ge.s32.totalorder %v256, 0
    %vm2895 = vcmp.ge.s32.totalorder %v257, 0
    %vm2896 = vcmp.ge.s32.totalorder %v258, 0
    %vm2897 = vcmp.ge.s32.totalorder %v259, 0
    %vm2898 = vcmp.lt.s32.totalorder %v244, 16
    %vm2899 = vcmp.lt.s32.totalorder %v245, 16
    %vm2900 = vcmp.lt.s32.totalorder %v246, 16
    %vm2901 = vcmp.lt.s32.totalorder %v247, 16
    %vm2902 = vcmp.lt.s32.totalorder %v248, 16
    %vm2903 = vcmp.lt.s32.totalorder %v249, 16
    %vm2904 = vcmp.lt.s32.totalorder %v250, 16
    %vm2905 = vcmp.lt.s32.totalorder %v251, 16
    %vm2906 = vcmp.lt.s32.totalorder %v252, 16
    %vm2907 = vcmp.lt.s32.totalorder %v253, 16
    %vm2908 = vcmp.lt.s32.totalorder %v254, 16
    %vm2909 = vcmp.lt.s32.totalorder %v255, 16
    %vm2910 = vcmp.lt.s32.totalorder %v256, 16
    %vm2911 = vcmp.lt.s32.totalorder %v257, 16
    %vm2912 = vcmp.lt.s32.totalorder %v258, 16
    %vm2913 = vcmp.lt.s32.totalorder %v259, 16
    %vm2914 = vmand %vm2882, %vm2898
    %vm2915 = vmand %vm2883, %vm2899
    %vm2916 = vmand %vm2884, %vm2900
    %vm2917 = vmand %vm2885, %vm2901
    %vm2918 = vmand %vm2886, %vm2902
    %vm2919 = vmand %vm2887, %vm2903
    %vm2920 = vmand %vm2888, %vm2904
    %vm2921 = vmand %vm2889, %vm2905
    %vm2922 = vmand %vm2890, %vm2906
    %vm2923 = vmand %vm2891, %vm2907
    %vm2924 = vmand %vm2892, %vm2908
    %vm2925 = vmand %vm2893, %vm2909
    %vm2926 = vmand %vm2894, %vm2910
    %vm2927 = vmand %vm2895, %vm2911
    %vm2928 = vmand %vm2896, %vm2912
    %vm2929 = vmand %vm2897, %vm2913
    %vm2930 = vmand %vm2914, %vm377
    %vm2931 = vmand %vm2915, %vm378
    %vm2932 = vmand %vm2916, %vm379
    %vm2933 = vmand %vm2917, %vm380
    %vm2934 = vmand %vm2918, %vm381
    %vm2935 = vmand %vm2919, %vm382
    %vm2936 = vmand %vm2920, %vm383
    %vm2937 = vmand %vm2921, %vm384
    %vm2938 = vmand %vm2922, %vm385
    %vm2939 = vmand %vm2923, %vm386
    %vm2940 = vmand %vm2924, %vm387
    %vm2941 = vmand %vm2925, %vm388
    %vm2942 = vmand %vm2926, %vm389
    %vm2943 = vmand %vm2927, %vm390
    %vm2944 = vmand %vm2928, %vm391
    %vm2945 = vmand %vm2929, %vm392
    %vm2946 = vmand %vm2930, %vm409
    %vm2947 = vmand %vm2931, %vm410
    %vm2948 = vmand %vm2932, %vm411
    %vm2949 = vmand %vm2933, %vm412
    %vm2950 = vmand %vm2934, %vm413
    %vm2951 = vmand %vm2935, %vm414
    %vm2952 = vmand %vm2936, %vm415
    %vm2953 = vmand %vm2937, %vm416
    %vm2954 = vmand %vm2938, %vm417
    %vm2955 = vmand %vm2939, %vm418
    %vm2956 = vmand %vm2940, %vm419
    %vm2957 = vmand %vm2941, %vm420
    %vm2958 = vmand %vm2942, %vm421
    %vm2959 = vmand %vm2943, %vm422
    %vm2960 = vmand %vm2944, %vm423
    %vm2961 = vmand %vm2945, %vm424
    %v2962 = vmul.u32 %v244, 16
    %v2963 = vmul.u32 %v245, 16
    %v2964 = vmul.u32 %v246, 16
    %v2965 = vmul.u32 %v247, 16
    %v2966 = vmul.u32 %v248, 16
    %v2967 = vmul.u32 %v249, 16
    %v2968 = vmul.u32 %v250, 16
    %v2969 = vmul.u32 %v251, 16
    %v2970 = vmul.u32 %v252, 16
    %v2971 = vmul.u32 %v253, 16
    %v2972 = vmul.u32 %v254, 16
    %v2973 = vmul.u32 %v255, 16
    %v2974 = vmul.u32 %v256, 16
    %v2975 = vmul.u32 %v257, 16
    %v2976 = vmul.u32 %v258, 16
    %v2977 = vmul.u32 %v259, 16
    %v2978 = vadd.s32 %v276, %v2962
    %v2979 = vadd.s32 %v277, %v2963
    %v2980 = vadd.s32 %v278, %v2964
    %v2981 = vadd.s32 %v279, %v2965
    %v2982 = vadd.s32 %v280, %v2966
    %v2983 = vadd.s32 %v281, %v2967
    %v2984 = vadd.s32 %v282, %v2968
    %v2985 = vadd.s32 %v283, %v2969
    %v2986 = vadd.s32 %v284, %v2970
    %v2987 = vadd.s32 %v285, %v2971
    %v2988 = vadd.s32 %v286, %v2972
    %v2989 = vadd.s32 %v287, %v2973
    %v2990 = vadd.s32 %v288, %v2974
    %v2991 = vadd.s32 %v289, %v2975
    %v2992 = vadd.s32 %v290, %v2976
    %v2993 = vadd.s32 %v291, %v2977
    %v2994 = vadd.s32 %v2978, %v313
    %v2995 = vadd.s32 %v2979, %v314
    %v2996 = vadd.s32 %v2980, %v315
    %v2997 = vadd.s32 %v2981, %v316
    %v2998 = vadd.s32 %v2982, %v317
    %v2999 = vadd.s32 %v2983, %v318
    %v3000 = vadd.s32 %v2984, %v319
    %v3001 = vadd.s32 %v2985, %v320
    %v3002 = vadd.s32 %v2986, %v321
    %v3003 = vadd.s32 %v2987, %v322
    %v3004 = vadd.s32 %v2988, %v323
    %v3005 = vadd.s32 %v2989, %v324
    %v3006 = vadd.s32 %v2990, %v325
    %v3007 = vadd.s32 %v2991, %v326
    %v3008 = vadd.s32 %v2992, %v327
    %v3009 = vadd.s32 %v2993, %v328
    %3010 = vset.pattern.permute.xlu0 0
    %3011 = vperm.xlu0 %3010, %v2994
    %v3012 = vpop.permute.xlu0 %3011
    %3013 = vset.pattern.permute.xlu0 0
    %3014 = vperm.xlu0 %3013, %v2995
    %v3015 = vpop.permute.xlu0 %3014
    %3016 = vset.pattern.permute.xlu0 0
    %3017 = vperm.xlu0 %3016, %v2996
    %v3018 = vpop.permute.xlu0 %3017
    %3019 = vset.pattern.permute.xlu0 0
    %3020 = vperm.xlu0 %3019, %v2997
    %v3021 = vpop.permute.xlu0 %3020
    %3022 = vset.pattern.permute.xlu0 0
    %3023 = vperm.xlu0 %3022, %v2998
    %v3024 = vpop.permute.xlu0 %3023
    %3025 = vset.pattern.permute.xlu0 0
    %3026 = vperm.xlu0 %3025, %v2999
    %v3027 = vpop.permute.xlu0 %3026
    %3028 = vset.pattern.permute.xlu0 0
    %3029 = vperm.xlu0 %3028, %v3000
    %v3030 = vpop.permute.xlu0 %3029
    %3031 = vset.pattern.permute.xlu0 0
    %3032 = vperm.xlu0 %3031, %v3001
    %v3033 = vpop.permute.xlu0 %3032
    %3034 = vset.pattern.permute.xlu0 0
    %3035 = vperm.xlu0 %3034, %v3002
    %v3036 = vpop.permute.xlu0 %3035
    %3037 = vset.pattern.permute.xlu0 0
    %3038 = vperm.xlu0 %3037, %v3003
    %v3039 = vpop.permute.xlu0 %3038
    %3040 = vset.pattern.permute.xlu0 0
    %3041 = vperm.xlu0 %3040, %v3004
    %v3042 = vpop.permute.xlu0 %3041
    %3043 = vset.pattern.permute.xlu0 0
    %3044 = vperm.xlu0 %3043, %v3005
    %v3045 = vpop.permute.xlu0 %3044
    %3046 = vset.pattern.permute.xlu0 0
    %3047 = vperm.xlu0 %3046, %v3006
    %v3048 = vpop.permute.xlu0 %3047
    %3049 = vset.pattern.permute.xlu0 0
    %3050 = vperm.xlu0 %3049, %v3007
    %v3051 = vpop.permute.xlu0 %3050
    %3052 = vset.pattern.permute.xlu0 0
    %3053 = vperm.xlu0 %3052, %v3008
    %v3054 = vpop.permute.xlu0 %3053
    %3055 = vset.pattern.permute.xlu0 0
    %3056 = vperm.xlu0 %3055, %v3009
    %v3057 = vpop.permute.xlu0 %3056
    %vm3058 = vcmp.eq.s32.totalorder %v293, %v3012
    %vm3059 = vcmp.eq.s32.totalorder %v294, %v3012
    %vm3060 = vcmp.eq.s32.totalorder %v295, %v3012
    %vm3061 = vcmp.eq.s32.totalorder %v296, %v3012
    %vm3062 = vcmp.eq.s32.totalorder %v293, %v3015
    %vm3063 = vcmp.eq.s32.totalorder %v294, %v3015
    %vm3064 = vcmp.eq.s32.totalorder %v295, %v3015
    %vm3065 = vcmp.eq.s32.totalorder %v296, %v3015
    %vm3066 = vcmp.eq.s32.totalorder %v293, %v3018
    %vm3067 = vcmp.eq.s32.totalorder %v294, %v3018
    %vm3068 = vcmp.eq.s32.totalorder %v295, %v3018
    %vm3069 = vcmp.eq.s32.totalorder %v296, %v3018
    %vm3070 = vcmp.eq.s32.totalorder %v293, %v3021
    %vm3071 = vcmp.eq.s32.totalorder %v294, %v3021
    %vm3072 = vcmp.eq.s32.totalorder %v295, %v3021
    %vm3073 = vcmp.eq.s32.totalorder %v296, %v3021
    %vm3074 = vcmp.eq.s32.totalorder %v293, %v3024
    %vm3075 = vcmp.eq.s32.totalorder %v294, %v3024
    %vm3076 = vcmp.eq.s32.totalorder %v295, %v3024
    %vm3077 = vcmp.eq.s32.totalorder %v296, %v3024
    %vm3078 = vcmp.eq.s32.totalorder %v293, %v3027
    %vm3079 = vcmp.eq.s32.totalorder %v294, %v3027
    %vm3080 = vcmp.eq.s32.totalorder %v295, %v3027
    %vm3081 = vcmp.eq.s32.totalorder %v296, %v3027
    %vm3082 = vcmp.eq.s32.totalorder %v293, %v3030
    %vm3083 = vcmp.eq.s32.totalorder %v294, %v3030
    %vm3084 = vcmp.eq.s32.totalorder %v295, %v3030
    %vm3085 = vcmp.eq.s32.totalorder %v296, %v3030
    %vm3086 = vcmp.eq.s32.totalorder %v293, %v3033
    %vm3087 = vcmp.eq.s32.totalorder %v294, %v3033
    %vm3088 = vcmp.eq.s32.totalorder %v295, %v3033
    %vm3089 = vcmp.eq.s32.totalorder %v296, %v3033
    %vm3090 = vcmp.eq.s32.totalorder %v293, %v3036
    %vm3091 = vcmp.eq.s32.totalorder %v294, %v3036
    %vm3092 = vcmp.eq.s32.totalorder %v295, %v3036
    %vm3093 = vcmp.eq.s32.totalorder %v296, %v3036
    %vm3094 = vcmp.eq.s32.totalorder %v293, %v3039
    %vm3095 = vcmp.eq.s32.totalorder %v294, %v3039
    %vm3096 = vcmp.eq.s32.totalorder %v295, %v3039
    %vm3097 = vcmp.eq.s32.totalorder %v296, %v3039
    %vm3098 = vcmp.eq.s32.totalorder %v293, %v3042
    %vm3099 = vcmp.eq.s32.totalorder %v294, %v3042
    %vm3100 = vcmp.eq.s32.totalorder %v295, %v3042
    %vm3101 = vcmp.eq.s32.totalorder %v296, %v3042
    %vm3102 = vcmp.eq.s32.totalorder %v293, %v3045
    %vm3103 = vcmp.eq.s32.totalorder %v294, %v3045
    %vm3104 = vcmp.eq.s32.totalorder %v295, %v3045
    %vm3105 = vcmp.eq.s32.totalorder %v296, %v3045
    %vm3106 = vcmp.eq.s32.totalorder %v293, %v3048
    %vm3107 = vcmp.eq.s32.totalorder %v294, %v3048
    %vm3108 = vcmp.eq.s32.totalorder %v295, %v3048
    %vm3109 = vcmp.eq.s32.totalorder %v296, %v3048
    %vm3110 = vcmp.eq.s32.totalorder %v293, %v3051
    %vm3111 = vcmp.eq.s32.totalorder %v294, %v3051
    %vm3112 = vcmp.eq.s32.totalorder %v295, %v3051
    %vm3113 = vcmp.eq.s32.totalorder %v296, %v3051
    %vm3114 = vcmp.eq.s32.totalorder %v293, %v3054
    %vm3115 = vcmp.eq.s32.totalorder %v294, %v3054
    %vm3116 = vcmp.eq.s32.totalorder %v295, %v3054
    %vm3117 = vcmp.eq.s32.totalorder %v296, %v3054
    %vm3118 = vcmp.eq.s32.totalorder %v293, %v3057
    %vm3119 = vcmp.eq.s32.totalorder %v294, %v3057
    %vm3120 = vcmp.eq.s32.totalorder %v295, %v3057
    %vm3121 = vcmp.eq.s32.totalorder %v296, %v3057
    %v3122 = vsel %vm2946, 1, 0
    %v3123 = vsel %vm2947, 1, 0
    %v3124 = vsel %vm2948, 1, 0
    %v3125 = vsel %vm2949, 1, 0
    %v3126 = vsel %vm2950, 1, 0
    %v3127 = vsel %vm2951, 1, 0
    %v3128 = vsel %vm2952, 1, 0
    %v3129 = vsel %vm2953, 1, 0
    %v3130 = vsel %vm2954, 1, 0
    %v3131 = vsel %vm2955, 1, 0
    %v3132 = vsel %vm2956, 1, 0
    %v3133 = vsel %vm2957, 1, 0
    %v3134 = vsel %vm2958, 1, 0
    %v3135 = vsel %vm2959, 1, 0
    %v3136 = vsel %vm2960, 1, 0
    %v3137 = vsel %vm2961, 1, 0
    %3138 = vset.pattern.permute.xlu0 0
    %3139 = vperm.xlu0 %3138, %v3122
    %v3140 = vpop.permute.xlu0 %3139
    %3141 = vset.pattern.permute.xlu0 0
    %3142 = vperm.xlu0 %3141, %v3123
    %v3143 = vpop.permute.xlu0 %3142
    %3144 = vset.pattern.permute.xlu0 0
    %3145 = vperm.xlu0 %3144, %v3124
    %v3146 = vpop.permute.xlu0 %3145
    %3147 = vset.pattern.permute.xlu0 0
    %3148 = vperm.xlu0 %3147, %v3125
    %v3149 = vpop.permute.xlu0 %3148
    %3150 = vset.pattern.permute.xlu0 0
    %3151 = vperm.xlu0 %3150, %v3126
    %v3152 = vpop.permute.xlu0 %3151
    %3153 = vset.pattern.permute.xlu0 0
    %3154 = vperm.xlu0 %3153, %v3127
    %v3155 = vpop.permute.xlu0 %3154
    %3156 = vset.pattern.permute.xlu0 0
    %3157 = vperm.xlu0 %3156, %v3128
    %v3158 = vpop.permute.xlu0 %3157
    %3159 = vset.pattern.permute.xlu0 0
    %3160 = vperm.xlu0 %3159, %v3129
    %v3161 = vpop.permute.xlu0 %3160
    %3162 = vset.pattern.permute.xlu0 0
    %3163 = vperm.xlu0 %3162, %v3130
    %v3164 = vpop.permute.xlu0 %3163
    %3165 = vset.pattern.permute.xlu0 0
    %3166 = vperm.xlu0 %3165, %v3131
    %v3167 = vpop.permute.xlu0 %3166
    %3168 = vset.pattern.permute.xlu0 0
    %3169 = vperm.xlu0 %3168, %v3132
    %v3170 = vpop.permute.xlu0 %3169
    %3171 = vset.pattern.permute.xlu0 0
    %3172 = vperm.xlu0 %3171, %v3133
    %v3173 = vpop.permute.xlu0 %3172
    %3174 = vset.pattern.permute.xlu0 0
    %3175 = vperm.xlu0 %3174, %v3134
    %v3176 = vpop.permute.xlu0 %3175
    %3177 = vset.pattern.permute.xlu0 0
    %3178 = vperm.xlu0 %3177, %v3135
    %v3179 = vpop.permute.xlu0 %3178
    %3180 = vset.pattern.permute.xlu0 0
    %3181 = vperm.xlu0 %3180, %v3136
    %v3182 = vpop.permute.xlu0 %3181
    %3183 = vset.pattern.permute.xlu0 0
    %3184 = vperm.xlu0 %3183, %v3137
    %v3185 = vpop.permute.xlu0 %3184
    %vm3186 = vcmp.eq.s32.totalorder %v3140, 1
    %vm3187 = vcmp.eq.s32.totalorder %v3143, 1
    %vm3188 = vcmp.eq.s32.totalorder %v3146, 1
    %vm3189 = vcmp.eq.s32.totalorder %v3149, 1
    %vm3190 = vcmp.eq.s32.totalorder %v3152, 1
    %vm3191 = vcmp.eq.s32.totalorder %v3155, 1
    %vm3192 = vcmp.eq.s32.totalorder %v3158, 1
    %vm3193 = vcmp.eq.s32.totalorder %v3161, 1
    %vm3194 = vcmp.eq.s32.totalorder %v3164, 1
    %vm3195 = vcmp.eq.s32.totalorder %v3167, 1
    %vm3196 = vcmp.eq.s32.totalorder %v3170, 1
    %vm3197 = vcmp.eq.s32.totalorder %v3173, 1
    %vm3198 = vcmp.eq.s32.totalorder %v3176, 1
    %vm3199 = vcmp.eq.s32.totalorder %v3179, 1
    %vm3200 = vcmp.eq.s32.totalorder %v3182, 1
    %vm3201 = vcmp.eq.s32.totalorder %v3185, 1
    %vm3202 = vmand %vm3058, %vm3186
    %vm3203 = vmand %vm3059, %vm3186
    %vm3204 = vmand %vm3060, %vm3186
    %vm3205 = vmand %vm3061, %vm3186
    %vm3206 = vmand %vm3062, %vm3187
    %vm3207 = vmand %vm3063, %vm3187
    %vm3208 = vmand %vm3064, %vm3187
    %vm3209 = vmand %vm3065, %vm3187
    %vm3210 = vmand %vm3066, %vm3188
    %vm3211 = vmand %vm3067, %vm3188
    %vm3212 = vmand %vm3068, %vm3188
    %vm3213 = vmand %vm3069, %vm3188
    %vm3214 = vmand %vm3070, %vm3189
    %vm3215 = vmand %vm3071, %vm3189
    %vm3216 = vmand %vm3072, %vm3189
    %vm3217 = vmand %vm3073, %vm3189
    %vm3218 = vmand %vm3074, %vm3190
    %vm3219 = vmand %vm3075, %vm3190
    %vm3220 = vmand %vm3076, %vm3190
    %vm3221 = vmand %vm3077, %vm3190
    %vm3222 = vmand %vm3078, %vm3191
    %vm3223 = vmand %vm3079, %vm3191
    %vm3224 = vmand %vm3080, %vm3191
    %vm3225 = vmand %vm3081, %vm3191
    %vm3226 = vmand %vm3082, %vm3192
    %vm3227 = vmand %vm3083, %vm3192
    %vm3228 = vmand %vm3084, %vm3192
    %vm3229 = vmand %vm3085, %vm3192
    %vm3230 = vmand %vm3086, %vm3193
    %vm3231 = vmand %vm3087, %vm3193
    %vm3232 = vmand %vm3088, %vm3193
    %vm3233 = vmand %vm3089, %vm3193
    %vm3234 = vmand %vm3090, %vm3194
    %vm3235 = vmand %vm3091, %vm3194
    %vm3236 = vmand %vm3092, %vm3194
    %vm3237 = vmand %vm3093, %vm3194
    %vm3238 = vmand %vm3094, %vm3195
    %vm3239 = vmand %vm3095, %vm3195
    %vm3240 = vmand %vm3096, %vm3195
    %vm3241 = vmand %vm3097, %vm3195
    %vm3242 = vmand %vm3098, %vm3196
    %vm3243 = vmand %vm3099, %vm3196
    %vm3244 = vmand %vm3100, %vm3196
    %vm3245 = vmand %vm3101, %vm3196
    %vm3246 = vmand %vm3102, %vm3197
    %vm3247 = vmand %vm3103, %vm3197
    %vm3248 = vmand %vm3104, %vm3197
    %vm3249 = vmand %vm3105, %vm3197
    %vm3250 = vmand %vm3106, %vm3198
    %vm3251 = vmand %vm3107, %vm3198
    %vm3252 = vmand %vm3108, %vm3198
    %vm3253 = vmand %vm3109, %vm3198
    %vm3254 = vmand %vm3110, %vm3199
    %vm3255 = vmand %vm3111, %vm3199
    %vm3256 = vmand %vm3112, %vm3199
    %vm3257 = vmand %vm3113, %vm3199
    %vm3258 = vmand %vm3114, %vm3200
    %vm3259 = vmand %vm3115, %vm3200
    %vm3260 = vmand %vm3116, %vm3200
    %vm3261 = vmand %vm3117, %vm3200
    %vm3262 = vmand %vm3118, %vm3201
    %vm3263 = vmand %vm3119, %vm3201
    %vm3264 = vmand %vm3120, %vm3201
    %vm3265 = vmand %vm3121, %vm3201
    %v3266 = vsel %vm3202, 1.0, 0.0
    %v3267 = vsel %vm3203, 1.0, 0.0
    %v3268 = vsel %vm3204, 1.0, 0.0
    %v3269 = vsel %vm3205, 1.0, 0.0
    %v3270 = vsel %vm3206, 1.0, 0.0
    %v3271 = vsel %vm3207, 1.0, 0.0
    %v3272 = vsel %vm3208, 1.0, 0.0
    %v3273 = vsel %vm3209, 1.0, 0.0
    %v3274 = vsel %vm3210, 1.0, 0.0
    %v3275 = vsel %vm3211, 1.0, 0.0
    %v3276 = vsel %vm3212, 1.0, 0.0
    %v3277 = vsel %vm3213, 1.0, 0.0
    %v3278 = vsel %vm3214, 1.0, 0.0
    %v3279 = vsel %vm3215, 1.0, 0.0
    %v3280 = vsel %vm3216, 1.0, 0.0
    %v3281 = vsel %vm3217, 1.0, 0.0
    %v3282 = vsel %vm3218, 1.0, 0.0
    %v3283 = vsel %vm3219, 1.0, 0.0
    %v3284 = vsel %vm3220, 1.0, 0.0
    %v3285 = vsel %vm3221, 1.0, 0.0
    %v3286 = vsel %vm3222, 1.0, 0.0
    %v3287 = vsel %vm3223, 1.0, 0.0
    %v3288 = vsel %vm3224, 1.0, 0.0
    %v3289 = vsel %vm3225, 1.0, 0.0
    %v3290 = vsel %vm3226, 1.0, 0.0
    %v3291 = vsel %vm3227, 1.0, 0.0
    %v3292 = vsel %vm3228, 1.0, 0.0
    %v3293 = vsel %vm3229, 1.0, 0.0
    %v3294 = vsel %vm3230, 1.0, 0.0
    %v3295 = vsel %vm3231, 1.0, 0.0
    %v3296 = vsel %vm3232, 1.0, 0.0
    %v3297 = vsel %vm3233, 1.0, 0.0
    %v3298 = vsel %vm3234, 1.0, 0.0
    %v3299 = vsel %vm3235, 1.0, 0.0
    %v3300 = vsel %vm3236, 1.0, 0.0
    %v3301 = vsel %vm3237, 1.0, 0.0
    %v3302 = vsel %vm3238, 1.0, 0.0
    %v3303 = vsel %vm3239, 1.0, 0.0
    %v3304 = vsel %vm3240, 1.0, 0.0
    %v3305 = vsel %vm3241, 1.0, 0.0
    %v3306 = vsel %vm3242, 1.0, 0.0
    %v3307 = vsel %vm3243, 1.0, 0.0
    %v3308 = vsel %vm3244, 1.0, 0.0
    %v3309 = vsel %vm3245, 1.0, 0.0
    %v3310 = vsel %vm3246, 1.0, 0.0
    %v3311 = vsel %vm3247, 1.0, 0.0
    %v3312 = vsel %vm3248, 1.0, 0.0
    %v3313 = vsel %vm3249, 1.0, 0.0
    %v3314 = vsel %vm3250, 1.0, 0.0
    %v3315 = vsel %vm3251, 1.0, 0.0
    %v3316 = vsel %vm3252, 1.0, 0.0
    %v3317 = vsel %vm3253, 1.0, 0.0
    %v3318 = vsel %vm3254, 1.0, 0.0
    %v3319 = vsel %vm3255, 1.0, 0.0
    %v3320 = vsel %vm3256, 1.0, 0.0
    %v3321 = vsel %vm3257, 1.0, 0.0
    %v3322 = vsel %vm3258, 1.0, 0.0
    %v3323 = vsel %vm3259, 1.0, 0.0
    %v3324 = vsel %vm3260, 1.0, 0.0
    %v3325 = vsel %vm3261, 1.0, 0.0
    %v3326 = vsel %vm3262, 1.0, 0.0
    %v3327 = vsel %vm3263, 1.0, 0.0
    %v3328 = vsel %vm3264, 1.0, 0.0
    %v3329 = vsel %vm3265, 1.0, 0.0
    %v3330 = vpack.c.bf16 %v3270, %v3266
    %v3331 = vpack.c.bf16 %v3271, %v3267
    %v3332 = vpack.c.bf16 %v3272, %v3268
    %v3333 = vpack.c.bf16 %v3273, %v3269
    %v3334 = vpack.c.bf16 %v3278, %v3274
    %v3335 = vpack.c.bf16 %v3279, %v3275
    %v3336 = vpack.c.bf16 %v3280, %v3276
    %v3337 = vpack.c.bf16 %v3281, %v3277
    %v3338 = vpack.c.bf16 %v3286, %v3282
    %v3339 = vpack.c.bf16 %v3287, %v3283
    %v3340 = vpack.c.bf16 %v3288, %v3284
    %v3341 = vpack.c.bf16 %v3289, %v3285
    %v3342 = vpack.c.bf16 %v3294, %v3290
    %v3343 = vpack.c.bf16 %v3295, %v3291
    %v3344 = vpack.c.bf16 %v3296, %v3292
    %v3345 = vpack.c.bf16 %v3297, %v3293
    %v3346 = vpack.c.bf16 %v3302, %v3298
    %v3347 = vpack.c.bf16 %v3303, %v3299
    %v3348 = vpack.c.bf16 %v3304, %v3300
    %v3349 = vpack.c.bf16 %v3305, %v3301
    %v3350 = vpack.c.bf16 %v3310, %v3306
    %v3351 = vpack.c.bf16 %v3311, %v3307
    %v3352 = vpack.c.bf16 %v3312, %v3308
    %v3353 = vpack.c.bf16 %v3313, %v3309
    %v3354 = vpack.c.bf16 %v3318, %v3314
    %v3355 = vpack.c.bf16 %v3319, %v3315
    %v3356 = vpack.c.bf16 %v3320, %v3316
    %v3357 = vpack.c.bf16 %v3321, %v3317
    %v3358 = vpack.c.bf16 %v3326, %v3322
    %v3359 = vpack.c.bf16 %v3327, %v3323
    %v3360 = vpack.c.bf16 %v3328, %v3324
    %v3361 = vpack.c.bf16 %v3329, %v3325
    %3362 = vmatpush.bf16.msra.mxu0 %v976
    %3363 = vmatpush.bf16.msra.mxu0 %v975
    %3364 = vmatpush.bf16.msra.mxu0 %v974
    %3365 = vmatpush.bf16.msra.mxu0 %v973
    %3366 = vmatpush.bf16.msra.mxu0 %v972
    %3367 = vmatpush.bf16.msra.mxu0 %v971
    %3368 = vmatpush.bf16.msra.mxu0 %v970
    %3369 = vmatpush.bf16.msra.mxu0 %v969
    %3370 = vmatmul.bf16.gmra.mxu0 %v3330
    %v3371 = vpop.f32.mrf.mxu0
    %v3372 = vadd.f32 0.0, %v3371
    %v3373 = vpop.f32.mrf.mxu0
    %v3374 = vadd.f32 0.0, %v3373
    %3375 = vmatmul.bf16.gmra.mxu0 %v3334
    %v3376 = vpop.f32.mrf.mxu0
    %v3377 = vadd.f32 0.0, %v3376
    %v3378 = vpop.f32.mrf.mxu0
    %v3379 = vadd.f32 0.0, %v3378
    %3380 = vmatmul.bf16.gmra.mxu0 %v3338
    %v3381 = vpop.f32.mrf.mxu0
    %v3382 = vadd.f32 0.0, %v3381
    %v3383 = vpop.f32.mrf.mxu0
    %v3384 = vadd.f32 0.0, %v3383
    %3385 = vmatmul.bf16.gmra.mxu0 %v3342
    %v3386 = vpop.f32.mrf.mxu0
    %v3387 = vadd.f32 0.0, %v3386
    %v3388 = vpop.f32.mrf.mxu0
    %v3389 = vadd.f32 0.0, %v3388
    %3390 = vmatmul.bf16.gmra.mxu0 %v3346
    %v3391 = vpop.f32.mrf.mxu0
    %v3392 = vadd.f32 0.0, %v3391
    %v3393 = vpop.f32.mrf.mxu0
    %v3394 = vadd.f32 0.0, %v3393
    %3395 = vmatmul.bf16.gmra.mxu0 %v3350
    %v3396 = vpop.f32.mrf.mxu0
    %v3397 = vadd.f32 0.0, %v3396
    %v3398 = vpop.f32.mrf.mxu0
    %v3399 = vadd.f32 0.0, %v3398
    %3400 = vmatmul.bf16.gmra.mxu0 %v3354
    %v3401 = vpop.f32.mrf.mxu0
    %v3402 = vadd.f32 0.0, %v3401
    %v3403 = vpop.f32.mrf.mxu0
    %v3404 = vadd.f32 0.0, %v3403
    %3405 = vmatmul.bf16.gmra.mxu0 %v3358
    %v3406 = vpop.f32.mrf.mxu0
    %v3407 = vadd.f32 0.0, %v3406
    %v3408 = vpop.f32.mrf.mxu0
    %v3409 = vadd.f32 0.0, %v3408
    %3410 = vdwg.mxu0
    %3411 = vmatpush.bf16.msra.mxu0 %v984
    %3412 = vmatpush.bf16.msra.mxu0 %v983
    %3413 = vmatpush.bf16.msra.mxu0 %v982
    %3414 = vmatpush.bf16.msra.mxu0 %v981
    %3415 = vmatpush.bf16.msra.mxu0 %v980
    %3416 = vmatpush.bf16.msra.mxu0 %v979
    %3417 = vmatpush.bf16.msra.mxu0 %v978
    %3418 = vmatpush.bf16.msra.mxu0 %v977
    %3419 = vmatmul.bf16.gmra.mxu0 %v3331
    %v3420 = vpop.f32.mrf.mxu0
    %v3421 = vadd.f32 %v3372, %v3420
    %v3422 = vpop.f32.mrf.mxu0
    %v3423 = vadd.f32 %v3374, %v3422
    %3424 = vmatmul.bf16.gmra.mxu0 %v3335
    %v3425 = vpop.f32.mrf.mxu0
    %v3426 = vadd.f32 %v3377, %v3425
    %v3427 = vpop.f32.mrf.mxu0
    %v3428 = vadd.f32 %v3379, %v3427
    %3429 = vmatmul.bf16.gmra.mxu0 %v3339
    %v3430 = vpop.f32.mrf.mxu0
    %v3431 = vadd.f32 %v3382, %v3430
    %v3432 = vpop.f32.mrf.mxu0
    %v3433 = vadd.f32 %v3384, %v3432
    %3434 = vmatmul.bf16.gmra.mxu0 %v3343
    %v3435 = vpop.f32.mrf.mxu0
    %v3436 = vadd.f32 %v3387, %v3435
    %v3437 = vpop.f32.mrf.mxu0
    %v3438 = vadd.f32 %v3389, %v3437
    %3439 = vmatmul.bf16.gmra.mxu0 %v3347
    %v3440 = vpop.f32.mrf.mxu0
    %v3441 = vadd.f32 %v3392, %v3440
    %v3442 = vpop.f32.mrf.mxu0
    %v3443 = vadd.f32 %v3394, %v3442
    %3444 = vmatmul.bf16.gmra.mxu0 %v3351
    %v3445 = vpop.f32.mrf.mxu0
    %v3446 = vadd.f32 %v3397, %v3445
    %v3447 = vpop.f32.mrf.mxu0
    %v3448 = vadd.f32 %v3399, %v3447
    %3449 = vmatmul.bf16.gmra.mxu0 %v3355
    %v3450 = vpop.f32.mrf.mxu0
    %v3451 = vadd.f32 %v3402, %v3450
    %v3452 = vpop.f32.mrf.mxu0
    %v3453 = vadd.f32 %v3404, %v3452
    %3454 = vmatmul.bf16.gmra.mxu0 %v3359
    %v3455 = vpop.f32.mrf.mxu0
    %v3456 = vadd.f32 %v3407, %v3455
    %v3457 = vpop.f32.mrf.mxu0
    %v3458 = vadd.f32 %v3409, %v3457
    %3459 = vdwg.mxu0
    %3460 = vmatpush.bf16.msra.mxu0 %v992
    %3461 = vmatpush.bf16.msra.mxu0 %v991
    %3462 = vmatpush.bf16.msra.mxu0 %v990
    %3463 = vmatpush.bf16.msra.mxu0 %v989
    %3464 = vmatpush.bf16.msra.mxu0 %v988
    %3465 = vmatpush.bf16.msra.mxu0 %v987
    %3466 = vmatpush.bf16.msra.mxu0 %v986
    %3467 = vmatpush.bf16.msra.mxu0 %v985
    %3468 = vmatmul.bf16.gmra.mxu0 %v3332
    %v3469 = vpop.f32.mrf.mxu0
    %v3470 = vadd.f32 %v3421, %v3469
    %v3471 = vpop.f32.mrf.mxu0
    %v3472 = vadd.f32 %v3423, %v3471
    %3473 = vmatmul.bf16.gmra.mxu0 %v3336
    %v3474 = vpop.f32.mrf.mxu0
    %v3475 = vadd.f32 %v3426, %v3474
    %v3476 = vpop.f32.mrf.mxu0
    %v3477 = vadd.f32 %v3428, %v3476
    %3478 = vmatmul.bf16.gmra.mxu0 %v3340
    %v3479 = vpop.f32.mrf.mxu0
    %v3480 = vadd.f32 %v3431, %v3479
    %v3481 = vpop.f32.mrf.mxu0
    %v3482 = vadd.f32 %v3433, %v3481
    %3483 = vmatmul.bf16.gmra.mxu0 %v3344
    %v3484 = vpop.f32.mrf.mxu0
    %v3485 = vadd.f32 %v3436, %v3484
    %v3486 = vpop.f32.mrf.mxu0
    %v3487 = vadd.f32 %v3438, %v3486
    %3488 = vmatmul.bf16.gmra.mxu0 %v3348
    %v3489 = vpop.f32.mrf.mxu0
    %v3490 = vadd.f32 %v3441, %v3489
    %v3491 = vpop.f32.mrf.mxu0
    %v3492 = vadd.f32 %v3443, %v3491
    %3493 = vmatmul.bf16.gmra.mxu0 %v3352
    %v3494 = vpop.f32.mrf.mxu0
    %v3495 = vadd.f32 %v3446, %v3494
    %v3496 = vpop.f32.mrf.mxu0
    %v3497 = vadd.f32 %v3448, %v3496
    %3498 = vmatmul.bf16.gmra.mxu0 %v3356
    %v3499 = vpop.f32.mrf.mxu0
    %v3500 = vadd.f32 %v3451, %v3499
    %v3501 = vpop.f32.mrf.mxu0
    %v3502 = vadd.f32 %v3453, %v3501
    %3503 = vmatmul.bf16.gmra.mxu0 %v3360
    %v3504 = vpop.f32.mrf.mxu0
    %v3505 = vadd.f32 %v3456, %v3504
    %v3506 = vpop.f32.mrf.mxu0
    %v3507 = vadd.f32 %v3458, %v3506
    %3508 = vdwg.mxu0
    %3509 = vmatpush.bf16.msra.mxu0 %v1000
    %3510 = vmatpush.bf16.msra.mxu0 %v999
    %3511 = vmatpush.bf16.msra.mxu0 %v998
    %3512 = vmatpush.bf16.msra.mxu0 %v997
    %3513 = vmatpush.bf16.msra.mxu0 %v996
    %3514 = vmatpush.bf16.msra.mxu0 %v995
    %3515 = vmatpush.bf16.msra.mxu0 %v994
    %3516 = vmatpush.bf16.msra.mxu0 %v993
    %3517 = vmatmul.bf16.gmra.mxu0 %v3333
    %v3518 = vpop.f32.mrf.mxu0
    %v3519 = vadd.f32 %v3470, %v3518
    %v3520 = vpop.f32.mrf.mxu0
    %v3521 = vadd.f32 %v3472, %v3520
    %3522 = vmatmul.bf16.gmra.mxu0 %v3337
    %v3523 = vpop.f32.mrf.mxu0
    %v3524 = vadd.f32 %v3475, %v3523
    %v3525 = vpop.f32.mrf.mxu0
    %v3526 = vadd.f32 %v3477, %v3525
    %3527 = vmatmul.bf16.gmra.mxu0 %v3341
    %v3528 = vpop.f32.mrf.mxu0
    %v3529 = vadd.f32 %v3480, %v3528
    %v3530 = vpop.f32.mrf.mxu0
    %v3531 = vadd.f32 %v3482, %v3530
    %3532 = vmatmul.bf16.gmra.mxu0 %v3345
    %v3533 = vpop.f32.mrf.mxu0
    %v3534 = vadd.f32 %v3485, %v3533
    %v3535 = vpop.f32.mrf.mxu0
    %v3536 = vadd.f32 %v3487, %v3535
    %3537 = vmatmul.bf16.gmra.mxu0 %v3349
    %v3538 = vpop.f32.mrf.mxu0
    %v3539 = vadd.f32 %v3490, %v3538
    %v3540 = vpop.f32.mrf.mxu0
    %v3541 = vadd.f32 %v3492, %v3540
    %3542 = vmatmul.bf16.gmra.mxu0 %v3353
    %v3543 = vpop.f32.mrf.mxu0
    %v3544 = vadd.f32 %v3495, %v3543
    %v3545 = vpop.f32.mrf.mxu0
    %v3546 = vadd.f32 %v3497, %v3545
    %3547 = vmatmul.bf16.gmra.mxu0 %v3357
    %v3548 = vpop.f32.mrf.mxu0
    %v3549 = vadd.f32 %v3500, %v3548
    %v3550 = vpop.f32.mrf.mxu0
    %v3551 = vadd.f32 %v3502, %v3550
    %3552 = vmatmul.bf16.gmra.mxu0 %v3361
    %v3553 = vpop.f32.mrf.mxu0
    %v3554 = vadd.f32 %v3505, %v3553
    %v3555 = vpop.f32.mrf.mxu0
    %v3556 = vadd.f32 %v3507, %v3555
    %3557 = vdwg.mxu0
    %v3558 = vpack.c.bf16 %v3521, %v3519
    %v3559 = vpack.c.bf16 %v3526, %v3524
    %v3560 = vpack.c.bf16 %v3531, %v3529
    %v3561 = vpack.c.bf16 %v3536, %v3534
    %v3562 = vpack.c.bf16 %v3541, %v3539
    %v3563 = vpack.c.bf16 %v3546, %v3544
    %v3564 = vpack.c.bf16 %v3551, %v3549
    %v3565 = vpack.c.bf16 %v3556, %v3554
    %s3566 = scalar_lea.vmem %s4, 192
    %v3567 = vld [vmem:[%s3566] sm:$0xf]
    %v3568 = vld [vmem:[%s3566 + $0x4] sm:$0xf]
    %v3569 = vld [vmem:[%s3566 + $0x8] sm:$0xf]
    %v3570 = vld [vmem:[%s3566 + $0xc] sm:$0xf]
    %v3571 = vld [vmem:[%s3566 + $0x10] sm:$0xf]
    %v3572 = vld [vmem:[%s3566 + $0x14] sm:$0xf]
    %v3573 = vld [vmem:[%s3566 + $0x18] sm:$0xf]
    %v3574 = vld [vmem:[%s3566 + $0x1c] sm:$0xf]
    %v3575 = vld [vmem:[%s3566 + $0x20] sm:$0xf]
    %v3576 = vld [vmem:[%s3566 + $0x24] sm:$0xf]
    %v3577 = vld [vmem:[%s3566 + $0x28] sm:$0xf]
    %v3578 = vld [vmem:[%s3566 + $0x2c] sm:$0xf]
    %v3579 = vld [vmem:[%s3566 + $0x30] sm:$0xf]
    %v3580 = vld [vmem:[%s3566 + $0x34] sm:$0xf]
    %v3581 = vld [vmem:[%s3566 + $0x38] sm:$0xf]
    %v3582 = vld [vmem:[%s3566 + $0x3c] sm:$0xf]
    %v3599 = vunpack.c.l.b16 %v3567
    %v3600 = vunpack.c.l.b16 %v3568
    %v3601 = vunpack.c.l.b16 %v3569
    %v3602 = vunpack.c.l.b16 %v3570
    %v3603 = vunpack.c.l.b16 %v3571
    %v3604 = vunpack.c.l.b16 %v3572
    %v3605 = vunpack.c.l.b16 %v3573
    %v3606 = vunpack.c.l.b16 %v3574
    %v3607 = vunpack.c.l.b16 %v3575
    %v3608 = vunpack.c.l.b16 %v3576
    %v3609 = vunpack.c.l.b16 %v3577
    %v3610 = vunpack.c.l.b16 %v3578
    %v3611 = vunpack.c.l.b16 %v3579
    %v3612 = vunpack.c.l.b16 %v3580
    %v3613 = vunpack.c.l.b16 %v3581
    %v3614 = vunpack.c.l.b16 %v3582
    %v3615 = vpack.c.b16 %v3600, %v3599
    %v3616 = vpack.c.b16 %v3602, %v3601
    %v3617 = vpack.c.b16 %v3604, %v3603
    %v3618 = vpack.c.b16 %v3606, %v3605
    %v3619 = vpack.c.b16 %v3608, %v3607
    %v3620 = vpack.c.b16 %v3610, %v3609
    %v3621 = vpack.c.b16 %v3612, %v3611
    %v3622 = vpack.c.b16 %v3614, %v3613
    %3631 = vmatpush.bf16.msra.mxu0 %v3622
    %3632 = vmatpush.bf16.msra.mxu0 %v3621
    %3633 = vmatpush.bf16.msra.mxu0 %v3620
    %3634 = vmatpush.bf16.msra.mxu0 %v3619
    %3635 = vmatpush.bf16.msra.mxu0 %v3618
    %3636 = vmatpush.bf16.msra.mxu0 %v3617
    %3637 = vmatpush.bf16.msra.mxu0 %v3616
    %3638 = vmatpush.bf16.msra.mxu0 %v3615
    %3639 = vmatmul.bf16.gmra.mxu0 %v3558
    %v3640 = vpop.f32.mrf.mxu0
    %v3641 = vadd.f32 0.0, %v3640
    %v3642 = vpop.f32.mrf.mxu0
    %v3643 = vadd.f32 0.0, %v3642
    %3644 = vmatmul.bf16.gmra.mxu0 %v3559
    %v3645 = vpop.f32.mrf.mxu0
    %v3646 = vadd.f32 0.0, %v3645
    %v3647 = vpop.f32.mrf.mxu0
    %v3648 = vadd.f32 0.0, %v3647
    %3649 = vmatmul.bf16.gmra.mxu0 %v3560
    %v3650 = vpop.f32.mrf.mxu0
    %v3651 = vadd.f32 0.0, %v3650
    %v3652 = vpop.f32.mrf.mxu0
    %v3653 = vadd.f32 0.0, %v3652
    %3654 = vmatmul.bf16.gmra.mxu0 %v3561
    %v3655 = vpop.f32.mrf.mxu0
    %v3656 = vadd.f32 0.0, %v3655
    %v3657 = vpop.f32.mrf.mxu0
    %v3658 = vadd.f32 0.0, %v3657
    %3659 = vmatmul.bf16.gmra.mxu0 %v3562
    %v3660 = vpop.f32.mrf.mxu0
    %v3661 = vadd.f32 0.0, %v3660
    %v3662 = vpop.f32.mrf.mxu0
    %v3663 = vadd.f32 0.0, %v3662
    %3664 = vmatmul.bf16.gmra.mxu0 %v3563
    %v3665 = vpop.f32.mrf.mxu0
    %v3666 = vadd.f32 0.0, %v3665
    %v3667 = vpop.f32.mrf.mxu0
    %v3668 = vadd.f32 0.0, %v3667
    %3669 = vmatmul.bf16.gmra.mxu0 %v3564
    %v3670 = vpop.f32.mrf.mxu0
    %v3671 = vadd.f32 0.0, %v3670
    %v3672 = vpop.f32.mrf.mxu0
    %v3673 = vadd.f32 0.0, %v3672
    %3674 = vmatmul.bf16.gmra.mxu0 %v3565
    %v3675 = vpop.f32.mrf.mxu0
    %v3676 = vadd.f32 0.0, %v3675
    %v3677 = vpop.f32.mrf.mxu0
    %v3678 = vadd.f32 0.0, %v3677
    %3679 = vdwg.mxu0
    %v3680 = vadd.f32 %v2866, %v3641
    %v3681 = vadd.f32 %v2867, %v3643
    %v3682 = vadd.f32 %v2868, %v3646
    %v3683 = vadd.f32 %v2869, %v3648
    %v3684 = vadd.f32 %v2870, %v3651
    %v3685 = vadd.f32 %v2871, %v3653
    %v3686 = vadd.f32 %v2872, %v3656
    %v3687 = vadd.f32 %v2873, %v3658
    %v3688 = vadd.f32 %v2874, %v3661
    %v3689 = vadd.f32 %v2875, %v3663
    %v3690 = vadd.f32 %v2876, %v3666
    %v3691 = vadd.f32 %v2877, %v3668
    %v3692 = vadd.f32 %v2878, %v3671
    %v3693 = vadd.f32 %v2879, %v3673
    %v3694 = vadd.f32 %v2880, %v3676
    %v3695 = vadd.f32 %v2881, %v3678
    %vm3696 = vmand %vm2914, %vm1253
    %vm3697 = vmand %vm2915, %vm1254
    %vm3698 = vmand %vm2916, %vm1255
    %vm3699 = vmand %vm2917, %vm1256
    %vm3700 = vmand %vm2918, %vm1257
    %vm3701 = vmand %vm2919, %vm1258
    %vm3702 = vmand %vm2920, %vm1259
    %vm3703 = vmand %vm2921, %vm1260
    %vm3704 = vmand %vm2922, %vm1261
    %vm3705 = vmand %vm2923, %vm1262
    %vm3706 = vmand %vm2924, %vm1263
    %vm3707 = vmand %vm2925, %vm1264
    %vm3708 = vmand %vm2926, %vm1265
    %vm3709 = vmand %vm2927, %vm1266
    %vm3710 = vmand %vm2928, %vm1267
    %vm3711 = vmand %vm2929, %vm1268
    %vm3712 = vmand %vm3696, %vm1285
    %vm3713 = vmand %vm3697, %vm1286
    %vm3714 = vmand %vm3698, %vm1287
    %vm3715 = vmand %vm3699, %vm1288
    %vm3716 = vmand %vm3700, %vm1289
    %vm3717 = vmand %vm3701, %vm1290
    %vm3718 = vmand %vm3702, %vm1291
    %vm3719 = vmand %vm3703, %vm1292
    %vm3720 = vmand %vm3704, %vm1293
    %vm3721 = vmand %vm3705, %vm1294
    %vm3722 = vmand %vm3706, %vm1295
    %vm3723 = vmand %vm3707, %vm1296
    %vm3724 = vmand %vm3708, %vm1297
    %vm3725 = vmand %vm3709, %vm1298
    %vm3726 = vmand %vm3710, %vm1299
    %vm3727 = vmand %vm3711, %vm1300
    %v3728 = vadd.s32 %v2978, %v260
    %v3729 = vadd.s32 %v2979, %v261
    %v3730 = vadd.s32 %v2980, %v262
    %v3731 = vadd.s32 %v2981, %v263
    %v3732 = vadd.s32 %v2982, %v264
    %v3733 = vadd.s32 %v2983, %v265
    %v3734 = vadd.s32 %v2984, %v266
    %v3735 = vadd.s32 %v2985, %v267
    %v3736 = vadd.s32 %v2986, %v268
    %v3737 = vadd.s32 %v2987, %v269
    %v3738 = vadd.s32 %v2988, %v270
    %v3739 = vadd.s32 %v2989, %v271
    %v3740 = vadd.s32 %v2990, %v272
    %v3741 = vadd.s32 %v2991, %v273
    %v3742 = vadd.s32 %v2992, %v274
    %v3743 = vadd.s32 %v2993, %v275
    %3744 = vset.pattern.permute.xlu0 0
    %3745 = vperm.xlu0 %3744, %v3728
    %v3746 = vpop.permute.xlu0 %3745
    %3747 = vset.pattern.permute.xlu0 0
    %3748 = vperm.xlu0 %3747, %v3729
    %v3749 = vpop.permute.xlu0 %3748
    %3750 = vset.pattern.permute.xlu0 0
    %3751 = vperm.xlu0 %3750, %v3730
    %v3752 = vpop.permute.xlu0 %3751
    %3753 = vset.pattern.permute.xlu0 0
    %3754 = vperm.xlu0 %3753, %v3731
    %v3755 = vpop.permute.xlu0 %3754
    %3756 = vset.pattern.permute.xlu0 0
    %3757 = vperm.xlu0 %3756, %v3732
    %v3758 = vpop.permute.xlu0 %3757
    %3759 = vset.pattern.permute.xlu0 0
    %3760 = vperm.xlu0 %3759, %v3733
    %v3761 = vpop.permute.xlu0 %3760
    %3762 = vset.pattern.permute.xlu0 0
    %3763 = vperm.xlu0 %3762, %v3734
    %v3764 = vpop.permute.xlu0 %3763
    %3765 = vset.pattern.permute.xlu0 0
    %3766 = vperm.xlu0 %3765, %v3735
    %v3767 = vpop.permute.xlu0 %3766
    %3768 = vset.pattern.permute.xlu0 0
    %3769 = vperm.xlu0 %3768, %v3736
    %v3770 = vpop.permute.xlu0 %3769
    %3771 = vset.pattern.permute.xlu0 0
    %3772 = vperm.xlu0 %3771, %v3737
    %v3773 = vpop.permute.xlu0 %3772
    %3774 = vset.pattern.permute.xlu0 0
    %3775 = vperm.xlu0 %3774, %v3738
    %v3776 = vpop.permute.xlu0 %3775
    %3777 = vset.pattern.permute.xlu0 0
    %3778 = vperm.xlu0 %3777, %v3739
    %v3779 = vpop.permute.xlu0 %3778
    %3780 = vset.pattern.permute.xlu0 0
    %3781 = vperm.xlu0 %3780, %v3740
    %v3782 = vpop.permute.xlu0 %3781
    %3783 = vset.pattern.permute.xlu0 0
    %3784 = vperm.xlu0 %3783, %v3741
    %v3785 = vpop.permute.xlu0 %3784
    %3786 = vset.pattern.permute.xlu0 0
    %3787 = vperm.xlu0 %3786, %v3742
    %v3788 = vpop.permute.xlu0 %3787
    %3789 = vset.pattern.permute.xlu0 0
    %3790 = vperm.xlu0 %3789, %v3743
    %v3791 = vpop.permute.xlu0 %3790
    %vm3792 = vcmp.eq.s32.totalorder %v293, %v3746
    %vm3793 = vcmp.eq.s32.totalorder %v294, %v3746
    %vm3794 = vcmp.eq.s32.totalorder %v295, %v3746
    %vm3795 = vcmp.eq.s32.totalorder %v296, %v3746
    %vm3796 = vcmp.eq.s32.totalorder %v293, %v3749
    %vm3797 = vcmp.eq.s32.totalorder %v294, %v3749
    %vm3798 = vcmp.eq.s32.totalorder %v295, %v3749
    %vm3799 = vcmp.eq.s32.totalorder %v296, %v3749
    %vm3800 = vcmp.eq.s32.totalorder %v293, %v3752
    %vm3801 = vcmp.eq.s32.totalorder %v294, %v3752
    %vm3802 = vcmp.eq.s32.totalorder %v295, %v3752
    %vm3803 = vcmp.eq.s32.totalorder %v296, %v3752
    %vm3804 = vcmp.eq.s32.totalorder %v293, %v3755
    %vm3805 = vcmp.eq.s32.totalorder %v294, %v3755
    %vm3806 = vcmp.eq.s32.totalorder %v295, %v3755
    %vm3807 = vcmp.eq.s32.totalorder %v296, %v3755
    %vm3808 = vcmp.eq.s32.totalorder %v293, %v3758
    %vm3809 = vcmp.eq.s32.totalorder %v294, %v3758
    %vm3810 = vcmp.eq.s32.totalorder %v295, %v3758
    %vm3811 = vcmp.eq.s32.totalorder %v296, %v3758
    %vm3812 = vcmp.eq.s32.totalorder %v293, %v3761
    %vm3813 = vcmp.eq.s32.totalorder %v294, %v3761
    %vm3814 = vcmp.eq.s32.totalorder %v295, %v3761
    %vm3815 = vcmp.eq.s32.totalorder %v296, %v3761
    %vm3816 = vcmp.eq.s32.totalorder %v293, %v3764
    %vm3817 = vcmp.eq.s32.totalorder %v294, %v3764
    %vm3818 = vcmp.eq.s32.totalorder %v295, %v3764
    %vm3819 = vcmp.eq.s32.totalorder %v296, %v3764
    %vm3820 = vcmp.eq.s32.totalorder %v293, %v3767
    %vm3821 = vcmp.eq.s32.totalorder %v294, %v3767
    %vm3822 = vcmp.eq.s32.totalorder %v295, %v3767
    %vm3823 = vcmp.eq.s32.totalorder %v296, %v3767
    %vm3824 = vcmp.eq.s32.totalorder %v293, %v3770
    %vm3825 = vcmp.eq.s32.totalorder %v294, %v3770
    %vm3826 = vcmp.eq.s32.totalorder %v295, %v3770
    %vm3827 = vcmp.eq.s32.totalorder %v296, %v3770
    %vm3828 = vcmp.eq.s32.totalorder %v293, %v3773
    %vm3829 = vcmp.eq.s32.totalorder %v294, %v3773
    %vm3830 = vcmp.eq.s32.totalorder %v295, %v3773
    %vm3831 = vcmp.eq.s32.totalorder %v296, %v3773
    %vm3832 = vcmp.eq.s32.totalorder %v293, %v3776
    %vm3833 = vcmp.eq.s32.totalorder %v294, %v3776
    %vm3834 = vcmp.eq.s32.totalorder %v295, %v3776
    %vm3835 = vcmp.eq.s32.totalorder %v296, %v3776
    %vm3836 = vcmp.eq.s32.totalorder %v293, %v3779
    %vm3837 = vcmp.eq.s32.totalorder %v294, %v3779
    %vm3838 = vcmp.eq.s32.totalorder %v295, %v3779
    %vm3839 = vcmp.eq.s32.totalorder %v296, %v3779
    %vm3840 = vcmp.eq.s32.totalorder %v293, %v3782
    %vm3841 = vcmp.eq.s32.totalorder %v294, %v3782
    %vm3842 = vcmp.eq.s32.totalorder %v295, %v3782
    %vm3843 = vcmp.eq.s32.totalorder %v296, %v3782
    %vm3844 = vcmp.eq.s32.totalorder %v293, %v3785
    %vm3845 = vcmp.eq.s32.totalorder %v294, %v3785
    %vm3846 = vcmp.eq.s32.totalorder %v295, %v3785
    %vm3847 = vcmp.eq.s32.totalorder %v296, %v3785
    %vm3848 = vcmp.eq.s32.totalorder %v293, %v3788
    %vm3849 = vcmp.eq.s32.totalorder %v294, %v3788
    %vm3850 = vcmp.eq.s32.totalorder %v295, %v3788
    %vm3851 = vcmp.eq.s32.totalorder %v296, %v3788
    %vm3852 = vcmp.eq.s32.totalorder %v293, %v3791
    %vm3853 = vcmp.eq.s32.totalorder %v294, %v3791
    %vm3854 = vcmp.eq.s32.totalorder %v295, %v3791
    %vm3855 = vcmp.eq.s32.totalorder %v296, %v3791
    %v3856 = vsel %vm3712, 1, 0
    %v3857 = vsel %vm3713, 1, 0
    %v3858 = vsel %vm3714, 1, 0
    %v3859 = vsel %vm3715, 1, 0
    %v3860 = vsel %vm3716, 1, 0
    %v3861 = vsel %vm3717, 1, 0
    %v3862 = vsel %vm3718, 1, 0
    %v3863 = vsel %vm3719, 1, 0
    %v3864 = vsel %vm3720, 1, 0
    %v3865 = vsel %vm3721, 1, 0
    %v3866 = vsel %vm3722, 1, 0
    %v3867 = vsel %vm3723, 1, 0
    %v3868 = vsel %vm3724, 1, 0
    %v3869 = vsel %vm3725, 1, 0
    %v3870 = vsel %vm3726, 1, 0
    %v3871 = vsel %vm3727, 1, 0
    %3872 = vset.pattern.permute.xlu0 0
    %3873 = vperm.xlu0 %3872, %v3856
    %v3874 = vpop.permute.xlu0 %3873
    %3875 = vset.pattern.permute.xlu0 0
    %3876 = vperm.xlu0 %3875, %v3857
    %v3877 = vpop.permute.xlu0 %3876
    %3878 = vset.pattern.permute.xlu0 0
    %3879 = vperm.xlu0 %3878, %v3858
    %v3880 = vpop.permute.xlu0 %3879
    %3881 = vset.pattern.permute.xlu0 0
    %3882 = vperm.xlu0 %3881, %v3859
    %v3883 = vpop.permute.xlu0 %3882
    %3884 = vset.pattern.permute.xlu0 0
    %3885 = vperm.xlu0 %3884, %v3860
    %v3886 = vpop.permute.xlu0 %3885
    %3887 = vset.pattern.permute.xlu0 0
    %3888 = vperm.xlu0 %3887, %v3861
    %v3889 = vpop.permute.xlu0 %3888
    %3890 = vset.pattern.permute.xlu0 0
    %3891 = vperm.xlu0 %3890, %v3862
    %v3892 = vpop.permute.xlu0 %3891
    %3893 = vset.pattern.permute.xlu0 0
    %3894 = vperm.xlu0 %3893, %v3863
    %v3895 = vpop.permute.xlu0 %3894
    %3896 = vset.pattern.permute.xlu0 0
    %3897 = vperm.xlu0 %3896, %v3864
    %v3898 = vpop.permute.xlu0 %3897
    %3899 = vset.pattern.permute.xlu0 0
    %3900 = vperm.xlu0 %3899, %v3865
    %v3901 = vpop.permute.xlu0 %3900
    %3902 = vset.pattern.permute.xlu0 0
    %3903 = vperm.xlu0 %3902, %v3866
    %v3904 = vpop.permute.xlu0 %3903
    %3905 = vset.pattern.permute.xlu0 0
    %3906 = vperm.xlu0 %3905, %v3867
    %v3907 = vpop.permute.xlu0 %3906
    %3908 = vset.pattern.permute.xlu0 0
    %3909 = vperm.xlu0 %3908, %v3868
    %v3910 = vpop.permute.xlu0 %3909
    %3911 = vset.pattern.permute.xlu0 0
    %3912 = vperm.xlu0 %3911, %v3869
    %v3913 = vpop.permute.xlu0 %3912
    %3914 = vset.pattern.permute.xlu0 0
    %3915 = vperm.xlu0 %3914, %v3870
    %v3916 = vpop.permute.xlu0 %3915
    %3917 = vset.pattern.permute.xlu0 0
    %3918 = vperm.xlu0 %3917, %v3871
    %v3919 = vpop.permute.xlu0 %3918
    %vm3920 = vcmp.eq.s32.totalorder %v3874, 1
    %vm3921 = vcmp.eq.s32.totalorder %v3877, 1
    %vm3922 = vcmp.eq.s32.totalorder %v3880, 1
    %vm3923 = vcmp.eq.s32.totalorder %v3883, 1
    %vm3924 = vcmp.eq.s32.totalorder %v3886, 1
    %vm3925 = vcmp.eq.s32.totalorder %v3889, 1
    %vm3926 = vcmp.eq.s32.totalorder %v3892, 1
    %vm3927 = vcmp.eq.s32.totalorder %v3895, 1
    %vm3928 = vcmp.eq.s32.totalorder %v3898, 1
    %vm3929 = vcmp.eq.s32.totalorder %v3901, 1
    %vm3930 = vcmp.eq.s32.totalorder %v3904, 1
    %vm3931 = vcmp.eq.s32.totalorder %v3907, 1
    %vm3932 = vcmp.eq.s32.totalorder %v3910, 1
    %vm3933 = vcmp.eq.s32.totalorder %v3913, 1
    %vm3934 = vcmp.eq.s32.totalorder %v3916, 1
    %vm3935 = vcmp.eq.s32.totalorder %v3919, 1
    %vm3936 = vmand %vm3792, %vm3920
    %vm3937 = vmand %vm3793, %vm3920
    %vm3938 = vmand %vm3794, %vm3920
    %vm3939 = vmand %vm3795, %vm3920
    %vm3940 = vmand %vm3796, %vm3921
    %vm3941 = vmand %vm3797, %vm3921
    %vm3942 = vmand %vm3798, %vm3921
    %vm3943 = vmand %vm3799, %vm3921
    %vm3944 = vmand %vm3800, %vm3922
    %vm3945 = vmand %vm3801, %vm3922
    %vm3946 = vmand %vm3802, %vm3922
    %vm3947 = vmand %vm3803, %vm3922
    %vm3948 = vmand %vm3804, %vm3923
    %vm3949 = vmand %vm3805, %vm3923
    %vm3950 = vmand %vm3806, %vm3923
    %vm3951 = vmand %vm3807, %vm3923
    %vm3952 = vmand %vm3808, %vm3924
    %vm3953 = vmand %vm3809, %vm3924
    %vm3954 = vmand %vm3810, %vm3924
    %vm3955 = vmand %vm3811, %vm3924
    %vm3956 = vmand %vm3812, %vm3925
    %vm3957 = vmand %vm3813, %vm3925
    %vm3958 = vmand %vm3814, %vm3925
    %vm3959 = vmand %vm3815, %vm3925
    %vm3960 = vmand %vm3816, %vm3926
    %vm3961 = vmand %vm3817, %vm3926
    %vm3962 = vmand %vm3818, %vm3926
    %vm3963 = vmand %vm3819, %vm3926
    %vm3964 = vmand %vm3820, %vm3927
    %vm3965 = vmand %vm3821, %vm3927
    %vm3966 = vmand %vm3822, %vm3927
    %vm3967 = vmand %vm3823, %vm3927
    %vm3968 = vmand %vm3824, %vm3928
    %vm3969 = vmand %vm3825, %vm3928
    %vm3970 = vmand %vm3826, %vm3928
    %vm3971 = vmand %vm3827, %vm3928
    %vm3972 = vmand %vm3828, %vm3929
    %vm3973 = vmand %vm3829, %vm3929
    %vm3974 = vmand %vm3830, %vm3929
    %vm3975 = vmand %vm3831, %vm3929
    %vm3976 = vmand %vm3832, %vm3930
    %vm3977 = vmand %vm3833, %vm3930
    %vm3978 = vmand %vm3834, %vm3930
    %vm3979 = vmand %vm3835, %vm3930
    %vm3980 = vmand %vm3836, %vm3931
    %vm3981 = vmand %vm3837, %vm3931
    %vm3982 = vmand %vm3838, %vm3931
    %vm3983 = vmand %vm3839, %vm3931
    %vm3984 = vmand %vm3840, %vm3932
    %vm3985 = vmand %vm3841, %vm3932
    %vm3986 = vmand %vm3842, %vm3932
    %vm3987 = vmand %vm3843, %vm3932
    %vm3988 = vmand %vm3844, %vm3933
    %vm3989 = vmand %vm3845, %vm3933
    %vm3990 = vmand %vm3846, %vm3933
    %vm3991 = vmand %vm3847, %vm3933
    %vm3992 = vmand %vm3848, %vm3934
    %vm3993 = vmand %vm3849, %vm3934
    %vm3994 = vmand %vm3850, %vm3934
    %vm3995 = vmand %vm3851, %vm3934
    %vm3996 = vmand %vm3852, %vm3935
    %vm3997 = vmand %vm3853, %vm3935
    %vm3998 = vmand %vm3854, %vm3935
    %vm3999 = vmand %vm3855, %vm3935
    %v4000 = vsel %vm3936, 1.0, 0.0
    %v4001 = vsel %vm3937, 1.0, 0.0
    %v4002 = vsel %vm3938, 1.0, 0.0
    %v4003 = vsel %vm3939, 1.0, 0.0
    %v4004 = vsel %vm3940, 1.0, 0.0
    %v4005 = vsel %vm3941, 1.0, 0.0
    %v4006 = vsel %vm3942, 1.0, 0.0
    %v4007 = vsel %vm3943, 1.0, 0.0
    %v4008 = vsel %vm3944, 1.0, 0.0
    %v4009 = vsel %vm3945, 1.0, 0.0
    %v4010 = vsel %vm3946, 1.0, 0.0
    %v4011 = vsel %vm3947, 1.0, 0.0
    %v4012 = vsel %vm3948, 1.0, 0.0
    %v4013 = vsel %vm3949, 1.0, 0.0
    %v4014 = vsel %vm3950, 1.0, 0.0
    %v4015 = vsel %vm3951, 1.0, 0.0
    %v4016 = vsel %vm3952, 1.0, 0.0
    %v4017 = vsel %vm3953, 1.0, 0.0
    %v4018 = vsel %vm3954, 1.0, 0.0
    %v4019 = vsel %vm3955, 1.0, 0.0
    %v4020 = vsel %vm3956, 1.0, 0.0
    %v4021 = vsel %vm3957, 1.0, 0.0
    %v4022 = vsel %vm3958, 1.0, 0.0
    %v4023 = vsel %vm3959, 1.0, 0.0
    %v4024 = vsel %vm3960, 1.0, 0.0
    %v4025 = vsel %vm3961, 1.0, 0.0
    %v4026 = vsel %vm3962, 1.0, 0.0
    %v4027 = vsel %vm3963, 1.0, 0.0
    %v4028 = vsel %vm3964, 1.0, 0.0
    %v4029 = vsel %vm3965, 1.0, 0.0
    %v4030 = vsel %vm3966, 1.0, 0.0
    %v4031 = vsel %vm3967, 1.0, 0.0
    %v4032 = vsel %vm3968, 1.0, 0.0
    %v4033 = vsel %vm3969, 1.0, 0.0
    %v4034 = vsel %vm3970, 1.0, 0.0
    %v4035 = vsel %vm3971, 1.0, 0.0
    %v4036 = vsel %vm3972, 1.0, 0.0
    %v4037 = vsel %vm3973, 1.0, 0.0
    %v4038 = vsel %vm3974, 1.0, 0.0
    %v4039 = vsel %vm3975, 1.0, 0.0
    %v4040 = vsel %vm3976, 1.0, 0.0
    %v4041 = vsel %vm3977, 1.0, 0.0
    %v4042 = vsel %vm3978, 1.0, 0.0
    %v4043 = vsel %vm3979, 1.0, 0.0
    %v4044 = vsel %vm3980, 1.0, 0.0
    %v4045 = vsel %vm3981, 1.0, 0.0
    %v4046 = vsel %vm3982, 1.0, 0.0
    %v4047 = vsel %vm3983, 1.0, 0.0
    %v4048 = vsel %vm3984, 1.0, 0.0
    %v4049 = vsel %vm3985, 1.0, 0.0
    %v4050 = vsel %vm3986, 1.0, 0.0
    %v4051 = vsel %vm3987, 1.0, 0.0
    %v4052 = vsel %vm3988, 1.0, 0.0
    %v4053 = vsel %vm3989, 1.0, 0.0
    %v4054 = vsel %vm3990, 1.0, 0.0
    %v4055 = vsel %vm3991, 1.0, 0.0
    %v4056 = vsel %vm3992, 1.0, 0.0
    %v4057 = vsel %vm3993, 1.0, 0.0
    %v4058 = vsel %vm3994, 1.0, 0.0
    %v4059 = vsel %vm3995, 1.0, 0.0
    %v4060 = vsel %vm3996, 1.0, 0.0
    %v4061 = vsel %vm3997, 1.0, 0.0
    %v4062 = vsel %vm3998, 1.0, 0.0
    %v4063 = vsel %vm3999, 1.0, 0.0
    %v4064 = vpack.c.bf16 %v4004, %v4000
    %v4065 = vpack.c.bf16 %v4005, %v4001
    %v4066 = vpack.c.bf16 %v4006, %v4002
    %v4067 = vpack.c.bf16 %v4007, %v4003
    %v4068 = vpack.c.bf16 %v4012, %v4008
    %v4069 = vpack.c.bf16 %v4013, %v4009
    %v4070 = vpack.c.bf16 %v4014, %v4010
    %v4071 = vpack.c.bf16 %v4015, %v4011
    %v4072 = vpack.c.bf16 %v4020, %v4016
    %v4073 = vpack.c.bf16 %v4021, %v4017
    %v4074 = vpack.c.bf16 %v4022, %v4018
    %v4075 = vpack.c.bf16 %v4023, %v4019
    %v4076 = vpack.c.bf16 %v4028, %v4024
    %v4077 = vpack.c.bf16 %v4029, %v4025
    %v4078 = vpack.c.bf16 %v4030, %v4026
    %v4079 = vpack.c.bf16 %v4031, %v4027
    %v4080 = vpack.c.bf16 %v4036, %v4032
    %v4081 = vpack.c.bf16 %v4037, %v4033
    %v4082 = vpack.c.bf16 %v4038, %v4034
    %v4083 = vpack.c.bf16 %v4039, %v4035
    %v4084 = vpack.c.bf16 %v4044, %v4040
    %v4085 = vpack.c.bf16 %v4045, %v4041
    %v4086 = vpack.c.bf16 %v4046, %v4042
    %v4087 = vpack.c.bf16 %v4047, %v4043
    %v4088 = vpack.c.bf16 %v4052, %v4048
    %v4089 = vpack.c.bf16 %v4053, %v4049
    %v4090 = vpack.c.bf16 %v4054, %v4050
    %v4091 = vpack.c.bf16 %v4055, %v4051
    %v4092 = vpack.c.bf16 %v4060, %v4056
    %v4093 = vpack.c.bf16 %v4061, %v4057
    %v4094 = vpack.c.bf16 %v4062, %v4058
    %v4095 = vpack.c.bf16 %v4063, %v4059
    %4096 = vmatpush.bf16.msra.mxu0 %v976
    %4097 = vmatpush.bf16.msra.mxu0 %v975
    %4098 = vmatpush.bf16.msra.mxu0 %v974
    %4099 = vmatpush.bf16.msra.mxu0 %v973
    %4100 = vmatpush.bf16.msra.mxu0 %v972
    %4101 = vmatpush.bf16.msra.mxu0 %v971
    %4102 = vmatpush.bf16.msra.mxu0 %v970
    %4103 = vmatpush.bf16.msra.mxu0 %v969
    %4104 = vmatmul.bf16.gmra.mxu0 %v4064
    %v4105 = vpop.f32.mrf.mxu0
    %v4106 = vadd.f32 0.0, %v4105
    %v4107 = vpop.f32.mrf.mxu0
    %v4108 = vadd.f32 0.0, %v4107
    %4109 = vmatmul.bf16.gmra.mxu0 %v4068
    %v4110 = vpop.f32.mrf.mxu0
    %v4111 = vadd.f32 0.0, %v4110
    %v4112 = vpop.f32.mrf.mxu0
    %v4113 = vadd.f32 0.0, %v4112
    %4114 = vmatmul.bf16.gmra.mxu0 %v4072
    %v4115 = vpop.f32.mrf.mxu0
    %v4116 = vadd.f32 0.0, %v4115
    %v4117 = vpop.f32.mrf.mxu0
    %v4118 = vadd.f32 0.0, %v4117
    %4119 = vmatmul.bf16.gmra.mxu0 %v4076
    %v4120 = vpop.f32.mrf.mxu0
    %v4121 = vadd.f32 0.0, %v4120
    %v4122 = vpop.f32.mrf.mxu0
    %v4123 = vadd.f32 0.0, %v4122
    %4124 = vmatmul.bf16.gmra.mxu0 %v4080
    %v4125 = vpop.f32.mrf.mxu0
    %v4126 = vadd.f32 0.0, %v4125
    %v4127 = vpop.f32.mrf.mxu0
    %v4128 = vadd.f32 0.0, %v4127
    %4129 = vmatmul.bf16.gmra.mxu0 %v4084
    %v4130 = vpop.f32.mrf.mxu0
    %v4131 = vadd.f32 0.0, %v4130
    %v4132 = vpop.f32.mrf.mxu0
    %v4133 = vadd.f32 0.0, %v4132
    %4134 = vmatmul.bf16.gmra.mxu0 %v4088
    %v4135 = vpop.f32.mrf.mxu0
    %v4136 = vadd.f32 0.0, %v4135
    %v4137 = vpop.f32.mrf.mxu0
    %v4138 = vadd.f32 0.0, %v4137
    %4139 = vmatmul.bf16.gmra.mxu0 %v4092
    %v4140 = vpop.f32.mrf.mxu0
    %v4141 = vadd.f32 0.0, %v4140
    %v4142 = vpop.f32.mrf.mxu0
    %v4143 = vadd.f32 0.0, %v4142
    %4144 = vdwg.mxu0
    %4145 = vmatpush.bf16.msra.mxu0 %v984
    %4146 = vmatpush.bf16.msra.mxu0 %v983
    %4147 = vmatpush.bf16.msra.mxu0 %v982
    %4148 = vmatpush.bf16.msra.mxu0 %v981
    %4149 = vmatpush.bf16.msra.mxu0 %v980
    %4150 = vmatpush.bf16.msra.mxu0 %v979
    %4151 = vmatpush.bf16.msra.mxu0 %v978
    %4152 = vmatpush.bf16.msra.mxu0 %v977
    %4153 = vmatmul.bf16.gmra.mxu0 %v4065
    %v4154 = vpop.f32.mrf.mxu0
    %v4155 = vadd.f32 %v4106, %v4154
    %v4156 = vpop.f32.mrf.mxu0
    %v4157 = vadd.f32 %v4108, %v4156
    %4158 = vmatmul.bf16.gmra.mxu0 %v4069
    %v4159 = vpop.f32.mrf.mxu0
    %v4160 = vadd.f32 %v4111, %v4159
    %v4161 = vpop.f32.mrf.mxu0
    %v4162 = vadd.f32 %v4113, %v4161
    %4163 = vmatmul.bf16.gmra.mxu0 %v4073
    %v4164 = vpop.f32.mrf.mxu0
    %v4165 = vadd.f32 %v4116, %v4164
    %v4166 = vpop.f32.mrf.mxu0
    %v4167 = vadd.f32 %v4118, %v4166
    %4168 = vmatmul.bf16.gmra.mxu0 %v4077
    %v4169 = vpop.f32.mrf.mxu0
    %v4170 = vadd.f32 %v4121, %v4169
    %v4171 = vpop.f32.mrf.mxu0
    %v4172 = vadd.f32 %v4123, %v4171
    %4173 = vmatmul.bf16.gmra.mxu0 %v4081
    %v4174 = vpop.f32.mrf.mxu0
    %v4175 = vadd.f32 %v4126, %v4174
    %v4176 = vpop.f32.mrf.mxu0
    %v4177 = vadd.f32 %v4128, %v4176
    %4178 = vmatmul.bf16.gmra.mxu0 %v4085
    %v4179 = vpop.f32.mrf.mxu0
    %v4180 = vadd.f32 %v4131, %v4179
    %v4181 = vpop.f32.mrf.mxu0
    %v4182 = vadd.f32 %v4133, %v4181
    %4183 = vmatmul.bf16.gmra.mxu0 %v4089
    %v4184 = vpop.f32.mrf.mxu0
    %v4185 = vadd.f32 %v4136, %v4184
    %v4186 = vpop.f32.mrf.mxu0
    %v4187 = vadd.f32 %v4138, %v4186
    %4188 = vmatmul.bf16.gmra.mxu0 %v4093
    %v4189 = vpop.f32.mrf.mxu0
    %v4190 = vadd.f32 %v4141, %v4189
    %v4191 = vpop.f32.mrf.mxu0
    %v4192 = vadd.f32 %v4143, %v4191
    %4193 = vdwg.mxu0
    %4194 = vmatpush.bf16.msra.mxu0 %v992
    %4195 = vmatpush.bf16.msra.mxu0 %v991
    %4196 = vmatpush.bf16.msra.mxu0 %v990
    %4197 = vmatpush.bf16.msra.mxu0 %v989
    %4198 = vmatpush.bf16.msra.mxu0 %v988
    %4199 = vmatpush.bf16.msra.mxu0 %v987
    %4200 = vmatpush.bf16.msra.mxu0 %v986
    %4201 = vmatpush.bf16.msra.mxu0 %v985
    %4202 = vmatmul.bf16.gmra.mxu0 %v4066
    %v4203 = vpop.f32.mrf.mxu0
    %v4204 = vadd.f32 %v4155, %v4203
    %v4205 = vpop.f32.mrf.mxu0
    %v4206 = vadd.f32 %v4157, %v4205
    %4207 = vmatmul.bf16.gmra.mxu0 %v4070
    %v4208 = vpop.f32.mrf.mxu0
    %v4209 = vadd.f32 %v4160, %v4208
    %v4210 = vpop.f32.mrf.mxu0
    %v4211 = vadd.f32 %v4162, %v4210
    %4212 = vmatmul.bf16.gmra.mxu0 %v4074
    %v4213 = vpop.f32.mrf.mxu0
    %v4214 = vadd.f32 %v4165, %v4213
    %v4215 = vpop.f32.mrf.mxu0
    %v4216 = vadd.f32 %v4167, %v4215
    %4217 = vmatmul.bf16.gmra.mxu0 %v4078
    %v4218 = vpop.f32.mrf.mxu0
    %v4219 = vadd.f32 %v4170, %v4218
    %v4220 = vpop.f32.mrf.mxu0
    %v4221 = vadd.f32 %v4172, %v4220
    %4222 = vmatmul.bf16.gmra.mxu0 %v4082
    %v4223 = vpop.f32.mrf.mxu0
    %v4224 = vadd.f32 %v4175, %v4223
    %v4225 = vpop.f32.mrf.mxu0
    %v4226 = vadd.f32 %v4177, %v4225
    %4227 = vmatmul.bf16.gmra.mxu0 %v4086
    %v4228 = vpop.f32.mrf.mxu0
    %v4229 = vadd.f32 %v4180, %v4228
    %v4230 = vpop.f32.mrf.mxu0
    %v4231 = vadd.f32 %v4182, %v4230
    %4232 = vmatmul.bf16.gmra.mxu0 %v4090
    %v4233 = vpop.f32.mrf.mxu0
    %v4234 = vadd.f32 %v4185, %v4233
    %v4235 = vpop.f32.mrf.mxu0
    %v4236 = vadd.f32 %v4187, %v4235
    %4237 = vmatmul.bf16.gmra.mxu0 %v4094
    %v4238 = vpop.f32.mrf.mxu0
    %v4239 = vadd.f32 %v4190, %v4238
    %v4240 = vpop.f32.mrf.mxu0
    %v4241 = vadd.f32 %v4192, %v4240
    %4242 = vdwg.mxu0
    %4243 = vmatpush.bf16.msra.mxu0 %v1000
    %4244 = vmatpush.bf16.msra.mxu0 %v999
    %4245 = vmatpush.bf16.msra.mxu0 %v998
    %4246 = vmatpush.bf16.msra.mxu0 %v997
    %4247 = vmatpush.bf16.msra.mxu0 %v996
    %4248 = vmatpush.bf16.msra.mxu0 %v995
    %4249 = vmatpush.bf16.msra.mxu0 %v994
    %4250 = vmatpush.bf16.msra.mxu0 %v993
    %4251 = vmatmul.bf16.gmra.mxu0 %v4067
    %v4252 = vpop.f32.mrf.mxu0
    %v4253 = vadd.f32 %v4204, %v4252
    %v4254 = vpop.f32.mrf.mxu0
    %v4255 = vadd.f32 %v4206, %v4254
    %4256 = vmatmul.bf16.gmra.mxu0 %v4071
    %v4257 = vpop.f32.mrf.mxu0
    %v4258 = vadd.f32 %v4209, %v4257
    %v4259 = vpop.f32.mrf.mxu0
    %v4260 = vadd.f32 %v4211, %v4259
    %4261 = vmatmul.bf16.gmra.mxu0 %v4075
    %v4262 = vpop.f32.mrf.mxu0
    %v4263 = vadd.f32 %v4214, %v4262
    %v4264 = vpop.f32.mrf.mxu0
    %v4265 = vadd.f32 %v4216, %v4264
    %4266 = vmatmul.bf16.gmra.mxu0 %v4079
    %v4267 = vpop.f32.mrf.mxu0
    %v4268 = vadd.f32 %v4219, %v4267
    %v4269 = vpop.f32.mrf.mxu0
    %v4270 = vadd.f32 %v4221, %v4269
    %4271 = vmatmul.bf16.gmra.mxu0 %v4083
    %v4272 = vpop.f32.mrf.mxu0
    %v4273 = vadd.f32 %v4224, %v4272
    %v4274 = vpop.f32.mrf.mxu0
    %v4275 = vadd.f32 %v4226, %v4274
    %4276 = vmatmul.bf16.gmra.mxu0 %v4087
    %v4277 = vpop.f32.mrf.mxu0
    %v4278 = vadd.f32 %v4229, %v4277
    %v4279 = vpop.f32.mrf.mxu0
    %v4280 = vadd.f32 %v4231, %v4279
    %4281 = vmatmul.bf16.gmra.mxu0 %v4091
    %v4282 = vpop.f32.mrf.mxu0
    %v4283 = vadd.f32 %v4234, %v4282
    %v4284 = vpop.f32.mrf.mxu0
    %v4285 = vadd.f32 %v4236, %v4284
    %4286 = vmatmul.bf16.gmra.mxu0 %v4095
    %v4287 = vpop.f32.mrf.mxu0
    %v4288 = vadd.f32 %v4239, %v4287
    %v4289 = vpop.f32.mrf.mxu0
    %v4290 = vadd.f32 %v4241, %v4289
    %4291 = vdwg.mxu0
    %v4292 = vpack.c.bf16 %v4255, %v4253
    %v4293 = vpack.c.bf16 %v4260, %v4258
    %v4294 = vpack.c.bf16 %v4265, %v4263
    %v4295 = vpack.c.bf16 %v4270, %v4268
    %v4296 = vpack.c.bf16 %v4275, %v4273
    %v4297 = vpack.c.bf16 %v4280, %v4278
    %v4298 = vpack.c.bf16 %v4285, %v4283
    %v4299 = vpack.c.bf16 %v4290, %v4288
    %s4300 = scalar_lea.vmem %s4, 256
    %v4301 = vld [vmem:[%s4300] sm:$0xf]
    %v4302 = vld [vmem:[%s4300 + $0x4] sm:$0xf]
    %v4303 = vld [vmem:[%s4300 + $0x8] sm:$0xf]
    %v4304 = vld [vmem:[%s4300 + $0xc] sm:$0xf]
    %v4305 = vld [vmem:[%s4300 + $0x10] sm:$0xf]
    %v4306 = vld [vmem:[%s4300 + $0x14] sm:$0xf]
    %v4307 = vld [vmem:[%s4300 + $0x18] sm:$0xf]
    %v4308 = vld [vmem:[%s4300 + $0x1c] sm:$0xf]
    %v4309 = vld [vmem:[%s4300 + $0x20] sm:$0xf]
    %v4310 = vld [vmem:[%s4300 + $0x24] sm:$0xf]
    %v4311 = vld [vmem:[%s4300 + $0x28] sm:$0xf]
    %v4312 = vld [vmem:[%s4300 + $0x2c] sm:$0xf]
    %v4313 = vld [vmem:[%s4300 + $0x30] sm:$0xf]
    %v4314 = vld [vmem:[%s4300 + $0x34] sm:$0xf]
    %v4315 = vld [vmem:[%s4300 + $0x38] sm:$0xf]
    %v4316 = vld [vmem:[%s4300 + $0x3c] sm:$0xf]
    %v4333 = vunpack.c.l.b16 %v4301
    %v4334 = vunpack.c.l.b16 %v4302
    %v4335 = vunpack.c.l.b16 %v4303
    %v4336 = vunpack.c.l.b16 %v4304
    %v4337 = vunpack.c.l.b16 %v4305
    %v4338 = vunpack.c.l.b16 %v4306
    %v4339 = vunpack.c.l.b16 %v4307
    %v4340 = vunpack.c.l.b16 %v4308
    %v4341 = vunpack.c.l.b16 %v4309
    %v4342 = vunpack.c.l.b16 %v4310
    %v4343 = vunpack.c.l.b16 %v4311
    %v4344 = vunpack.c.l.b16 %v4312
    %v4345 = vunpack.c.l.b16 %v4313
    %v4346 = vunpack.c.l.b16 %v4314
    %v4347 = vunpack.c.l.b16 %v4315
    %v4348 = vunpack.c.l.b16 %v4316
    %v4349 = vpack.c.b16 %v4334, %v4333
    %v4350 = vpack.c.b16 %v4336, %v4335
    %v4351 = vpack.c.b16 %v4338, %v4337
    %v4352 = vpack.c.b16 %v4340, %v4339
    %v4353 = vpack.c.b16 %v4342, %v4341
    %v4354 = vpack.c.b16 %v4344, %v4343
    %v4355 = vpack.c.b16 %v4346, %v4345
    %v4356 = vpack.c.b16 %v4348, %v4347
    %4365 = vmatpush.bf16.msra.mxu0 %v4356
    %4366 = vmatpush.bf16.msra.mxu0 %v4355
    %4367 = vmatpush.bf16.msra.mxu0 %v4354
    %4368 = vmatpush.bf16.msra.mxu0 %v4353
    %4369 = vmatpush.bf16.msra.mxu0 %v4352
    %4370 = vmatpush.bf16.msra.mxu0 %v4351
    %4371 = vmatpush.bf16.msra.mxu0 %v4350
    %4372 = vmatpush.bf16.msra.mxu0 %v4349
    %4373 = vmatmul.bf16.gmra.mxu0 %v4292
    %v4374 = vpop.f32.mrf.mxu0
    %v4375 = vadd.f32 0.0, %v4374
    %v4376 = vpop.f32.mrf.mxu0
    %v4377 = vadd.f32 0.0, %v4376
    %4378 = vmatmul.bf16.gmra.mxu0 %v4293
    %v4379 = vpop.f32.mrf.mxu0
    %v4380 = vadd.f32 0.0, %v4379
    %v4381 = vpop.f32.mrf.mxu0
    %v4382 = vadd.f32 0.0, %v4381
    %4383 = vmatmul.bf16.gmra.mxu0 %v4294
    %v4384 = vpop.f32.mrf.mxu0
    %v4385 = vadd.f32 0.0, %v4384
    %v4386 = vpop.f32.mrf.mxu0
    %v4387 = vadd.f32 0.0, %v4386
    %4388 = vmatmul.bf16.gmra.mxu0 %v4295
    %v4389 = vpop.f32.mrf.mxu0
    %v4390 = vadd.f32 0.0, %v4389
    %v4391 = vpop.f32.mrf.mxu0
    %v4392 = vadd.f32 0.0, %v4391
    %4393 = vmatmul.bf16.gmra.mxu0 %v4296
    %v4394 = vpop.f32.mrf.mxu0
    %v4395 = vadd.f32 0.0, %v4394
    %v4396 = vpop.f32.mrf.mxu0
    %v4397 = vadd.f32 0.0, %v4396
    %4398 = vmatmul.bf16.gmra.mxu0 %v4297
    %v4399 = vpop.f32.mrf.mxu0
    %v4400 = vadd.f32 0.0, %v4399
    %v4401 = vpop.f32.mrf.mxu0
    %v4402 = vadd.f32 0.0, %v4401
    %4403 = vmatmul.bf16.gmra.mxu0 %v4298
    %v4404 = vpop.f32.mrf.mxu0
    %v4405 = vadd.f32 0.0, %v4404
    %v4406 = vpop.f32.mrf.mxu0
    %v4407 = vadd.f32 0.0, %v4406
    %4408 = vmatmul.bf16.gmra.mxu0 %v4299
    %v4409 = vpop.f32.mrf.mxu0
    %v4410 = vadd.f32 0.0, %v4409
    %v4411 = vpop.f32.mrf.mxu0
    %v4412 = vadd.f32 0.0, %v4411
    %4413 = vdwg.mxu0
    %v4414 = vadd.f32 %v3680, %v4375
    %v4415 = vadd.f32 %v3681, %v4377
    %v4416 = vadd.f32 %v3682, %v4380
    %v4417 = vadd.f32 %v3683, %v4382
    %v4418 = vadd.f32 %v3684, %v4385
    %v4419 = vadd.f32 %v3685, %v4387
    %v4420 = vadd.f32 %v3686, %v4390
    %v4421 = vadd.f32 %v3687, %v4392
    %v4422 = vadd.f32 %v3688, %v4395
    %v4423 = vadd.f32 %v3689, %v4397
    %v4424 = vadd.f32 %v3690, %v4400
    %v4425 = vadd.f32 %v3691, %v4402
    %v4426 = vadd.f32 %v3692, %v4405
    %v4427 = vadd.f32 %v3693, %v4407
    %v4428 = vadd.f32 %v3694, %v4410
    %v4429 = vadd.f32 %v3695, %v4412
    %vm4430 = vmand %vm2914, %vm2116
    %vm4431 = vmand %vm2915, %vm2117
    %vm4432 = vmand %vm2916, %vm2118
    %vm4433 = vmand %vm2917, %vm2119
    %vm4434 = vmand %vm2918, %vm2120
    %vm4435 = vmand %vm2919, %vm2121
    %vm4436 = vmand %vm2920, %vm2122
    %vm4437 = vmand %vm2921, %vm2123
    %vm4438 = vmand %vm2922, %vm2124
    %vm4439 = vmand %vm2923, %vm2125
    %vm4440 = vmand %vm2924, %vm2126
    %vm4441 = vmand %vm2925, %vm2127
    %vm4442 = vmand %vm2926, %vm2128
    %vm4443 = vmand %vm2927, %vm2129
    %vm4444 = vmand %vm2928, %vm2130
    %vm4445 = vmand %vm2929, %vm2131
    %vm4446 = vmand %vm4430, %vm2148
    %vm4447 = vmand %vm4431, %vm2149
    %vm4448 = vmand %vm4432, %vm2150
    %vm4449 = vmand %vm4433, %vm2151
    %vm4450 = vmand %vm4434, %vm2152
    %vm4451 = vmand %vm4435, %vm2153
    %vm4452 = vmand %vm4436, %vm2154
    %vm4453 = vmand %vm4437, %vm2155
    %vm4454 = vmand %vm4438, %vm2156
    %vm4455 = vmand %vm4439, %vm2157
    %vm4456 = vmand %vm4440, %vm2158
    %vm4457 = vmand %vm4441, %vm2159
    %vm4458 = vmand %vm4442, %vm2160
    %vm4459 = vmand %vm4443, %vm2161
    %vm4460 = vmand %vm4444, %vm2162
    %vm4461 = vmand %vm4445, %vm2163
    %v4462 = vadd.s32 %v2978, %v2100
    %v4463 = vadd.s32 %v2979, %v2101
    %v4464 = vadd.s32 %v2980, %v2102
    %v4465 = vadd.s32 %v2981, %v2103
    %v4466 = vadd.s32 %v2982, %v2104
    %v4467 = vadd.s32 %v2983, %v2105
    %v4468 = vadd.s32 %v2984, %v2106
    %v4469 = vadd.s32 %v2985, %v2107
    %v4470 = vadd.s32 %v2986, %v2108
    %v4471 = vadd.s32 %v2987, %v2109
    %v4472 = vadd.s32 %v2988, %v2110
    %v4473 = vadd.s32 %v2989, %v2111
    %v4474 = vadd.s32 %v2990, %v2112
    %v4475 = vadd.s32 %v2991, %v2113
    %v4476 = vadd.s32 %v2992, %v2114
    %v4477 = vadd.s32 %v2993, %v2115
    %4478 = vset.pattern.permute.xlu0 0
    %4479 = vperm.xlu0 %4478, %v4462
    %v4480 = vpop.permute.xlu0 %4479
    %4481 = vset.pattern.permute.xlu0 0
    %4482 = vperm.xlu0 %4481, %v4463
    %v4483 = vpop.permute.xlu0 %4482
    %4484 = vset.pattern.permute.xlu0 0
    %4485 = vperm.xlu0 %4484, %v4464
    %v4486 = vpop.permute.xlu0 %4485
    %4487 = vset.pattern.permute.xlu0 0
    %4488 = vperm.xlu0 %4487, %v4465
    %v4489 = vpop.permute.xlu0 %4488
    %4490 = vset.pattern.permute.xlu0 0
    %4491 = vperm.xlu0 %4490, %v4466
    %v4492 = vpop.permute.xlu0 %4491
    %4493 = vset.pattern.permute.xlu0 0
    %4494 = vperm.xlu0 %4493, %v4467
    %v4495 = vpop.permute.xlu0 %4494
    %4496 = vset.pattern.permute.xlu0 0
    %4497 = vperm.xlu0 %4496, %v4468
    %v4498 = vpop.permute.xlu0 %4497
    %4499 = vset.pattern.permute.xlu0 0
    %4500 = vperm.xlu0 %4499, %v4469
    %v4501 = vpop.permute.xlu0 %4500
    %4502 = vset.pattern.permute.xlu0 0
    %4503 = vperm.xlu0 %4502, %v4470
    %v4504 = vpop.permute.xlu0 %4503
    %4505 = vset.pattern.permute.xlu0 0
    %4506 = vperm.xlu0 %4505, %v4471
    %v4507 = vpop.permute.xlu0 %4506
    %4508 = vset.pattern.permute.xlu0 0
    %4509 = vperm.xlu0 %4508, %v4472
    %v4510 = vpop.permute.xlu0 %4509
    %4511 = vset.pattern.permute.xlu0 0
    %4512 = vperm.xlu0 %4511, %v4473
    %v4513 = vpop.permute.xlu0 %4512
    %4514 = vset.pattern.permute.xlu0 0
    %4515 = vperm.xlu0 %4514, %v4474
    %v4516 = vpop.permute.xlu0 %4515
    %4517 = vset.pattern.permute.xlu0 0
    %4518 = vperm.xlu0 %4517, %v4475
    %v4519 = vpop.permute.xlu0 %4518
    %4520 = vset.pattern.permute.xlu0 0
    %4521 = vperm.xlu0 %4520, %v4476
    %v4522 = vpop.permute.xlu0 %4521
    %4523 = vset.pattern.permute.xlu0 0
    %4524 = vperm.xlu0 %4523, %v4477
    %v4525 = vpop.permute.xlu0 %4524
    %vm4526 = vcmp.eq.s32.totalorder %v293, %v4480
    %vm4527 = vcmp.eq.s32.totalorder %v294, %v4480
    %vm4528 = vcmp.eq.s32.totalorder %v295, %v4480
    %vm4529 = vcmp.eq.s32.totalorder %v296, %v4480
    %vm4530 = vcmp.eq.s32.totalorder %v293, %v4483
    %vm4531 = vcmp.eq.s32.totalorder %v294, %v4483
    %vm4532 = vcmp.eq.s32.totalorder %v295, %v4483
    %vm4533 = vcmp.eq.s32.totalorder %v296, %v4483
    %vm4534 = vcmp.eq.s32.totalorder %v293, %v4486
    %vm4535 = vcmp.eq.s32.totalorder %v294, %v4486
    %vm4536 = vcmp.eq.s32.totalorder %v295, %v4486
    %vm4537 = vcmp.eq.s32.totalorder %v296, %v4486
    %vm4538 = vcmp.eq.s32.totalorder %v293, %v4489
    %vm4539 = vcmp.eq.s32.totalorder %v294, %v4489
    %vm4540 = vcmp.eq.s32.totalorder %v295, %v4489
    %vm4541 = vcmp.eq.s32.totalorder %v296, %v4489
    %vm4542 = vcmp.eq.s32.totalorder %v293, %v4492
    %vm4543 = vcmp.eq.s32.totalorder %v294, %v4492
    %vm4544 = vcmp.eq.s32.totalorder %v295, %v4492
    %vm4545 = vcmp.eq.s32.totalorder %v296, %v4492
    %vm4546 = vcmp.eq.s32.totalorder %v293, %v4495
    %vm4547 = vcmp.eq.s32.totalorder %v294, %v4495
    %vm4548 = vcmp.eq.s32.totalorder %v295, %v4495
    %vm4549 = vcmp.eq.s32.totalorder %v296, %v4495
    %vm4550 = vcmp.eq.s32.totalorder %v293, %v4498
    %vm4551 = vcmp.eq.s32.totalorder %v294, %v4498
    %vm4552 = vcmp.eq.s32.totalorder %v295, %v4498
    %vm4553 = vcmp.eq.s32.totalorder %v296, %v4498
    %vm4554 = vcmp.eq.s32.totalorder %v293, %v4501
    %vm4555 = vcmp.eq.s32.totalorder %v294, %v4501
    %vm4556 = vcmp.eq.s32.totalorder %v295, %v4501
    %vm4557 = vcmp.eq.s32.totalorder %v296, %v4501
    %vm4558 = vcmp.eq.s32.totalorder %v293, %v4504
    %vm4559 = vcmp.eq.s32.totalorder %v294, %v4504
    %vm4560 = vcmp.eq.s32.totalorder %v295, %v4504
    %vm4561 = vcmp.eq.s32.totalorder %v296, %v4504
    %vm4562 = vcmp.eq.s32.totalorder %v293, %v4507
    %vm4563 = vcmp.eq.s32.totalorder %v294, %v4507
    %vm4564 = vcmp.eq.s32.totalorder %v295, %v4507
    %vm4565 = vcmp.eq.s32.totalorder %v296, %v4507
    %vm4566 = vcmp.eq.s32.totalorder %v293, %v4510
    %vm4567 = vcmp.eq.s32.totalorder %v294, %v4510
    %vm4568 = vcmp.eq.s32.totalorder %v295, %v4510
    %vm4569 = vcmp.eq.s32.totalorder %v296, %v4510
    %vm4570 = vcmp.eq.s32.totalorder %v293, %v4513
    %vm4571 = vcmp.eq.s32.totalorder %v294, %v4513
    %vm4572 = vcmp.eq.s32.totalorder %v295, %v4513
    %vm4573 = vcmp.eq.s32.totalorder %v296, %v4513
    %vm4574 = vcmp.eq.s32.totalorder %v293, %v4516
    %vm4575 = vcmp.eq.s32.totalorder %v294, %v4516
    %vm4576 = vcmp.eq.s32.totalorder %v295, %v4516
    %vm4577 = vcmp.eq.s32.totalorder %v296, %v4516
    %vm4578 = vcmp.eq.s32.totalorder %v293, %v4519
    %vm4579 = vcmp.eq.s32.totalorder %v294, %v4519
    %vm4580 = vcmp.eq.s32.totalorder %v295, %v4519
    %vm4581 = vcmp.eq.s32.totalorder %v296, %v4519
    %vm4582 = vcmp.eq.s32.totalorder %v293, %v4522
    %vm4583 = vcmp.eq.s32.totalorder %v294, %v4522
    %vm4584 = vcmp.eq.s32.totalorder %v295, %v4522
    %vm4585 = vcmp.eq.s32.totalorder %v296, %v4522
    %vm4586 = vcmp.eq.s32.totalorder %v293, %v4525
    %vm4587 = vcmp.eq.s32.totalorder %v294, %v4525
    %vm4588 = vcmp.eq.s32.totalorder %v295, %v4525
    %vm4589 = vcmp.eq.s32.totalorder %v296, %v4525
    %v4590 = vsel %vm4446, 1, 0
    %v4591 = vsel %vm4447, 1, 0
    %v4592 = vsel %vm4448, 1, 0
    %v4593 = vsel %vm4449, 1, 0
    %v4594 = vsel %vm4450, 1, 0
    %v4595 = vsel %vm4451, 1, 0
    %v4596 = vsel %vm4452, 1, 0
    %v4597 = vsel %vm4453, 1, 0
    %v4598 = vsel %vm4454, 1, 0
    %v4599 = vsel %vm4455, 1, 0
    %v4600 = vsel %vm4456, 1, 0
    %v4601 = vsel %vm4457, 1, 0
    %v4602 = vsel %vm4458, 1, 0
    %v4603 = vsel %vm4459, 1, 0
    %v4604 = vsel %vm4460, 1, 0
    %v4605 = vsel %vm4461, 1, 0
    %4606 = vset.pattern.permute.xlu0 0
    %4607 = vperm.xlu0 %4606, %v4590
    %v4608 = vpop.permute.xlu0 %4607
    %4609 = vset.pattern.permute.xlu0 0
    %4610 = vperm.xlu0 %4609, %v4591
    %v4611 = vpop.permute.xlu0 %4610
    %4612 = vset.pattern.permute.xlu0 0
    %4613 = vperm.xlu0 %4612, %v4592
    %v4614 = vpop.permute.xlu0 %4613
    %4615 = vset.pattern.permute.xlu0 0
    %4616 = vperm.xlu0 %4615, %v4593
    %v4617 = vpop.permute.xlu0 %4616
    %4618 = vset.pattern.permute.xlu0 0
    %4619 = vperm.xlu0 %4618, %v4594
    %v4620 = vpop.permute.xlu0 %4619
    %4621 = vset.pattern.permute.xlu0 0
    %4622 = vperm.xlu0 %4621, %v4595
    %v4623 = vpop.permute.xlu0 %4622
    %4624 = vset.pattern.permute.xlu0 0
    %4625 = vperm.xlu0 %4624, %v4596
    %v4626 = vpop.permute.xlu0 %4625
    %4627 = vset.pattern.permute.xlu0 0
    %4628 = vperm.xlu0 %4627, %v4597
    %v4629 = vpop.permute.xlu0 %4628
    %4630 = vset.pattern.permute.xlu0 0
    %4631 = vperm.xlu0 %4630, %v4598
    %v4632 = vpop.permute.xlu0 %4631
    %4633 = vset.pattern.permute.xlu0 0
    %4634 = vperm.xlu0 %4633, %v4599
    %v4635 = vpop.permute.xlu0 %4634
    %4636 = vset.pattern.permute.xlu0 0
    %4637 = vperm.xlu0 %4636, %v4600
    %v4638 = vpop.permute.xlu0 %4637
    %4639 = vset.pattern.permute.xlu0 0
    %4640 = vperm.xlu0 %4639, %v4601
    %v4641 = vpop.permute.xlu0 %4640
    %4642 = vset.pattern.permute.xlu0 0
    %4643 = vperm.xlu0 %4642, %v4602
    %v4644 = vpop.permute.xlu0 %4643
    %4645 = vset.pattern.permute.xlu0 0
    %4646 = vperm.xlu0 %4645, %v4603
    %v4647 = vpop.permute.xlu0 %4646
    %4648 = vset.pattern.permute.xlu0 0
    %4649 = vperm.xlu0 %4648, %v4604
    %v4650 = vpop.permute.xlu0 %4649
    %4651 = vset.pattern.permute.xlu0 0
    %4652 = vperm.xlu0 %4651, %v4605
    %v4653 = vpop.permute.xlu0 %4652
    %vm4654 = vcmp.eq.s32.totalorder %v4608, 1
    %vm4655 = vcmp.eq.s32.totalorder %v4611, 1
    %vm4656 = vcmp.eq.s32.totalorder %v4614, 1
    %vm4657 = vcmp.eq.s32.totalorder %v4617, 1
    %vm4658 = vcmp.eq.s32.totalorder %v4620, 1
    %vm4659 = vcmp.eq.s32.totalorder %v4623, 1
    %vm4660 = vcmp.eq.s32.totalorder %v4626, 1
    %vm4661 = vcmp.eq.s32.totalorder %v4629, 1
    %vm4662 = vcmp.eq.s32.totalorder %v4632, 1
    %vm4663 = vcmp.eq.s32.totalorder %v4635, 1
    %vm4664 = vcmp.eq.s32.totalorder %v4638, 1
    %vm4665 = vcmp.eq.s32.totalorder %v4641, 1
    %vm4666 = vcmp.eq.s32.totalorder %v4644, 1
    %vm4667 = vcmp.eq.s32.totalorder %v4647, 1
    %vm4668 = vcmp.eq.s32.totalorder %v4650, 1
    %vm4669 = vcmp.eq.s32.totalorder %v4653, 1
    %vm4670 = vmand %vm4526, %vm4654
    %vm4671 = vmand %vm4527, %vm4654
    %vm4672 = vmand %vm4528, %vm4654
    %vm4673 = vmand %vm4529, %vm4654
    %vm4674 = vmand %vm4530, %vm4655
    %vm4675 = vmand %vm4531, %vm4655
    %vm4676 = vmand %vm4532, %vm4655
    %vm4677 = vmand %vm4533, %vm4655
    %vm4678 = vmand %vm4534, %vm4656
    %vm4679 = vmand %vm4535, %vm4656
    %vm4680 = vmand %vm4536, %vm4656
    %vm4681 = vmand %vm4537, %vm4656
    %vm4682 = vmand %vm4538, %vm4657
    %vm4683 = vmand %vm4539, %vm4657
    %vm4684 = vmand %vm4540, %vm4657
    %vm4685 = vmand %vm4541, %vm4657
    %vm4686 = vmand %vm4542, %vm4658
    %vm4687 = vmand %vm4543, %vm4658
    %vm4688 = vmand %vm4544, %vm4658
    %vm4689 = vmand %vm4545, %vm4658
    %vm4690 = vmand %vm4546, %vm4659
    %vm4691 = vmand %vm4547, %vm4659
    %vm4692 = vmand %vm4548, %vm4659
    %vm4693 = vmand %vm4549, %vm4659
    %vm4694 = vmand %vm4550, %vm4660
    %vm4695 = vmand %vm4551, %vm4660
    %vm4696 = vmand %vm4552, %vm4660
    %vm4697 = vmand %vm4553, %vm4660
    %vm4698 = vmand %vm4554, %vm4661
    %vm4699 = vmand %vm4555, %vm4661
    %vm4700 = vmand %vm4556, %vm4661
    %vm4701 = vmand %vm4557, %vm4661
    %vm4702 = vmand %vm4558, %vm4662
    %vm4703 = vmand %vm4559, %vm4662
    %vm4704 = vmand %vm4560, %vm4662
    %vm4705 = vmand %vm4561, %vm4662
    %vm4706 = vmand %vm4562, %vm4663
    %vm4707 = vmand %vm4563, %vm4663
    %vm4708 = vmand %vm4564, %vm4663
    %vm4709 = vmand %vm4565, %vm4663
    %vm4710 = vmand %vm4566, %vm4664
    %vm4711 = vmand %vm4567, %vm4664
    %vm4712 = vmand %vm4568, %vm4664
    %vm4713 = vmand %vm4569, %vm4664
    %vm4714 = vmand %vm4570, %vm4665
    %vm4715 = vmand %vm4571, %vm4665
    %vm4716 = vmand %vm4572, %vm4665
    %vm4717 = vmand %vm4573, %vm4665
    %vm4718 = vmand %vm4574, %vm4666
    %vm4719 = vmand %vm4575, %vm4666
    %vm4720 = vmand %vm4576, %vm4666
    %vm4721 = vmand %vm4577, %vm4666
    %vm4722 = vmand %vm4578, %vm4667
    %vm4723 = vmand %vm4579, %vm4667
    %vm4724 = vmand %vm4580, %vm4667
    %vm4725 = vmand %vm4581, %vm4667
    %vm4726 = vmand %vm4582, %vm4668
    %vm4727 = vmand %vm4583, %vm4668
    %vm4728 = vmand %vm4584, %vm4668
    %vm4729 = vmand %vm4585, %vm4668
    %vm4730 = vmand %vm4586, %vm4669
    %vm4731 = vmand %vm4587, %vm4669
    %vm4732 = vmand %vm4588, %vm4669
    %vm4733 = vmand %vm4589, %vm4669
    %v4734 = vsel %vm4670, 1.0, 0.0
    %v4735 = vsel %vm4671, 1.0, 0.0
    %v4736 = vsel %vm4672, 1.0, 0.0
    %v4737 = vsel %vm4673, 1.0, 0.0
    %v4738 = vsel %vm4674, 1.0, 0.0
    %v4739 = vsel %vm4675, 1.0, 0.0
    %v4740 = vsel %vm4676, 1.0, 0.0
    %v4741 = vsel %vm4677, 1.0, 0.0
    %v4742 = vsel %vm4678, 1.0, 0.0
    %v4743 = vsel %vm4679, 1.0, 0.0
    %v4744 = vsel %vm4680, 1.0, 0.0
    %v4745 = vsel %vm4681, 1.0, 0.0
    %v4746 = vsel %vm4682, 1.0, 0.0
    %v4747 = vsel %vm4683, 1.0, 0.0
    %v4748 = vsel %vm4684, 1.0, 0.0
    %v4749 = vsel %vm4685, 1.0, 0.0
    %v4750 = vsel %vm4686, 1.0, 0.0
    %v4751 = vsel %vm4687, 1.0, 0.0
    %v4752 = vsel %vm4688, 1.0, 0.0
    %v4753 = vsel %vm4689, 1.0, 0.0
    %v4754 = vsel %vm4690, 1.0, 0.0
    %v4755 = vsel %vm4691, 1.0, 0.0
    %v4756 = vsel %vm4692, 1.0, 0.0
    %v4757 = vsel %vm4693, 1.0, 0.0
    %v4758 = vsel %vm4694, 1.0, 0.0
    %v4759 = vsel %vm4695, 1.0, 0.0
    %v4760 = vsel %vm4696, 1.0, 0.0
    %v4761 = vsel %vm4697, 1.0, 0.0
    %v4762 = vsel %vm4698, 1.0, 0.0
    %v4763 = vsel %vm4699, 1.0, 0.0
    %v4764 = vsel %vm4700, 1.0, 0.0
    %v4765 = vsel %vm4701, 1.0, 0.0
    %v4766 = vsel %vm4702, 1.0, 0.0
    %v4767 = vsel %vm4703, 1.0, 0.0
    %v4768 = vsel %vm4704, 1.0, 0.0
    %v4769 = vsel %vm4705, 1.0, 0.0
    %v4770 = vsel %vm4706, 1.0, 0.0
    %v4771 = vsel %vm4707, 1.0, 0.0
    %v4772 = vsel %vm4708, 1.0, 0.0
    %v4773 = vsel %vm4709, 1.0, 0.0
    %v4774 = vsel %vm4710, 1.0, 0.0
    %v4775 = vsel %vm4711, 1.0, 0.0
    %v4776 = vsel %vm4712, 1.0, 0.0
    %v4777 = vsel %vm4713, 1.0, 0.0
    %v4778 = vsel %vm4714, 1.0, 0.0
    %v4779 = vsel %vm4715, 1.0, 0.0
    %v4780 = vsel %vm4716, 1.0, 0.0
    %v4781 = vsel %vm4717, 1.0, 0.0
    %v4782 = vsel %vm4718, 1.0, 0.0
    %v4783 = vsel %vm4719, 1.0, 0.0
    %v4784 = vsel %vm4720, 1.0, 0.0
    %v4785 = vsel %vm4721, 1.0, 0.0
    %v4786 = vsel %vm4722, 1.0, 0.0
    %v4787 = vsel %vm4723, 1.0, 0.0
    %v4788 = vsel %vm4724, 1.0, 0.0
    %v4789 = vsel %vm4725, 1.0, 0.0
    %v4790 = vsel %vm4726, 1.0, 0.0
    %v4791 = vsel %vm4727, 1.0, 0.0
    %v4792 = vsel %vm4728, 1.0, 0.0
    %v4793 = vsel %vm4729, 1.0, 0.0
    %v4794 = vsel %vm4730, 1.0, 0.0
    %v4795 = vsel %vm4731, 1.0, 0.0
    %v4796 = vsel %vm4732, 1.0, 0.0
    %v4797 = vsel %vm4733, 1.0, 0.0
    %v4798 = vpack.c.bf16 %v4738, %v4734
    %v4799 = vpack.c.bf16 %v4739, %v4735
    %v4800 = vpack.c.bf16 %v4740, %v4736
    %v4801 = vpack.c.bf16 %v4741, %v4737
    %v4802 = vpack.c.bf16 %v4746, %v4742
    %v4803 = vpack.c.bf16 %v4747, %v4743
    %v4804 = vpack.c.bf16 %v4748, %v4744
    %v4805 = vpack.c.bf16 %v4749, %v4745
    %v4806 = vpack.c.bf16 %v4754, %v4750
    %v4807 = vpack.c.bf16 %v4755, %v4751
    %v4808 = vpack.c.bf16 %v4756, %v4752
    %v4809 = vpack.c.bf16 %v4757, %v4753
    %v4810 = vpack.c.bf16 %v4762, %v4758
    %v4811 = vpack.c.bf16 %v4763, %v4759
    %v4812 = vpack.c.bf16 %v4764, %v4760
    %v4813 = vpack.c.bf16 %v4765, %v4761
    %v4814 = vpack.c.bf16 %v4770, %v4766
    %v4815 = vpack.c.bf16 %v4771, %v4767
    %v4816 = vpack.c.bf16 %v4772, %v4768
    %v4817 = vpack.c.bf16 %v4773, %v4769
    %v4818 = vpack.c.bf16 %v4778, %v4774
    %v4819 = vpack.c.bf16 %v4779, %v4775
    %v4820 = vpack.c.bf16 %v4780, %v4776
    %v4821 = vpack.c.bf16 %v4781, %v4777
    %v4822 = vpack.c.bf16 %v4786, %v4782
    %v4823 = vpack.c.bf16 %v4787, %v4783
    %v4824 = vpack.c.bf16 %v4788, %v4784
    %v4825 = vpack.c.bf16 %v4789, %v4785
    %v4826 = vpack.c.bf16 %v4794, %v4790
    %v4827 = vpack.c.bf16 %v4795, %v4791
    %v4828 = vpack.c.bf16 %v4796, %v4792
    %v4829 = vpack.c.bf16 %v4797, %v4793
    %4830 = vmatpush.bf16.msra.mxu0 %v976
    %4831 = vmatpush.bf16.msra.mxu0 %v975
    %4832 = vmatpush.bf16.msra.mxu0 %v974
    %4833 = vmatpush.bf16.msra.mxu0 %v973
    %4834 = vmatpush.bf16.msra.mxu0 %v972
    %4835 = vmatpush.bf16.msra.mxu0 %v971
    %4836 = vmatpush.bf16.msra.mxu0 %v970
    %4837 = vmatpush.bf16.msra.mxu0 %v969
    %4838 = vmatmul.bf16.gmra.mxu0 %v4798
    %v4839 = vpop.f32.mrf.mxu0
    %v4840 = vadd.f32 0.0, %v4839
    %v4841 = vpop.f32.mrf.mxu0
    %v4842 = vadd.f32 0.0, %v4841
    %4843 = vmatmul.bf16.gmra.mxu0 %v4802
    %v4844 = vpop.f32.mrf.mxu0
    %v4845 = vadd.f32 0.0, %v4844
    %v4846 = vpop.f32.mrf.mxu0
    %v4847 = vadd.f32 0.0, %v4846
    %4848 = vmatmul.bf16.gmra.mxu0 %v4806
    %v4849 = vpop.f32.mrf.mxu0
    %v4850 = vadd.f32 0.0, %v4849
    %v4851 = vpop.f32.mrf.mxu0
    %v4852 = vadd.f32 0.0, %v4851
    %4853 = vmatmul.bf16.gmra.mxu0 %v4810
    %v4854 = vpop.f32.mrf.mxu0
    %v4855 = vadd.f32 0.0, %v4854
    %v4856 = vpop.f32.mrf.mxu0
    %v4857 = vadd.f32 0.0, %v4856
    %4858 = vmatmul.bf16.gmra.mxu0 %v4814
    %v4859 = vpop.f32.mrf.mxu0
    %v4860 = vadd.f32 0.0, %v4859
    %v4861 = vpop.f32.mrf.mxu0
    %v4862 = vadd.f32 0.0, %v4861
    %4863 = vmatmul.bf16.gmra.mxu0 %v4818
    %v4864 = vpop.f32.mrf.mxu0
    %v4865 = vadd.f32 0.0, %v4864
    %v4866 = vpop.f32.mrf.mxu0
    %v4867 = vadd.f32 0.0, %v4866
    %4868 = vmatmul.bf16.gmra.mxu0 %v4822
    %v4869 = vpop.f32.mrf.mxu0
    %v4870 = vadd.f32 0.0, %v4869
    %v4871 = vpop.f32.mrf.mxu0
    %v4872 = vadd.f32 0.0, %v4871
    %4873 = vmatmul.bf16.gmra.mxu0 %v4826
    %v4874 = vpop.f32.mrf.mxu0
    %v4875 = vadd.f32 0.0, %v4874
    %v4876 = vpop.f32.mrf.mxu0
    %v4877 = vadd.f32 0.0, %v4876
    %4878 = vdwg.mxu0
    %4879 = vmatpush.bf16.msra.mxu0 %v984
    %4880 = vmatpush.bf16.msra.mxu0 %v983
    %4881 = vmatpush.bf16.msra.mxu0 %v982
    %4882 = vmatpush.bf16.msra.mxu0 %v981
    %4883 = vmatpush.bf16.msra.mxu0 %v980
    %4884 = vmatpush.bf16.msra.mxu0 %v979
    %4885 = vmatpush.bf16.msra.mxu0 %v978
    %4886 = vmatpush.bf16.msra.mxu0 %v977
    %4887 = vmatmul.bf16.gmra.mxu0 %v4799
    %v4888 = vpop.f32.mrf.mxu0
    %v4889 = vadd.f32 %v4840, %v4888
    %v4890 = vpop.f32.mrf.mxu0
    %v4891 = vadd.f32 %v4842, %v4890
    %4892 = vmatmul.bf16.gmra.mxu0 %v4803
    %v4893 = vpop.f32.mrf.mxu0
    %v4894 = vadd.f32 %v4845, %v4893
    %v4895 = vpop.f32.mrf.mxu0
    %v4896 = vadd.f32 %v4847, %v4895
    %4897 = vmatmul.bf16.gmra.mxu0 %v4807
    %v4898 = vpop.f32.mrf.mxu0
    %v4899 = vadd.f32 %v4850, %v4898
    %v4900 = vpop.f32.mrf.mxu0
    %v4901 = vadd.f32 %v4852, %v4900
    %4902 = vmatmul.bf16.gmra.mxu0 %v4811
    %v4903 = vpop.f32.mrf.mxu0
    %v4904 = vadd.f32 %v4855, %v4903
    %v4905 = vpop.f32.mrf.mxu0
    %v4906 = vadd.f32 %v4857, %v4905
    %4907 = vmatmul.bf16.gmra.mxu0 %v4815
    %v4908 = vpop.f32.mrf.mxu0
    %v4909 = vadd.f32 %v4860, %v4908
    %v4910 = vpop.f32.mrf.mxu0
    %v4911 = vadd.f32 %v4862, %v4910
    %4912 = vmatmul.bf16.gmra.mxu0 %v4819
    %v4913 = vpop.f32.mrf.mxu0
    %v4914 = vadd.f32 %v4865, %v4913
    %v4915 = vpop.f32.mrf.mxu0
    %v4916 = vadd.f32 %v4867, %v4915
    %4917 = vmatmul.bf16.gmra.mxu0 %v4823
    %v4918 = vpop.f32.mrf.mxu0
    %v4919 = vadd.f32 %v4870, %v4918
    %v4920 = vpop.f32.mrf.mxu0
    %v4921 = vadd.f32 %v4872, %v4920
    %4922 = vmatmul.bf16.gmra.mxu0 %v4827
    %v4923 = vpop.f32.mrf.mxu0
    %v4924 = vadd.f32 %v4875, %v4923
    %v4925 = vpop.f32.mrf.mxu0
    %v4926 = vadd.f32 %v4877, %v4925
    %4927 = vdwg.mxu0
    %4928 = vmatpush.bf16.msra.mxu0 %v992
    %4929 = vmatpush.bf16.msra.mxu0 %v991
    %4930 = vmatpush.bf16.msra.mxu0 %v990
    %4931 = vmatpush.bf16.msra.mxu0 %v989
    %4932 = vmatpush.bf16.msra.mxu0 %v988
    %4933 = vmatpush.bf16.msra.mxu0 %v987
    %4934 = vmatpush.bf16.msra.mxu0 %v986
    %4935 = vmatpush.bf16.msra.mxu0 %v985
    %4936 = vmatmul.bf16.gmra.mxu0 %v4800
    %v4937 = vpop.f32.mrf.mxu0
    %v4938 = vadd.f32 %v4889, %v4937
    %v4939 = vpop.f32.mrf.mxu0
    %v4940 = vadd.f32 %v4891, %v4939
    %4941 = vmatmul.bf16.gmra.mxu0 %v4804
    %v4942 = vpop.f32.mrf.mxu0
    %v4943 = vadd.f32 %v4894, %v4942
    %v4944 = vpop.f32.mrf.mxu0
    %v4945 = vadd.f32 %v4896, %v4944
    %4946 = vmatmul.bf16.gmra.mxu0 %v4808
    %v4947 = vpop.f32.mrf.mxu0
    %v4948 = vadd.f32 %v4899, %v4947
    %v4949 = vpop.f32.mrf.mxu0
    %v4950 = vadd.f32 %v4901, %v4949
    %4951 = vmatmul.bf16.gmra.mxu0 %v4812
    %v4952 = vpop.f32.mrf.mxu0
    %v4953 = vadd.f32 %v4904, %v4952
    %v4954 = vpop.f32.mrf.mxu0
    %v4955 = vadd.f32 %v4906, %v4954
    %4956 = vmatmul.bf16.gmra.mxu0 %v4816
    %v4957 = vpop.f32.mrf.mxu0
    %v4958 = vadd.f32 %v4909, %v4957
    %v4959 = vpop.f32.mrf.mxu0
    %v4960 = vadd.f32 %v4911, %v4959
    %4961 = vmatmul.bf16.gmra.mxu0 %v4820
    %v4962 = vpop.f32.mrf.mxu0
    %v4963 = vadd.f32 %v4914, %v4962
    %v4964 = vpop.f32.mrf.mxu0
    %v4965 = vadd.f32 %v4916, %v4964
    %4966 = vmatmul.bf16.gmra.mxu0 %v4824
    %v4967 = vpop.f32.mrf.mxu0
    %v4968 = vadd.f32 %v4919, %v4967
    %v4969 = vpop.f32.mrf.mxu0
    %v4970 = vadd.f32 %v4921, %v4969
    %4971 = vmatmul.bf16.gmra.mxu0 %v4828
    %v4972 = vpop.f32.mrf.mxu0
    %v4973 = vadd.f32 %v4924, %v4972
    %v4974 = vpop.f32.mrf.mxu0
    %v4975 = vadd.f32 %v4926, %v4974
    %4976 = vdwg.mxu0
    %4977 = vmatpush.bf16.msra.mxu0 %v1000
    %4978 = vmatpush.bf16.msra.mxu0 %v999
    %4979 = vmatpush.bf16.msra.mxu0 %v998
    %4980 = vmatpush.bf16.msra.mxu0 %v997
    %4981 = vmatpush.bf16.msra.mxu0 %v996
    %4982 = vmatpush.bf16.msra.mxu0 %v995
    %4983 = vmatpush.bf16.msra.mxu0 %v994
    %4984 = vmatpush.bf16.msra.mxu0 %v993
    %4985 = vmatmul.bf16.gmra.mxu0 %v4801
    %v4986 = vpop.f32.mrf.mxu0
    %v4987 = vadd.f32 %v4938, %v4986
    %v4988 = vpop.f32.mrf.mxu0
    %v4989 = vadd.f32 %v4940, %v4988
    %4990 = vmatmul.bf16.gmra.mxu0 %v4805
    %v4991 = vpop.f32.mrf.mxu0
    %v4992 = vadd.f32 %v4943, %v4991
    %v4993 = vpop.f32.mrf.mxu0
    %v4994 = vadd.f32 %v4945, %v4993
    %4995 = vmatmul.bf16.gmra.mxu0 %v4809
    %v4996 = vpop.f32.mrf.mxu0
    %v4997 = vadd.f32 %v4948, %v4996
    %v4998 = vpop.f32.mrf.mxu0
    %v4999 = vadd.f32 %v4950, %v4998
    %5000 = vmatmul.bf16.gmra.mxu0 %v4813
    %v5001 = vpop.f32.mrf.mxu0
    %v5002 = vadd.f32 %v4953, %v5001
    %v5003 = vpop.f32.mrf.mxu0
    %v5004 = vadd.f32 %v4955, %v5003
    %5005 = vmatmul.bf16.gmra.mxu0 %v4817
    %v5006 = vpop.f32.mrf.mxu0
    %v5007 = vadd.f32 %v4958, %v5006
    %v5008 = vpop.f32.mrf.mxu0
    %v5009 = vadd.f32 %v4960, %v5008
    %5010 = vmatmul.bf16.gmra.mxu0 %v4821
    %v5011 = vpop.f32.mrf.mxu0
    %v5012 = vadd.f32 %v4963, %v5011
    %v5013 = vpop.f32.mrf.mxu0
    %v5014 = vadd.f32 %v4965, %v5013
    %5015 = vmatmul.bf16.gmra.mxu0 %v4825
    %v5016 = vpop.f32.mrf.mxu0
    %v5017 = vadd.f32 %v4968, %v5016
    %v5018 = vpop.f32.mrf.mxu0
    %v5019 = vadd.f32 %v4970, %v5018
    %5020 = vmatmul.bf16.gmra.mxu0 %v4829
    %v5021 = vpop.f32.mrf.mxu0
    %v5022 = vadd.f32 %v4973, %v5021
    %v5023 = vpop.f32.mrf.mxu0
    %v5024 = vadd.f32 %v4975, %v5023
    %5025 = vdwg.mxu0
    %v5026 = vpack.c.bf16 %v4989, %v4987
    %v5027 = vpack.c.bf16 %v4994, %v4992
    %v5028 = vpack.c.bf16 %v4999, %v4997
    %v5029 = vpack.c.bf16 %v5004, %v5002
    %v5030 = vpack.c.bf16 %v5009, %v5007
    %v5031 = vpack.c.bf16 %v5014, %v5012
    %v5032 = vpack.c.bf16 %v5019, %v5017
    %v5033 = vpack.c.bf16 %v5024, %v5022
    %s5034 = scalar_lea.vmem %s4, 320
    %v5035 = vld [vmem:[%s5034] sm:$0xf]
    %v5036 = vld [vmem:[%s5034 + $0x4] sm:$0xf]
    %v5037 = vld [vmem:[%s5034 + $0x8] sm:$0xf]
    %v5038 = vld [vmem:[%s5034 + $0xc] sm:$0xf]
    %v5039 = vld [vmem:[%s5034 + $0x10] sm:$0xf]
    %v5040 = vld [vmem:[%s5034 + $0x14] sm:$0xf]
    %v5041 = vld [vmem:[%s5034 + $0x18] sm:$0xf]
    %v5042 = vld [vmem:[%s5034 + $0x1c] sm:$0xf]
    %v5043 = vld [vmem:[%s5034 + $0x20] sm:$0xf]
    %v5044 = vld [vmem:[%s5034 + $0x24] sm:$0xf]
    %v5045 = vld [vmem:[%s5034 + $0x28] sm:$0xf]
    %v5046 = vld [vmem:[%s5034 + $0x2c] sm:$0xf]
    %v5047 = vld [vmem:[%s5034 + $0x30] sm:$0xf]
    %v5048 = vld [vmem:[%s5034 + $0x34] sm:$0xf]
    %v5049 = vld [vmem:[%s5034 + $0x38] sm:$0xf]
    %v5050 = vld [vmem:[%s5034 + $0x3c] sm:$0xf]
    %v5067 = vunpack.c.l.b16 %v5035
    %v5068 = vunpack.c.l.b16 %v5036
    %v5069 = vunpack.c.l.b16 %v5037
    %v5070 = vunpack.c.l.b16 %v5038
    %v5071 = vunpack.c.l.b16 %v5039
    %v5072 = vunpack.c.l.b16 %v5040
    %v5073 = vunpack.c.l.b16 %v5041
    %v5074 = vunpack.c.l.b16 %v5042
    %v5075 = vunpack.c.l.b16 %v5043
    %v5076 = vunpack.c.l.b16 %v5044
    %v5077 = vunpack.c.l.b16 %v5045
    %v5078 = vunpack.c.l.b16 %v5046
    %v5079 = vunpack.c.l.b16 %v5047
    %v5080 = vunpack.c.l.b16 %v5048
    %v5081 = vunpack.c.l.b16 %v5049
    %v5082 = vunpack.c.l.b16 %v5050
    %v5083 = vpack.c.b16 %v5068, %v5067
    %v5084 = vpack.c.b16 %v5070, %v5069
    %v5085 = vpack.c.b16 %v5072, %v5071
    %v5086 = vpack.c.b16 %v5074, %v5073
    %v5087 = vpack.c.b16 %v5076, %v5075
    %v5088 = vpack.c.b16 %v5078, %v5077
    %v5089 = vpack.c.b16 %v5080, %v5079
    %v5090 = vpack.c.b16 %v5082, %v5081
    %5099 = vmatpush.bf16.msra.mxu0 %v5090
    %5100 = vmatpush.bf16.msra.mxu0 %v5089
    %5101 = vmatpush.bf16.msra.mxu0 %v5088
    %5102 = vmatpush.bf16.msra.mxu0 %v5087
    %5103 = vmatpush.bf16.msra.mxu0 %v5086
    %5104 = vmatpush.bf16.msra.mxu0 %v5085
    %5105 = vmatpush.bf16.msra.mxu0 %v5084
    %5106 = vmatpush.bf16.msra.mxu0 %v5083
    %5107 = vmatmul.bf16.gmra.mxu0 %v5026
    %v5108 = vpop.f32.mrf.mxu0
    %v5109 = vadd.f32 0.0, %v5108
    %v5110 = vpop.f32.mrf.mxu0
    %v5111 = vadd.f32 0.0, %v5110
    %5112 = vmatmul.bf16.gmra.mxu0 %v5027
    %v5113 = vpop.f32.mrf.mxu0
    %v5114 = vadd.f32 0.0, %v5113
    %v5115 = vpop.f32.mrf.mxu0
    %v5116 = vadd.f32 0.0, %v5115
    %5117 = vmatmul.bf16.gmra.mxu0 %v5028
    %v5118 = vpop.f32.mrf.mxu0
    %v5119 = vadd.f32 0.0, %v5118
    %v5120 = vpop.f32.mrf.mxu0
    %v5121 = vadd.f32 0.0, %v5120
    %5122 = vmatmul.bf16.gmra.mxu0 %v5029
    %v5123 = vpop.f32.mrf.mxu0
    %v5124 = vadd.f32 0.0, %v5123
    %v5125 = vpop.f32.mrf.mxu0
    %v5126 = vadd.f32 0.0, %v5125
    %5127 = vmatmul.bf16.gmra.mxu0 %v5030
    %v5128 = vpop.f32.mrf.mxu0
    %v5129 = vadd.f32 0.0, %v5128
    %v5130 = vpop.f32.mrf.mxu0
    %v5131 = vadd.f32 0.0, %v5130
    %5132 = vmatmul.bf16.gmra.mxu0 %v5031
    %v5133 = vpop.f32.mrf.mxu0
    %v5134 = vadd.f32 0.0, %v5133
    %v5135 = vpop.f32.mrf.mxu0
    %v5136 = vadd.f32 0.0, %v5135
    %5137 = vmatmul.bf16.gmra.mxu0 %v5032
    %v5138 = vpop.f32.mrf.mxu0
    %v5139 = vadd.f32 0.0, %v5138
    %v5140 = vpop.f32.mrf.mxu0
    %v5141 = vadd.f32 0.0, %v5140
    %5142 = vmatmul.bf16.gmra.mxu0 %v5033
    %v5143 = vpop.f32.mrf.mxu0
    %v5144 = vadd.f32 0.0, %v5143
    %v5145 = vpop.f32.mrf.mxu0
    %v5146 = vadd.f32 0.0, %v5145
    %5147 = vdwg.mxu0
    %v5148 = vadd.f32 %v4414, %v5109
    %v5149 = vadd.f32 %v4415, %v5111
    %v5150 = vadd.f32 %v4416, %v5114
    %v5151 = vadd.f32 %v4417, %v5116
    %v5152 = vadd.f32 %v4418, %v5119
    %v5153 = vadd.f32 %v4419, %v5121
    %v5154 = vadd.f32 %v4420, %v5124
    %v5155 = vadd.f32 %v4421, %v5126
    %v5156 = vadd.f32 %v4422, %v5129
    %v5157 = vadd.f32 %v4423, %v5131
    %v5158 = vadd.f32 %v4424, %v5134
    %v5159 = vadd.f32 %v4425, %v5136
    %v5160 = vadd.f32 %v4426, %v5139
    %v5161 = vadd.f32 %v4427, %v5141
    %v5162 = vadd.f32 %v4428, %v5144
    %v5163 = vadd.f32 %v4429, %v5146
    %v5164 = vadd.s32 %v244, 1
    %v5165 = vadd.s32 %v245, 1
    %v5166 = vadd.s32 %v246, 1
    %v5167 = vadd.s32 %v247, 1
    %v5168 = vadd.s32 %v248, 1
    %v5169 = vadd.s32 %v249, 1
    %v5170 = vadd.s32 %v250, 1
    %v5171 = vadd.s32 %v251, 1
    %v5172 = vadd.s32 %v252, 1
    %v5173 = vadd.s32 %v253, 1
    %v5174 = vadd.s32 %v254, 1
    %v5175 = vadd.s32 %v255, 1
    %v5176 = vadd.s32 %v256, 1
    %v5177 = vadd.s32 %v257, 1
    %v5178 = vadd.s32 %v258, 1
    %v5179 = vadd.s32 %v259, 1
    %vm5180 = vcmp.ge.s32.totalorder %v5164, 0
    %vm5181 = vcmp.ge.s32.totalorder %v5165, 0
    %vm5182 = vcmp.ge.s32.totalorder %v5166, 0
    %vm5183 = vcmp.ge.s32.totalorder %v5167, 0
    %vm5184 = vcmp.ge.s32.totalorder %v5168, 0
    %vm5185 = vcmp.ge.s32.totalorder %v5169, 0
    %vm5186 = vcmp.ge.s32.totalorder %v5170, 0
    %vm5187 = vcmp.ge.s32.totalorder %v5171, 0
    %vm5188 = vcmp.ge.s32.totalorder %v5172, 0
    %vm5189 = vcmp.ge.s32.totalorder %v5173, 0
    %vm5190 = vcmp.ge.s32.totalorder %v5174, 0
    %vm5191 = vcmp.ge.s32.totalorder %v5175, 0
    %vm5192 = vcmp.ge.s32.totalorder %v5176, 0
    %vm5193 = vcmp.ge.s32.totalorder %v5177, 0
    %vm5194 = vcmp.ge.s32.totalorder %v5178, 0
    %vm5195 = vcmp.ge.s32.totalorder %v5179, 0
    %vm5196 = vcmp.lt.s32.totalorder %v5164, 16
    %vm5197 = vcmp.lt.s32.totalorder %v5165, 16
    %vm5198 = vcmp.lt.s32.totalorder %v5166, 16
    %vm5199 = vcmp.lt.s32.totalorder %v5167, 16
    %vm5200 = vcmp.lt.s32.totalorder %v5168, 16
    %vm5201 = vcmp.lt.s32.totalorder %v5169, 16
    %vm5202 = vcmp.lt.s32.totalorder %v5170, 16
    %vm5203 = vcmp.lt.s32.totalorder %v5171, 16
    %vm5204 = vcmp.lt.s32.totalorder %v5172, 16
    %vm5205 = vcmp.lt.s32.totalorder %v5173, 16
    %vm5206 = vcmp.lt.s32.totalorder %v5174, 16
    %vm5207 = vcmp.lt.s32.totalorder %v5175, 16
    %vm5208 = vcmp.lt.s32.totalorder %v5176, 16
    %vm5209 = vcmp.lt.s32.totalorder %v5177, 16
    %vm5210 = vcmp.lt.s32.totalorder %v5178, 16
    %vm5211 = vcmp.lt.s32.totalorder %v5179, 16
    %vm5212 = vmand %vm5180, %vm5196
    %vm5213 = vmand %vm5181, %vm5197
    %vm5214 = vmand %vm5182, %vm5198
    %vm5215 = vmand %vm5183, %vm5199
    %vm5216 = vmand %vm5184, %vm5200
    %vm5217 = vmand %vm5185, %vm5201
    %vm5218 = vmand %vm5186, %vm5202
    %vm5219 = vmand %vm5187, %vm5203
    %vm5220 = vmand %vm5188, %vm5204
    %vm5221 = vmand %vm5189, %vm5205
    %vm5222 = vmand %vm5190, %vm5206
    %vm5223 = vmand %vm5191, %vm5207
    %vm5224 = vmand %vm5192, %vm5208
    %vm5225 = vmand %vm5193, %vm5209
    %vm5226 = vmand %vm5194, %vm5210
    %vm5227 = vmand %vm5195, %vm5211
    %vm5228 = vmand %vm5212, %vm377
    %vm5229 = vmand %vm5213, %vm378
    %vm5230 = vmand %vm5214, %vm379
    %vm5231 = vmand %vm5215, %vm380
    %vm5232 = vmand %vm5216, %vm381
    %vm5233 = vmand %vm5217, %vm382
    %vm5234 = vmand %vm5218, %vm383
    %vm5235 = vmand %vm5219, %vm384
    %vm5236 = vmand %vm5220, %vm385
    %vm5237 = vmand %vm5221, %vm386
    %vm5238 = vmand %vm5222, %vm387
    %vm5239 = vmand %vm5223, %vm388
    %vm5240 = vmand %vm5224, %vm389
    %vm5241 = vmand %vm5225, %vm390
    %vm5242 = vmand %vm5226, %vm391
    %vm5243 = vmand %vm5227, %vm392
    %vm5244 = vmand %vm5228, %vm409
    %vm5245 = vmand %vm5229, %vm410
    %vm5246 = vmand %vm5230, %vm411
    %vm5247 = vmand %vm5231, %vm412
    %vm5248 = vmand %vm5232, %vm413
    %vm5249 = vmand %vm5233, %vm414
    %vm5250 = vmand %vm5234, %vm415
    %vm5251 = vmand %vm5235, %vm416
    %vm5252 = vmand %vm5236, %vm417
    %vm5253 = vmand %vm5237, %vm418
    %vm5254 = vmand %vm5238, %vm419
    %vm5255 = vmand %vm5239, %vm420
    %vm5256 = vmand %vm5240, %vm421
    %vm5257 = vmand %vm5241, %vm422
    %vm5258 = vmand %vm5242, %vm423
    %vm5259 = vmand %vm5243, %vm424
    %v5260 = vmul.u32 %v5164, 16
    %v5261 = vmul.u32 %v5165, 16
    %v5262 = vmul.u32 %v5166, 16
    %v5263 = vmul.u32 %v5167, 16
    %v5264 = vmul.u32 %v5168, 16
    %v5265 = vmul.u32 %v5169, 16
    %v5266 = vmul.u32 %v5170, 16
    %v5267 = vmul.u32 %v5171, 16
    %v5268 = vmul.u32 %v5172, 16
    %v5269 = vmul.u32 %v5173, 16
    %v5270 = vmul.u32 %v5174, 16
    %v5271 = vmul.u32 %v5175, 16
    %v5272 = vmul.u32 %v5176, 16
    %v5273 = vmul.u32 %v5177, 16
    %v5274 = vmul.u32 %v5178, 16
    %v5275 = vmul.u32 %v5179, 16
    %v5276 = vadd.s32 %v276, %v5260
    %v5277 = vadd.s32 %v277, %v5261
    %v5278 = vadd.s32 %v278, %v5262
    %v5279 = vadd.s32 %v279, %v5263
    %v5280 = vadd.s32 %v280, %v5264
    %v5281 = vadd.s32 %v281, %v5265
    %v5282 = vadd.s32 %v282, %v5266
    %v5283 = vadd.s32 %v283, %v5267
    %v5284 = vadd.s32 %v284, %v5268
    %v5285 = vadd.s32 %v285, %v5269
    %v5286 = vadd.s32 %v286, %v5270
    %v5287 = vadd.s32 %v287, %v5271
    %v5288 = vadd.s32 %v288, %v5272
    %v5289 = vadd.s32 %v289, %v5273
    %v5290 = vadd.s32 %v290, %v5274
    %v5291 = vadd.s32 %v291, %v5275
    %v5292 = vadd.s32 %v5276, %v313
    %v5293 = vadd.s32 %v5277, %v314
    %v5294 = vadd.s32 %v5278, %v315
    %v5295 = vadd.s32 %v5279, %v316
    %v5296 = vadd.s32 %v5280, %v317
    %v5297 = vadd.s32 %v5281, %v318
    %v5298 = vadd.s32 %v5282, %v319
    %v5299 = vadd.s32 %v5283, %v320
    %v5300 = vadd.s32 %v5284, %v321
    %v5301 = vadd.s32 %v5285, %v322
    %v5302 = vadd.s32 %v5286, %v323
    %v5303 = vadd.s32 %v5287, %v324
    %v5304 = vadd.s32 %v5288, %v325
    %v5305 = vadd.s32 %v5289, %v326
    %v5306 = vadd.s32 %v5290, %v327
    %v5307 = vadd.s32 %v5291, %v328
    %5308 = vset.pattern.permute.xlu0 0
    %5309 = vperm.xlu0 %5308, %v5292
    %v5310 = vpop.permute.xlu0 %5309
    %5311 = vset.pattern.permute.xlu0 0
    %5312 = vperm.xlu0 %5311, %v5293
    %v5313 = vpop.permute.xlu0 %5312
    %5314 = vset.pattern.permute.xlu0 0
    %5315 = vperm.xlu0 %5314, %v5294
    %v5316 = vpop.permute.xlu0 %5315
    %5317 = vset.pattern.permute.xlu0 0
    %5318 = vperm.xlu0 %5317, %v5295
    %v5319 = vpop.permute.xlu0 %5318
    %5320 = vset.pattern.permute.xlu0 0
    %5321 = vperm.xlu0 %5320, %v5296
    %v5322 = vpop.permute.xlu0 %5321
    %5323 = vset.pattern.permute.xlu0 0
    %5324 = vperm.xlu0 %5323, %v5297
    %v5325 = vpop.permute.xlu0 %5324
    %5326 = vset.pattern.permute.xlu0 0
    %5327 = vperm.xlu0 %5326, %v5298
    %v5328 = vpop.permute.xlu0 %5327
    %5329 = vset.pattern.permute.xlu0 0
    %5330 = vperm.xlu0 %5329, %v5299
    %v5331 = vpop.permute.xlu0 %5330
    %5332 = vset.pattern.permute.xlu0 0
    %5333 = vperm.xlu0 %5332, %v5300
    %v5334 = vpop.permute.xlu0 %5333
    %5335 = vset.pattern.permute.xlu0 0
    %5336 = vperm.xlu0 %5335, %v5301
    %v5337 = vpop.permute.xlu0 %5336
    %5338 = vset.pattern.permute.xlu0 0
    %5339 = vperm.xlu0 %5338, %v5302
    %v5340 = vpop.permute.xlu0 %5339
    %5341 = vset.pattern.permute.xlu0 0
    %5342 = vperm.xlu0 %5341, %v5303
    %v5343 = vpop.permute.xlu0 %5342
    %5344 = vset.pattern.permute.xlu0 0
    %5345 = vperm.xlu0 %5344, %v5304
    %v5346 = vpop.permute.xlu0 %5345
    %5347 = vset.pattern.permute.xlu0 0
    %5348 = vperm.xlu0 %5347, %v5305
    %v5349 = vpop.permute.xlu0 %5348
    %5350 = vset.pattern.permute.xlu0 0
    %5351 = vperm.xlu0 %5350, %v5306
    %v5352 = vpop.permute.xlu0 %5351
    %5353 = vset.pattern.permute.xlu0 0
    %5354 = vperm.xlu0 %5353, %v5307
    %v5355 = vpop.permute.xlu0 %5354
    %vm5356 = vcmp.eq.s32.totalorder %v293, %v5310
    %vm5357 = vcmp.eq.s32.totalorder %v294, %v5310
    %vm5358 = vcmp.eq.s32.totalorder %v295, %v5310
    %vm5359 = vcmp.eq.s32.totalorder %v296, %v5310
    %vm5360 = vcmp.eq.s32.totalorder %v293, %v5313
    %vm5361 = vcmp.eq.s32.totalorder %v294, %v5313
    %vm5362 = vcmp.eq.s32.totalorder %v295, %v5313
    %vm5363 = vcmp.eq.s32.totalorder %v296, %v5313
    %vm5364 = vcmp.eq.s32.totalorder %v293, %v5316
    %vm5365 = vcmp.eq.s32.totalorder %v294, %v5316
    %vm5366 = vcmp.eq.s32.totalorder %v295, %v5316
    %vm5367 = vcmp.eq.s32.totalorder %v296, %v5316
    %vm5368 = vcmp.eq.s32.totalorder %v293, %v5319
    %vm5369 = vcmp.eq.s32.totalorder %v294, %v5319
    %vm5370 = vcmp.eq.s32.totalorder %v295, %v5319
    %vm5371 = vcmp.eq.s32.totalorder %v296, %v5319
    %vm5372 = vcmp.eq.s32.totalorder %v293, %v5322
    %vm5373 = vcmp.eq.s32.totalorder %v294, %v5322
    %vm5374 = vcmp.eq.s32.totalorder %v295, %v5322
    %vm5375 = vcmp.eq.s32.totalorder %v296, %v5322
    %vm5376 = vcmp.eq.s32.totalorder %v293, %v5325
    %vm5377 = vcmp.eq.s32.totalorder %v294, %v5325
    %vm5378 = vcmp.eq.s32.totalorder %v295, %v5325
    %vm5379 = vcmp.eq.s32.totalorder %v296, %v5325
    %vm5380 = vcmp.eq.s32.totalorder %v293, %v5328
    %vm5381 = vcmp.eq.s32.totalorder %v294, %v5328
    %vm5382 = vcmp.eq.s32.totalorder %v295, %v5328
    %vm5383 = vcmp.eq.s32.totalorder %v296, %v5328
    %vm5384 = vcmp.eq.s32.totalorder %v293, %v5331
    %vm5385 = vcmp.eq.s32.totalorder %v294, %v5331
    %vm5386 = vcmp.eq.s32.totalorder %v295, %v5331
    %vm5387 = vcmp.eq.s32.totalorder %v296, %v5331
    %vm5388 = vcmp.eq.s32.totalorder %v293, %v5334
    %vm5389 = vcmp.eq.s32.totalorder %v294, %v5334
    %vm5390 = vcmp.eq.s32.totalorder %v295, %v5334
    %vm5391 = vcmp.eq.s32.totalorder %v296, %v5334
    %vm5392 = vcmp.eq.s32.totalorder %v293, %v5337
    %vm5393 = vcmp.eq.s32.totalorder %v294, %v5337
    %vm5394 = vcmp.eq.s32.totalorder %v295, %v5337
    %vm5395 = vcmp.eq.s32.totalorder %v296, %v5337
    %vm5396 = vcmp.eq.s32.totalorder %v293, %v5340
    %vm5397 = vcmp.eq.s32.totalorder %v294, %v5340
    %vm5398 = vcmp.eq.s32.totalorder %v295, %v5340
    %vm5399 = vcmp.eq.s32.totalorder %v296, %v5340
    %vm5400 = vcmp.eq.s32.totalorder %v293, %v5343
    %vm5401 = vcmp.eq.s32.totalorder %v294, %v5343
    %vm5402 = vcmp.eq.s32.totalorder %v295, %v5343
    %vm5403 = vcmp.eq.s32.totalorder %v296, %v5343
    %vm5404 = vcmp.eq.s32.totalorder %v293, %v5346
    %vm5405 = vcmp.eq.s32.totalorder %v294, %v5346
    %vm5406 = vcmp.eq.s32.totalorder %v295, %v5346
    %vm5407 = vcmp.eq.s32.totalorder %v296, %v5346
    %vm5408 = vcmp.eq.s32.totalorder %v293, %v5349
    %vm5409 = vcmp.eq.s32.totalorder %v294, %v5349
    %vm5410 = vcmp.eq.s32.totalorder %v295, %v5349
    %vm5411 = vcmp.eq.s32.totalorder %v296, %v5349
    %vm5412 = vcmp.eq.s32.totalorder %v293, %v5352
    %vm5413 = vcmp.eq.s32.totalorder %v294, %v5352
    %vm5414 = vcmp.eq.s32.totalorder %v295, %v5352
    %vm5415 = vcmp.eq.s32.totalorder %v296, %v5352
    %vm5416 = vcmp.eq.s32.totalorder %v293, %v5355
    %vm5417 = vcmp.eq.s32.totalorder %v294, %v5355
    %vm5418 = vcmp.eq.s32.totalorder %v295, %v5355
    %vm5419 = vcmp.eq.s32.totalorder %v296, %v5355
    %v5420 = vsel %vm5244, 1, 0
    %v5421 = vsel %vm5245, 1, 0
    %v5422 = vsel %vm5246, 1, 0
    %v5423 = vsel %vm5247, 1, 0
    %v5424 = vsel %vm5248, 1, 0
    %v5425 = vsel %vm5249, 1, 0
    %v5426 = vsel %vm5250, 1, 0
    %v5427 = vsel %vm5251, 1, 0
    %v5428 = vsel %vm5252, 1, 0
    %v5429 = vsel %vm5253, 1, 0
    %v5430 = vsel %vm5254, 1, 0
    %v5431 = vsel %vm5255, 1, 0
    %v5432 = vsel %vm5256, 1, 0
    %v5433 = vsel %vm5257, 1, 0
    %v5434 = vsel %vm5258, 1, 0
    %v5435 = vsel %vm5259, 1, 0
    %5436 = vset.pattern.permute.xlu0 0
    %5437 = vperm.xlu0 %5436, %v5420
    %v5438 = vpop.permute.xlu0 %5437
    %5439 = vset.pattern.permute.xlu0 0
    %5440 = vperm.xlu0 %5439, %v5421
    %v5441 = vpop.permute.xlu0 %5440
    %5442 = vset.pattern.permute.xlu0 0
    %5443 = vperm.xlu0 %5442, %v5422
    %v5444 = vpop.permute.xlu0 %5443
    %5445 = vset.pattern.permute.xlu0 0
    %5446 = vperm.xlu0 %5445, %v5423
    %v5447 = vpop.permute.xlu0 %5446
    %5448 = vset.pattern.permute.xlu0 0
    %5449 = vperm.xlu0 %5448, %v5424
    %v5450 = vpop.permute.xlu0 %5449
    %5451 = vset.pattern.permute.xlu0 0
    %5452 = vperm.xlu0 %5451, %v5425
    %v5453 = vpop.permute.xlu0 %5452
    %5454 = vset.pattern.permute.xlu0 0
    %5455 = vperm.xlu0 %5454, %v5426
    %v5456 = vpop.permute.xlu0 %5455
    %5457 = vset.pattern.permute.xlu0 0
    %5458 = vperm.xlu0 %5457, %v5427
    %v5459 = vpop.permute.xlu0 %5458
    %5460 = vset.pattern.permute.xlu0 0
    %5461 = vperm.xlu0 %5460, %v5428
    %v5462 = vpop.permute.xlu0 %5461
    %5463 = vset.pattern.permute.xlu0 0
    %5464 = vperm.xlu0 %5463, %v5429
    %v5465 = vpop.permute.xlu0 %5464
    %5466 = vset.pattern.permute.xlu0 0
    %5467 = vperm.xlu0 %5466, %v5430
    %v5468 = vpop.permute.xlu0 %5467
    %5469 = vset.pattern.permute.xlu0 0
    %5470 = vperm.xlu0 %5469, %v5431
    %v5471 = vpop.permute.xlu0 %5470
    %5472 = vset.pattern.permute.xlu0 0
    %5473 = vperm.xlu0 %5472, %v5432
    %v5474 = vpop.permute.xlu0 %5473
    %5475 = vset.pattern.permute.xlu0 0
    %5476 = vperm.xlu0 %5475, %v5433
    %v5477 = vpop.permute.xlu0 %5476
    %5478 = vset.pattern.permute.xlu0 0
    %5479 = vperm.xlu0 %5478, %v5434
    %v5480 = vpop.permute.xlu0 %5479
    %5481 = vset.pattern.permute.xlu0 0
    %5482 = vperm.xlu0 %5481, %v5435
    %v5483 = vpop.permute.xlu0 %5482
    %vm5484 = vcmp.eq.s32.totalorder %v5438, 1
    %vm5485 = vcmp.eq.s32.totalorder %v5441, 1
    %vm5486 = vcmp.eq.s32.totalorder %v5444, 1
    %vm5487 = vcmp.eq.s32.totalorder %v5447, 1
    %vm5488 = vcmp.eq.s32.totalorder %v5450, 1
    %vm5489 = vcmp.eq.s32.totalorder %v5453, 1
    %vm5490 = vcmp.eq.s32.totalorder %v5456, 1
    %vm5491 = vcmp.eq.s32.totalorder %v5459, 1
    %vm5492 = vcmp.eq.s32.totalorder %v5462, 1
    %vm5493 = vcmp.eq.s32.totalorder %v5465, 1
    %vm5494 = vcmp.eq.s32.totalorder %v5468, 1
    %vm5495 = vcmp.eq.s32.totalorder %v5471, 1
    %vm5496 = vcmp.eq.s32.totalorder %v5474, 1
    %vm5497 = vcmp.eq.s32.totalorder %v5477, 1
    %vm5498 = vcmp.eq.s32.totalorder %v5480, 1
    %vm5499 = vcmp.eq.s32.totalorder %v5483, 1
    %vm5500 = vmand %vm5356, %vm5484
    %vm5501 = vmand %vm5357, %vm5484
    %vm5502 = vmand %vm5358, %vm5484
    %vm5503 = vmand %vm5359, %vm5484
    %vm5504 = vmand %vm5360, %vm5485
    %vm5505 = vmand %vm5361, %vm5485
    %vm5506 = vmand %vm5362, %vm5485
    %vm5507 = vmand %vm5363, %vm5485
    %vm5508 = vmand %vm5364, %vm5486
    %vm5509 = vmand %vm5365, %vm5486
    %vm5510 = vmand %vm5366, %vm5486
    %vm5511 = vmand %vm5367, %vm5486
    %vm5512 = vmand %vm5368, %vm5487
    %vm5513 = vmand %vm5369, %vm5487
    %vm5514 = vmand %vm5370, %vm5487
    %vm5515 = vmand %vm5371, %vm5487
    %vm5516 = vmand %vm5372, %vm5488
    %vm5517 = vmand %vm5373, %vm5488
    %vm5518 = vmand %vm5374, %vm5488
    %vm5519 = vmand %vm5375, %vm5488
    %vm5520 = vmand %vm5376, %vm5489
    %vm5521 = vmand %vm5377, %vm5489
    %vm5522 = vmand %vm5378, %vm5489
    %vm5523 = vmand %vm5379, %vm5489
    %vm5524 = vmand %vm5380, %vm5490
    %vm5525 = vmand %vm5381, %vm5490
    %vm5526 = vmand %vm5382, %vm5490
    %vm5527 = vmand %vm5383, %vm5490
    %vm5528 = vmand %vm5384, %vm5491
    %vm5529 = vmand %vm5385, %vm5491
    %vm5530 = vmand %vm5386, %vm5491
    %vm5531 = vmand %vm5387, %vm5491
    %vm5532 = vmand %vm5388, %vm5492
    %vm5533 = vmand %vm5389, %vm5492
    %vm5534 = vmand %vm5390, %vm5492
    %vm5535 = vmand %vm5391, %vm5492
    %vm5536 = vmand %vm5392, %vm5493
    %vm5537 = vmand %vm5393, %vm5493
    %vm5538 = vmand %vm5394, %vm5493
    %vm5539 = vmand %vm5395, %vm5493
    %vm5540 = vmand %vm5396, %vm5494
    %vm5541 = vmand %vm5397, %vm5494
    %vm5542 = vmand %vm5398, %vm5494
    %vm5543 = vmand %vm5399, %vm5494
    %vm5544 = vmand %vm5400, %vm5495
    %vm5545 = vmand %vm5401, %vm5495
    %vm5546 = vmand %vm5402, %vm5495
    %vm5547 = vmand %vm5403, %vm5495
    %vm5548 = vmand %vm5404, %vm5496
    %vm5549 = vmand %vm5405, %vm5496
    %vm5550 = vmand %vm5406, %vm5496
    %vm5551 = vmand %vm5407, %vm5496
    %vm5552 = vmand %vm5408, %vm5497
    %vm5553 = vmand %vm5409, %vm5497
    %vm5554 = vmand %vm5410, %vm5497
    %vm5555 = vmand %vm5411, %vm5497
    %vm5556 = vmand %vm5412, %vm5498
    %vm5557 = vmand %vm5413, %vm5498
    %vm5558 = vmand %vm5414, %vm5498
    %vm5559 = vmand %vm5415, %vm5498
    %vm5560 = vmand %vm5416, %vm5499
    %vm5561 = vmand %vm5417, %vm5499
    %vm5562 = vmand %vm5418, %vm5499
    %vm5563 = vmand %vm5419, %vm5499
    %v5564 = vsel %vm5500, 1.0, 0.0
    %v5565 = vsel %vm5501, 1.0, 0.0
    %v5566 = vsel %vm5502, 1.0, 0.0
    %v5567 = vsel %vm5503, 1.0, 0.0
    %v5568 = vsel %vm5504, 1.0, 0.0
    %v5569 = vsel %vm5505, 1.0, 0.0
    %v5570 = vsel %vm5506, 1.0, 0.0
    %v5571 = vsel %vm5507, 1.0, 0.0
    %v5572 = vsel %vm5508, 1.0, 0.0
    %v5573 = vsel %vm5509, 1.0, 0.0
    %v5574 = vsel %vm5510, 1.0, 0.0
    %v5575 = vsel %vm5511, 1.0, 0.0
    %v5576 = vsel %vm5512, 1.0, 0.0
    %v5577 = vsel %vm5513, 1.0, 0.0
    %v5578 = vsel %vm5514, 1.0, 0.0
    %v5579 = vsel %vm5515, 1.0, 0.0
    %v5580 = vsel %vm5516, 1.0, 0.0
    %v5581 = vsel %vm5517, 1.0, 0.0
    %v5582 = vsel %vm5518, 1.0, 0.0
    %v5583 = vsel %vm5519, 1.0, 0.0
    %v5584 = vsel %vm5520, 1.0, 0.0
    %v5585 = vsel %vm5521, 1.0, 0.0
    %v5586 = vsel %vm5522, 1.0, 0.0
    %v5587 = vsel %vm5523, 1.0, 0.0
    %v5588 = vsel %vm5524, 1.0, 0.0
    %v5589 = vsel %vm5525, 1.0, 0.0
    %v5590 = vsel %vm5526, 1.0, 0.0
    %v5591 = vsel %vm5527, 1.0, 0.0
    %v5592 = vsel %vm5528, 1.0, 0.0
    %v5593 = vsel %vm5529, 1.0, 0.0
    %v5594 = vsel %vm5530, 1.0, 0.0
    %v5595 = vsel %vm5531, 1.0, 0.0
    %v5596 = vsel %vm5532, 1.0, 0.0
    %v5597 = vsel %vm5533, 1.0, 0.0
    %v5598 = vsel %vm5534, 1.0, 0.0
    %v5599 = vsel %vm5535, 1.0, 0.0
    %v5600 = vsel %vm5536, 1.0, 0.0
    %v5601 = vsel %vm5537, 1.0, 0.0
    %v5602 = vsel %vm5538, 1.0, 0.0
    %v5603 = vsel %vm5539, 1.0, 0.0
    %v5604 = vsel %vm5540, 1.0, 0.0
    %v5605 = vsel %vm5541, 1.0, 0.0
    %v5606 = vsel %vm5542, 1.0, 0.0
    %v5607 = vsel %vm5543, 1.0, 0.0
    %v5608 = vsel %vm5544, 1.0, 0.0
    %v5609 = vsel %vm5545, 1.0, 0.0
    %v5610 = vsel %vm5546, 1.0, 0.0
    %v5611 = vsel %vm5547, 1.0, 0.0
    %v5612 = vsel %vm5548, 1.0, 0.0
    %v5613 = vsel %vm5549, 1.0, 0.0
    %v5614 = vsel %vm5550, 1.0, 0.0
    %v5615 = vsel %vm5551, 1.0, 0.0
    %v5616 = vsel %vm5552, 1.0, 0.0
    %v5617 = vsel %vm5553, 1.0, 0.0
    %v5618 = vsel %vm5554, 1.0, 0.0
    %v5619 = vsel %vm5555, 1.0, 0.0
    %v5620 = vsel %vm5556, 1.0, 0.0
    %v5621 = vsel %vm5557, 1.0, 0.0
    %v5622 = vsel %vm5558, 1.0, 0.0
    %v5623 = vsel %vm5559, 1.0, 0.0
    %v5624 = vsel %vm5560, 1.0, 0.0
    %v5625 = vsel %vm5561, 1.0, 0.0
    %v5626 = vsel %vm5562, 1.0, 0.0
    %v5627 = vsel %vm5563, 1.0, 0.0
    %v5628 = vpack.c.bf16 %v5568, %v5564
    %v5629 = vpack.c.bf16 %v5569, %v5565
    %v5630 = vpack.c.bf16 %v5570, %v5566
    %v5631 = vpack.c.bf16 %v5571, %v5567
    %v5632 = vpack.c.bf16 %v5576, %v5572
    %v5633 = vpack.c.bf16 %v5577, %v5573
    %v5634 = vpack.c.bf16 %v5578, %v5574
    %v5635 = vpack.c.bf16 %v5579, %v5575
    %v5636 = vpack.c.bf16 %v5584, %v5580
    %v5637 = vpack.c.bf16 %v5585, %v5581
    %v5638 = vpack.c.bf16 %v5586, %v5582
    %v5639 = vpack.c.bf16 %v5587, %v5583
    %v5640 = vpack.c.bf16 %v5592, %v5588
    %v5641 = vpack.c.bf16 %v5593, %v5589
    %v5642 = vpack.c.bf16 %v5594, %v5590
    %v5643 = vpack.c.bf16 %v5595, %v5591
    %v5644 = vpack.c.bf16 %v5600, %v5596
    %v5645 = vpack.c.bf16 %v5601, %v5597
    %v5646 = vpack.c.bf16 %v5602, %v5598
    %v5647 = vpack.c.bf16 %v5603, %v5599
    %v5648 = vpack.c.bf16 %v5608, %v5604
    %v5649 = vpack.c.bf16 %v5609, %v5605
    %v5650 = vpack.c.bf16 %v5610, %v5606
    %v5651 = vpack.c.bf16 %v5611, %v5607
    %v5652 = vpack.c.bf16 %v5616, %v5612
    %v5653 = vpack.c.bf16 %v5617, %v5613
    %v5654 = vpack.c.bf16 %v5618, %v5614
    %v5655 = vpack.c.bf16 %v5619, %v5615
    %v5656 = vpack.c.bf16 %v5624, %v5620
    %v5657 = vpack.c.bf16 %v5625, %v5621
    %v5658 = vpack.c.bf16 %v5626, %v5622
    %v5659 = vpack.c.bf16 %v5627, %v5623
    %5660 = vmatpush.bf16.msra.mxu0 %v976
    %5661 = vmatpush.bf16.msra.mxu0 %v975
    %5662 = vmatpush.bf16.msra.mxu0 %v974
    %5663 = vmatpush.bf16.msra.mxu0 %v973
    %5664 = vmatpush.bf16.msra.mxu0 %v972
    %5665 = vmatpush.bf16.msra.mxu0 %v971
    %5666 = vmatpush.bf16.msra.mxu0 %v970
    %5667 = vmatpush.bf16.msra.mxu0 %v969
    %5668 = vmatmul.bf16.gmra.mxu0 %v5628
    %v5669 = vpop.f32.mrf.mxu0
    %v5670 = vadd.f32 0.0, %v5669
    %v5671 = vpop.f32.mrf.mxu0
    %v5672 = vadd.f32 0.0, %v5671
    %5673 = vmatmul.bf16.gmra.mxu0 %v5632
    %v5674 = vpop.f32.mrf.mxu0
    %v5675 = vadd.f32 0.0, %v5674
    %v5676 = vpop.f32.mrf.mxu0
    %v5677 = vadd.f32 0.0, %v5676
    %5678 = vmatmul.bf16.gmra.mxu0 %v5636
    %v5679 = vpop.f32.mrf.mxu0
    %v5680 = vadd.f32 0.0, %v5679
    %v5681 = vpop.f32.mrf.mxu0
    %v5682 = vadd.f32 0.0, %v5681
    %5683 = vmatmul.bf16.gmra.mxu0 %v5640
    %v5684 = vpop.f32.mrf.mxu0
    %v5685 = vadd.f32 0.0, %v5684
    %v5686 = vpop.f32.mrf.mxu0
    %v5687 = vadd.f32 0.0, %v5686
    %5688 = vmatmul.bf16.gmra.mxu0 %v5644
    %v5689 = vpop.f32.mrf.mxu0
    %v5690 = vadd.f32 0.0, %v5689
    %v5691 = vpop.f32.mrf.mxu0
    %v5692 = vadd.f32 0.0, %v5691
    %5693 = vmatmul.bf16.gmra.mxu0 %v5648
    %v5694 = vpop.f32.mrf.mxu0
    %v5695 = vadd.f32 0.0, %v5694
    %v5696 = vpop.f32.mrf.mxu0
    %v5697 = vadd.f32 0.0, %v5696
    %5698 = vmatmul.bf16.gmra.mxu0 %v5652
    %v5699 = vpop.f32.mrf.mxu0
    %v5700 = vadd.f32 0.0, %v5699
    %v5701 = vpop.f32.mrf.mxu0
    %v5702 = vadd.f32 0.0, %v5701
    %5703 = vmatmul.bf16.gmra.mxu0 %v5656
    %v5704 = vpop.f32.mrf.mxu0
    %v5705 = vadd.f32 0.0, %v5704
    %v5706 = vpop.f32.mrf.mxu0
    %v5707 = vadd.f32 0.0, %v5706
    %5708 = vdwg.mxu0
    %5709 = vmatpush.bf16.msra.mxu0 %v984
    %5710 = vmatpush.bf16.msra.mxu0 %v983
    %5711 = vmatpush.bf16.msra.mxu0 %v982
    %5712 = vmatpush.bf16.msra.mxu0 %v981
    %5713 = vmatpush.bf16.msra.mxu0 %v980
    %5714 = vmatpush.bf16.msra.mxu0 %v979
    %5715 = vmatpush.bf16.msra.mxu0 %v978
    %5716 = vmatpush.bf16.msra.mxu0 %v977
    %5717 = vmatmul.bf16.gmra.mxu0 %v5629
    %v5718 = vpop.f32.mrf.mxu0
    %v5719 = vadd.f32 %v5670, %v5718
    %v5720 = vpop.f32.mrf.mxu0
    %v5721 = vadd.f32 %v5672, %v5720
    %5722 = vmatmul.bf16.gmra.mxu0 %v5633
    %v5723 = vpop.f32.mrf.mxu0
    %v5724 = vadd.f32 %v5675, %v5723
    %v5725 = vpop.f32.mrf.mxu0
    %v5726 = vadd.f32 %v5677, %v5725
    %5727 = vmatmul.bf16.gmra.mxu0 %v5637
    %v5728 = vpop.f32.mrf.mxu0
    %v5729 = vadd.f32 %v5680, %v5728
    %v5730 = vpop.f32.mrf.mxu0
    %v5731 = vadd.f32 %v5682, %v5730
    %5732 = vmatmul.bf16.gmra.mxu0 %v5641
    %v5733 = vpop.f32.mrf.mxu0
    %v5734 = vadd.f32 %v5685, %v5733
    %v5735 = vpop.f32.mrf.mxu0
    %v5736 = vadd.f32 %v5687, %v5735
    %5737 = vmatmul.bf16.gmra.mxu0 %v5645
    %v5738 = vpop.f32.mrf.mxu0
    %v5739 = vadd.f32 %v5690, %v5738
    %v5740 = vpop.f32.mrf.mxu0
    %v5741 = vadd.f32 %v5692, %v5740
    %5742 = vmatmul.bf16.gmra.mxu0 %v5649
    %v5743 = vpop.f32.mrf.mxu0
    %v5744 = vadd.f32 %v5695, %v5743
    %v5745 = vpop.f32.mrf.mxu0
    %v5746 = vadd.f32 %v5697, %v5745
    %5747 = vmatmul.bf16.gmra.mxu0 %v5653
    %v5748 = vpop.f32.mrf.mxu0
    %v5749 = vadd.f32 %v5700, %v5748
    %v5750 = vpop.f32.mrf.mxu0
    %v5751 = vadd.f32 %v5702, %v5750
    %5752 = vmatmul.bf16.gmra.mxu0 %v5657
    %v5753 = vpop.f32.mrf.mxu0
    %v5754 = vadd.f32 %v5705, %v5753
    %v5755 = vpop.f32.mrf.mxu0
    %v5756 = vadd.f32 %v5707, %v5755
    %5757 = vdwg.mxu0
    %5758 = vmatpush.bf16.msra.mxu0 %v992
    %5759 = vmatpush.bf16.msra.mxu0 %v991
    %5760 = vmatpush.bf16.msra.mxu0 %v990
    %5761 = vmatpush.bf16.msra.mxu0 %v989
    %5762 = vmatpush.bf16.msra.mxu0 %v988
    %5763 = vmatpush.bf16.msra.mxu0 %v987
    %5764 = vmatpush.bf16.msra.mxu0 %v986
    %5765 = vmatpush.bf16.msra.mxu0 %v985
    %5766 = vmatmul.bf16.gmra.mxu0 %v5630
    %v5767 = vpop.f32.mrf.mxu0
    %v5768 = vadd.f32 %v5719, %v5767
    %v5769 = vpop.f32.mrf.mxu0
    %v5770 = vadd.f32 %v5721, %v5769
    %5771 = vmatmul.bf16.gmra.mxu0 %v5634
    %v5772 = vpop.f32.mrf.mxu0
    %v5773 = vadd.f32 %v5724, %v5772
    %v5774 = vpop.f32.mrf.mxu0
    %v5775 = vadd.f32 %v5726, %v5774
    %5776 = vmatmul.bf16.gmra.mxu0 %v5638
    %v5777 = vpop.f32.mrf.mxu0
    %v5778 = vadd.f32 %v5729, %v5777
    %v5779 = vpop.f32.mrf.mxu0
    %v5780 = vadd.f32 %v5731, %v5779
    %5781 = vmatmul.bf16.gmra.mxu0 %v5642
    %v5782 = vpop.f32.mrf.mxu0
    %v5783 = vadd.f32 %v5734, %v5782
    %v5784 = vpop.f32.mrf.mxu0
    %v5785 = vadd.f32 %v5736, %v5784
    %5786 = vmatmul.bf16.gmra.mxu0 %v5646
    %v5787 = vpop.f32.mrf.mxu0
    %v5788 = vadd.f32 %v5739, %v5787
    %v5789 = vpop.f32.mrf.mxu0
    %v5790 = vadd.f32 %v5741, %v5789
    %5791 = vmatmul.bf16.gmra.mxu0 %v5650
    %v5792 = vpop.f32.mrf.mxu0
    %v5793 = vadd.f32 %v5744, %v5792
    %v5794 = vpop.f32.mrf.mxu0
    %v5795 = vadd.f32 %v5746, %v5794
    %5796 = vmatmul.bf16.gmra.mxu0 %v5654
    %v5797 = vpop.f32.mrf.mxu0
    %v5798 = vadd.f32 %v5749, %v5797
    %v5799 = vpop.f32.mrf.mxu0
    %v5800 = vadd.f32 %v5751, %v5799
    %5801 = vmatmul.bf16.gmra.mxu0 %v5658
    %v5802 = vpop.f32.mrf.mxu0
    %v5803 = vadd.f32 %v5754, %v5802
    %v5804 = vpop.f32.mrf.mxu0
    %v5805 = vadd.f32 %v5756, %v5804
    %5806 = vdwg.mxu0
    %5807 = vmatpush.bf16.msra.mxu0 %v1000
    %5808 = vmatpush.bf16.msra.mxu0 %v999
    %5809 = vmatpush.bf16.msra.mxu0 %v998
    %5810 = vmatpush.bf16.msra.mxu0 %v997
    %5811 = vmatpush.bf16.msra.mxu0 %v996
    %5812 = vmatpush.bf16.msra.mxu0 %v995
    %5813 = vmatpush.bf16.msra.mxu0 %v994
    %5814 = vmatpush.bf16.msra.mxu0 %v993
    %5815 = vmatmul.bf16.gmra.mxu0 %v5631
    %v5816 = vpop.f32.mrf.mxu0
    %v5817 = vadd.f32 %v5768, %v5816
    %v5818 = vpop.f32.mrf.mxu0
    %v5819 = vadd.f32 %v5770, %v5818
    %5820 = vmatmul.bf16.gmra.mxu0 %v5635
    %v5821 = vpop.f32.mrf.mxu0
    %v5822 = vadd.f32 %v5773, %v5821
    %v5823 = vpop.f32.mrf.mxu0
    %v5824 = vadd.f32 %v5775, %v5823
    %5825 = vmatmul.bf16.gmra.mxu0 %v5639
    %v5826 = vpop.f32.mrf.mxu0
    %v5827 = vadd.f32 %v5778, %v5826
    %v5828 = vpop.f32.mrf.mxu0
    %v5829 = vadd.f32 %v5780, %v5828
    %5830 = vmatmul.bf16.gmra.mxu0 %v5643
    %v5831 = vpop.f32.mrf.mxu0
    %v5832 = vadd.f32 %v5783, %v5831
    %v5833 = vpop.f32.mrf.mxu0
    %v5834 = vadd.f32 %v5785, %v5833
    %5835 = vmatmul.bf16.gmra.mxu0 %v5647
    %v5836 = vpop.f32.mrf.mxu0
    %v5837 = vadd.f32 %v5788, %v5836
    %v5838 = vpop.f32.mrf.mxu0
    %v5839 = vadd.f32 %v5790, %v5838
    %5840 = vmatmul.bf16.gmra.mxu0 %v5651
    %v5841 = vpop.f32.mrf.mxu0
    %v5842 = vadd.f32 %v5793, %v5841
    %v5843 = vpop.f32.mrf.mxu0
    %v5844 = vadd.f32 %v5795, %v5843
    %5845 = vmatmul.bf16.gmra.mxu0 %v5655
    %v5846 = vpop.f32.mrf.mxu0
    %v5847 = vadd.f32 %v5798, %v5846
    %v5848 = vpop.f32.mrf.mxu0
    %v5849 = vadd.f32 %v5800, %v5848
    %5850 = vmatmul.bf16.gmra.mxu0 %v5659
    %v5851 = vpop.f32.mrf.mxu0
    %v5852 = vadd.f32 %v5803, %v5851
    %v5853 = vpop.f32.mrf.mxu0
    %v5854 = vadd.f32 %v5805, %v5853
    %5855 = vdwg.mxu0
    %v5856 = vpack.c.bf16 %v5819, %v5817
    %v5857 = vpack.c.bf16 %v5824, %v5822
    %v5858 = vpack.c.bf16 %v5829, %v5827
    %v5859 = vpack.c.bf16 %v5834, %v5832
    %v5860 = vpack.c.bf16 %v5839, %v5837
    %v5861 = vpack.c.bf16 %v5844, %v5842
    %v5862 = vpack.c.bf16 %v5849, %v5847
    %v5863 = vpack.c.bf16 %v5854, %v5852
    %s5864 = scalar_lea.vmem %s4, 384
    %v5865 = vld [vmem:[%s5864] sm:$0xf]
    %v5866 = vld [vmem:[%s5864 + $0x4] sm:$0xf]
    %v5867 = vld [vmem:[%s5864 + $0x8] sm:$0xf]
    %v5868 = vld [vmem:[%s5864 + $0xc] sm:$0xf]
    %v5869 = vld [vmem:[%s5864 + $0x10] sm:$0xf]
    %v5870 = vld [vmem:[%s5864 + $0x14] sm:$0xf]
    %v5871 = vld [vmem:[%s5864 + $0x18] sm:$0xf]
    %v5872 = vld [vmem:[%s5864 + $0x1c] sm:$0xf]
    %v5873 = vld [vmem:[%s5864 + $0x20] sm:$0xf]
    %v5874 = vld [vmem:[%s5864 + $0x24] sm:$0xf]
    %v5875 = vld [vmem:[%s5864 + $0x28] sm:$0xf]
    %v5876 = vld [vmem:[%s5864 + $0x2c] sm:$0xf]
    %v5877 = vld [vmem:[%s5864 + $0x30] sm:$0xf]
    %v5878 = vld [vmem:[%s5864 + $0x34] sm:$0xf]
    %v5879 = vld [vmem:[%s5864 + $0x38] sm:$0xf]
    %v5880 = vld [vmem:[%s5864 + $0x3c] sm:$0xf]
    %v5897 = vunpack.c.l.b16 %v5865
    %v5898 = vunpack.c.l.b16 %v5866
    %v5899 = vunpack.c.l.b16 %v5867
    %v5900 = vunpack.c.l.b16 %v5868
    %v5901 = vunpack.c.l.b16 %v5869
    %v5902 = vunpack.c.l.b16 %v5870
    %v5903 = vunpack.c.l.b16 %v5871
    %v5904 = vunpack.c.l.b16 %v5872
    %v5905 = vunpack.c.l.b16 %v5873
    %v5906 = vunpack.c.l.b16 %v5874
    %v5907 = vunpack.c.l.b16 %v5875
    %v5908 = vunpack.c.l.b16 %v5876
    %v5909 = vunpack.c.l.b16 %v5877
    %v5910 = vunpack.c.l.b16 %v5878
    %v5911 = vunpack.c.l.b16 %v5879
    %v5912 = vunpack.c.l.b16 %v5880
    %v5913 = vpack.c.b16 %v5898, %v5897
    %v5914 = vpack.c.b16 %v5900, %v5899
    %v5915 = vpack.c.b16 %v5902, %v5901
    %v5916 = vpack.c.b16 %v5904, %v5903
    %v5917 = vpack.c.b16 %v5906, %v5905
    %v5918 = vpack.c.b16 %v5908, %v5907
    %v5919 = vpack.c.b16 %v5910, %v5909
    %v5920 = vpack.c.b16 %v5912, %v5911
    %5929 = vmatpush.bf16.msra.mxu0 %v5920
    %5930 = vmatpush.bf16.msra.mxu0 %v5919
    %5931 = vmatpush.bf16.msra.mxu0 %v5918
    %5932 = vmatpush.bf16.msra.mxu0 %v5917
    %5933 = vmatpush.bf16.msra.mxu0 %v5916
    %5934 = vmatpush.bf16.msra.mxu0 %v5915
    %5935 = vmatpush.bf16.msra.mxu0 %v5914
    %5936 = vmatpush.bf16.msra.mxu0 %v5913
    %5937 = vmatmul.bf16.gmra.mxu0 %v5856
    %v5938 = vpop.f32.mrf.mxu0
    %v5939 = vadd.f32 0.0, %v5938
    %v5940 = vpop.f32.mrf.mxu0
    %v5941 = vadd.f32 0.0, %v5940
    %5942 = vmatmul.bf16.gmra.mxu0 %v5857
    %v5943 = vpop.f32.mrf.mxu0
    %v5944 = vadd.f32 0.0, %v5943
    %v5945 = vpop.f32.mrf.mxu0
    %v5946 = vadd.f32 0.0, %v5945
    %5947 = vmatmul.bf16.gmra.mxu0 %v5858
    %v5948 = vpop.f32.mrf.mxu0
    %v5949 = vadd.f32 0.0, %v5948
    %v5950 = vpop.f32.mrf.mxu0
    %v5951 = vadd.f32 0.0, %v5950
    %5952 = vmatmul.bf16.gmra.mxu0 %v5859
    %v5953 = vpop.f32.mrf.mxu0
    %v5954 = vadd.f32 0.0, %v5953
    %v5955 = vpop.f32.mrf.mxu0
    %v5956 = vadd.f32 0.0, %v5955
    %5957 = vmatmul.bf16.gmra.mxu0 %v5860
    %v5958 = vpop.f32.mrf.mxu0
    %v5959 = vadd.f32 0.0, %v5958
    %v5960 = vpop.f32.mrf.mxu0
    %v5961 = vadd.f32 0.0, %v5960
    %5962 = vmatmul.bf16.gmra.mxu0 %v5861
    %v5963 = vpop.f32.mrf.mxu0
    %v5964 = vadd.f32 0.0, %v5963
    %v5965 = vpop.f32.mrf.mxu0
    %v5966 = vadd.f32 0.0, %v5965
    %5967 = vmatmul.bf16.gmra.mxu0 %v5862
    %v5968 = vpop.f32.mrf.mxu0
    %v5969 = vadd.f32 0.0, %v5968
    %v5970 = vpop.f32.mrf.mxu0
    %v5971 = vadd.f32 0.0, %v5970
    %5972 = vmatmul.bf16.gmra.mxu0 %v5863
    %v5973 = vpop.f32.mrf.mxu0
    %v5974 = vadd.f32 0.0, %v5973
    %v5975 = vpop.f32.mrf.mxu0
    %v5976 = vadd.f32 0.0, %v5975
    %5977 = vdwg.mxu0
    %v5978 = vadd.f32 %v5148, %v5939
    %v5979 = vadd.f32 %v5149, %v5941
    %v5980 = vadd.f32 %v5150, %v5944
    %v5981 = vadd.f32 %v5151, %v5946
    %v5982 = vadd.f32 %v5152, %v5949
    %v5983 = vadd.f32 %v5153, %v5951
    %v5984 = vadd.f32 %v5154, %v5954
    %v5985 = vadd.f32 %v5155, %v5956
    %v5986 = vadd.f32 %v5156, %v5959
    %v5987 = vadd.f32 %v5157, %v5961
    %v5988 = vadd.f32 %v5158, %v5964
    %v5989 = vadd.f32 %v5159, %v5966
    %v5990 = vadd.f32 %v5160, %v5969
    %v5991 = vadd.f32 %v5161, %v5971
    %v5992 = vadd.f32 %v5162, %v5974
    %v5993 = vadd.f32 %v5163, %v5976
    %vm5994 = vmand %vm5212, %vm1253
    %vm5995 = vmand %vm5213, %vm1254
    %vm5996 = vmand %vm5214, %vm1255
    %vm5997 = vmand %vm5215, %vm1256
    %vm5998 = vmand %vm5216, %vm1257
    %vm5999 = vmand %vm5217, %vm1258
    %vm6000 = vmand %vm5218, %vm1259
    %vm6001 = vmand %vm5219, %vm1260
    %vm6002 = vmand %vm5220, %vm1261
    %vm6003 = vmand %vm5221, %vm1262
    %vm6004 = vmand %vm5222, %vm1263
    %vm6005 = vmand %vm5223, %vm1264
    %vm6006 = vmand %vm5224, %vm1265
    %vm6007 = vmand %vm5225, %vm1266
    %vm6008 = vmand %vm5226, %vm1267
    %vm6009 = vmand %vm5227, %vm1268
    %vm6010 = vmand %vm5994, %vm1285
    %vm6011 = vmand %vm5995, %vm1286
    %vm6012 = vmand %vm5996, %vm1287
    %vm6013 = vmand %vm5997, %vm1288
    %vm6014 = vmand %vm5998, %vm1289
    %vm6015 = vmand %vm5999, %vm1290
    %vm6016 = vmand %vm6000, %vm1291
    %vm6017 = vmand %vm6001, %vm1292
    %vm6018 = vmand %vm6002, %vm1293
    %vm6019 = vmand %vm6003, %vm1294
    %vm6020 = vmand %vm6004, %vm1295
    %vm6021 = vmand %vm6005, %vm1296
    %vm6022 = vmand %vm6006, %vm1297
    %vm6023 = vmand %vm6007, %vm1298
    %vm6024 = vmand %vm6008, %vm1299
    %vm6025 = vmand %vm6009, %vm1300
    %v6026 = vadd.s32 %v5276, %v260
    %v6027 = vadd.s32 %v5277, %v261
    %v6028 = vadd.s32 %v5278, %v262
    %v6029 = vadd.s32 %v5279, %v263
    %v6030 = vadd.s32 %v5280, %v264
    %v6031 = vadd.s32 %v5281, %v265
    %v6032 = vadd.s32 %v5282, %v266
    %v6033 = vadd.s32 %v5283, %v267
    %v6034 = vadd.s32 %v5284, %v268
    %v6035 = vadd.s32 %v5285, %v269
    %v6036 = vadd.s32 %v5286, %v270
    %v6037 = vadd.s32 %v5287, %v271
    %v6038 = vadd.s32 %v5288, %v272
    %v6039 = vadd.s32 %v5289, %v273
    %v6040 = vadd.s32 %v5290, %v274
    %v6041 = vadd.s32 %v5291, %v275
    %6042 = vset.pattern.permute.xlu0 0
    %6043 = vperm.xlu0 %6042, %v6026
    %v6044 = vpop.permute.xlu0 %6043
    %6045 = vset.pattern.permute.xlu0 0
    %6046 = vperm.xlu0 %6045, %v6027
    %v6047 = vpop.permute.xlu0 %6046
    %6048 = vset.pattern.permute.xlu0 0
    %6049 = vperm.xlu0 %6048, %v6028
    %v6050 = vpop.permute.xlu0 %6049
    %6051 = vset.pattern.permute.xlu0 0
    %6052 = vperm.xlu0 %6051, %v6029
    %v6053 = vpop.permute.xlu0 %6052
    %6054 = vset.pattern.permute.xlu0 0
    %6055 = vperm.xlu0 %6054, %v6030
    %v6056 = vpop.permute.xlu0 %6055
    %6057 = vset.pattern.permute.xlu0 0
    %6058 = vperm.xlu0 %6057, %v6031
    %v6059 = vpop.permute.xlu0 %6058
    %6060 = vset.pattern.permute.xlu0 0
    %6061 = vperm.xlu0 %6060, %v6032
    %v6062 = vpop.permute.xlu0 %6061
    %6063 = vset.pattern.permute.xlu0 0
    %6064 = vperm.xlu0 %6063, %v6033
    %v6065 = vpop.permute.xlu0 %6064
    %6066 = vset.pattern.permute.xlu0 0
    %6067 = vperm.xlu0 %6066, %v6034
    %v6068 = vpop.permute.xlu0 %6067
    %6069 = vset.pattern.permute.xlu0 0
    %6070 = vperm.xlu0 %6069, %v6035
    %v6071 = vpop.permute.xlu0 %6070
    %6072 = vset.pattern.permute.xlu0 0
    %6073 = vperm.xlu0 %6072, %v6036
    %v6074 = vpop.permute.xlu0 %6073
    %6075 = vset.pattern.permute.xlu0 0
    %6076 = vperm.xlu0 %6075, %v6037
    %v6077 = vpop.permute.xlu0 %6076
    %6078 = vset.pattern.permute.xlu0 0
    %6079 = vperm.xlu0 %6078, %v6038
    %v6080 = vpop.permute.xlu0 %6079
    %6081 = vset.pattern.permute.xlu0 0
    %6082 = vperm.xlu0 %6081, %v6039
    %v6083 = vpop.permute.xlu0 %6082
    %6084 = vset.pattern.permute.xlu0 0
    %6085 = vperm.xlu0 %6084, %v6040
    %v6086 = vpop.permute.xlu0 %6085
    %6087 = vset.pattern.permute.xlu0 0
    %6088 = vperm.xlu0 %6087, %v6041
    %v6089 = vpop.permute.xlu0 %6088
    %vm6090 = vcmp.eq.s32.totalorder %v293, %v6044
    %vm6091 = vcmp.eq.s32.totalorder %v294, %v6044
    %vm6092 = vcmp.eq.s32.totalorder %v295, %v6044
    %vm6093 = vcmp.eq.s32.totalorder %v296, %v6044
    %vm6094 = vcmp.eq.s32.totalorder %v293, %v6047
    %vm6095 = vcmp.eq.s32.totalorder %v294, %v6047
    %vm6096 = vcmp.eq.s32.totalorder %v295, %v6047
    %vm6097 = vcmp.eq.s32.totalorder %v296, %v6047
    %vm6098 = vcmp.eq.s32.totalorder %v293, %v6050
    %vm6099 = vcmp.eq.s32.totalorder %v294, %v6050
    %vm6100 = vcmp.eq.s32.totalorder %v295, %v6050
    %vm6101 = vcmp.eq.s32.totalorder %v296, %v6050
    %vm6102 = vcmp.eq.s32.totalorder %v293, %v6053
    %vm6103 = vcmp.eq.s32.totalorder %v294, %v6053
    %vm6104 = vcmp.eq.s32.totalorder %v295, %v6053
    %vm6105 = vcmp.eq.s32.totalorder %v296, %v6053
    %vm6106 = vcmp.eq.s32.totalorder %v293, %v6056
    %vm6107 = vcmp.eq.s32.totalorder %v294, %v6056
    %vm6108 = vcmp.eq.s32.totalorder %v295, %v6056
    %vm6109 = vcmp.eq.s32.totalorder %v296, %v6056
    %vm6110 = vcmp.eq.s32.totalorder %v293, %v6059
    %vm6111 = vcmp.eq.s32.totalorder %v294, %v6059
    %vm6112 = vcmp.eq.s32.totalorder %v295, %v6059
    %vm6113 = vcmp.eq.s32.totalorder %v296, %v6059
    %vm6114 = vcmp.eq.s32.totalorder %v293, %v6062
    %vm6115 = vcmp.eq.s32.totalorder %v294, %v6062
    %vm6116 = vcmp.eq.s32.totalorder %v295, %v6062
    %vm6117 = vcmp.eq.s32.totalorder %v296, %v6062
    %vm6118 = vcmp.eq.s32.totalorder %v293, %v6065
    %vm6119 = vcmp.eq.s32.totalorder %v294, %v6065
    %vm6120 = vcmp.eq.s32.totalorder %v295, %v6065
    %vm6121 = vcmp.eq.s32.totalorder %v296, %v6065
    %vm6122 = vcmp.eq.s32.totalorder %v293, %v6068
    %vm6123 = vcmp.eq.s32.totalorder %v294, %v6068
    %vm6124 = vcmp.eq.s32.totalorder %v295, %v6068
    %vm6125 = vcmp.eq.s32.totalorder %v296, %v6068
    %vm6126 = vcmp.eq.s32.totalorder %v293, %v6071
    %vm6127 = vcmp.eq.s32.totalorder %v294, %v6071
    %vm6128 = vcmp.eq.s32.totalorder %v295, %v6071
    %vm6129 = vcmp.eq.s32.totalorder %v296, %v6071
    %vm6130 = vcmp.eq.s32.totalorder %v293, %v6074
    %vm6131 = vcmp.eq.s32.totalorder %v294, %v6074
    %vm6132 = vcmp.eq.s32.totalorder %v295, %v6074
    %vm6133 = vcmp.eq.s32.totalorder %v296, %v6074
    %vm6134 = vcmp.eq.s32.totalorder %v293, %v6077
    %vm6135 = vcmp.eq.s32.totalorder %v294, %v6077
    %vm6136 = vcmp.eq.s32.totalorder %v295, %v6077
    %vm6137 = vcmp.eq.s32.totalorder %v296, %v6077
    %vm6138 = vcmp.eq.s32.totalorder %v293, %v6080
    %vm6139 = vcmp.eq.s32.totalorder %v294, %v6080
    %vm6140 = vcmp.eq.s32.totalorder %v295, %v6080
    %vm6141 = vcmp.eq.s32.totalorder %v296, %v6080
    %vm6142 = vcmp.eq.s32.totalorder %v293, %v6083
    %vm6143 = vcmp.eq.s32.totalorder %v294, %v6083
    %vm6144 = vcmp.eq.s32.totalorder %v295, %v6083
    %vm6145 = vcmp.eq.s32.totalorder %v296, %v6083
    %vm6146 = vcmp.eq.s32.totalorder %v293, %v6086
    %vm6147 = vcmp.eq.s32.totalorder %v294, %v6086
    %vm6148 = vcmp.eq.s32.totalorder %v295, %v6086
    %vm6149 = vcmp.eq.s32.totalorder %v296, %v6086
    %vm6150 = vcmp.eq.s32.totalorder %v293, %v6089
    %vm6151 = vcmp.eq.s32.totalorder %v294, %v6089
    %vm6152 = vcmp.eq.s32.totalorder %v295, %v6089
    %vm6153 = vcmp.eq.s32.totalorder %v296, %v6089
    %v6154 = vsel %vm6010, 1, 0
    %v6155 = vsel %vm6011, 1, 0
    %v6156 = vsel %vm6012, 1, 0
    %v6157 = vsel %vm6013, 1, 0
    %v6158 = vsel %vm6014, 1, 0
    %v6159 = vsel %vm6015, 1, 0
    %v6160 = vsel %vm6016, 1, 0
    %v6161 = vsel %vm6017, 1, 0
    %v6162 = vsel %vm6018, 1, 0
    %v6163 = vsel %vm6019, 1, 0
    %v6164 = vsel %vm6020, 1, 0
    %v6165 = vsel %vm6021, 1, 0
    %v6166 = vsel %vm6022, 1, 0
    %v6167 = vsel %vm6023, 1, 0
    %v6168 = vsel %vm6024, 1, 0
    %v6169 = vsel %vm6025, 1, 0
    %6170 = vset.pattern.permute.xlu0 0
    %6171 = vperm.xlu0 %6170, %v6154
    %v6172 = vpop.permute.xlu0 %6171
    %6173 = vset.pattern.permute.xlu0 0
    %6174 = vperm.xlu0 %6173, %v6155
    %v6175 = vpop.permute.xlu0 %6174
    %6176 = vset.pattern.permute.xlu0 0
    %6177 = vperm.xlu0 %6176, %v6156
    %v6178 = vpop.permute.xlu0 %6177
    %6179 = vset.pattern.permute.xlu0 0
    %6180 = vperm.xlu0 %6179, %v6157
    %v6181 = vpop.permute.xlu0 %6180
    %6182 = vset.pattern.permute.xlu0 0
    %6183 = vperm.xlu0 %6182, %v6158
    %v6184 = vpop.permute.xlu0 %6183
    %6185 = vset.pattern.permute.xlu0 0
    %6186 = vperm.xlu0 %6185, %v6159
    %v6187 = vpop.permute.xlu0 %6186
    %6188 = vset.pattern.permute.xlu0 0
    %6189 = vperm.xlu0 %6188, %v6160
    %v6190 = vpop.permute.xlu0 %6189
    %6191 = vset.pattern.permute.xlu0 0
    %6192 = vperm.xlu0 %6191, %v6161
    %v6193 = vpop.permute.xlu0 %6192
    %6194 = vset.pattern.permute.xlu0 0
    %6195 = vperm.xlu0 %6194, %v6162
    %v6196 = vpop.permute.xlu0 %6195
    %6197 = vset.pattern.permute.xlu0 0
    %6198 = vperm.xlu0 %6197, %v6163
    %v6199 = vpop.permute.xlu0 %6198
    %6200 = vset.pattern.permute.xlu0 0
    %6201 = vperm.xlu0 %6200, %v6164
    %v6202 = vpop.permute.xlu0 %6201
    %6203 = vset.pattern.permute.xlu0 0
    %6204 = vperm.xlu0 %6203, %v6165
    %v6205 = vpop.permute.xlu0 %6204
    %6206 = vset.pattern.permute.xlu0 0
    %6207 = vperm.xlu0 %6206, %v6166
    %v6208 = vpop.permute.xlu0 %6207
    %6209 = vset.pattern.permute.xlu0 0
    %6210 = vperm.xlu0 %6209, %v6167
    %v6211 = vpop.permute.xlu0 %6210
    %6212 = vset.pattern.permute.xlu0 0
    %6213 = vperm.xlu0 %6212, %v6168
    %v6214 = vpop.permute.xlu0 %6213
    %6215 = vset.pattern.permute.xlu0 0
    %6216 = vperm.xlu0 %6215, %v6169
    %v6217 = vpop.permute.xlu0 %6216
    %vm6218 = vcmp.eq.s32.totalorder %v6172, 1
    %vm6219 = vcmp.eq.s32.totalorder %v6175, 1
    %vm6220 = vcmp.eq.s32.totalorder %v6178, 1
    %vm6221 = vcmp.eq.s32.totalorder %v6181, 1
    %vm6222 = vcmp.eq.s32.totalorder %v6184, 1
    %vm6223 = vcmp.eq.s32.totalorder %v6187, 1
    %vm6224 = vcmp.eq.s32.totalorder %v6190, 1
    %vm6225 = vcmp.eq.s32.totalorder %v6193, 1
    %vm6226 = vcmp.eq.s32.totalorder %v6196, 1
    %vm6227 = vcmp.eq.s32.totalorder %v6199, 1
    %vm6228 = vcmp.eq.s32.totalorder %v6202, 1
    %vm6229 = vcmp.eq.s32.totalorder %v6205, 1
    %vm6230 = vcmp.eq.s32.totalorder %v6208, 1
    %vm6231 = vcmp.eq.s32.totalorder %v6211, 1
    %vm6232 = vcmp.eq.s32.totalorder %v6214, 1
    %vm6233 = vcmp.eq.s32.totalorder %v6217, 1
    %vm6234 = vmand %vm6090, %vm6218
    %vm6235 = vmand %vm6091, %vm6218
    %vm6236 = vmand %vm6092, %vm6218
    %vm6237 = vmand %vm6093, %vm6218
    %vm6238 = vmand %vm6094, %vm6219
    %vm6239 = vmand %vm6095, %vm6219
    %vm6240 = vmand %vm6096, %vm6219
    %vm6241 = vmand %vm6097, %vm6219
    %vm6242 = vmand %vm6098, %vm6220
    %vm6243 = vmand %vm6099, %vm6220
    %vm6244 = vmand %vm6100, %vm6220
    %vm6245 = vmand %vm6101, %vm6220
    %vm6246 = vmand %vm6102, %vm6221
    %vm6247 = vmand %vm6103, %vm6221
    %vm6248 = vmand %vm6104, %vm6221
    %vm6249 = vmand %vm6105, %vm6221
    %vm6250 = vmand %vm6106, %vm6222
    %vm6251 = vmand %vm6107, %vm6222
    %vm6252 = vmand %vm6108, %vm6222
    %vm6253 = vmand %vm6109, %vm6222
    %vm6254 = vmand %vm6110, %vm6223
    %vm6255 = vmand %vm6111, %vm6223
    %vm6256 = vmand %vm6112, %vm6223
    %vm6257 = vmand %vm6113, %vm6223
    %vm6258 = vmand %vm6114, %vm6224
    %vm6259 = vmand %vm6115, %vm6224
    %vm6260 = vmand %vm6116, %vm6224
    %vm6261 = vmand %vm6117, %vm6224
    %vm6262 = vmand %vm6118, %vm6225
    %vm6263 = vmand %vm6119, %vm6225
    %vm6264 = vmand %vm6120, %vm6225
    %vm6265 = vmand %vm6121, %vm6225
    %vm6266 = vmand %vm6122, %vm6226
    %vm6267 = vmand %vm6123, %vm6226
    %vm6268 = vmand %vm6124, %vm6226
    %vm6269 = vmand %vm6125, %vm6226
    %vm6270 = vmand %vm6126, %vm6227
    %vm6271 = vmand %vm6127, %vm6227
    %vm6272 = vmand %vm6128, %vm6227
    %vm6273 = vmand %vm6129, %vm6227
    %vm6274 = vmand %vm6130, %vm6228
    %vm6275 = vmand %vm6131, %vm6228
    %vm6276 = vmand %vm6132, %vm6228
    %vm6277 = vmand %vm6133, %vm6228
    %vm6278 = vmand %vm6134, %vm6229
    %vm6279 = vmand %vm6135, %vm6229
    %vm6280 = vmand %vm6136, %vm6229
    %vm6281 = vmand %vm6137, %vm6229
    %vm6282 = vmand %vm6138, %vm6230
    %vm6283 = vmand %vm6139, %vm6230
    %vm6284 = vmand %vm6140, %vm6230
    %vm6285 = vmand %vm6141, %vm6230
    %vm6286 = vmand %vm6142, %vm6231
    %vm6287 = vmand %vm6143, %vm6231
    %vm6288 = vmand %vm6144, %vm6231
    %vm6289 = vmand %vm6145, %vm6231
    %vm6290 = vmand %vm6146, %vm6232
    %vm6291 = vmand %vm6147, %vm6232
    %vm6292 = vmand %vm6148, %vm6232
    %vm6293 = vmand %vm6149, %vm6232
    %vm6294 = vmand %vm6150, %vm6233
    %vm6295 = vmand %vm6151, %vm6233
    %vm6296 = vmand %vm6152, %vm6233
    %vm6297 = vmand %vm6153, %vm6233
    %v6298 = vsel %vm6234, 1.0, 0.0
    %v6299 = vsel %vm6235, 1.0, 0.0
    %v6300 = vsel %vm6236, 1.0, 0.0
    %v6301 = vsel %vm6237, 1.0, 0.0
    %v6302 = vsel %vm6238, 1.0, 0.0
    %v6303 = vsel %vm6239, 1.0, 0.0
    %v6304 = vsel %vm6240, 1.0, 0.0
    %v6305 = vsel %vm6241, 1.0, 0.0
    %v6306 = vsel %vm6242, 1.0, 0.0
    %v6307 = vsel %vm6243, 1.0, 0.0
    %v6308 = vsel %vm6244, 1.0, 0.0
    %v6309 = vsel %vm6245, 1.0, 0.0
    %v6310 = vsel %vm6246, 1.0, 0.0
    %v6311 = vsel %vm6247, 1.0, 0.0
    %v6312 = vsel %vm6248, 1.0, 0.0
    %v6313 = vsel %vm6249, 1.0, 0.0
    %v6314 = vsel %vm6250, 1.0, 0.0
    %v6315 = vsel %vm6251, 1.0, 0.0
    %v6316 = vsel %vm6252, 1.0, 0.0
    %v6317 = vsel %vm6253, 1.0, 0.0
    %v6318 = vsel %vm6254, 1.0, 0.0
    %v6319 = vsel %vm6255, 1.0, 0.0
    %v6320 = vsel %vm6256, 1.0, 0.0
    %v6321 = vsel %vm6257, 1.0, 0.0
    %v6322 = vsel %vm6258, 1.0, 0.0
    %v6323 = vsel %vm6259, 1.0, 0.0
    %v6324 = vsel %vm6260, 1.0, 0.0
    %v6325 = vsel %vm6261, 1.0, 0.0
    %v6326 = vsel %vm6262, 1.0, 0.0
    %v6327 = vsel %vm6263, 1.0, 0.0
    %v6328 = vsel %vm6264, 1.0, 0.0
    %v6329 = vsel %vm6265, 1.0, 0.0
    %v6330 = vsel %vm6266, 1.0, 0.0
    %v6331 = vsel %vm6267, 1.0, 0.0
    %v6332 = vsel %vm6268, 1.0, 0.0
    %v6333 = vsel %vm6269, 1.0, 0.0
    %v6334 = vsel %vm6270, 1.0, 0.0
    %v6335 = vsel %vm6271, 1.0, 0.0
    %v6336 = vsel %vm6272, 1.0, 0.0
    %v6337 = vsel %vm6273, 1.0, 0.0
    %v6338 = vsel %vm6274, 1.0, 0.0
    %v6339 = vsel %vm6275, 1.0, 0.0
    %v6340 = vsel %vm6276, 1.0, 0.0
    %v6341 = vsel %vm6277, 1.0, 0.0
    %v6342 = vsel %vm6278, 1.0, 0.0
    %v6343 = vsel %vm6279, 1.0, 0.0
    %v6344 = vsel %vm6280, 1.0, 0.0
    %v6345 = vsel %vm6281, 1.0, 0.0
    %v6346 = vsel %vm6282, 1.0, 0.0
    %v6347 = vsel %vm6283, 1.0, 0.0
    %v6348 = vsel %vm6284, 1.0, 0.0
    %v6349 = vsel %vm6285, 1.0, 0.0
    %v6350 = vsel %vm6286, 1.0, 0.0
    %v6351 = vsel %vm6287, 1.0, 0.0
    %v6352 = vsel %vm6288, 1.0, 0.0
    %v6353 = vsel %vm6289, 1.0, 0.0
    %v6354 = vsel %vm6290, 1.0, 0.0
    %v6355 = vsel %vm6291, 1.0, 0.0
    %v6356 = vsel %vm6292, 1.0, 0.0
    %v6357 = vsel %vm6293, 1.0, 0.0
    %v6358 = vsel %vm6294, 1.0, 0.0
    %v6359 = vsel %vm6295, 1.0, 0.0
    %v6360 = vsel %vm6296, 1.0, 0.0
    %v6361 = vsel %vm6297, 1.0, 0.0
    %v6362 = vpack.c.bf16 %v6302, %v6298
    %v6363 = vpack.c.bf16 %v6303, %v6299
    %v6364 = vpack.c.bf16 %v6304, %v6300
    %v6365 = vpack.c.bf16 %v6305, %v6301
    %v6366 = vpack.c.bf16 %v6310, %v6306
    %v6367 = vpack.c.bf16 %v6311, %v6307
    %v6368 = vpack.c.bf16 %v6312, %v6308
    %v6369 = vpack.c.bf16 %v6313, %v6309
    %v6370 = vpack.c.bf16 %v6318, %v6314
    %v6371 = vpack.c.bf16 %v6319, %v6315
    %v6372 = vpack.c.bf16 %v6320, %v6316
    %v6373 = vpack.c.bf16 %v6321, %v6317
    %v6374 = vpack.c.bf16 %v6326, %v6322
    %v6375 = vpack.c.bf16 %v6327, %v6323
    %v6376 = vpack.c.bf16 %v6328, %v6324
    %v6377 = vpack.c.bf16 %v6329, %v6325
    %v6378 = vpack.c.bf16 %v6334, %v6330
    %v6379 = vpack.c.bf16 %v6335, %v6331
    %v6380 = vpack.c.bf16 %v6336, %v6332
    %v6381 = vpack.c.bf16 %v6337, %v6333
    %v6382 = vpack.c.bf16 %v6342, %v6338
    %v6383 = vpack.c.bf16 %v6343, %v6339
    %v6384 = vpack.c.bf16 %v6344, %v6340
    %v6385 = vpack.c.bf16 %v6345, %v6341
    %v6386 = vpack.c.bf16 %v6350, %v6346
    %v6387 = vpack.c.bf16 %v6351, %v6347
    %v6388 = vpack.c.bf16 %v6352, %v6348
    %v6389 = vpack.c.bf16 %v6353, %v6349
    %v6390 = vpack.c.bf16 %v6358, %v6354
    %v6391 = vpack.c.bf16 %v6359, %v6355
    %v6392 = vpack.c.bf16 %v6360, %v6356
    %v6393 = vpack.c.bf16 %v6361, %v6357
    %6394 = vmatpush.bf16.msra.mxu0 %v976
    %6395 = vmatpush.bf16.msra.mxu0 %v975
    %6396 = vmatpush.bf16.msra.mxu0 %v974
    %6397 = vmatpush.bf16.msra.mxu0 %v973
    %6398 = vmatpush.bf16.msra.mxu0 %v972
    %6399 = vmatpush.bf16.msra.mxu0 %v971
    %6400 = vmatpush.bf16.msra.mxu0 %v970
    %6401 = vmatpush.bf16.msra.mxu0 %v969
    %6402 = vmatmul.bf16.gmra.mxu0 %v6362
    %v6403 = vpop.f32.mrf.mxu0
    %v6404 = vadd.f32 0.0, %v6403
    %v6405 = vpop.f32.mrf.mxu0
    %v6406 = vadd.f32 0.0, %v6405
    %6407 = vmatmul.bf16.gmra.mxu0 %v6366
    %v6408 = vpop.f32.mrf.mxu0
    %v6409 = vadd.f32 0.0, %v6408
    %v6410 = vpop.f32.mrf.mxu0
    %v6411 = vadd.f32 0.0, %v6410
    %6412 = vmatmul.bf16.gmra.mxu0 %v6370
    %v6413 = vpop.f32.mrf.mxu0
    %v6414 = vadd.f32 0.0, %v6413
    %v6415 = vpop.f32.mrf.mxu0
    %v6416 = vadd.f32 0.0, %v6415
    %6417 = vmatmul.bf16.gmra.mxu0 %v6374
    %v6418 = vpop.f32.mrf.mxu0
    %v6419 = vadd.f32 0.0, %v6418
    %v6420 = vpop.f32.mrf.mxu0
    %v6421 = vadd.f32 0.0, %v6420
    %6422 = vmatmul.bf16.gmra.mxu0 %v6378
    %v6423 = vpop.f32.mrf.mxu0
    %v6424 = vadd.f32 0.0, %v6423
    %v6425 = vpop.f32.mrf.mxu0
    %v6426 = vadd.f32 0.0, %v6425
    %6427 = vmatmul.bf16.gmra.mxu0 %v6382
    %v6428 = vpop.f32.mrf.mxu0
    %v6429 = vadd.f32 0.0, %v6428
    %v6430 = vpop.f32.mrf.mxu0
    %v6431 = vadd.f32 0.0, %v6430
    %6432 = vmatmul.bf16.gmra.mxu0 %v6386
    %v6433 = vpop.f32.mrf.mxu0
    %v6434 = vadd.f32 0.0, %v6433
    %v6435 = vpop.f32.mrf.mxu0
    %v6436 = vadd.f32 0.0, %v6435
    %6437 = vmatmul.bf16.gmra.mxu0 %v6390
    %v6438 = vpop.f32.mrf.mxu0
    %v6439 = vadd.f32 0.0, %v6438
    %v6440 = vpop.f32.mrf.mxu0
    %v6441 = vadd.f32 0.0, %v6440
    %6442 = vdwg.mxu0
    %6443 = vmatpush.bf16.msra.mxu0 %v984
    %6444 = vmatpush.bf16.msra.mxu0 %v983
    %6445 = vmatpush.bf16.msra.mxu0 %v982
    %6446 = vmatpush.bf16.msra.mxu0 %v981
    %6447 = vmatpush.bf16.msra.mxu0 %v980
    %6448 = vmatpush.bf16.msra.mxu0 %v979
    %6449 = vmatpush.bf16.msra.mxu0 %v978
    %6450 = vmatpush.bf16.msra.mxu0 %v977
    %6451 = vmatmul.bf16.gmra.mxu0 %v6363
    %v6452 = vpop.f32.mrf.mxu0
    %v6453 = vadd.f32 %v6404, %v6452
    %v6454 = vpop.f32.mrf.mxu0
    %v6455 = vadd.f32 %v6406, %v6454
    %6456 = vmatmul.bf16.gmra.mxu0 %v6367
    %v6457 = vpop.f32.mrf.mxu0
    %v6458 = vadd.f32 %v6409, %v6457
    %v6459 = vpop.f32.mrf.mxu0
    %v6460 = vadd.f32 %v6411, %v6459
    %6461 = vmatmul.bf16.gmra.mxu0 %v6371
    %v6462 = vpop.f32.mrf.mxu0
    %v6463 = vadd.f32 %v6414, %v6462
    %v6464 = vpop.f32.mrf.mxu0
    %v6465 = vadd.f32 %v6416, %v6464
    %6466 = vmatmul.bf16.gmra.mxu0 %v6375
    %v6467 = vpop.f32.mrf.mxu0
    %v6468 = vadd.f32 %v6419, %v6467
    %v6469 = vpop.f32.mrf.mxu0
    %v6470 = vadd.f32 %v6421, %v6469
    %6471 = vmatmul.bf16.gmra.mxu0 %v6379
    %v6472 = vpop.f32.mrf.mxu0
    %v6473 = vadd.f32 %v6424, %v6472
    %v6474 = vpop.f32.mrf.mxu0
    %v6475 = vadd.f32 %v6426, %v6474
    %6476 = vmatmul.bf16.gmra.mxu0 %v6383
    %v6477 = vpop.f32.mrf.mxu0
    %v6478 = vadd.f32 %v6429, %v6477
    %v6479 = vpop.f32.mrf.mxu0
    %v6480 = vadd.f32 %v6431, %v6479
    %6481 = vmatmul.bf16.gmra.mxu0 %v6387
    %v6482 = vpop.f32.mrf.mxu0
    %v6483 = vadd.f32 %v6434, %v6482
    %v6484 = vpop.f32.mrf.mxu0
    %v6485 = vadd.f32 %v6436, %v6484
    %6486 = vmatmul.bf16.gmra.mxu0 %v6391
    %v6487 = vpop.f32.mrf.mxu0
    %v6488 = vadd.f32 %v6439, %v6487
    %v6489 = vpop.f32.mrf.mxu0
    %v6490 = vadd.f32 %v6441, %v6489
    %6491 = vdwg.mxu0
    %6492 = vmatpush.bf16.msra.mxu0 %v992
    %6493 = vmatpush.bf16.msra.mxu0 %v991
    %6494 = vmatpush.bf16.msra.mxu0 %v990
    %6495 = vmatpush.bf16.msra.mxu0 %v989
    %6496 = vmatpush.bf16.msra.mxu0 %v988
    %6497 = vmatpush.bf16.msra.mxu0 %v987
    %6498 = vmatpush.bf16.msra.mxu0 %v986
    %6499 = vmatpush.bf16.msra.mxu0 %v985
    %6500 = vmatmul.bf16.gmra.mxu0 %v6364
    %v6501 = vpop.f32.mrf.mxu0
    %v6502 = vadd.f32 %v6453, %v6501
    %v6503 = vpop.f32.mrf.mxu0
    %v6504 = vadd.f32 %v6455, %v6503
    %6505 = vmatmul.bf16.gmra.mxu0 %v6368
    %v6506 = vpop.f32.mrf.mxu0
    %v6507 = vadd.f32 %v6458, %v6506
    %v6508 = vpop.f32.mrf.mxu0
    %v6509 = vadd.f32 %v6460, %v6508
    %6510 = vmatmul.bf16.gmra.mxu0 %v6372
    %v6511 = vpop.f32.mrf.mxu0
    %v6512 = vadd.f32 %v6463, %v6511
    %v6513 = vpop.f32.mrf.mxu0
    %v6514 = vadd.f32 %v6465, %v6513
    %6515 = vmatmul.bf16.gmra.mxu0 %v6376
    %v6516 = vpop.f32.mrf.mxu0
    %v6517 = vadd.f32 %v6468, %v6516
    %v6518 = vpop.f32.mrf.mxu0
    %v6519 = vadd.f32 %v6470, %v6518
    %6520 = vmatmul.bf16.gmra.mxu0 %v6380
    %v6521 = vpop.f32.mrf.mxu0
    %v6522 = vadd.f32 %v6473, %v6521
    %v6523 = vpop.f32.mrf.mxu0
    %v6524 = vadd.f32 %v6475, %v6523
    %6525 = vmatmul.bf16.gmra.mxu0 %v6384
    %v6526 = vpop.f32.mrf.mxu0
    %v6527 = vadd.f32 %v6478, %v6526
    %v6528 = vpop.f32.mrf.mxu0
    %v6529 = vadd.f32 %v6480, %v6528
    %6530 = vmatmul.bf16.gmra.mxu0 %v6388
    %v6531 = vpop.f32.mrf.mxu0
    %v6532 = vadd.f32 %v6483, %v6531
    %v6533 = vpop.f32.mrf.mxu0
    %v6534 = vadd.f32 %v6485, %v6533
    %6535 = vmatmul.bf16.gmra.mxu0 %v6392
    %v6536 = vpop.f32.mrf.mxu0
    %v6537 = vadd.f32 %v6488, %v6536
    %v6538 = vpop.f32.mrf.mxu0
    %v6539 = vadd.f32 %v6490, %v6538
    %6540 = vdwg.mxu0
    %6541 = vmatpush.bf16.msra.mxu0 %v1000
    %6542 = vmatpush.bf16.msra.mxu0 %v999
    %6543 = vmatpush.bf16.msra.mxu0 %v998
    %6544 = vmatpush.bf16.msra.mxu0 %v997
    %6545 = vmatpush.bf16.msra.mxu0 %v996
    %6546 = vmatpush.bf16.msra.mxu0 %v995
    %6547 = vmatpush.bf16.msra.mxu0 %v994
    %6548 = vmatpush.bf16.msra.mxu0 %v993
    %6549 = vmatmul.bf16.gmra.mxu0 %v6365
    %v6550 = vpop.f32.mrf.mxu0
    %v6551 = vadd.f32 %v6502, %v6550
    %v6552 = vpop.f32.mrf.mxu0
    %v6553 = vadd.f32 %v6504, %v6552
    %6554 = vmatmul.bf16.gmra.mxu0 %v6369
    %v6555 = vpop.f32.mrf.mxu0
    %v6556 = vadd.f32 %v6507, %v6555
    %v6557 = vpop.f32.mrf.mxu0
    %v6558 = vadd.f32 %v6509, %v6557
    %6559 = vmatmul.bf16.gmra.mxu0 %v6373
    %v6560 = vpop.f32.mrf.mxu0
    %v6561 = vadd.f32 %v6512, %v6560
    %v6562 = vpop.f32.mrf.mxu0
    %v6563 = vadd.f32 %v6514, %v6562
    %6564 = vmatmul.bf16.gmra.mxu0 %v6377
    %v6565 = vpop.f32.mrf.mxu0
    %v6566 = vadd.f32 %v6517, %v6565
    %v6567 = vpop.f32.mrf.mxu0
    %v6568 = vadd.f32 %v6519, %v6567
    %6569 = vmatmul.bf16.gmra.mxu0 %v6381
    %v6570 = vpop.f32.mrf.mxu0
    %v6571 = vadd.f32 %v6522, %v6570
    %v6572 = vpop.f32.mrf.mxu0
    %v6573 = vadd.f32 %v6524, %v6572
    %6574 = vmatmul.bf16.gmra.mxu0 %v6385
    %v6575 = vpop.f32.mrf.mxu0
    %v6576 = vadd.f32 %v6527, %v6575
    %v6577 = vpop.f32.mrf.mxu0
    %v6578 = vadd.f32 %v6529, %v6577
    %6579 = vmatmul.bf16.gmra.mxu0 %v6389
    %v6580 = vpop.f32.mrf.mxu0
    %v6581 = vadd.f32 %v6532, %v6580
    %v6582 = vpop.f32.mrf.mxu0
    %v6583 = vadd.f32 %v6534, %v6582
    %6584 = vmatmul.bf16.gmra.mxu0 %v6393
    %v6585 = vpop.f32.mrf.mxu0
    %v6586 = vadd.f32 %v6537, %v6585
    %v6587 = vpop.f32.mrf.mxu0
    %v6588 = vadd.f32 %v6539, %v6587
    %6589 = vdwg.mxu0
    %v6590 = vpack.c.bf16 %v6553, %v6551
    %v6591 = vpack.c.bf16 %v6558, %v6556
    %v6592 = vpack.c.bf16 %v6563, %v6561
    %v6593 = vpack.c.bf16 %v6568, %v6566
    %v6594 = vpack.c.bf16 %v6573, %v6571
    %v6595 = vpack.c.bf16 %v6578, %v6576
    %v6596 = vpack.c.bf16 %v6583, %v6581
    %v6597 = vpack.c.bf16 %v6588, %v6586
    %s6598 = scalar_lea.vmem %s4, 448
    %v6599 = vld [vmem:[%s6598] sm:$0xf]
    %v6600 = vld [vmem:[%s6598 + $0x4] sm:$0xf]
    %v6601 = vld [vmem:[%s6598 + $0x8] sm:$0xf]
    %v6602 = vld [vmem:[%s6598 + $0xc] sm:$0xf]
    %v6603 = vld [vmem:[%s6598 + $0x10] sm:$0xf]
    %v6604 = vld [vmem:[%s6598 + $0x14] sm:$0xf]
    %v6605 = vld [vmem:[%s6598 + $0x18] sm:$0xf]
    %v6606 = vld [vmem:[%s6598 + $0x1c] sm:$0xf]
    %v6607 = vld [vmem:[%s6598 + $0x20] sm:$0xf]
    %v6608 = vld [vmem:[%s6598 + $0x24] sm:$0xf]
    %v6609 = vld [vmem:[%s6598 + $0x28] sm:$0xf]
    %v6610 = vld [vmem:[%s6598 + $0x2c] sm:$0xf]
    %v6611 = vld [vmem:[%s6598 + $0x30] sm:$0xf]
    %v6612 = vld [vmem:[%s6598 + $0x34] sm:$0xf]
    %v6613 = vld [vmem:[%s6598 + $0x38] sm:$0xf]
    %v6614 = vld [vmem:[%s6598 + $0x3c] sm:$0xf]
    %v6631 = vunpack.c.l.b16 %v6599
    %v6632 = vunpack.c.l.b16 %v6600
    %v6633 = vunpack.c.l.b16 %v6601
    %v6634 = vunpack.c.l.b16 %v6602
    %v6635 = vunpack.c.l.b16 %v6603
    %v6636 = vunpack.c.l.b16 %v6604
    %v6637 = vunpack.c.l.b16 %v6605
    %v6638 = vunpack.c.l.b16 %v6606
    %v6639 = vunpack.c.l.b16 %v6607
    %v6640 = vunpack.c.l.b16 %v6608
    %v6641 = vunpack.c.l.b16 %v6609
    %v6642 = vunpack.c.l.b16 %v6610
    %v6643 = vunpack.c.l.b16 %v6611
    %v6644 = vunpack.c.l.b16 %v6612
    %v6645 = vunpack.c.l.b16 %v6613
    %v6646 = vunpack.c.l.b16 %v6614
    %v6647 = vpack.c.b16 %v6632, %v6631
    %v6648 = vpack.c.b16 %v6634, %v6633
    %v6649 = vpack.c.b16 %v6636, %v6635
    %v6650 = vpack.c.b16 %v6638, %v6637
    %v6651 = vpack.c.b16 %v6640, %v6639
    %v6652 = vpack.c.b16 %v6642, %v6641
    %v6653 = vpack.c.b16 %v6644, %v6643
    %v6654 = vpack.c.b16 %v6646, %v6645
    %6663 = vmatpush.bf16.msra.mxu0 %v6654
    %6664 = vmatpush.bf16.msra.mxu0 %v6653
    %6665 = vmatpush.bf16.msra.mxu0 %v6652
    %6666 = vmatpush.bf16.msra.mxu0 %v6651
    %6667 = vmatpush.bf16.msra.mxu0 %v6650
    %6668 = vmatpush.bf16.msra.mxu0 %v6649
    %6669 = vmatpush.bf16.msra.mxu0 %v6648
    %6670 = vmatpush.bf16.msra.mxu0 %v6647
    %6671 = vmatmul.bf16.gmra.mxu0 %v6590
    %v6672 = vpop.f32.mrf.mxu0
    %v6673 = vadd.f32 0.0, %v6672
    %v6674 = vpop.f32.mrf.mxu0
    %v6675 = vadd.f32 0.0, %v6674
    %6676 = vmatmul.bf16.gmra.mxu0 %v6591
    %v6677 = vpop.f32.mrf.mxu0
    %v6678 = vadd.f32 0.0, %v6677
    %v6679 = vpop.f32.mrf.mxu0
    %v6680 = vadd.f32 0.0, %v6679
    %6681 = vmatmul.bf16.gmra.mxu0 %v6592
    %v6682 = vpop.f32.mrf.mxu0
    %v6683 = vadd.f32 0.0, %v6682
    %v6684 = vpop.f32.mrf.mxu0
    %v6685 = vadd.f32 0.0, %v6684
    %6686 = vmatmul.bf16.gmra.mxu0 %v6593
    %v6687 = vpop.f32.mrf.mxu0
    %v6688 = vadd.f32 0.0, %v6687
    %v6689 = vpop.f32.mrf.mxu0
    %v6690 = vadd.f32 0.0, %v6689
    %6691 = vmatmul.bf16.gmra.mxu0 %v6594
    %v6692 = vpop.f32.mrf.mxu0
    %v6693 = vadd.f32 0.0, %v6692
    %v6694 = vpop.f32.mrf.mxu0
    %v6695 = vadd.f32 0.0, %v6694
    %6696 = vmatmul.bf16.gmra.mxu0 %v6595
    %v6697 = vpop.f32.mrf.mxu0
    %v6698 = vadd.f32 0.0, %v6697
    %v6699 = vpop.f32.mrf.mxu0
    %v6700 = vadd.f32 0.0, %v6699
    %6701 = vmatmul.bf16.gmra.mxu0 %v6596
    %v6702 = vpop.f32.mrf.mxu0
    %v6703 = vadd.f32 0.0, %v6702
    %v6704 = vpop.f32.mrf.mxu0
    %v6705 = vadd.f32 0.0, %v6704
    %6706 = vmatmul.bf16.gmra.mxu0 %v6597
    %v6707 = vpop.f32.mrf.mxu0
    %v6708 = vadd.f32 0.0, %v6707
    %v6709 = vpop.f32.mrf.mxu0
    %v6710 = vadd.f32 0.0, %v6709
    %6711 = vdwg.mxu0
    %v6712 = vadd.f32 %v5978, %v6673
    %v6713 = vadd.f32 %v5979, %v6675
    %v6714 = vadd.f32 %v5980, %v6678
    %v6715 = vadd.f32 %v5981, %v6680
    %v6716 = vadd.f32 %v5982, %v6683
    %v6717 = vadd.f32 %v5983, %v6685
    %v6718 = vadd.f32 %v5984, %v6688
    %v6719 = vadd.f32 %v5985, %v6690
    %v6720 = vadd.f32 %v5986, %v6693
    %v6721 = vadd.f32 %v5987, %v6695
    %v6722 = vadd.f32 %v5988, %v6698
    %v6723 = vadd.f32 %v5989, %v6700
    %v6724 = vadd.f32 %v5990, %v6703
    %v6725 = vadd.f32 %v5991, %v6705
    %v6726 = vadd.f32 %v5992, %v6708
    %v6727 = vadd.f32 %v5993, %v6710
    %vm6728 = vmand %vm5212, %vm2116
    %vm6729 = vmand %vm5213, %vm2117
    %vm6730 = vmand %vm5214, %vm2118
    %vm6731 = vmand %vm5215, %vm2119
    %vm6732 = vmand %vm5216, %vm2120
    %vm6733 = vmand %vm5217, %vm2121
    %vm6734 = vmand %vm5218, %vm2122
    %vm6735 = vmand %vm5219, %vm2123
    %vm6736 = vmand %vm5220, %vm2124
    %vm6737 = vmand %vm5221, %vm2125
    %vm6738 = vmand %vm5222, %vm2126
    %vm6739 = vmand %vm5223, %vm2127
    %vm6740 = vmand %vm5224, %vm2128
    %vm6741 = vmand %vm5225, %vm2129
    %vm6742 = vmand %vm5226, %vm2130
    %vm6743 = vmand %vm5227, %vm2131
    %vm6744 = vmand %vm6728, %vm2148
    %vm6745 = vmand %vm6729, %vm2149
    %vm6746 = vmand %vm6730, %vm2150
    %vm6747 = vmand %vm6731, %vm2151
    %vm6748 = vmand %vm6732, %vm2152
    %vm6749 = vmand %vm6733, %vm2153
    %vm6750 = vmand %vm6734, %vm2154
    %vm6751 = vmand %vm6735, %vm2155
    %vm6752 = vmand %vm6736, %vm2156
    %vm6753 = vmand %vm6737, %vm2157
    %vm6754 = vmand %vm6738, %vm2158
    %vm6755 = vmand %vm6739, %vm2159
    %vm6756 = vmand %vm6740, %vm2160
    %vm6757 = vmand %vm6741, %vm2161
    %vm6758 = vmand %vm6742, %vm2162
    %vm6759 = vmand %vm6743, %vm2163
    %v6760 = vadd.s32 %v5276, %v2100
    %v6761 = vadd.s32 %v5277, %v2101
    %v6762 = vadd.s32 %v5278, %v2102
    %v6763 = vadd.s32 %v5279, %v2103
    %v6764 = vadd.s32 %v5280, %v2104
    %v6765 = vadd.s32 %v5281, %v2105
    %v6766 = vadd.s32 %v5282, %v2106
    %v6767 = vadd.s32 %v5283, %v2107
    %v6768 = vadd.s32 %v5284, %v2108
    %v6769 = vadd.s32 %v5285, %v2109
    %v6770 = vadd.s32 %v5286, %v2110
    %v6771 = vadd.s32 %v5287, %v2111
    %v6772 = vadd.s32 %v5288, %v2112
    %v6773 = vadd.s32 %v5289, %v2113
    %v6774 = vadd.s32 %v5290, %v2114
    %v6775 = vadd.s32 %v5291, %v2115
    %6776 = vset.pattern.permute.xlu0 0
    %6777 = vperm.xlu0 %6776, %v6760
    %v6778 = vpop.permute.xlu0 %6777
    %6779 = vset.pattern.permute.xlu0 0
    %6780 = vperm.xlu0 %6779, %v6761
    %v6781 = vpop.permute.xlu0 %6780
    %6782 = vset.pattern.permute.xlu0 0
    %6783 = vperm.xlu0 %6782, %v6762
    %v6784 = vpop.permute.xlu0 %6783
    %6785 = vset.pattern.permute.xlu0 0
    %6786 = vperm.xlu0 %6785, %v6763
    %v6787 = vpop.permute.xlu0 %6786
    %6788 = vset.pattern.permute.xlu0 0
    %6789 = vperm.xlu0 %6788, %v6764
    %v6790 = vpop.permute.xlu0 %6789
    %6791 = vset.pattern.permute.xlu0 0
    %6792 = vperm.xlu0 %6791, %v6765
    %v6793 = vpop.permute.xlu0 %6792
    %6794 = vset.pattern.permute.xlu0 0
    %6795 = vperm.xlu0 %6794, %v6766
    %v6796 = vpop.permute.xlu0 %6795
    %6797 = vset.pattern.permute.xlu0 0
    %6798 = vperm.xlu0 %6797, %v6767
    %v6799 = vpop.permute.xlu0 %6798
    %6800 = vset.pattern.permute.xlu0 0
    %6801 = vperm.xlu0 %6800, %v6768
    %v6802 = vpop.permute.xlu0 %6801
    %6803 = vset.pattern.permute.xlu0 0
    %6804 = vperm.xlu0 %6803, %v6769
    %v6805 = vpop.permute.xlu0 %6804
    %6806 = vset.pattern.permute.xlu0 0
    %6807 = vperm.xlu0 %6806, %v6770
    %v6808 = vpop.permute.xlu0 %6807
    %6809 = vset.pattern.permute.xlu0 0
    %6810 = vperm.xlu0 %6809, %v6771
    %v6811 = vpop.permute.xlu0 %6810
    %6812 = vset.pattern.permute.xlu0 0
    %6813 = vperm.xlu0 %6812, %v6772
    %v6814 = vpop.permute.xlu0 %6813
    %6815 = vset.pattern.permute.xlu0 0
    %6816 = vperm.xlu0 %6815, %v6773
    %v6817 = vpop.permute.xlu0 %6816
    %6818 = vset.pattern.permute.xlu0 0
    %6819 = vperm.xlu0 %6818, %v6774
    %v6820 = vpop.permute.xlu0 %6819
    %6821 = vset.pattern.permute.xlu0 0
    %6822 = vperm.xlu0 %6821, %v6775
    %v6823 = vpop.permute.xlu0 %6822
    %vm6824 = vcmp.eq.s32.totalorder %v293, %v6778
    %vm6825 = vcmp.eq.s32.totalorder %v294, %v6778
    %vm6826 = vcmp.eq.s32.totalorder %v295, %v6778
    %vm6827 = vcmp.eq.s32.totalorder %v296, %v6778
    %vm6828 = vcmp.eq.s32.totalorder %v293, %v6781
    %vm6829 = vcmp.eq.s32.totalorder %v294, %v6781
    %vm6830 = vcmp.eq.s32.totalorder %v295, %v6781
    %vm6831 = vcmp.eq.s32.totalorder %v296, %v6781
    %vm6832 = vcmp.eq.s32.totalorder %v293, %v6784
    %vm6833 = vcmp.eq.s32.totalorder %v294, %v6784
    %vm6834 = vcmp.eq.s32.totalorder %v295, %v6784
    %vm6835 = vcmp.eq.s32.totalorder %v296, %v6784
    %vm6836 = vcmp.eq.s32.totalorder %v293, %v6787
    %vm6837 = vcmp.eq.s32.totalorder %v294, %v6787
    %vm6838 = vcmp.eq.s32.totalorder %v295, %v6787
    %vm6839 = vcmp.eq.s32.totalorder %v296, %v6787
    %vm6840 = vcmp.eq.s32.totalorder %v293, %v6790
    %vm6841 = vcmp.eq.s32.totalorder %v294, %v6790
    %vm6842 = vcmp.eq.s32.totalorder %v295, %v6790
    %vm6843 = vcmp.eq.s32.totalorder %v296, %v6790
    %vm6844 = vcmp.eq.s32.totalorder %v293, %v6793
    %vm6845 = vcmp.eq.s32.totalorder %v294, %v6793
    %vm6846 = vcmp.eq.s32.totalorder %v295, %v6793
    %vm6847 = vcmp.eq.s32.totalorder %v296, %v6793
    %vm6848 = vcmp.eq.s32.totalorder %v293, %v6796
    %vm6849 = vcmp.eq.s32.totalorder %v294, %v6796
    %vm6850 = vcmp.eq.s32.totalorder %v295, %v6796
    %vm6851 = vcmp.eq.s32.totalorder %v296, %v6796
    %vm6852 = vcmp.eq.s32.totalorder %v293, %v6799
    %vm6853 = vcmp.eq.s32.totalorder %v294, %v6799
    %vm6854 = vcmp.eq.s32.totalorder %v295, %v6799
    %vm6855 = vcmp.eq.s32.totalorder %v296, %v6799
    %vm6856 = vcmp.eq.s32.totalorder %v293, %v6802
    %vm6857 = vcmp.eq.s32.totalorder %v294, %v6802
    %vm6858 = vcmp.eq.s32.totalorder %v295, %v6802
    %vm6859 = vcmp.eq.s32.totalorder %v296, %v6802
    %vm6860 = vcmp.eq.s32.totalorder %v293, %v6805
    %vm6861 = vcmp.eq.s32.totalorder %v294, %v6805
    %vm6862 = vcmp.eq.s32.totalorder %v295, %v6805
    %vm6863 = vcmp.eq.s32.totalorder %v296, %v6805
    %vm6864 = vcmp.eq.s32.totalorder %v293, %v6808
    %vm6865 = vcmp.eq.s32.totalorder %v294, %v6808
    %vm6866 = vcmp.eq.s32.totalorder %v295, %v6808
    %vm6867 = vcmp.eq.s32.totalorder %v296, %v6808
    %vm6868 = vcmp.eq.s32.totalorder %v293, %v6811
    %vm6869 = vcmp.eq.s32.totalorder %v294, %v6811
    %vm6870 = vcmp.eq.s32.totalorder %v295, %v6811
    %vm6871 = vcmp.eq.s32.totalorder %v296, %v6811
    %vm6872 = vcmp.eq.s32.totalorder %v293, %v6814
    %vm6873 = vcmp.eq.s32.totalorder %v294, %v6814
    %vm6874 = vcmp.eq.s32.totalorder %v295, %v6814
    %vm6875 = vcmp.eq.s32.totalorder %v296, %v6814
    %vm6876 = vcmp.eq.s32.totalorder %v293, %v6817
    %vm6877 = vcmp.eq.s32.totalorder %v294, %v6817
    %vm6878 = vcmp.eq.s32.totalorder %v295, %v6817
    %vm6879 = vcmp.eq.s32.totalorder %v296, %v6817
    %vm6880 = vcmp.eq.s32.totalorder %v293, %v6820
    %vm6881 = vcmp.eq.s32.totalorder %v294, %v6820
    %vm6882 = vcmp.eq.s32.totalorder %v295, %v6820
    %vm6883 = vcmp.eq.s32.totalorder %v296, %v6820
    %vm6884 = vcmp.eq.s32.totalorder %v293, %v6823
    %vm6885 = vcmp.eq.s32.totalorder %v294, %v6823
    %vm6886 = vcmp.eq.s32.totalorder %v295, %v6823
    %vm6887 = vcmp.eq.s32.totalorder %v296, %v6823
    %v6888 = vsel %vm6744, 1, 0
    %v6889 = vsel %vm6745, 1, 0
    %v6890 = vsel %vm6746, 1, 0
    %v6891 = vsel %vm6747, 1, 0
    %v6892 = vsel %vm6748, 1, 0
    %v6893 = vsel %vm6749, 1, 0
    %v6894 = vsel %vm6750, 1, 0
    %v6895 = vsel %vm6751, 1, 0
    %v6896 = vsel %vm6752, 1, 0
    %v6897 = vsel %vm6753, 1, 0
    %v6898 = vsel %vm6754, 1, 0
    %v6899 = vsel %vm6755, 1, 0
    %v6900 = vsel %vm6756, 1, 0
    %v6901 = vsel %vm6757, 1, 0
    %v6902 = vsel %vm6758, 1, 0
    %v6903 = vsel %vm6759, 1, 0
    %6904 = vset.pattern.permute.xlu0 0
    %6905 = vperm.xlu0 %6904, %v6888
    %v6906 = vpop.permute.xlu0 %6905
    %6907 = vset.pattern.permute.xlu0 0
    %6908 = vperm.xlu0 %6907, %v6889
    %v6909 = vpop.permute.xlu0 %6908
    %6910 = vset.pattern.permute.xlu0 0
    %6911 = vperm.xlu0 %6910, %v6890
    %v6912 = vpop.permute.xlu0 %6911
    %6913 = vset.pattern.permute.xlu0 0
    %6914 = vperm.xlu0 %6913, %v6891
    %v6915 = vpop.permute.xlu0 %6914
    %6916 = vset.pattern.permute.xlu0 0
    %6917 = vperm.xlu0 %6916, %v6892
    %v6918 = vpop.permute.xlu0 %6917
    %6919 = vset.pattern.permute.xlu0 0
    %6920 = vperm.xlu0 %6919, %v6893
    %v6921 = vpop.permute.xlu0 %6920
    %6922 = vset.pattern.permute.xlu0 0
    %6923 = vperm.xlu0 %6922, %v6894
    %v6924 = vpop.permute.xlu0 %6923
    %6925 = vset.pattern.permute.xlu0 0
    %6926 = vperm.xlu0 %6925, %v6895
    %v6927 = vpop.permute.xlu0 %6926
    %6928 = vset.pattern.permute.xlu0 0
    %6929 = vperm.xlu0 %6928, %v6896
    %v6930 = vpop.permute.xlu0 %6929
    %6931 = vset.pattern.permute.xlu0 0
    %6932 = vperm.xlu0 %6931, %v6897
    %v6933 = vpop.permute.xlu0 %6932
    %6934 = vset.pattern.permute.xlu0 0
    %6935 = vperm.xlu0 %6934, %v6898
    %v6936 = vpop.permute.xlu0 %6935
    %6937 = vset.pattern.permute.xlu0 0
    %6938 = vperm.xlu0 %6937, %v6899
    %v6939 = vpop.permute.xlu0 %6938
    %6940 = vset.pattern.permute.xlu0 0
    %6941 = vperm.xlu0 %6940, %v6900
    %v6942 = vpop.permute.xlu0 %6941
    %6943 = vset.pattern.permute.xlu0 0
    %6944 = vperm.xlu0 %6943, %v6901
    %v6945 = vpop.permute.xlu0 %6944
    %6946 = vset.pattern.permute.xlu0 0
    %6947 = vperm.xlu0 %6946, %v6902
    %v6948 = vpop.permute.xlu0 %6947
    %6949 = vset.pattern.permute.xlu0 0
    %6950 = vperm.xlu0 %6949, %v6903
    %v6951 = vpop.permute.xlu0 %6950
    %vm6952 = vcmp.eq.s32.totalorder %v6906, 1
    %vm6953 = vcmp.eq.s32.totalorder %v6909, 1
    %vm6954 = vcmp.eq.s32.totalorder %v6912, 1
    %vm6955 = vcmp.eq.s32.totalorder %v6915, 1
    %vm6956 = vcmp.eq.s32.totalorder %v6918, 1
    %vm6957 = vcmp.eq.s32.totalorder %v6921, 1
    %vm6958 = vcmp.eq.s32.totalorder %v6924, 1
    %vm6959 = vcmp.eq.s32.totalorder %v6927, 1
    %vm6960 = vcmp.eq.s32.totalorder %v6930, 1
    %vm6961 = vcmp.eq.s32.totalorder %v6933, 1
    %vm6962 = vcmp.eq.s32.totalorder %v6936, 1
    %vm6963 = vcmp.eq.s32.totalorder %v6939, 1
    %vm6964 = vcmp.eq.s32.totalorder %v6942, 1
    %vm6965 = vcmp.eq.s32.totalorder %v6945, 1
    %vm6966 = vcmp.eq.s32.totalorder %v6948, 1
    %vm6967 = vcmp.eq.s32.totalorder %v6951, 1
    %vm6968 = vmand %vm6824, %vm6952
    %vm6969 = vmand %vm6825, %vm6952
    %vm6970 = vmand %vm6826, %vm6952
    %vm6971 = vmand %vm6827, %vm6952
    %vm6972 = vmand %vm6828, %vm6953
    %vm6973 = vmand %vm6829, %vm6953
    %vm6974 = vmand %vm6830, %vm6953
    %vm6975 = vmand %vm6831, %vm6953
    %vm6976 = vmand %vm6832, %vm6954
    %vm6977 = vmand %vm6833, %vm6954
    %vm6978 = vmand %vm6834, %vm6954
    %vm6979 = vmand %vm6835, %vm6954
    %vm6980 = vmand %vm6836, %vm6955
    %vm6981 = vmand %vm6837, %vm6955
    %vm6982 = vmand %vm6838, %vm6955
    %vm6983 = vmand %vm6839, %vm6955
    %vm6984 = vmand %vm6840, %vm6956
    %vm6985 = vmand %vm6841, %vm6956
    %vm6986 = vmand %vm6842, %vm6956
    %vm6987 = vmand %vm6843, %vm6956
    %vm6988 = vmand %vm6844, %vm6957
    %vm6989 = vmand %vm6845, %vm6957
    %vm6990 = vmand %vm6846, %vm6957
    %vm6991 = vmand %vm6847, %vm6957
    %vm6992 = vmand %vm6848, %vm6958
    %vm6993 = vmand %vm6849, %vm6958
    %vm6994 = vmand %vm6850, %vm6958
    %vm6995 = vmand %vm6851, %vm6958
    %vm6996 = vmand %vm6852, %vm6959
    %vm6997 = vmand %vm6853, %vm6959
    %vm6998 = vmand %vm6854, %vm6959
    %vm6999 = vmand %vm6855, %vm6959
    %vm7000 = vmand %vm6856, %vm6960
    %vm7001 = vmand %vm6857, %vm6960
    %vm7002 = vmand %vm6858, %vm6960
    %vm7003 = vmand %vm6859, %vm6960
    %vm7004 = vmand %vm6860, %vm6961
    %vm7005 = vmand %vm6861, %vm6961
    %vm7006 = vmand %vm6862, %vm6961
    %vm7007 = vmand %vm6863, %vm6961
    %vm7008 = vmand %vm6864, %vm6962
    %vm7009 = vmand %vm6865, %vm6962
    %vm7010 = vmand %vm6866, %vm6962
    %vm7011 = vmand %vm6867, %vm6962
    %vm7012 = vmand %vm6868, %vm6963
    %vm7013 = vmand %vm6869, %vm6963
    %vm7014 = vmand %vm6870, %vm6963
    %vm7015 = vmand %vm6871, %vm6963
    %vm7016 = vmand %vm6872, %vm6964
    %vm7017 = vmand %vm6873, %vm6964
    %vm7018 = vmand %vm6874, %vm6964
    %vm7019 = vmand %vm6875, %vm6964
    %vm7020 = vmand %vm6876, %vm6965
    %vm7021 = vmand %vm6877, %vm6965
    %vm7022 = vmand %vm6878, %vm6965
    %vm7023 = vmand %vm6879, %vm6965
    %vm7024 = vmand %vm6880, %vm6966
    %vm7025 = vmand %vm6881, %vm6966
    %vm7026 = vmand %vm6882, %vm6966
    %vm7027 = vmand %vm6883, %vm6966
    %vm7028 = vmand %vm6884, %vm6967
    %vm7029 = vmand %vm6885, %vm6967
    %vm7030 = vmand %vm6886, %vm6967
    %vm7031 = vmand %vm6887, %vm6967
    %v7032 = vsel %vm6968, 1.0, 0.0
    %v7033 = vsel %vm6969, 1.0, 0.0
    %v7034 = vsel %vm6970, 1.0, 0.0
    %v7035 = vsel %vm6971, 1.0, 0.0
    %v7036 = vsel %vm6972, 1.0, 0.0
    %v7037 = vsel %vm6973, 1.0, 0.0
    %v7038 = vsel %vm6974, 1.0, 0.0
    %v7039 = vsel %vm6975, 1.0, 0.0
    %v7040 = vsel %vm6976, 1.0, 0.0
    %v7041 = vsel %vm6977, 1.0, 0.0
    %v7042 = vsel %vm6978, 1.0, 0.0
    %v7043 = vsel %vm6979, 1.0, 0.0
    %v7044 = vsel %vm6980, 1.0, 0.0
    %v7045 = vsel %vm6981, 1.0, 0.0
    %v7046 = vsel %vm6982, 1.0, 0.0
    %v7047 = vsel %vm6983, 1.0, 0.0
    %v7048 = vsel %vm6984, 1.0, 0.0
    %v7049 = vsel %vm6985, 1.0, 0.0
    %v7050 = vsel %vm6986, 1.0, 0.0
    %v7051 = vsel %vm6987, 1.0, 0.0
    %v7052 = vsel %vm6988, 1.0, 0.0
    %v7053 = vsel %vm6989, 1.0, 0.0
    %v7054 = vsel %vm6990, 1.0, 0.0
    %v7055 = vsel %vm6991, 1.0, 0.0
    %v7056 = vsel %vm6992, 1.0, 0.0
    %v7057 = vsel %vm6993, 1.0, 0.0
    %v7058 = vsel %vm6994, 1.0, 0.0
    %v7059 = vsel %vm6995, 1.0, 0.0
    %v7060 = vsel %vm6996, 1.0, 0.0
    %v7061 = vsel %vm6997, 1.0, 0.0
    %v7062 = vsel %vm6998, 1.0, 0.0
    %v7063 = vsel %vm6999, 1.0, 0.0
    %v7064 = vsel %vm7000, 1.0, 0.0
    %v7065 = vsel %vm7001, 1.0, 0.0
    %v7066 = vsel %vm7002, 1.0, 0.0
    %v7067 = vsel %vm7003, 1.0, 0.0
    %v7068 = vsel %vm7004, 1.0, 0.0
    %v7069 = vsel %vm7005, 1.0, 0.0
    %v7070 = vsel %vm7006, 1.0, 0.0
    %v7071 = vsel %vm7007, 1.0, 0.0
    %v7072 = vsel %vm7008, 1.0, 0.0
    %v7073 = vsel %vm7009, 1.0, 0.0
    %v7074 = vsel %vm7010, 1.0, 0.0
    %v7075 = vsel %vm7011, 1.0, 0.0
    %v7076 = vsel %vm7012, 1.0, 0.0
    %v7077 = vsel %vm7013, 1.0, 0.0
    %v7078 = vsel %vm7014, 1.0, 0.0
    %v7079 = vsel %vm7015, 1.0, 0.0
    %v7080 = vsel %vm7016, 1.0, 0.0
    %v7081 = vsel %vm7017, 1.0, 0.0
    %v7082 = vsel %vm7018, 1.0, 0.0
    %v7083 = vsel %vm7019, 1.0, 0.0
    %v7084 = vsel %vm7020, 1.0, 0.0
    %v7085 = vsel %vm7021, 1.0, 0.0
    %v7086 = vsel %vm7022, 1.0, 0.0
    %v7087 = vsel %vm7023, 1.0, 0.0
    %v7088 = vsel %vm7024, 1.0, 0.0
    %v7089 = vsel %vm7025, 1.0, 0.0
    %v7090 = vsel %vm7026, 1.0, 0.0
    %v7091 = vsel %vm7027, 1.0, 0.0
    %v7092 = vsel %vm7028, 1.0, 0.0
    %v7093 = vsel %vm7029, 1.0, 0.0
    %v7094 = vsel %vm7030, 1.0, 0.0
    %v7095 = vsel %vm7031, 1.0, 0.0
    %v7096 = vpack.c.bf16 %v7036, %v7032
    %v7097 = vpack.c.bf16 %v7037, %v7033
    %v7098 = vpack.c.bf16 %v7038, %v7034
    %v7099 = vpack.c.bf16 %v7039, %v7035
    %v7100 = vpack.c.bf16 %v7044, %v7040
    %v7101 = vpack.c.bf16 %v7045, %v7041
    %v7102 = vpack.c.bf16 %v7046, %v7042
    %v7103 = vpack.c.bf16 %v7047, %v7043
    %v7104 = vpack.c.bf16 %v7052, %v7048
    %v7105 = vpack.c.bf16 %v7053, %v7049
    %v7106 = vpack.c.bf16 %v7054, %v7050
    %v7107 = vpack.c.bf16 %v7055, %v7051
    %v7108 = vpack.c.bf16 %v7060, %v7056
    %v7109 = vpack.c.bf16 %v7061, %v7057
    %v7110 = vpack.c.bf16 %v7062, %v7058
    %v7111 = vpack.c.bf16 %v7063, %v7059
    %v7112 = vpack.c.bf16 %v7068, %v7064
    %v7113 = vpack.c.bf16 %v7069, %v7065
    %v7114 = vpack.c.bf16 %v7070, %v7066
    %v7115 = vpack.c.bf16 %v7071, %v7067
    %v7116 = vpack.c.bf16 %v7076, %v7072
    %v7117 = vpack.c.bf16 %v7077, %v7073
    %v7118 = vpack.c.bf16 %v7078, %v7074
    %v7119 = vpack.c.bf16 %v7079, %v7075
    %v7120 = vpack.c.bf16 %v7084, %v7080
    %v7121 = vpack.c.bf16 %v7085, %v7081
    %v7122 = vpack.c.bf16 %v7086, %v7082
    %v7123 = vpack.c.bf16 %v7087, %v7083
    %v7124 = vpack.c.bf16 %v7092, %v7088
    %v7125 = vpack.c.bf16 %v7093, %v7089
    %v7126 = vpack.c.bf16 %v7094, %v7090
    %v7127 = vpack.c.bf16 %v7095, %v7091
    %7128 = vmatpush.bf16.msra.mxu0 %v976
    %7129 = vmatpush.bf16.msra.mxu0 %v975
    %7130 = vmatpush.bf16.msra.mxu0 %v974
    %7131 = vmatpush.bf16.msra.mxu0 %v973
    %7132 = vmatpush.bf16.msra.mxu0 %v972
    %7133 = vmatpush.bf16.msra.mxu0 %v971
    %7134 = vmatpush.bf16.msra.mxu0 %v970
    %7135 = vmatpush.bf16.msra.mxu0 %v969
    %7136 = vmatmul.bf16.gmra.mxu0 %v7096
    %v7137 = vpop.f32.mrf.mxu0
    %v7138 = vadd.f32 0.0, %v7137
    %v7139 = vpop.f32.mrf.mxu0
    %v7140 = vadd.f32 0.0, %v7139
    %7141 = vmatmul.bf16.gmra.mxu0 %v7100
    %v7142 = vpop.f32.mrf.mxu0
    %v7143 = vadd.f32 0.0, %v7142
    %v7144 = vpop.f32.mrf.mxu0
    %v7145 = vadd.f32 0.0, %v7144
    %7146 = vmatmul.bf16.gmra.mxu0 %v7104
    %v7147 = vpop.f32.mrf.mxu0
    %v7148 = vadd.f32 0.0, %v7147
    %v7149 = vpop.f32.mrf.mxu0
    %v7150 = vadd.f32 0.0, %v7149
    %7151 = vmatmul.bf16.gmra.mxu0 %v7108
    %v7152 = vpop.f32.mrf.mxu0
    %v7153 = vadd.f32 0.0, %v7152
    %v7154 = vpop.f32.mrf.mxu0
    %v7155 = vadd.f32 0.0, %v7154
    %7156 = vmatmul.bf16.gmra.mxu0 %v7112
    %v7157 = vpop.f32.mrf.mxu0
    %v7158 = vadd.f32 0.0, %v7157
    %v7159 = vpop.f32.mrf.mxu0
    %v7160 = vadd.f32 0.0, %v7159
    %7161 = vmatmul.bf16.gmra.mxu0 %v7116
    %v7162 = vpop.f32.mrf.mxu0
    %v7163 = vadd.f32 0.0, %v7162
    %v7164 = vpop.f32.mrf.mxu0
    %v7165 = vadd.f32 0.0, %v7164
    %7166 = vmatmul.bf16.gmra.mxu0 %v7120
    %v7167 = vpop.f32.mrf.mxu0
    %v7168 = vadd.f32 0.0, %v7167
    %v7169 = vpop.f32.mrf.mxu0
    %v7170 = vadd.f32 0.0, %v7169
    %7171 = vmatmul.bf16.gmra.mxu0 %v7124
    %v7172 = vpop.f32.mrf.mxu0
    %v7173 = vadd.f32 0.0, %v7172
    %v7174 = vpop.f32.mrf.mxu0
    %v7175 = vadd.f32 0.0, %v7174
    %7176 = vdwg.mxu0
    %7177 = vmatpush.bf16.msra.mxu0 %v984
    %7178 = vmatpush.bf16.msra.mxu0 %v983
    %7179 = vmatpush.bf16.msra.mxu0 %v982
    %7180 = vmatpush.bf16.msra.mxu0 %v981
    %7181 = vmatpush.bf16.msra.mxu0 %v980
    %7182 = vmatpush.bf16.msra.mxu0 %v979
    %7183 = vmatpush.bf16.msra.mxu0 %v978
    %7184 = vmatpush.bf16.msra.mxu0 %v977
    %7185 = vmatmul.bf16.gmra.mxu0 %v7097
    %v7186 = vpop.f32.mrf.mxu0
    %v7187 = vadd.f32 %v7138, %v7186
    %v7188 = vpop.f32.mrf.mxu0
    %v7189 = vadd.f32 %v7140, %v7188
    %7190 = vmatmul.bf16.gmra.mxu0 %v7101
    %v7191 = vpop.f32.mrf.mxu0
    %v7192 = vadd.f32 %v7143, %v7191
    %v7193 = vpop.f32.mrf.mxu0
    %v7194 = vadd.f32 %v7145, %v7193
    %7195 = vmatmul.bf16.gmra.mxu0 %v7105
    %v7196 = vpop.f32.mrf.mxu0
    %v7197 = vadd.f32 %v7148, %v7196
    %v7198 = vpop.f32.mrf.mxu0
    %v7199 = vadd.f32 %v7150, %v7198
    %7200 = vmatmul.bf16.gmra.mxu0 %v7109
    %v7201 = vpop.f32.mrf.mxu0
    %v7202 = vadd.f32 %v7153, %v7201
    %v7203 = vpop.f32.mrf.mxu0
    %v7204 = vadd.f32 %v7155, %v7203
    %7205 = vmatmul.bf16.gmra.mxu0 %v7113
    %v7206 = vpop.f32.mrf.mxu0
    %v7207 = vadd.f32 %v7158, %v7206
    %v7208 = vpop.f32.mrf.mxu0
    %v7209 = vadd.f32 %v7160, %v7208
    %7210 = vmatmul.bf16.gmra.mxu0 %v7117
    %v7211 = vpop.f32.mrf.mxu0
    %v7212 = vadd.f32 %v7163, %v7211
    %v7213 = vpop.f32.mrf.mxu0
    %v7214 = vadd.f32 %v7165, %v7213
    %7215 = vmatmul.bf16.gmra.mxu0 %v7121
    %v7216 = vpop.f32.mrf.mxu0
    %v7217 = vadd.f32 %v7168, %v7216
    %v7218 = vpop.f32.mrf.mxu0
    %v7219 = vadd.f32 %v7170, %v7218
    %7220 = vmatmul.bf16.gmra.mxu0 %v7125
    %v7221 = vpop.f32.mrf.mxu0
    %v7222 = vadd.f32 %v7173, %v7221
    %v7223 = vpop.f32.mrf.mxu0
    %v7224 = vadd.f32 %v7175, %v7223
    %7225 = vdwg.mxu0
    %7226 = vmatpush.bf16.msra.mxu0 %v992
    %7227 = vmatpush.bf16.msra.mxu0 %v991
    %7228 = vmatpush.bf16.msra.mxu0 %v990
    %7229 = vmatpush.bf16.msra.mxu0 %v989
    %7230 = vmatpush.bf16.msra.mxu0 %v988
    %7231 = vmatpush.bf16.msra.mxu0 %v987
    %7232 = vmatpush.bf16.msra.mxu0 %v986
    %7233 = vmatpush.bf16.msra.mxu0 %v985
    %7234 = vmatmul.bf16.gmra.mxu0 %v7098
    %v7235 = vpop.f32.mrf.mxu0
    %v7236 = vadd.f32 %v7187, %v7235
    %v7237 = vpop.f32.mrf.mxu0
    %v7238 = vadd.f32 %v7189, %v7237
    %7239 = vmatmul.bf16.gmra.mxu0 %v7102
    %v7240 = vpop.f32.mrf.mxu0
    %v7241 = vadd.f32 %v7192, %v7240
    %v7242 = vpop.f32.mrf.mxu0
    %v7243 = vadd.f32 %v7194, %v7242
    %7244 = vmatmul.bf16.gmra.mxu0 %v7106
    %v7245 = vpop.f32.mrf.mxu0
    %v7246 = vadd.f32 %v7197, %v7245
    %v7247 = vpop.f32.mrf.mxu0
    %v7248 = vadd.f32 %v7199, %v7247
    %7249 = vmatmul.bf16.gmra.mxu0 %v7110
    %v7250 = vpop.f32.mrf.mxu0
    %v7251 = vadd.f32 %v7202, %v7250
    %v7252 = vpop.f32.mrf.mxu0
    %v7253 = vadd.f32 %v7204, %v7252
    %7254 = vmatmul.bf16.gmra.mxu0 %v7114
    %v7255 = vpop.f32.mrf.mxu0
    %v7256 = vadd.f32 %v7207, %v7255
    %v7257 = vpop.f32.mrf.mxu0
    %v7258 = vadd.f32 %v7209, %v7257
    %7259 = vmatmul.bf16.gmra.mxu0 %v7118
    %v7260 = vpop.f32.mrf.mxu0
    %v7261 = vadd.f32 %v7212, %v7260
    %v7262 = vpop.f32.mrf.mxu0
    %v7263 = vadd.f32 %v7214, %v7262
    %7264 = vmatmul.bf16.gmra.mxu0 %v7122
    %v7265 = vpop.f32.mrf.mxu0
    %v7266 = vadd.f32 %v7217, %v7265
    %v7267 = vpop.f32.mrf.mxu0
    %v7268 = vadd.f32 %v7219, %v7267
    %7269 = vmatmul.bf16.gmra.mxu0 %v7126
    %v7270 = vpop.f32.mrf.mxu0
    %v7271 = vadd.f32 %v7222, %v7270
    %v7272 = vpop.f32.mrf.mxu0
    %v7273 = vadd.f32 %v7224, %v7272
    %7274 = vdwg.mxu0
    %7275 = vmatpush.bf16.msra.mxu0 %v1000
    %7276 = vmatpush.bf16.msra.mxu0 %v999
    %7277 = vmatpush.bf16.msra.mxu0 %v998
    %7278 = vmatpush.bf16.msra.mxu0 %v997
    %7279 = vmatpush.bf16.msra.mxu0 %v996
    %7280 = vmatpush.bf16.msra.mxu0 %v995
    %7281 = vmatpush.bf16.msra.mxu0 %v994
    %7282 = vmatpush.bf16.msra.mxu0 %v993
    %7283 = vmatmul.bf16.gmra.mxu0 %v7099
    %v7284 = vpop.f32.mrf.mxu0
    %v7285 = vadd.f32 %v7236, %v7284
    %v7286 = vpop.f32.mrf.mxu0
    %v7287 = vadd.f32 %v7238, %v7286
    %7288 = vmatmul.bf16.gmra.mxu0 %v7103
    %v7289 = vpop.f32.mrf.mxu0
    %v7290 = vadd.f32 %v7241, %v7289
    %v7291 = vpop.f32.mrf.mxu0
    %v7292 = vadd.f32 %v7243, %v7291
    %7293 = vmatmul.bf16.gmra.mxu0 %v7107
    %v7294 = vpop.f32.mrf.mxu0
    %v7295 = vadd.f32 %v7246, %v7294
    %v7296 = vpop.f32.mrf.mxu0
    %v7297 = vadd.f32 %v7248, %v7296
    %7298 = vmatmul.bf16.gmra.mxu0 %v7111
    %v7299 = vpop.f32.mrf.mxu0
    %v7300 = vadd.f32 %v7251, %v7299
    %v7301 = vpop.f32.mrf.mxu0
    %v7302 = vadd.f32 %v7253, %v7301
    %7303 = vmatmul.bf16.gmra.mxu0 %v7115
    %v7304 = vpop.f32.mrf.mxu0
    %v7305 = vadd.f32 %v7256, %v7304
    %v7306 = vpop.f32.mrf.mxu0
    %v7307 = vadd.f32 %v7258, %v7306
    %7308 = vmatmul.bf16.gmra.mxu0 %v7119
    %v7309 = vpop.f32.mrf.mxu0
    %v7310 = vadd.f32 %v7261, %v7309
    %v7311 = vpop.f32.mrf.mxu0
    %v7312 = vadd.f32 %v7263, %v7311
    %7313 = vmatmul.bf16.gmra.mxu0 %v7123
    %v7314 = vpop.f32.mrf.mxu0
    %v7315 = vadd.f32 %v7266, %v7314
    %v7316 = vpop.f32.mrf.mxu0
    %v7317 = vadd.f32 %v7268, %v7316
    %7318 = vmatmul.bf16.gmra.mxu0 %v7127
    %v7319 = vpop.f32.mrf.mxu0
    %v7320 = vadd.f32 %v7271, %v7319
    %v7321 = vpop.f32.mrf.mxu0
    %v7322 = vadd.f32 %v7273, %v7321
    %7323 = vdwg.mxu0
    %v7324 = vpack.c.bf16 %v7287, %v7285
    %v7325 = vpack.c.bf16 %v7292, %v7290
    %v7326 = vpack.c.bf16 %v7297, %v7295
    %v7327 = vpack.c.bf16 %v7302, %v7300
    %v7328 = vpack.c.bf16 %v7307, %v7305
    %v7329 = vpack.c.bf16 %v7312, %v7310
    %v7330 = vpack.c.bf16 %v7317, %v7315
    %v7331 = vpack.c.bf16 %v7322, %v7320
    %s7332 = scalar_lea.vmem %s4, 512
    %v7333 = vld [vmem:[%s7332] sm:$0xf]
    %v7334 = vld [vmem:[%s7332 + $0x4] sm:$0xf]
    %v7335 = vld [vmem:[%s7332 + $0x8] sm:$0xf]
    %v7336 = vld [vmem:[%s7332 + $0xc] sm:$0xf]
    %v7337 = vld [vmem:[%s7332 + $0x10] sm:$0xf]
    %v7338 = vld [vmem:[%s7332 + $0x14] sm:$0xf]
    %v7339 = vld [vmem:[%s7332 + $0x18] sm:$0xf]
    %v7340 = vld [vmem:[%s7332 + $0x1c] sm:$0xf]
    %v7341 = vld [vmem:[%s7332 + $0x20] sm:$0xf]
    %v7342 = vld [vmem:[%s7332 + $0x24] sm:$0xf]
    %v7343 = vld [vmem:[%s7332 + $0x28] sm:$0xf]
    %v7344 = vld [vmem:[%s7332 + $0x2c] sm:$0xf]
    %v7345 = vld [vmem:[%s7332 + $0x30] sm:$0xf]
    %v7346 = vld [vmem:[%s7332 + $0x34] sm:$0xf]
    %v7347 = vld [vmem:[%s7332 + $0x38] sm:$0xf]
    %v7348 = vld [vmem:[%s7332 + $0x3c] sm:$0xf]
    %v7365 = vunpack.c.l.b16 %v7333
    %v7366 = vunpack.c.l.b16 %v7334
    %v7367 = vunpack.c.l.b16 %v7335
    %v7368 = vunpack.c.l.b16 %v7336
    %v7369 = vunpack.c.l.b16 %v7337
    %v7370 = vunpack.c.l.b16 %v7338
    %v7371 = vunpack.c.l.b16 %v7339
    %v7372 = vunpack.c.l.b16 %v7340
    %v7373 = vunpack.c.l.b16 %v7341
    %v7374 = vunpack.c.l.b16 %v7342
    %v7375 = vunpack.c.l.b16 %v7343
    %v7376 = vunpack.c.l.b16 %v7344
    %v7377 = vunpack.c.l.b16 %v7345
    %v7378 = vunpack.c.l.b16 %v7346
    %v7379 = vunpack.c.l.b16 %v7347
    %v7380 = vunpack.c.l.b16 %v7348
    %v7381 = vpack.c.b16 %v7366, %v7365
    %v7382 = vpack.c.b16 %v7368, %v7367
    %v7383 = vpack.c.b16 %v7370, %v7369
    %v7384 = vpack.c.b16 %v7372, %v7371
    %v7385 = vpack.c.b16 %v7374, %v7373
    %v7386 = vpack.c.b16 %v7376, %v7375
    %v7387 = vpack.c.b16 %v7378, %v7377
    %v7388 = vpack.c.b16 %v7380, %v7379
    %7397 = vmatpush.bf16.msra.mxu0 %v7388
    %7398 = vmatpush.bf16.msra.mxu0 %v7387
    %7399 = vmatpush.bf16.msra.mxu0 %v7386
    %7400 = vmatpush.bf16.msra.mxu0 %v7385
    %7401 = vmatpush.bf16.msra.mxu0 %v7384
    %7402 = vmatpush.bf16.msra.mxu0 %v7383
    %7403 = vmatpush.bf16.msra.mxu0 %v7382
    %7404 = vmatpush.bf16.msra.mxu0 %v7381
    %7405 = vmatmul.bf16.gmra.mxu0 %v7324
    %v7406 = vpop.f32.mrf.mxu0
    %v7407 = vadd.f32 0.0, %v7406
    %v7408 = vpop.f32.mrf.mxu0
    %v7409 = vadd.f32 0.0, %v7408
    %7410 = vmatmul.bf16.gmra.mxu0 %v7325
    %v7411 = vpop.f32.mrf.mxu0
    %v7412 = vadd.f32 0.0, %v7411
    %v7413 = vpop.f32.mrf.mxu0
    %v7414 = vadd.f32 0.0, %v7413
    %7415 = vmatmul.bf16.gmra.mxu0 %v7326
    %v7416 = vpop.f32.mrf.mxu0
    %v7417 = vadd.f32 0.0, %v7416
    %v7418 = vpop.f32.mrf.mxu0
    %v7419 = vadd.f32 0.0, %v7418
    %7420 = vmatmul.bf16.gmra.mxu0 %v7327
    %v7421 = vpop.f32.mrf.mxu0
    %v7422 = vadd.f32 0.0, %v7421
    %v7423 = vpop.f32.mrf.mxu0
    %v7424 = vadd.f32 0.0, %v7423
    %7425 = vmatmul.bf16.gmra.mxu0 %v7328
    %v7426 = vpop.f32.mrf.mxu0
    %v7427 = vadd.f32 0.0, %v7426
    %v7428 = vpop.f32.mrf.mxu0
    %v7429 = vadd.f32 0.0, %v7428
    %7430 = vmatmul.bf16.gmra.mxu0 %v7329
    %v7431 = vpop.f32.mrf.mxu0
    %v7432 = vadd.f32 0.0, %v7431
    %v7433 = vpop.f32.mrf.mxu0
    %v7434 = vadd.f32 0.0, %v7433
    %7435 = vmatmul.bf16.gmra.mxu0 %v7330
    %v7436 = vpop.f32.mrf.mxu0
    %v7437 = vadd.f32 0.0, %v7436
    %v7438 = vpop.f32.mrf.mxu0
    %v7439 = vadd.f32 0.0, %v7438
    %7440 = vmatmul.bf16.gmra.mxu0 %v7331
    %v7441 = vpop.f32.mrf.mxu0
    %v7442 = vadd.f32 0.0, %v7441
    %v7443 = vpop.f32.mrf.mxu0
    %v7444 = vadd.f32 0.0, %v7443
    %7445 = vdwg.mxu0
    %v7446 = vadd.f32 %v6712, %v7407
    %v7447 = vadd.f32 %v6713, %v7409
    %v7448 = vadd.f32 %v6714, %v7412
    %v7449 = vadd.f32 %v6715, %v7414
    %v7450 = vadd.f32 %v6716, %v7417
    %v7451 = vadd.f32 %v6717, %v7419
    %v7452 = vadd.f32 %v6718, %v7422
    %v7453 = vadd.f32 %v6719, %v7424
    %v7454 = vadd.f32 %v6720, %v7427
    %v7455 = vadd.f32 %v6721, %v7429
    %v7456 = vadd.f32 %v6722, %v7432
    %v7457 = vadd.f32 %v6723, %v7434
    %v7458 = vadd.f32 %v6724, %v7437
    %v7459 = vadd.f32 %v6725, %v7439
    %v7460 = vadd.f32 %v6726, %v7442
    %v7461 = vadd.f32 %v6727, %v7444
    %v7462 = vld [vmem:[%s5] sm:$0x1]
    %v7464 = vperm.slane %v7462, 0
    %v7466 = vadd.f32 %v7446, %v7464
    %v7467 = vadd.f32 %v7447, %v7464
    %v7468 = vadd.f32 %v7448, %v7464
    %v7469 = vadd.f32 %v7449, %v7464
    %v7470 = vadd.f32 %v7450, %v7464
    %v7471 = vadd.f32 %v7451, %v7464
    %v7472 = vadd.f32 %v7452, %v7464
    %v7473 = vadd.f32 %v7453, %v7464
    %v7474 = vadd.f32 %v7454, %v7464
    %v7475 = vadd.f32 %v7455, %v7464
    %v7476 = vadd.f32 %v7456, %v7464
    %v7477 = vadd.f32 %v7457, %v7464
    %v7478 = vadd.f32 %v7458, %v7464
    %v7479 = vadd.f32 %v7459, %v7464
    %v7480 = vadd.f32 %v7460, %v7464
    %v7481 = vadd.f32 %v7461, %v7464
    %v7482 = vmax.f32 %v7466, 0.0
    %v7483 = vmax.f32 %v7467, 0.0
    %v7484 = vmax.f32 %v7468, 0.0
    %v7485 = vmax.f32 %v7469, 0.0
    %v7486 = vmax.f32 %v7470, 0.0
    %v7487 = vmax.f32 %v7471, 0.0
    %v7488 = vmax.f32 %v7472, 0.0
    %v7489 = vmax.f32 %v7473, 0.0
    %v7490 = vmax.f32 %v7474, 0.0
    %v7491 = vmax.f32 %v7475, 0.0
    %v7492 = vmax.f32 %v7476, 0.0
    %v7493 = vmax.f32 %v7477, 0.0
    %v7494 = vmax.f32 %v7478, 0.0
    %v7495 = vmax.f32 %v7479, 0.0
    %v7496 = vmax.f32 %v7480, 0.0
    %v7497 = vmax.f32 %v7481, 0.0
    %v7498 = vpack.c.bf16 %v7483, %v7482
    %v7499 = vpack.c.bf16 %v7485, %v7484
    %v7500 = vpack.c.bf16 %v7487, %v7486
    %v7501 = vpack.c.bf16 %v7489, %v7488
    %v7502 = vpack.c.bf16 %v7491, %v7490
    %v7503 = vpack.c.bf16 %v7493, %v7492
    %v7504 = vpack.c.bf16 %v7495, %v7494
    %v7505 = vpack.c.bf16 %v7497, %v7496
    %v7506 = vld [vmem:[#allocation2] sm:$0xff]
    %v7507 = vld [vmem:[#allocation2 + $0x8] sm:$0xff]
    %v7508 = vld [vmem:[#allocation2 + $0x10] sm:$0xff]
    %v7509 = vld [vmem:[#allocation2 + $0x18] sm:$0xff]
    %v7510 = vld [vmem:[#allocation5] sm:$0xff]
    %v7511 = vld [vmem:[#allocation5 + $0x8] sm:$0xff]
    %v7512 = vld [vmem:[#allocation5 + $0x10] sm:$0xff]
    %v7513 = vld [vmem:[#allocation5 + $0x18] sm:$0xff]
    %v7514 = vld [vmem:[#allocation7] sm:$0xff]
    %v7515 = vld [vmem:[#allocation7 + $0x8] sm:$0xff]
    %v7516 = vld [vmem:[#allocation7 + $0x10] sm:$0xff]
    %v7517 = vld [vmem:[#allocation7 + $0x18] sm:$0xff]
    %v7518 = vadd.s32 %v7506, 4294967295
    %v7519 = vadd.s32 %v7507, 4294967295
    %v7520 = vadd.s32 %v7508, 4294967295
    %v7521 = vadd.s32 %v7509, 4294967295
    %v7522 = vadd.s32 %v7510, 4294967295
    %v7523 = vadd.s32 %v7511, 4294967295
    %v7524 = vadd.s32 %v7512, 4294967295
    %v7525 = vadd.s32 %v7513, 4294967295
    %vm7526 = vcmp.ge.s32.totalorder %v7518, 0
    %vm7527 = vcmp.ge.s32.totalorder %v7519, 0
    %vm7528 = vcmp.ge.s32.totalorder %v7520, 0
    %vm7529 = vcmp.ge.s32.totalorder %v7521, 0
    %vm7530 = vcmp.lt.s32.totalorder %v7518, 8
    %vm7531 = vcmp.lt.s32.totalorder %v7519, 8
    %vm7532 = vcmp.lt.s32.totalorder %v7520, 8
    %vm7533 = vcmp.lt.s32.totalorder %v7521, 8
    %vm7534 = vmand %vm7526, %vm7530
    %vm7535 = vmand %vm7527, %vm7531
    %vm7536 = vmand %vm7528, %vm7532
    %vm7537 = vmand %vm7529, %vm7533
    %vm7538 = vcmp.ge.s32.totalorder %v7522, 0
    %vm7539 = vcmp.ge.s32.totalorder %v7523, 0
    %vm7540 = vcmp.ge.s32.totalorder %v7524, 0
    %vm7541 = vcmp.ge.s32.totalorder %v7525, 0
    %vm7542 = vmand %vm7534, %vm7538
    %vm7543 = vmand %vm7535, %vm7539
    %vm7544 = vmand %vm7536, %vm7540
    %vm7545 = vmand %vm7537, %vm7541
    %vm7546 = vcmp.lt.s32.totalorder %v7522, 8
    %vm7547 = vcmp.lt.s32.totalorder %v7523, 8
    %vm7548 = vcmp.lt.s32.totalorder %v7524, 8
    %vm7549 = vcmp.lt.s32.totalorder %v7525, 8
    %vm7550 = vmand %vm7542, %vm7546
    %vm7551 = vmand %vm7543, %vm7547
    %vm7552 = vmand %vm7544, %vm7548
    %vm7553 = vmand %vm7545, %vm7549
    %v7554 = vmul.u32 %v7518, 8
    %v7555 = vmul.u32 %v7519, 8
    %v7556 = vmul.u32 %v7520, 8
    %v7557 = vmul.u32 %v7521, 8
    %v7558 = vadd.s32 %v7514, %v7554
    %v7559 = vadd.s32 %v7515, %v7555
    %v7560 = vadd.s32 %v7516, %v7556
    %v7561 = vadd.s32 %v7517, %v7557
    %v7562 = vadd.s32 %v7558, %v7522
    %v7563 = vadd.s32 %v7559, %v7523
    %v7564 = vadd.s32 %v7560, %v7524
    %v7565 = vadd.s32 %v7561, %v7525
    %7566 = vset.pattern.permute.xlu0 0
    %7567 = vperm.xlu0 %7566, %v7562
    %v7568 = vpop.permute.xlu0 %7567
    %7569 = vset.pattern.permute.xlu0 0
    %7570 = vperm.xlu0 %7569, %v7563
    %v7571 = vpop.permute.xlu0 %7570
    %7572 = vset.pattern.permute.xlu0 0
    %7573 = vperm.xlu0 %7572, %v7564
    %v7574 = vpop.permute.xlu0 %7573
    %7575 = vset.pattern.permute.xlu0 0
    %7576 = vperm.xlu0 %7575, %v7565
    %v7577 = vpop.permute.xlu0 %7576
    %vm7578 = vcmp.eq.s32.totalorder %v293, %v7568
    %vm7579 = vcmp.eq.s32.totalorder %v293, %v7571
    %vm7580 = vcmp.eq.s32.totalorder %v293, %v7574
    %vm7581 = vcmp.eq.s32.totalorder %v293, %v7577
    %v7582 = vsel %vm7550, 1, 0
    %v7583 = vsel %vm7551, 1, 0
    %v7584 = vsel %vm7552, 1, 0
    %v7585 = vsel %vm7553, 1, 0
    %7586 = vset.pattern.permute.xlu0 0
    %7587 = vperm.xlu0 %7586, %v7582
    %v7588 = vpop.permute.xlu0 %7587
    %7589 = vset.pattern.permute.xlu0 0
    %7590 = vperm.xlu0 %7589, %v7583
    %v7591 = vpop.permute.xlu0 %7590
    %7592 = vset.pattern.permute.xlu0 0
    %7593 = vperm.xlu0 %7592, %v7584
    %v7594 = vpop.permute.xlu0 %7593
    %7595 = vset.pattern.permute.xlu0 0
    %7596 = vperm.xlu0 %7595, %v7585
    %v7597 = vpop.permute.xlu0 %7596
    %vm7598 = vcmp.eq.s32.totalorder %v7588, 1
    %vm7599 = vcmp.eq.s32.totalorder %v7591, 1
    %vm7600 = vcmp.eq.s32.totalorder %v7594, 1
    %vm7601 = vcmp.eq.s32.totalorder %v7597, 1
    %vm7602 = vmand %vm7578, %vm7598
    %vm7603 = vmand %vm7579, %vm7599
    %vm7604 = vmand %vm7580, %vm7600
    %vm7605 = vmand %vm7581, %vm7601
    %v7606 = vsel %vm7602, 1.0, 0.0
    %v7607 = vsel %vm7603, 1.0, 0.0
    %v7608 = vsel %vm7604, 1.0, 0.0
    %v7609 = vsel %vm7605, 1.0, 0.0
    %v7610 = vpack.c.bf16 %v7607, %v7606
    %v7611 = vpack.c.bf16 %v7609, %v7608
    %7612 = vmatpush.bf16.msra.mxu0 %v7505
    %7613 = vmatpush.bf16.msra.mxu0 %v7504
    %7614 = vmatpush.bf16.msra.mxu0 %v7503
    %7615 = vmatpush.bf16.msra.mxu0 %v7502
    %7616 = vmatpush.bf16.msra.mxu0 %v7501
    %7617 = vmatpush.bf16.msra.mxu0 %v7500
    %7618 = vmatpush.bf16.msra.mxu0 %v7499
    %7619 = vmatpush.bf16.msra.mxu0 %v7498
    %7620 = vmatmul.bf16.gmra.mxu0 %v7610
    %v7621 = vpop.f32.mrf.mxu0
    %v7622 = vadd.f32 0.0, %v7621
    %v7623 = vpop.f32.mrf.mxu0
    %v7624 = vadd.f32 0.0, %v7623
    %7625 = vmatmul.bf16.gmra.mxu0 %v7611
    %v7626 = vpop.f32.mrf.mxu0
    %v7627 = vadd.f32 0.0, %v7626
    %v7628 = vpop.f32.mrf.mxu0
    %v7629 = vadd.f32 0.0, %v7628
    %7630 = vdwg.mxu0
    %v7631 = vpack.c.bf16 %v7624, %v7622
    %v7632 = vpack.c.bf16 %v7629, %v7627
    %v7633 = vld [vmem:[#allocation8] sm:$0xf]
    %v7634 = vld [vmem:[#allocation8 + $0x4] sm:$0xf]
    %v7635 = vld [vmem:[#allocation8 + $0x8] sm:$0xf]
    %v7636 = vld [vmem:[#allocation8 + $0xc] sm:$0xf]
    %v7637 = vld [vmem:[#allocation8 + $0x10] sm:$0xf]
    %v7638 = vld [vmem:[#allocation8 + $0x14] sm:$0xf]
    %v7639 = vld [vmem:[#allocation8 + $0x18] sm:$0xf]
    %v7640 = vld [vmem:[#allocation8 + $0x1c] sm:$0xf]
    %v7641 = vld [vmem:[#allocation8 + $0x20] sm:$0xf]
    %v7642 = vld [vmem:[#allocation8 + $0x24] sm:$0xf]
    %v7643 = vld [vmem:[#allocation8 + $0x28] sm:$0xf]
    %v7644 = vld [vmem:[#allocation8 + $0x2c] sm:$0xf]
    %v7645 = vld [vmem:[#allocation8 + $0x30] sm:$0xf]
    %v7646 = vld [vmem:[#allocation8 + $0x34] sm:$0xf]
    %v7647 = vld [vmem:[#allocation8 + $0x38] sm:$0xf]
    %v7648 = vld [vmem:[#allocation8 + $0x3c] sm:$0xf]
    %vm7649 = vcmp.ge.s32.totalorder %v7510, 0
    %vm7650 = vcmp.ge.s32.totalorder %v7511, 0
    %vm7651 = vcmp.ge.s32.totalorder %v7512, 0
    %vm7652 = vcmp.ge.s32.totalorder %v7513, 0
    %vm7653 = vmand %vm7534, %vm7649
    %vm7654 = vmand %vm7535, %vm7650
    %vm7655 = vmand %vm7536, %vm7651
    %vm7656 = vmand %vm7537, %vm7652
    %vm7657 = vcmp.lt.s32.totalorder %v7510, 8
    %vm7658 = vcmp.lt.s32.totalorder %v7511, 8
    %vm7659 = vcmp.lt.s32.totalorder %v7512, 8
    %vm7660 = vcmp.lt.s32.totalorder %v7513, 8
    %vm7661 = vmand %vm7653, %vm7657
    %vm7662 = vmand %vm7654, %vm7658
    %vm7663 = vmand %vm7655, %vm7659
    %vm7664 = vmand %vm7656, %vm7660
    %v7665 = vadd.s32 %v7558, %v7510
    %v7666 = vadd.s32 %v7559, %v7511
    %v7667 = vadd.s32 %v7560, %v7512
    %v7668 = vadd.s32 %v7561, %v7513
    %7669 = vset.pattern.permute.xlu0 0
    %7670 = vperm.xlu0 %7669, %v7665
    %v7671 = vpop.permute.xlu0 %7670
    %7672 = vset.pattern.permute.xlu0 0
    %7673 = vperm.xlu0 %7672, %v7666
    %v7674 = vpop.permute.xlu0 %7673
    %7675 = vset.pattern.permute.xlu0 0
    %7676 = vperm.xlu0 %7675, %v7667
    %v7677 = vpop.permute.xlu0 %7676
    %7678 = vset.pattern.permute.xlu0 0
    %7679 = vperm.xlu0 %7678, %v7668
    %v7680 = vpop.permute.xlu0 %7679
    %vm7681 = vcmp.eq.s32.totalorder %v293, %v7671
    %vm7682 = vcmp.eq.s32.totalorder %v293, %v7674
    %vm7683 = vcmp.eq.s32.totalorder %v293, %v7677
    %vm7684 = vcmp.eq.s32.totalorder %v293, %v7680
    %v7685 = vsel %vm7661, 1, 0
    %v7686 = vsel %vm7662, 1, 0
    %v7687 = vsel %vm7663, 1, 0
    %v7688 = vsel %vm7664, 1, 0
    %7689 = vset.pattern.permute.xlu0 0
    %7690 = vperm.xlu0 %7689, %v7685
    %v7691 = vpop.permute.xlu0 %7690
    %7692 = vset.pattern.permute.xlu0 0
    %7693 = vperm.xlu0 %7692, %v7686
    %v7694 = vpop.permute.xlu0 %7693
    %7695 = vset.pattern.permute.xlu0 0
    %7696 = vperm.xlu0 %7695, %v7687
    %v7697 = vpop.permute.xlu0 %7696
    %7698 = vset.pattern.permute.xlu0 0
    %7699 = vperm.xlu0 %7698, %v7688
    %v7700 = vpop.permute.xlu0 %7699
    %vm7701 = vcmp.eq.s32.totalorder %v7691, 1
    %vm7702 = vcmp.eq.s32.totalorder %v7694, 1
    %vm7703 = vcmp.eq.s32.totalorder %v7697, 1
    %vm7704 = vcmp.eq.s32.totalorder %v7700, 1
    %vm7705 = vmand %vm7681, %vm7701
    %vm7706 = vmand %vm7682, %vm7702
    %vm7707 = vmand %vm7683, %vm7703
    %vm7708 = vmand %vm7684, %vm7704
    %v7709 = vsel %vm7705, 1.0, 0.0
    %v7710 = vsel %vm7706, 1.0, 0.0
    %v7711 = vsel %vm7707, 1.0, 0.0
    %v7712 = vsel %vm7708, 1.0, 0.0
    %v7713 = vpack.c.bf16 %v7710, %v7709
    %v7714 = vpack.c.bf16 %v7712, %v7711
    %7715 = vmatpush.bf16.msra.mxu0 %v7505
    %7716 = vmatpush.bf16.msra.mxu0 %v7504
    %7717 = vmatpush.bf16.msra.mxu0 %v7503
    %7718 = vmatpush.bf16.msra.mxu0 %v7502
    %7719 = vmatpush.bf16.msra.mxu0 %v7501
    %7720 = vmatpush.bf16.msra.mxu0 %v7500
    %7721 = vmatpush.bf16.msra.mxu0 %v7499
    %7722 = vmatpush.bf16.msra.mxu0 %v7498
    %7723 = vmatmul.bf16.gmra.mxu0 %v7713
    %v7724 = vpop.f32.mrf.mxu0
    %v7725 = vadd.f32 0.0, %v7724
    %v7726 = vpop.f32.mrf.mxu0
    %v7727 = vadd.f32 0.0, %v7726
    %7728 = vmatmul.bf16.gmra.mxu0 %v7714
    %v7729 = vpop.f32.mrf.mxu0
    %v7730 = vadd.f32 0.0, %v7729
    %v7731 = vpop.f32.mrf.mxu0
    %v7732 = vadd.f32 0.0, %v7731
    %7733 = vdwg.mxu0
    %v7734 = vpack.c.bf16 %v7727, %v7725
    %v7735 = vpack.c.bf16 %v7732, %v7730
    %s7736 = scalar_lea.vmem [#allocation8], 64
    %v7737 = vld [vmem:[%s7736] sm:$0xf]
    %v7738 = vld [vmem:[%s7736 + $0x4] sm:$0xf]
    %v7739 = vld [vmem:[%s7736 + $0x8] sm:$0xf]
    %v7740 = vld [vmem:[%s7736 + $0xc] sm:$0xf]
    %v7741 = vld [vmem:[%s7736 + $0x10] sm:$0xf]
    %v7742 = vld [vmem:[%s7736 + $0x14] sm:$0xf]
    %v7743 = vld [vmem:[%s7736 + $0x18] sm:$0xf]
    %v7744 = vld [vmem:[%s7736 + $0x1c] sm:$0xf]
    %v7745 = vld [vmem:[%s7736 + $0x20] sm:$0xf]
    %v7746 = vld [vmem:[%s7736 + $0x24] sm:$0xf]
    %v7747 = vld [vmem:[%s7736 + $0x28] sm:$0xf]
    %v7748 = vld [vmem:[%s7736 + $0x2c] sm:$0xf]
    %v7749 = vld [vmem:[%s7736 + $0x30] sm:$0xf]
    %v7750 = vld [vmem:[%s7736 + $0x34] sm:$0xf]
    %v7751 = vld [vmem:[%s7736 + $0x38] sm:$0xf]
    %v7752 = vld [vmem:[%s7736 + $0x3c] sm:$0xf]
    %v7769 = vunpack.c.l.b16 %v7737
    %v7770 = vunpack.c.l.b16 %v7738
    %v7771 = vunpack.c.l.b16 %v7739
    %v7772 = vunpack.c.l.b16 %v7740
    %v7773 = vunpack.c.l.b16 %v7741
    %v7774 = vunpack.c.l.b16 %v7742
    %v7775 = vunpack.c.l.b16 %v7743
    %v7776 = vunpack.c.l.b16 %v7744
    %v7777 = vunpack.c.l.b16 %v7745
    %v7778 = vunpack.c.l.b16 %v7746
    %v7779 = vunpack.c.l.b16 %v7747
    %v7780 = vunpack.c.l.b16 %v7748
    %v7781 = vunpack.c.l.b16 %v7749
    %v7782 = vunpack.c.l.b16 %v7750
    %v7783 = vunpack.c.l.b16 %v7751
    %v7784 = vunpack.c.l.b16 %v7752
    %v7785 = vpack.c.b16 %v7770, %v7769
    %v7786 = vpack.c.b16 %v7772, %v7771
    %v7787 = vpack.c.b16 %v7774, %v7773
    %v7788 = vpack.c.b16 %v7776, %v7775
    %v7789 = vpack.c.b16 %v7778, %v7777
    %v7790 = vpack.c.b16 %v7780, %v7779
    %v7791 = vpack.c.b16 %v7782, %v7781
    %v7792 = vpack.c.b16 %v7784, %v7783
    %7801 = vmatpush.bf16.msra.mxu0 %v7792
    %7802 = vmatpush.bf16.msra.mxu0 %v7791
    %7803 = vmatpush.bf16.msra.mxu0 %v7790
    %7804 = vmatpush.bf16.msra.mxu0 %v7789
    %7805 = vmatpush.bf16.msra.mxu0 %v7788
    %7806 = vmatpush.bf16.msra.mxu0 %v7787
    %7807 = vmatpush.bf16.msra.mxu0 %v7786
    %7808 = vmatpush.bf16.msra.mxu0 %v7785
    %7809 = vmatmul.bf16.gmra.mxu0 %v7734
    %v7810 = vpop.f32.mrf.mxu0
    %v7811 = vadd.f32 0.0, %v7810
    %v7812 = vpop.f32.mrf.mxu0
    %v7813 = vadd.f32 0.0, %v7812
    %7814 = vmatmul.bf16.gmra.mxu0 %v7735
    %v7815 = vpop.f32.mrf.mxu0
    %v7816 = vadd.f32 0.0, %v7815
    %v7817 = vpop.f32.mrf.mxu0
    %v7818 = vadd.f32 0.0, %v7817
    %7819 = vdwg.mxu0
    %v7836 = vunpack.c.l.b16 %v7633
    %v7837 = vunpack.c.l.b16 %v7634
    %v7838 = vunpack.c.l.b16 %v7635
    %v7839 = vunpack.c.l.b16 %v7636
    %v7840 = vunpack.c.l.b16 %v7637
    %v7841 = vunpack.c.l.b16 %v7638
    %v7842 = vunpack.c.l.b16 %v7639
    %v7843 = vunpack.c.l.b16 %v7640
    %v7844 = vunpack.c.l.b16 %v7641
    %v7845 = vunpack.c.l.b16 %v7642
    %v7846 = vunpack.c.l.b16 %v7643
    %v7847 = vunpack.c.l.b16 %v7644
    %v7848 = vunpack.c.l.b16 %v7645
    %v7849 = vunpack.c.l.b16 %v7646
    %v7850 = vunpack.c.l.b16 %v7647
    %v7851 = vunpack.c.l.b16 %v7648
    %v7852 = vpack.c.b16 %v7837, %v7836
    %v7853 = vpack.c.b16 %v7839, %v7838
    %v7854 = vpack.c.b16 %v7841, %v7840
    %v7855 = vpack.c.b16 %v7843, %v7842
    %v7856 = vpack.c.b16 %v7845, %v7844
    %v7857 = vpack.c.b16 %v7847, %v7846
    %v7858 = vpack.c.b16 %v7849, %v7848
    %v7859 = vpack.c.b16 %v7851, %v7850
    %7868 = vmatpush.bf16.msra.mxu0 %v7859
    %7869 = vmatpush.bf16.msra.mxu0 %v7858
    %7870 = vmatpush.bf16.msra.mxu0 %v7857
    %7871 = vmatpush.bf16.msra.mxu0 %v7856
    %7872 = vmatpush.bf16.msra.mxu0 %v7855
    %7873 = vmatpush.bf16.msra.mxu0 %v7854
    %7874 = vmatpush.bf16.msra.mxu0 %v7853
    %7875 = vmatpush.bf16.msra.mxu0 %v7852
    %7876 = vmatmul.bf16.gmra.mxu0 %v7631
    %v7877 = vpop.f32.mrf.mxu0
    %v7878 = vadd.f32 %v7811, %v7877
    %v7879 = vpop.f32.mrf.mxu0
    %v7880 = vadd.f32 %v7813, %v7879
    %7881 = vmatmul.bf16.gmra.mxu0 %v7632
    %v7882 = vpop.f32.mrf.mxu0
    %v7883 = vadd.f32 %v7816, %v7882
    %v7884 = vpop.f32.mrf.mxu0
    %v7885 = vadd.f32 %v7818, %v7884
    %7886 = vdwg.mxu0
    %v7887 = vadd.s32 %v7510, 1
    %v7888 = vadd.s32 %v7511, 1
    %v7889 = vadd.s32 %v7512, 1
    %v7890 = vadd.s32 %v7513, 1
    %vm7891 = vcmp.ge.s32.totalorder %v7887, 0
    %vm7892 = vcmp.ge.s32.totalorder %v7888, 0
    %vm7893 = vcmp.ge.s32.totalorder %v7889, 0
    %vm7894 = vcmp.ge.s32.totalorder %v7890, 0
    %vm7895 = vmand %vm7534, %vm7891
    %vm7896 = vmand %vm7535, %vm7892
    %vm7897 = vmand %vm7536, %vm7893
    %vm7898 = vmand %vm7537, %vm7894
    %vm7899 = vcmp.lt.s32.totalorder %v7887, 8
    %vm7900 = vcmp.lt.s32.totalorder %v7888, 8
    %vm7901 = vcmp.lt.s32.totalorder %v7889, 8
    %vm7902 = vcmp.lt.s32.totalorder %v7890, 8
    %vm7903 = vmand %vm7895, %vm7899
    %vm7904 = vmand %vm7896, %vm7900
    %vm7905 = vmand %vm7897, %vm7901
    %vm7906 = vmand %vm7898, %vm7902
    %v7907 = vadd.s32 %v7558, %v7887
    %v7908 = vadd.s32 %v7559, %v7888
    %v7909 = vadd.s32 %v7560, %v7889
    %v7910 = vadd.s32 %v7561, %v7890
    %7911 = vset.pattern.permute.xlu0 0
    %7912 = vperm.xlu0 %7911, %v7907
    %v7913 = vpop.permute.xlu0 %7912
    %7914 = vset.pattern.permute.xlu0 0
    %7915 = vperm.xlu0 %7914, %v7908
    %v7916 = vpop.permute.xlu0 %7915
    %7917 = vset.pattern.permute.xlu0 0
    %7918 = vperm.xlu0 %7917, %v7909
    %v7919 = vpop.permute.xlu0 %7918
    %7920 = vset.pattern.permute.xlu0 0
    %7921 = vperm.xlu0 %7920, %v7910
    %v7922 = vpop.permute.xlu0 %7921
    %vm7923 = vcmp.eq.s32.totalorder %v293, %v7913
    %vm7924 = vcmp.eq.s32.totalorder %v293, %v7916
    %vm7925 = vcmp.eq.s32.totalorder %v293, %v7919
    %vm7926 = vcmp.eq.s32.totalorder %v293, %v7922
    %v7927 = vsel %vm7903, 1, 0
    %v7928 = vsel %vm7904, 1, 0
    %v7929 = vsel %vm7905, 1, 0
    %v7930 = vsel %vm7906, 1, 0
    %7931 = vset.pattern.permute.xlu0 0
    %7932 = vperm.xlu0 %7931, %v7927
    %v7933 = vpop.permute.xlu0 %7932
    %7934 = vset.pattern.permute.xlu0 0
    %7935 = vperm.xlu0 %7934, %v7928
    %v7936 = vpop.permute.xlu0 %7935
    %7937 = vset.pattern.permute.xlu0 0
    %7938 = vperm.xlu0 %7937, %v7929
    %v7939 = vpop.permute.xlu0 %7938
    %7940 = vset.pattern.permute.xlu0 0
    %7941 = vperm.xlu0 %7940, %v7930
    %v7942 = vpop.permute.xlu0 %7941
    %vm7943 = vcmp.eq.s32.totalorder %v7933, 1
    %vm7944 = vcmp.eq.s32.totalorder %v7936, 1
    %vm7945 = vcmp.eq.s32.totalorder %v7939, 1
    %vm7946 = vcmp.eq.s32.totalorder %v7942, 1
    %vm7947 = vmand %vm7923, %vm7943
    %vm7948 = vmand %vm7924, %vm7944
    %vm7949 = vmand %vm7925, %vm7945
    %vm7950 = vmand %vm7926, %vm7946
    %v7951 = vsel %vm7947, 1.0, 0.0
    %v7952 = vsel %vm7948, 1.0, 0.0
    %v7953 = vsel %vm7949, 1.0, 0.0
    %v7954 = vsel %vm7950, 1.0, 0.0
    %v7955 = vpack.c.bf16 %v7952, %v7951
    %v7956 = vpack.c.bf16 %v7954, %v7953
    %7957 = vmatpush.bf16.msra.mxu0 %v7505
    %7958 = vmatpush.bf16.msra.mxu0 %v7504
    %7959 = vmatpush.bf16.msra.mxu0 %v7503
    %7960 = vmatpush.bf16.msra.mxu0 %v7502
    %7961 = vmatpush.bf16.msra.mxu0 %v7501
    %7962 = vmatpush.bf16.msra.mxu0 %v7500
    %7963 = vmatpush.bf16.msra.mxu0 %v7499
    %7964 = vmatpush.bf16.msra.mxu0 %v7498
    %7965 = vmatmul.bf16.gmra.mxu0 %v7955
    %v7966 = vpop.f32.mrf.mxu0
    %v7967 = vadd.f32 0.0, %v7966
    %v7968 = vpop.f32.mrf.mxu0
    %v7969 = vadd.f32 0.0, %v7968
    %7970 = vmatmul.bf16.gmra.mxu0 %v7956
    %v7971 = vpop.f32.mrf.mxu0
    %v7972 = vadd.f32 0.0, %v7971
    %v7973 = vpop.f32.mrf.mxu0
    %v7974 = vadd.f32 0.0, %v7973
    %7975 = vdwg.mxu0
    %v7976 = vpack.c.bf16 %v7969, %v7967
    %v7977 = vpack.c.bf16 %v7974, %v7972
    %s7978 = scalar_lea.vmem [#allocation8], 128
    %v7979 = vld [vmem:[%s7978] sm:$0xf]
    %v7980 = vld [vmem:[%s7978 + $0x4] sm:$0xf]
    %v7981 = vld [vmem:[%s7978 + $0x8] sm:$0xf]
    %v7982 = vld [vmem:[%s7978 + $0xc] sm:$0xf]
    %v7983 = vld [vmem:[%s7978 + $0x10] sm:$0xf]
    %v7984 = vld [vmem:[%s7978 + $0x14] sm:$0xf]
    %v7985 = vld [vmem:[%s7978 + $0x18] sm:$0xf]
    %v7986 = vld [vmem:[%s7978 + $0x1c] sm:$0xf]
    %v7987 = vld [vmem:[%s7978 + $0x20] sm:$0xf]
    %v7988 = vld [vmem:[%s7978 + $0x24] sm:$0xf]
    %v7989 = vld [vmem:[%s7978 + $0x28] sm:$0xf]
    %v7990 = vld [vmem:[%s7978 + $0x2c] sm:$0xf]
    %v7991 = vld [vmem:[%s7978 + $0x30] sm:$0xf]
    %v7992 = vld [vmem:[%s7978 + $0x34] sm:$0xf]
    %v7993 = vld [vmem:[%s7978 + $0x38] sm:$0xf]
    %v7994 = vld [vmem:[%s7978 + $0x3c] sm:$0xf]
    %v8011 = vunpack.c.l.b16 %v7979
    %v8012 = vunpack.c.l.b16 %v7980
    %v8013 = vunpack.c.l.b16 %v7981
    %v8014 = vunpack.c.l.b16 %v7982
    %v8015 = vunpack.c.l.b16 %v7983
    %v8016 = vunpack.c.l.b16 %v7984
    %v8017 = vunpack.c.l.b16 %v7985
    %v8018 = vunpack.c.l.b16 %v7986
    %v8019 = vunpack.c.l.b16 %v7987
    %v8020 = vunpack.c.l.b16 %v7988
    %v8021 = vunpack.c.l.b16 %v7989
    %v8022 = vunpack.c.l.b16 %v7990
    %v8023 = vunpack.c.l.b16 %v7991
    %v8024 = vunpack.c.l.b16 %v7992
    %v8025 = vunpack.c.l.b16 %v7993
    %v8026 = vunpack.c.l.b16 %v7994
    %v8027 = vpack.c.b16 %v8012, %v8011
    %v8028 = vpack.c.b16 %v8014, %v8013
    %v8029 = vpack.c.b16 %v8016, %v8015
    %v8030 = vpack.c.b16 %v8018, %v8017
    %v8031 = vpack.c.b16 %v8020, %v8019
    %v8032 = vpack.c.b16 %v8022, %v8021
    %v8033 = vpack.c.b16 %v8024, %v8023
    %v8034 = vpack.c.b16 %v8026, %v8025
    %8043 = vmatpush.bf16.msra.mxu0 %v8034
    %8044 = vmatpush.bf16.msra.mxu0 %v8033
    %8045 = vmatpush.bf16.msra.mxu0 %v8032
    %8046 = vmatpush.bf16.msra.mxu0 %v8031
    %8047 = vmatpush.bf16.msra.mxu0 %v8030
    %8048 = vmatpush.bf16.msra.mxu0 %v8029
    %8049 = vmatpush.bf16.msra.mxu0 %v8028
    %8050 = vmatpush.bf16.msra.mxu0 %v8027
    %8051 = vmatmul.bf16.gmra.mxu0 %v7976
    %v8052 = vpop.f32.mrf.mxu0
    %v8053 = vadd.f32 0.0, %v8052
    %v8054 = vpop.f32.mrf.mxu0
    %v8055 = vadd.f32 0.0, %v8054
    %8056 = vmatmul.bf16.gmra.mxu0 %v7977
    %v8057 = vpop.f32.mrf.mxu0
    %v8058 = vadd.f32 0.0, %v8057
    %v8059 = vpop.f32.mrf.mxu0
    %v8060 = vadd.f32 0.0, %v8059
    %8061 = vdwg.mxu0
    %v8062 = vadd.f32 %v7878, %v8053
    %v8063 = vadd.f32 %v7880, %v8055
    %v8064 = vadd.f32 %v7883, %v8058
    %v8065 = vadd.f32 %v7885, %v8060
    %vm8066 = vcmp.ge.s32.totalorder %v7506, 0
    %vm8067 = vcmp.ge.s32.totalorder %v7507, 0
    %vm8068 = vcmp.ge.s32.totalorder %v7508, 0
    %vm8069 = vcmp.ge.s32.totalorder %v7509, 0
    %vm8070 = vcmp.lt.s32.totalorder %v7506, 8
    %vm8071 = vcmp.lt.s32.totalorder %v7507, 8
    %vm8072 = vcmp.lt.s32.totalorder %v7508, 8
    %vm8073 = vcmp.lt.s32.totalorder %v7509, 8
    %vm8074 = vmand %vm8066, %vm8070
    %vm8075 = vmand %vm8067, %vm8071
    %vm8076 = vmand %vm8068, %vm8072
    %vm8077 = vmand %vm8069, %vm8073
    %vm8078 = vmand %vm8074, %vm7538
    %vm8079 = vmand %vm8075, %vm7539
    %vm8080 = vmand %vm8076, %vm7540
    %vm8081 = vmand %vm8077, %vm7541
    %vm8082 = vmand %vm8078, %vm7546
    %vm8083 = vmand %vm8079, %vm7547
    %vm8084 = vmand %vm8080, %vm7548
    %vm8085 = vmand %vm8081, %vm7549
    %v8086 = vmul.u32 %v7506, 8
    %v8087 = vmul.u32 %v7507, 8
    %v8088 = vmul.u32 %v7508, 8
    %v8089 = vmul.u32 %v7509, 8
    %v8090 = vadd.s32 %v7514, %v8086
    %v8091 = vadd.s32 %v7515, %v8087
    %v8092 = vadd.s32 %v7516, %v8088
    %v8093 = vadd.s32 %v7517, %v8089
    %v8094 = vadd.s32 %v8090, %v7522
    %v8095 = vadd.s32 %v8091, %v7523
    %v8096 = vadd.s32 %v8092, %v7524
    %v8097 = vadd.s32 %v8093, %v7525
    %8098 = vset.pattern.permute.xlu0 0
    %8099 = vperm.xlu0 %8098, %v8094
    %v8100 = vpop.permute.xlu0 %8099
    %8101 = vset.pattern.permute.xlu0 0
    %8102 = vperm.xlu0 %8101, %v8095
    %v8103 = vpop.permute.xlu0 %8102
    %8104 = vset.pattern.permute.xlu0 0
    %8105 = vperm.xlu0 %8104, %v8096
    %v8106 = vpop.permute.xlu0 %8105
    %8107 = vset.pattern.permute.xlu0 0
    %8108 = vperm.xlu0 %8107, %v8097
    %v8109 = vpop.permute.xlu0 %8108
    %vm8110 = vcmp.eq.s32.totalorder %v293, %v8100
    %vm8111 = vcmp.eq.s32.totalorder %v293, %v8103
    %vm8112 = vcmp.eq.s32.totalorder %v293, %v8106
    %vm8113 = vcmp.eq.s32.totalorder %v293, %v8109
    %v8114 = vsel %vm8082, 1, 0
    %v8115 = vsel %vm8083, 1, 0
    %v8116 = vsel %vm8084, 1, 0
    %v8117 = vsel %vm8085, 1, 0
    %8118 = vset.pattern.permute.xlu0 0
    %8119 = vperm.xlu0 %8118, %v8114
    %v8120 = vpop.permute.xlu0 %8119
    %8121 = vset.pattern.permute.xlu0 0
    %8122 = vperm.xlu0 %8121, %v8115
    %v8123 = vpop.permute.xlu0 %8122
    %8124 = vset.pattern.permute.xlu0 0
    %8125 = vperm.xlu0 %8124, %v8116
    %v8126 = vpop.permute.xlu0 %8125
    %8127 = vset.pattern.permute.xlu0 0
    %8128 = vperm.xlu0 %8127, %v8117
    %v8129 = vpop.permute.xlu0 %8128
    %vm8130 = vcmp.eq.s32.totalorder %v8120, 1
    %vm8131 = vcmp.eq.s32.totalorder %v8123, 1
    %vm8132 = vcmp.eq.s32.totalorder %v8126, 1
    %vm8133 = vcmp.eq.s32.totalorder %v8129, 1
    %vm8134 = vmand %vm8110, %vm8130
    %vm8135 = vmand %vm8111, %vm8131
    %vm8136 = vmand %vm8112, %vm8132
    %vm8137 = vmand %vm8113, %vm8133
    %v8138 = vsel %vm8134, 1.0, 0.0
    %v8139 = vsel %vm8135, 1.0, 0.0
    %v8140 = vsel %vm8136, 1.0, 0.0
    %v8141 = vsel %vm8137, 1.0, 0.0
    %v8142 = vpack.c.bf16 %v8139, %v8138
    %v8143 = vpack.c.bf16 %v8141, %v8140
    %8144 = vmatpush.bf16.msra.mxu0 %v7505
    %8145 = vmatpush.bf16.msra.mxu0 %v7504
    %8146 = vmatpush.bf16.msra.mxu0 %v7503
    %8147 = vmatpush.bf16.msra.mxu0 %v7502
    %8148 = vmatpush.bf16.msra.mxu0 %v7501
    %8149 = vmatpush.bf16.msra.mxu0 %v7500
    %8150 = vmatpush.bf16.msra.mxu0 %v7499
    %8151 = vmatpush.bf16.msra.mxu0 %v7498
    %8152 = vmatmul.bf16.gmra.mxu0 %v8142
    %v8153 = vpop.f32.mrf.mxu0
    %v8154 = vadd.f32 0.0, %v8153
    %v8155 = vpop.f32.mrf.mxu0
    %v8156 = vadd.f32 0.0, %v8155
    %8157 = vmatmul.bf16.gmra.mxu0 %v8143
    %v8158 = vpop.f32.mrf.mxu0
    %v8159 = vadd.f32 0.0, %v8158
    %v8160 = vpop.f32.mrf.mxu0
    %v8161 = vadd.f32 0.0, %v8160
    %8162 = vdwg.mxu0
    %v8163 = vpack.c.bf16 %v8156, %v8154
    %v8164 = vpack.c.bf16 %v8161, %v8159
    %s8165 = scalar_lea.vmem [#allocation8], 192
    %v8166 = vld [vmem:[%s8165] sm:$0xf]
    %v8167 = vld [vmem:[%s8165 + $0x4] sm:$0xf]
    %v8168 = vld [vmem:[%s8165 + $0x8] sm:$0xf]
    %v8169 = vld [vmem:[%s8165 + $0xc] sm:$0xf]
    %v8170 = vld [vmem:[%s8165 + $0x10] sm:$0xf]
    %v8171 = vld [vmem:[%s8165 + $0x14] sm:$0xf]
    %v8172 = vld [vmem:[%s8165 + $0x18] sm:$0xf]
    %v8173 = vld [vmem:[%s8165 + $0x1c] sm:$0xf]
    %v8174 = vld [vmem:[%s8165 + $0x20] sm:$0xf]
    %v8175 = vld [vmem:[%s8165 + $0x24] sm:$0xf]
    %v8176 = vld [vmem:[%s8165 + $0x28] sm:$0xf]
    %v8177 = vld [vmem:[%s8165 + $0x2c] sm:$0xf]
    %v8178 = vld [vmem:[%s8165 + $0x30] sm:$0xf]
    %v8179 = vld [vmem:[%s8165 + $0x34] sm:$0xf]
    %v8180 = vld [vmem:[%s8165 + $0x38] sm:$0xf]
    %v8181 = vld [vmem:[%s8165 + $0x3c] sm:$0xf]
    %v8198 = vunpack.c.l.b16 %v8166
    %v8199 = vunpack.c.l.b16 %v8167
    %v8200 = vunpack.c.l.b16 %v8168
    %v8201 = vunpack.c.l.b16 %v8169
    %v8202 = vunpack.c.l.b16 %v8170
    %v8203 = vunpack.c.l.b16 %v8171
    %v8204 = vunpack.c.l.b16 %v8172
    %v8205 = vunpack.c.l.b16 %v8173
    %v8206 = vunpack.c.l.b16 %v8174
    %v8207 = vunpack.c.l.b16 %v8175
    %v8208 = vunpack.c.l.b16 %v8176
    %v8209 = vunpack.c.l.b16 %v8177
    %v8210 = vunpack.c.l.b16 %v8178
    %v8211 = vunpack.c.l.b16 %v8179
    %v8212 = vunpack.c.l.b16 %v8180
    %v8213 = vunpack.c.l.b16 %v8181
    %v8214 = vpack.c.b16 %v8199, %v8198
    %v8215 = vpack.c.b16 %v8201, %v8200
    %v8216 = vpack.c.b16 %v8203, %v8202
    %v8217 = vpack.c.b16 %v8205, %v8204
    %v8218 = vpack.c.b16 %v8207, %v8206
    %v8219 = vpack.c.b16 %v8209, %v8208
    %v8220 = vpack.c.b16 %v8211, %v8210
    %v8221 = vpack.c.b16 %v8213, %v8212
    %8230 = vmatpush.bf16.msra.mxu0 %v8221
    %8231 = vmatpush.bf16.msra.mxu0 %v8220
    %8232 = vmatpush.bf16.msra.mxu0 %v8219
    %8233 = vmatpush.bf16.msra.mxu0 %v8218
    %8234 = vmatpush.bf16.msra.mxu0 %v8217
    %8235 = vmatpush.bf16.msra.mxu0 %v8216
    %8236 = vmatpush.bf16.msra.mxu0 %v8215
    %8237 = vmatpush.bf16.msra.mxu0 %v8214
    %8238 = vmatmul.bf16.gmra.mxu0 %v8163
    %v8239 = vpop.f32.mrf.mxu0
    %v8240 = vadd.f32 0.0, %v8239
    %v8241 = vpop.f32.mrf.mxu0
    %v8242 = vadd.f32 0.0, %v8241
    %8243 = vmatmul.bf16.gmra.mxu0 %v8164
    %v8244 = vpop.f32.mrf.mxu0
    %v8245 = vadd.f32 0.0, %v8244
    %v8246 = vpop.f32.mrf.mxu0
    %v8247 = vadd.f32 0.0, %v8246
    %8248 = vdwg.mxu0
    %v8249 = vadd.f32 %v8062, %v8240
    %v8250 = vadd.f32 %v8063, %v8242
    %v8251 = vadd.f32 %v8064, %v8245
    %v8252 = vadd.f32 %v8065, %v8247
    %vm8253 = vmand %vm8074, %vm7649
    %vm8254 = vmand %vm8075, %vm7650
    %vm8255 = vmand %vm8076, %vm7651
    %vm8256 = vmand %vm8077, %vm7652
    %vm8257 = vmand %vm8253, %vm7657
    %vm8258 = vmand %vm8254, %vm7658
    %vm8259 = vmand %vm8255, %vm7659
    %vm8260 = vmand %vm8256, %vm7660
    %v8261 = vadd.s32 %v8090, %v7510
    %v8262 = vadd.s32 %v8091, %v7511
    %v8263 = vadd.s32 %v8092, %v7512
    %v8264 = vadd.s32 %v8093, %v7513
    %8265 = vset.pattern.permute.xlu0 0
    %8266 = vperm.xlu0 %8265, %v8261
    %v8267 = vpop.permute.xlu0 %8266
    %8268 = vset.pattern.permute.xlu0 0
    %8269 = vperm.xlu0 %8268, %v8262
    %v8270 = vpop.permute.xlu0 %8269
    %8271 = vset.pattern.permute.xlu0 0
    %8272 = vperm.xlu0 %8271, %v8263
    %v8273 = vpop.permute.xlu0 %8272
    %8274 = vset.pattern.permute.xlu0 0
    %8275 = vperm.xlu0 %8274, %v8264
    %v8276 = vpop.permute.xlu0 %8275
    %vm8277 = vcmp.eq.s32.totalorder %v293, %v8267
    %vm8278 = vcmp.eq.s32.totalorder %v293, %v8270
    %vm8279 = vcmp.eq.s32.totalorder %v293, %v8273
    %vm8280 = vcmp.eq.s32.totalorder %v293, %v8276
    %v8281 = vsel %vm8257, 1, 0
    %v8282 = vsel %vm8258, 1, 0
    %v8283 = vsel %vm8259, 1, 0
    %v8284 = vsel %vm8260, 1, 0
    %8285 = vset.pattern.permute.xlu0 0
    %8286 = vperm.xlu0 %8285, %v8281
    %v8287 = vpop.permute.xlu0 %8286
    %8288 = vset.pattern.permute.xlu0 0
    %8289 = vperm.xlu0 %8288, %v8282
    %v8290 = vpop.permute.xlu0 %8289
    %8291 = vset.pattern.permute.xlu0 0
    %8292 = vperm.xlu0 %8291, %v8283
    %v8293 = vpop.permute.xlu0 %8292
    %8294 = vset.pattern.permute.xlu0 0
    %8295 = vperm.xlu0 %8294, %v8284
    %v8296 = vpop.permute.xlu0 %8295
    %vm8297 = vcmp.eq.s32.totalorder %v8287, 1
    %vm8298 = vcmp.eq.s32.totalorder %v8290, 1
    %vm8299 = vcmp.eq.s32.totalorder %v8293, 1
    %vm8300 = vcmp.eq.s32.totalorder %v8296, 1
    %vm8301 = vmand %vm8277, %vm8297
    %vm8302 = vmand %vm8278, %vm8298
    %vm8303 = vmand %vm8279, %vm8299
    %vm8304 = vmand %vm8280, %vm8300
    %v8305 = vsel %vm8301, 1.0, 0.0
    %v8306 = vsel %vm8302, 1.0, 0.0
    %v8307 = vsel %vm8303, 1.0, 0.0
    %v8308 = vsel %vm8304, 1.0, 0.0
    %v8309 = vpack.c.bf16 %v8306, %v8305
    %v8310 = vpack.c.bf16 %v8308, %v8307
    %8311 = vmatpush.bf16.msra.mxu0 %v7505
    %8312 = vmatpush.bf16.msra.mxu0 %v7504
    %8313 = vmatpush.bf16.msra.mxu0 %v7503
    %8314 = vmatpush.bf16.msra.mxu0 %v7502
    %8315 = vmatpush.bf16.msra.mxu0 %v7501
    %8316 = vmatpush.bf16.msra.mxu0 %v7500
    %8317 = vmatpush.bf16.msra.mxu0 %v7499
    %8318 = vmatpush.bf16.msra.mxu0 %v7498
    %8319 = vmatmul.bf16.gmra.mxu0 %v8309
    %v8320 = vpop.f32.mrf.mxu0
    %v8321 = vadd.f32 0.0, %v8320
    %v8322 = vpop.f32.mrf.mxu0
    %v8323 = vadd.f32 0.0, %v8322
    %8324 = vmatmul.bf16.gmra.mxu0 %v8310
    %v8325 = vpop.f32.mrf.mxu0
    %v8326 = vadd.f32 0.0, %v8325
    %v8327 = vpop.f32.mrf.mxu0
    %v8328 = vadd.f32 0.0, %v8327
    %8329 = vdwg.mxu0
    %v8330 = vpack.c.bf16 %v8323, %v8321
    %v8331 = vpack.c.bf16 %v8328, %v8326
    %s8332 = scalar_lea.vmem [#allocation8], 256
    %v8333 = vld [vmem:[%s8332] sm:$0xf]
    %v8334 = vld [vmem:[%s8332 + $0x4] sm:$0xf]
    %v8335 = vld [vmem:[%s8332 + $0x8] sm:$0xf]
    %v8336 = vld [vmem:[%s8332 + $0xc] sm:$0xf]
    %v8337 = vld [vmem:[%s8332 + $0x10] sm:$0xf]
    %v8338 = vld [vmem:[%s8332 + $0x14] sm:$0xf]
    %v8339 = vld [vmem:[%s8332 + $0x18] sm:$0xf]
    %v8340 = vld [vmem:[%s8332 + $0x1c] sm:$0xf]
    %v8341 = vld [vmem:[%s8332 + $0x20] sm:$0xf]
    %v8342 = vld [vmem:[%s8332 + $0x24] sm:$0xf]
    %v8343 = vld [vmem:[%s8332 + $0x28] sm:$0xf]
    %v8344 = vld [vmem:[%s8332 + $0x2c] sm:$0xf]
    %v8345 = vld [vmem:[%s8332 + $0x30] sm:$0xf]
    %v8346 = vld [vmem:[%s8332 + $0x34] sm:$0xf]
    %v8347 = vld [vmem:[%s8332 + $0x38] sm:$0xf]
    %v8348 = vld [vmem:[%s8332 + $0x3c] sm:$0xf]
    %v8365 = vunpack.c.l.b16 %v8333
    %v8366 = vunpack.c.l.b16 %v8334
    %v8367 = vunpack.c.l.b16 %v8335
    %v8368 = vunpack.c.l.b16 %v8336
    %v8369 = vunpack.c.l.b16 %v8337
    %v8370 = vunpack.c.l.b16 %v8338
    %v8371 = vunpack.c.l.b16 %v8339
    %v8372 = vunpack.c.l.b16 %v8340
    %v8373 = vunpack.c.l.b16 %v8341
    %v8374 = vunpack.c.l.b16 %v8342
    %v8375 = vunpack.c.l.b16 %v8343
    %v8376 = vunpack.c.l.b16 %v8344
    %v8377 = vunpack.c.l.b16 %v8345
    %v8378 = vunpack.c.l.b16 %v8346
    %v8379 = vunpack.c.l.b16 %v8347
    %v8380 = vunpack.c.l.b16 %v8348
    %v8381 = vpack.c.b16 %v8366, %v8365
    %v8382 = vpack.c.b16 %v8368, %v8367
    %v8383 = vpack.c.b16 %v8370, %v8369
    %v8384 = vpack.c.b16 %v8372, %v8371
    %v8385 = vpack.c.b16 %v8374, %v8373
    %v8386 = vpack.c.b16 %v8376, %v8375
    %v8387 = vpack.c.b16 %v8378, %v8377
    %v8388 = vpack.c.b16 %v8380, %v8379
    %8397 = vmatpush.bf16.msra.mxu0 %v8388
    %8398 = vmatpush.bf16.msra.mxu0 %v8387
    %8399 = vmatpush.bf16.msra.mxu0 %v8386
    %8400 = vmatpush.bf16.msra.mxu0 %v8385
    %8401 = vmatpush.bf16.msra.mxu0 %v8384
    %8402 = vmatpush.bf16.msra.mxu0 %v8383
    %8403 = vmatpush.bf16.msra.mxu0 %v8382
    %8404 = vmatpush.bf16.msra.mxu0 %v8381
    %8405 = vmatmul.bf16.gmra.mxu0 %v8330
    %v8406 = vpop.f32.mrf.mxu0
    %v8407 = vadd.f32 0.0, %v8406
    %v8408 = vpop.f32.mrf.mxu0
    %v8409 = vadd.f32 0.0, %v8408
    %8410 = vmatmul.bf16.gmra.mxu0 %v8331
    %v8411 = vpop.f32.mrf.mxu0
    %v8412 = vadd.f32 0.0, %v8411
    %v8413 = vpop.f32.mrf.mxu0
    %v8414 = vadd.f32 0.0, %v8413
    %8415 = vdwg.mxu0
    %v8416 = vadd.f32 %v8249, %v8407
    %v8417 = vadd.f32 %v8250, %v8409
    %v8418 = vadd.f32 %v8251, %v8412
    %v8419 = vadd.f32 %v8252, %v8414
    %vm8420 = vmand %vm8074, %vm7891
    %vm8421 = vmand %vm8075, %vm7892
    %vm8422 = vmand %vm8076, %vm7893
    %vm8423 = vmand %vm8077, %vm7894
    %vm8424 = vmand %vm8420, %vm7899
    %vm8425 = vmand %vm8421, %vm7900
    %vm8426 = vmand %vm8422, %vm7901
    %vm8427 = vmand %vm8423, %vm7902
    %v8428 = vadd.s32 %v8090, %v7887
    %v8429 = vadd.s32 %v8091, %v7888
    %v8430 = vadd.s32 %v8092, %v7889
    %v8431 = vadd.s32 %v8093, %v7890
    %8432 = vset.pattern.permute.xlu0 0
    %8433 = vperm.xlu0 %8432, %v8428
    %v8434 = vpop.permute.xlu0 %8433
    %8435 = vset.pattern.permute.xlu0 0
    %8436 = vperm.xlu0 %8435, %v8429
    %v8437 = vpop.permute.xlu0 %8436
    %8438 = vset.pattern.permute.xlu0 0
    %8439 = vperm.xlu0 %8438, %v8430
    %v8440 = vpop.permute.xlu0 %8439
    %8441 = vset.pattern.permute.xlu0 0
    %8442 = vperm.xlu0 %8441, %v8431
    %v8443 = vpop.permute.xlu0 %8442
    %vm8444 = vcmp.eq.s32.totalorder %v293, %v8434
    %vm8445 = vcmp.eq.s32.totalorder %v293, %v8437
    %vm8446 = vcmp.eq.s32.totalorder %v293, %v8440
    %vm8447 = vcmp.eq.s32.totalorder %v293, %v8443
    %v8448 = vsel %vm8424, 1, 0
    %v8449 = vsel %vm8425, 1, 0
    %v8450 = vsel %vm8426, 1, 0
    %v8451 = vsel %vm8427, 1, 0
    %8452 = vset.pattern.permute.xlu0 0
    %8453 = vperm.xlu0 %8452, %v8448
    %v8454 = vpop.permute.xlu0 %8453
    %8455 = vset.pattern.permute.xlu0 0
    %8456 = vperm.xlu0 %8455, %v8449
    %v8457 = vpop.permute.xlu0 %8456
    %8458 = vset.pattern.permute.xlu0 0
    %8459 = vperm.xlu0 %8458, %v8450
    %v8460 = vpop.permute.xlu0 %8459
    %8461 = vset.pattern.permute.xlu0 0
    %8462 = vperm.xlu0 %8461, %v8451
    %v8463 = vpop.permute.xlu0 %8462
    %vm8464 = vcmp.eq.s32.totalorder %v8454, 1
    %vm8465 = vcmp.eq.s32.totalorder %v8457, 1
    %vm8466 = vcmp.eq.s32.totalorder %v8460, 1
    %vm8467 = vcmp.eq.s32.totalorder %v8463, 1
    %vm8468 = vmand %vm8444, %vm8464
    %vm8469 = vmand %vm8445, %vm8465
    %vm8470 = vmand %vm8446, %vm8466
    %vm8471 = vmand %vm8447, %vm8467
    %v8472 = vsel %vm8468, 1.0, 0.0
    %v8473 = vsel %vm8469, 1.0, 0.0
    %v8474 = vsel %vm8470, 1.0, 0.0
    %v8475 = vsel %vm8471, 1.0, 0.0
    %v8476 = vpack.c.bf16 %v8473, %v8472
    %v8477 = vpack.c.bf16 %v8475, %v8474
    %8478 = vmatpush.bf16.msra.mxu0 %v7505
    %8479 = vmatpush.bf16.msra.mxu0 %v7504
    %8480 = vmatpush.bf16.msra.mxu0 %v7503
    %8481 = vmatpush.bf16.msra.mxu0 %v7502
    %8482 = vmatpush.bf16.msra.mxu0 %v7501
    %8483 = vmatpush.bf16.msra.mxu0 %v7500
    %8484 = vmatpush.bf16.msra.mxu0 %v7499
    %8485 = vmatpush.bf16.msra.mxu0 %v7498
    %8486 = vmatmul.bf16.gmra.mxu0 %v8476
    %v8487 = vpop.f32.mrf.mxu0
    %v8488 = vadd.f32 0.0, %v8487
    %v8489 = vpop.f32.mrf.mxu0
    %v8490 = vadd.f32 0.0, %v8489
    %8491 = vmatmul.bf16.gmra.mxu0 %v8477
    %v8492 = vpop.f32.mrf.mxu0
    %v8493 = vadd.f32 0.0, %v8492
    %v8494 = vpop.f32.mrf.mxu0
    %v8495 = vadd.f32 0.0, %v8494
    %8496 = vdwg.mxu0
    %v8497 = vpack.c.bf16 %v8490, %v8488
    %v8498 = vpack.c.bf16 %v8495, %v8493
    %s8499 = scalar_lea.vmem [#allocation8], 320
    %v8500 = vld [vmem:[%s8499] sm:$0xf]
    %v8501 = vld [vmem:[%s8499 + $0x4] sm:$0xf]
    %v8502 = vld [vmem:[%s8499 + $0x8] sm:$0xf]
    %v8503 = vld [vmem:[%s8499 + $0xc] sm:$0xf]
    %v8504 = vld [vmem:[%s8499 + $0x10] sm:$0xf]
    %v8505 = vld [vmem:[%s8499 + $0x14] sm:$0xf]
    %v8506 = vld [vmem:[%s8499 + $0x18] sm:$0xf]
    %v8507 = vld [vmem:[%s8499 + $0x1c] sm:$0xf]
    %v8508 = vld [vmem:[%s8499 + $0x20] sm:$0xf]
    %v8509 = vld [vmem:[%s8499 + $0x24] sm:$0xf]
    %v8510 = vld [vmem:[%s8499 + $0x28] sm:$0xf]
    %v8511 = vld [vmem:[%s8499 + $0x2c] sm:$0xf]
    %v8512 = vld [vmem:[%s8499 + $0x30] sm:$0xf]
    %v8513 = vld [vmem:[%s8499 + $0x34] sm:$0xf]
    %v8514 = vld [vmem:[%s8499 + $0x38] sm:$0xf]
    %v8515 = vld [vmem:[%s8499 + $0x3c] sm:$0xf]
    %v8532 = vunpack.c.l.b16 %v8500
    %v8533 = vunpack.c.l.b16 %v8501
    %v8534 = vunpack.c.l.b16 %v8502
    %v8535 = vunpack.c.l.b16 %v8503
    %v8536 = vunpack.c.l.b16 %v8504
    %v8537 = vunpack.c.l.b16 %v8505
    %v8538 = vunpack.c.l.b16 %v8506
    %v8539 = vunpack.c.l.b16 %v8507
    %v8540 = vunpack.c.l.b16 %v8508
    %v8541 = vunpack.c.l.b16 %v8509
    %v8542 = vunpack.c.l.b16 %v8510
    %v8543 = vunpack.c.l.b16 %v8511
    %v8544 = vunpack.c.l.b16 %v8512
    %v8545 = vunpack.c.l.b16 %v8513
    %v8546 = vunpack.c.l.b16 %v8514
    %v8547 = vunpack.c.l.b16 %v8515
    %v8548 = vpack.c.b16 %v8533, %v8532
    %v8549 = vpack.c.b16 %v8535, %v8534
    %v8550 = vpack.c.b16 %v8537, %v8536
    %v8551 = vpack.c.b16 %v8539, %v8538
    %v8552 = vpack.c.b16 %v8541, %v8540
    %v8553 = vpack.c.b16 %v8543, %v8542
    %v8554 = vpack.c.b16 %v8545, %v8544
    %v8555 = vpack.c.b16 %v8547, %v8546
    %8564 = vmatpush.bf16.msra.mxu0 %v8555
    %8565 = vmatpush.bf16.msra.mxu0 %v8554
    %8566 = vmatpush.bf16.msra.mxu0 %v8553
    %8567 = vmatpush.bf16.msra.mxu0 %v8552
    %8568 = vmatpush.bf16.msra.mxu0 %v8551
    %8569 = vmatpush.bf16.msra.mxu0 %v8550
    %8570 = vmatpush.bf16.msra.mxu0 %v8549
    %8571 = vmatpush.bf16.msra.mxu0 %v8548
    %8572 = vmatmul.bf16.gmra.mxu0 %v8497
    %v8573 = vpop.f32.mrf.mxu0
    %v8574 = vadd.f32 0.0, %v8573
    %v8575 = vpop.f32.mrf.mxu0
    %v8576 = vadd.f32 0.0, %v8575
    %8577 = vmatmul.bf16.gmra.mxu0 %v8498
    %v8578 = vpop.f32.mrf.mxu0
    %v8579 = vadd.f32 0.0, %v8578
    %v8580 = vpop.f32.mrf.mxu0
    %v8581 = vadd.f32 0.0, %v8580
    %8582 = vdwg.mxu0
    %v8583 = vadd.f32 %v8416, %v8574
    %v8584 = vadd.f32 %v8417, %v8576
    %v8585 = vadd.f32 %v8418, %v8579
    %v8586 = vadd.f32 %v8419, %v8581
    %v8587 = vadd.s32 %v7506, 1
    %v8588 = vadd.s32 %v7507, 1
    %v8589 = vadd.s32 %v7508, 1
    %v8590 = vadd.s32 %v7509, 1
    %vm8591 = vcmp.ge.s32.totalorder %v8587, 0
    %vm8592 = vcmp.ge.s32.totalorder %v8588, 0
    %vm8593 = vcmp.ge.s32.totalorder %v8589, 0
    %vm8594 = vcmp.ge.s32.totalorder %v8590, 0
    %vm8595 = vcmp.lt.s32.totalorder %v8587, 8
    %vm8596 = vcmp.lt.s32.totalorder %v8588, 8
    %vm8597 = vcmp.lt.s32.totalorder %v8589, 8
    %vm8598 = vcmp.lt.s32.totalorder %v8590, 8
    %vm8599 = vmand %vm8591, %vm8595
    %vm8600 = vmand %vm8592, %vm8596
    %vm8601 = vmand %vm8593, %vm8597
    %vm8602 = vmand %vm8594, %vm8598
    %vm8603 = vmand %vm8599, %vm7538
    %vm8604 = vmand %vm8600, %vm7539
    %vm8605 = vmand %vm8601, %vm7540
    %vm8606 = vmand %vm8602, %vm7541
    %vm8607 = vmand %vm8603, %vm7546
    %vm8608 = vmand %vm8604, %vm7547
    %vm8609 = vmand %vm8605, %vm7548
    %vm8610 = vmand %vm8606, %vm7549
    %v8611 = vmul.u32 %v8587, 8
    %v8612 = vmul.u32 %v8588, 8
    %v8613 = vmul.u32 %v8589, 8
    %v8614 = vmul.u32 %v8590, 8
    %v8615 = vadd.s32 %v7514, %v8611
    %v8616 = vadd.s32 %v7515, %v8612
    %v8617 = vadd.s32 %v7516, %v8613
    %v8618 = vadd.s32 %v7517, %v8614
    %v8619 = vadd.s32 %v8615, %v7522
    %v8620 = vadd.s32 %v8616, %v7523
    %v8621 = vadd.s32 %v8617, %v7524
    %v8622 = vadd.s32 %v8618, %v7525
    %8623 = vset.pattern.permute.xlu0 0
    %8624 = vperm.xlu0 %8623, %v8619
    %v8625 = vpop.permute.xlu0 %8624
    %8626 = vset.pattern.permute.xlu0 0
    %8627 = vperm.xlu0 %8626, %v8620
    %v8628 = vpop.permute.xlu0 %8627
    %8629 = vset.pattern.permute.xlu0 0
    %8630 = vperm.xlu0 %8629, %v8621
    %v8631 = vpop.permute.xlu0 %8630
    %8632 = vset.pattern.permute.xlu0 0
    %8633 = vperm.xlu0 %8632, %v8622
    %v8634 = vpop.permute.xlu0 %8633
    %vm8635 = vcmp.eq.s32.totalorder %v293, %v8625
    %vm8636 = vcmp.eq.s32.totalorder %v293, %v8628
    %vm8637 = vcmp.eq.s32.totalorder %v293, %v8631
    %vm8638 = vcmp.eq.s32.totalorder %v293, %v8634
    %v8639 = vsel %vm8607, 1, 0
    %v8640 = vsel %vm8608, 1, 0
    %v8641 = vsel %vm8609, 1, 0
    %v8642 = vsel %vm8610, 1, 0
    %8643 = vset.pattern.permute.xlu0 0
    %8644 = vperm.xlu0 %8643, %v8639
    %v8645 = vpop.permute.xlu0 %8644
    %8646 = vset.pattern.permute.xlu0 0
    %8647 = vperm.xlu0 %8646, %v8640
    %v8648 = vpop.permute.xlu0 %8647
    %8649 = vset.pattern.permute.xlu0 0
    %8650 = vperm.xlu0 %8649, %v8641
    %v8651 = vpop.permute.xlu0 %8650
    %8652 = vset.pattern.permute.xlu0 0
    %8653 = vperm.xlu0 %8652, %v8642
    %v8654 = vpop.permute.xlu0 %8653
    %vm8655 = vcmp.eq.s32.totalorder %v8645, 1
    %vm8656 = vcmp.eq.s32.totalorder %v8648, 1
    %vm8657 = vcmp.eq.s32.totalorder %v8651, 1
    %vm8658 = vcmp.eq.s32.totalorder %v8654, 1
    %vm8659 = vmand %vm8635, %vm8655
    %vm8660 = vmand %vm8636, %vm8656
    %vm8661 = vmand %vm8637, %vm8657
    %vm8662 = vmand %vm8638, %vm8658
    %v8663 = vsel %vm8659, 1.0, 0.0
    %v8664 = vsel %vm8660, 1.0, 0.0
    %v8665 = vsel %vm8661, 1.0, 0.0
    %v8666 = vsel %vm8662, 1.0, 0.0
    %v8667 = vpack.c.bf16 %v8664, %v8663
    %v8668 = vpack.c.bf16 %v8666, %v8665
    %8669 = vmatpush.bf16.msra.mxu0 %v7505
    %8670 = vmatpush.bf16.msra.mxu0 %v7504
    %8671 = vmatpush.bf16.msra.mxu0 %v7503
    %8672 = vmatpush.bf16.msra.mxu0 %v7502
    %8673 = vmatpush.bf16.msra.mxu0 %v7501
    %8674 = vmatpush.bf16.msra.mxu0 %v7500
    %8675 = vmatpush.bf16.msra.mxu0 %v7499
    %8676 = vmatpush.bf16.msra.mxu0 %v7498
    %8677 = vmatmul.bf16.gmra.mxu0 %v8667
    %v8678 = vpop.f32.mrf.mxu0
    %v8679 = vadd.f32 0.0, %v8678
    %v8680 = vpop.f32.mrf.mxu0
    %v8681 = vadd.f32 0.0, %v8680
    %8682 = vmatmul.bf16.gmra.mxu0 %v8668
    %v8683 = vpop.f32.mrf.mxu0
    %v8684 = vadd.f32 0.0, %v8683
    %v8685 = vpop.f32.mrf.mxu0
    %v8686 = vadd.f32 0.0, %v8685
    %8687 = vdwg.mxu0
    %v8688 = vpack.c.bf16 %v8681, %v8679
    %v8689 = vpack.c.bf16 %v8686, %v8684
    %s8690 = scalar_lea.vmem [#allocation8], 384
    %v8691 = vld [vmem:[%s8690] sm:$0xf]
    %v8692 = vld [vmem:[%s8690 + $0x4] sm:$0xf]
    %v8693 = vld [vmem:[%s8690 + $0x8] sm:$0xf]
    %v8694 = vld [vmem:[%s8690 + $0xc] sm:$0xf]
    %v8695 = vld [vmem:[%s8690 + $0x10] sm:$0xf]
    %v8696 = vld [vmem:[%s8690 + $0x14] sm:$0xf]
    %v8697 = vld [vmem:[%s8690 + $0x18] sm:$0xf]
    %v8698 = vld [vmem:[%s8690 + $0x1c] sm:$0xf]
    %v8699 = vld [vmem:[%s8690 + $0x20] sm:$0xf]
    %v8700 = vld [vmem:[%s8690 + $0x24] sm:$0xf]
    %v8701 = vld [vmem:[%s8690 + $0x28] sm:$0xf]
    %v8702 = vld [vmem:[%s8690 + $0x2c] sm:$0xf]
    %v8703 = vld [vmem:[%s8690 + $0x30] sm:$0xf]
    %v8704 = vld [vmem:[%s8690 + $0x34] sm:$0xf]
    %v8705 = vld [vmem:[%s8690 + $0x38] sm:$0xf]
    %v8706 = vld [vmem:[%s8690 + $0x3c] sm:$0xf]
    %v8723 = vunpack.c.l.b16 %v8691
    %v8724 = vunpack.c.l.b16 %v8692
    %v8725 = vunpack.c.l.b16 %v8693
    %v8726 = vunpack.c.l.b16 %v8694
    %v8727 = vunpack.c.l.b16 %v8695
    %v8728 = vunpack.c.l.b16 %v8696
    %v8729 = vunpack.c.l.b16 %v8697
    %v8730 = vunpack.c.l.b16 %v8698
    %v8731 = vunpack.c.l.b16 %v8699
    %v8732 = vunpack.c.l.b16 %v8700
    %v8733 = vunpack.c.l.b16 %v8701
    %v8734 = vunpack.c.l.b16 %v8702
    %v8735 = vunpack.c.l.b16 %v8703
    %v8736 = vunpack.c.l.b16 %v8704
    %v8737 = vunpack.c.l.b16 %v8705
    %v8738 = vunpack.c.l.b16 %v8706
    %v8739 = vpack.c.b16 %v8724, %v8723
    %v8740 = vpack.c.b16 %v8726, %v8725
    %v8741 = vpack.c.b16 %v8728, %v8727
    %v8742 = vpack.c.b16 %v8730, %v8729
    %v8743 = vpack.c.b16 %v8732, %v8731
    %v8744 = vpack.c.b16 %v8734, %v8733
    %v8745 = vpack.c.b16 %v8736, %v8735
    %v8746 = vpack.c.b16 %v8738, %v8737
    %8755 = vmatpush.bf16.msra.mxu0 %v8746
    %8756 = vmatpush.bf16.msra.mxu0 %v8745
    %8757 = vmatpush.bf16.msra.mxu0 %v8744
    %8758 = vmatpush.bf16.msra.mxu0 %v8743
    %8759 = vmatpush.bf16.msra.mxu0 %v8742
    %8760 = vmatpush.bf16.msra.mxu0 %v8741
    %8761 = vmatpush.bf16.msra.mxu0 %v8740
    %8762 = vmatpush.bf16.msra.mxu0 %v8739
    %8763 = vmatmul.bf16.gmra.mxu0 %v8688
    %v8764 = vpop.f32.mrf.mxu0
    %v8765 = vadd.f32 0.0, %v8764
    %v8766 = vpop.f32.mrf.mxu0
    %v8767 = vadd.f32 0.0, %v8766
    %8768 = vmatmul.bf16.gmra.mxu0 %v8689
    %v8769 = vpop.f32.mrf.mxu0
    %v8770 = vadd.f32 0.0, %v8769
    %v8771 = vpop.f32.mrf.mxu0
    %v8772 = vadd.f32 0.0, %v8771
    %8773 = vdwg.mxu0
    %v8774 = vadd.f32 %v8583, %v8765
    %v8775 = vadd.f32 %v8584, %v8767
    %v8776 = vadd.f32 %v8585, %v8770
    %v8777 = vadd.f32 %v8586, %v8772
    %vm8778 = vmand %vm8599, %vm7649
    %vm8779 = vmand %vm8600, %vm7650
    %vm8780 = vmand %vm8601, %vm7651
    %vm8781 = vmand %vm8602, %vm7652
    %vm8782 = vmand %vm8778, %vm7657
    %vm8783 = vmand %vm8779, %vm7658
    %vm8784 = vmand %vm8780, %vm7659
    %vm8785 = vmand %vm8781, %vm7660
    %v8786 = vadd.s32 %v8615, %v7510
    %v8787 = vadd.s32 %v8616, %v7511
    %v8788 = vadd.s32 %v8617, %v7512
    %v8789 = vadd.s32 %v8618, %v7513
    %8790 = vset.pattern.permute.xlu0 0
    %8791 = vperm.xlu0 %8790, %v8786
    %v8792 = vpop.permute.xlu0 %8791
    %8793 = vset.pattern.permute.xlu0 0
    %8794 = vperm.xlu0 %8793, %v8787
    %v8795 = vpop.permute.xlu0 %8794
    %8796 = vset.pattern.permute.xlu0 0
    %8797 = vperm.xlu0 %8796, %v8788
    %v8798 = vpop.permute.xlu0 %8797
    %8799 = vset.pattern.permute.xlu0 0
    %8800 = vperm.xlu0 %8799, %v8789
    %v8801 = vpop.permute.xlu0 %8800
    %vm8802 = vcmp.eq.s32.totalorder %v293, %v8792
    %vm8803 = vcmp.eq.s32.totalorder %v293, %v8795
    %vm8804 = vcmp.eq.s32.totalorder %v293, %v8798
    %vm8805 = vcmp.eq.s32.totalorder %v293, %v8801
    %v8806 = vsel %vm8782, 1, 0
    %v8807 = vsel %vm8783, 1, 0
    %v8808 = vsel %vm8784, 1, 0
    %v8809 = vsel %vm8785, 1, 0
    %8810 = vset.pattern.permute.xlu0 0
    %8811 = vperm.xlu0 %8810, %v8806
    %v8812 = vpop.permute.xlu0 %8811
    %8813 = vset.pattern.permute.xlu0 0
    %8814 = vperm.xlu0 %8813, %v8807
    %v8815 = vpop.permute.xlu0 %8814
    %8816 = vset.pattern.permute.xlu0 0
    %8817 = vperm.xlu0 %8816, %v8808
    %v8818 = vpop.permute.xlu0 %8817
    %8819 = vset.pattern.permute.xlu0 0
    %8820 = vperm.xlu0 %8819, %v8809
    %v8821 = vpop.permute.xlu0 %8820
    %vm8822 = vcmp.eq.s32.totalorder %v8812, 1
    %vm8823 = vcmp.eq.s32.totalorder %v8815, 1
    %vm8824 = vcmp.eq.s32.totalorder %v8818, 1
    %vm8825 = vcmp.eq.s32.totalorder %v8821, 1
    %vm8826 = vmand %vm8802, %vm8822
    %vm8827 = vmand %vm8803, %vm8823
    %vm8828 = vmand %vm8804, %vm8824
    %vm8829 = vmand %vm8805, %vm8825
    %v8830 = vsel %vm8826, 1.0, 0.0
    %v8831 = vsel %vm8827, 1.0, 0.0
    %v8832 = vsel %vm8828, 1.0, 0.0
    %v8833 = vsel %vm8829, 1.0, 0.0
    %v8834 = vpack.c.bf16 %v8831, %v8830
    %v8835 = vpack.c.bf16 %v8833, %v8832
    %8836 = vmatpush.bf16.msra.mxu0 %v7505
    %8837 = vmatpush.bf16.msra.mxu0 %v7504
    %8838 = vmatpush.bf16.msra.mxu0 %v7503
    %8839 = vmatpush.bf16.msra.mxu0 %v7502
    %8840 = vmatpush.bf16.msra.mxu0 %v7501
    %8841 = vmatpush.bf16.msra.mxu0 %v7500
    %8842 = vmatpush.bf16.msra.mxu0 %v7499
    %8843 = vmatpush.bf16.msra.mxu0 %v7498
    %8844 = vmatmul.bf16.gmra.mxu0 %v8834
    %v8845 = vpop.f32.mrf.mxu0
    %v8846 = vadd.f32 0.0, %v8845
    %v8847 = vpop.f32.mrf.mxu0
    %v8848 = vadd.f32 0.0, %v8847
    %8849 = vmatmul.bf16.gmra.mxu0 %v8835
    %v8850 = vpop.f32.mrf.mxu0
    %v8851 = vadd.f32 0.0, %v8850
    %v8852 = vpop.f32.mrf.mxu0
    %v8853 = vadd.f32 0.0, %v8852
    %8854 = vdwg.mxu0
    %v8855 = vpack.c.bf16 %v8848, %v8846
    %v8856 = vpack.c.bf16 %v8853, %v8851
    %s8857 = scalar_lea.vmem [#allocation8], 448
    %v8858 = vld [vmem:[%s8857] sm:$0xf]
    %v8859 = vld [vmem:[%s8857 + $0x4] sm:$0xf]
    %v8860 = vld [vmem:[%s8857 + $0x8] sm:$0xf]
    %v8861 = vld [vmem:[%s8857 + $0xc] sm:$0xf]
    %v8862 = vld [vmem:[%s8857 + $0x10] sm:$0xf]
    %v8863 = vld [vmem:[%s8857 + $0x14] sm:$0xf]
    %v8864 = vld [vmem:[%s8857 + $0x18] sm:$0xf]
    %v8865 = vld [vmem:[%s8857 + $0x1c] sm:$0xf]
    %v8866 = vld [vmem:[%s8857 + $0x20] sm:$0xf]
    %v8867 = vld [vmem:[%s8857 + $0x24] sm:$0xf]
    %v8868 = vld [vmem:[%s8857 + $0x28] sm:$0xf]
    %v8869 = vld [vmem:[%s8857 + $0x2c] sm:$0xf]
    %v8870 = vld [vmem:[%s8857 + $0x30] sm:$0xf]
    %v8871 = vld [vmem:[%s8857 + $0x34] sm:$0xf]
    %v8872 = vld [vmem:[%s8857 + $0x38] sm:$0xf]
    %v8873 = vld [vmem:[%s8857 + $0x3c] sm:$0xf]
    %v8890 = vunpack.c.l.b16 %v8858
    %v8891 = vunpack.c.l.b16 %v8859
    %v8892 = vunpack.c.l.b16 %v8860
    %v8893 = vunpack.c.l.b16 %v8861
    %v8894 = vunpack.c.l.b16 %v8862
    %v8895 = vunpack.c.l.b16 %v8863
    %v8896 = vunpack.c.l.b16 %v8864
    %v8897 = vunpack.c.l.b16 %v8865
    %v8898 = vunpack.c.l.b16 %v8866
    %v8899 = vunpack.c.l.b16 %v8867
    %v8900 = vunpack.c.l.b16 %v8868
    %v8901 = vunpack.c.l.b16 %v8869
    %v8902 = vunpack.c.l.b16 %v8870
    %v8903 = vunpack.c.l.b16 %v8871
    %v8904 = vunpack.c.l.b16 %v8872
    %v8905 = vunpack.c.l.b16 %v8873
    %v8906 = vpack.c.b16 %v8891, %v8890
    %v8907 = vpack.c.b16 %v8893, %v8892
    %v8908 = vpack.c.b16 %v8895, %v8894
    %v8909 = vpack.c.b16 %v8897, %v8896
    %v8910 = vpack.c.b16 %v8899, %v8898
    %v8911 = vpack.c.b16 %v8901, %v8900
    %v8912 = vpack.c.b16 %v8903, %v8902
    %v8913 = vpack.c.b16 %v8905, %v8904
    %8922 = vmatpush.bf16.msra.mxu0 %v8913
    %8923 = vmatpush.bf16.msra.mxu0 %v8912
    %8924 = vmatpush.bf16.msra.mxu0 %v8911
    %8925 = vmatpush.bf16.msra.mxu0 %v8910
    %8926 = vmatpush.bf16.msra.mxu0 %v8909
    %8927 = vmatpush.bf16.msra.mxu0 %v8908
    %8928 = vmatpush.bf16.msra.mxu0 %v8907
    %8929 = vmatpush.bf16.msra.mxu0 %v8906
    %8930 = vmatmul.bf16.gmra.mxu0 %v8855
    %v8931 = vpop.f32.mrf.mxu0
    %v8932 = vadd.f32 0.0, %v8931
    %v8933 = vpop.f32.mrf.mxu0
    %v8934 = vadd.f32 0.0, %v8933
    %8935 = vmatmul.bf16.gmra.mxu0 %v8856
    %v8936 = vpop.f32.mrf.mxu0
    %v8937 = vadd.f32 0.0, %v8936
    %v8938 = vpop.f32.mrf.mxu0
    %v8939 = vadd.f32 0.0, %v8938
    %8940 = vdwg.mxu0
    %v8941 = vadd.f32 %v8774, %v8932
    %v8942 = vadd.f32 %v8775, %v8934
    %v8943 = vadd.f32 %v8776, %v8937
    %v8944 = vadd.f32 %v8777, %v8939
    %vm8945 = vmand %vm8599, %vm7891
    %vm8946 = vmand %vm8600, %vm7892
    %vm8947 = vmand %vm8601, %vm7893
    %vm8948 = vmand %vm8602, %vm7894
    %vm8949 = vmand %vm8945, %vm7899
    %vm8950 = vmand %vm8946, %vm7900
    %vm8951 = vmand %vm8947, %vm7901
    %vm8952 = vmand %vm8948, %vm7902
    %v8953 = vadd.s32 %v8615, %v7887
    %v8954 = vadd.s32 %v8616, %v7888
    %v8955 = vadd.s32 %v8617, %v7889
    %v8956 = vadd.s32 %v8618, %v7890
    %8957 = vset.pattern.permute.xlu0 0
    %8958 = vperm.xlu0 %8957, %v8953
    %v8959 = vpop.permute.xlu0 %8958
    %8960 = vset.pattern.permute.xlu0 0
    %8961 = vperm.xlu0 %8960, %v8954
    %v8962 = vpop.permute.xlu0 %8961
    %8963 = vset.pattern.permute.xlu0 0
    %8964 = vperm.xlu0 %8963, %v8955
    %v8965 = vpop.permute.xlu0 %8964
    %8966 = vset.pattern.permute.xlu0 0
    %8967 = vperm.xlu0 %8966, %v8956
    %v8968 = vpop.permute.xlu0 %8967
    %vm8969 = vcmp.eq.s32.totalorder %v293, %v8959
    %vm8970 = vcmp.eq.s32.totalorder %v293, %v8962
    %vm8971 = vcmp.eq.s32.totalorder %v293, %v8965
    %vm8972 = vcmp.eq.s32.totalorder %v293, %v8968
    %v8973 = vsel %vm8949, 1, 0
    %v8974 = vsel %vm8950, 1, 0
    %v8975 = vsel %vm8951, 1, 0
    %v8976 = vsel %vm8952, 1, 0
    %8977 = vset.pattern.permute.xlu0 0
    %8978 = vperm.xlu0 %8977, %v8973
    %v8979 = vpop.permute.xlu0 %8978
    %8980 = vset.pattern.permute.xlu0 0
    %8981 = vperm.xlu0 %8980, %v8974
    %v8982 = vpop.permute.xlu0 %8981
    %8983 = vset.pattern.permute.xlu0 0
    %8984 = vperm.xlu0 %8983, %v8975
    %v8985 = vpop.permute.xlu0 %8984
    %8986 = vset.pattern.permute.xlu0 0
    %8987 = vperm.xlu0 %8986, %v8976
    %v8988 = vpop.permute.xlu0 %8987
    %vm8989 = vcmp.eq.s32.totalorder %v8979, 1
    %vm8990 = vcmp.eq.s32.totalorder %v8982, 1
    %vm8991 = vcmp.eq.s32.totalorder %v8985, 1
    %vm8992 = vcmp.eq.s32.totalorder %v8988, 1
    %vm8993 = vmand %vm8969, %vm8989
    %vm8994 = vmand %vm8970, %vm8990
    %vm8995 = vmand %vm8971, %vm8991
    %vm8996 = vmand %vm8972, %vm8992
    %v8997 = vsel %vm8993, 1.0, 0.0
    %v8998 = vsel %vm8994, 1.0, 0.0
    %v8999 = vsel %vm8995, 1.0, 0.0
    %v9000 = vsel %vm8996, 1.0, 0.0
    %v9001 = vpack.c.bf16 %v8998, %v8997
    %v9002 = vpack.c.bf16 %v9000, %v8999
    %9003 = vmatpush.bf16.msra.mxu0 %v7505
    %9004 = vmatpush.bf16.msra.mxu0 %v7504
    %9005 = vmatpush.bf16.msra.mxu0 %v7503
    %9006 = vmatpush.bf16.msra.mxu0 %v7502
    %9007 = vmatpush.bf16.msra.mxu0 %v7501
    %9008 = vmatpush.bf16.msra.mxu0 %v7500
    %9009 = vmatpush.bf16.msra.mxu0 %v7499
    %9010 = vmatpush.bf16.msra.mxu0 %v7498
    %9011 = vmatmul.bf16.gmra.mxu0 %v9001
    %v9012 = vpop.f32.mrf.mxu0
    %v9013 = vadd.f32 0.0, %v9012
    %v9014 = vpop.f32.mrf.mxu0
    %v9015 = vadd.f32 0.0, %v9014
    %9016 = vmatmul.bf16.gmra.mxu0 %v9002
    %v9017 = vpop.f32.mrf.mxu0
    %v9018 = vadd.f32 0.0, %v9017
    %v9019 = vpop.f32.mrf.mxu0
    %v9020 = vadd.f32 0.0, %v9019
    %9021 = vdwg.mxu0
    %v9022 = vpack.c.bf16 %v9015, %v9013
    %v9023 = vpack.c.bf16 %v9020, %v9018
    %s9024 = scalar_lea.vmem [#allocation8], 512
    %v9025 = vld [vmem:[%s9024] sm:$0xf]
    %v9026 = vld [vmem:[%s9024 + $0x4] sm:$0xf]
    %v9027 = vld [vmem:[%s9024 + $0x8] sm:$0xf]
    %v9028 = vld [vmem:[%s9024 + $0xc] sm:$0xf]
    %v9029 = vld [vmem:[%s9024 + $0x10] sm:$0xf]
    %v9030 = vld [vmem:[%s9024 + $0x14] sm:$0xf]
    %v9031 = vld [vmem:[%s9024 + $0x18] sm:$0xf]
    %v9032 = vld [vmem:[%s9024 + $0x1c] sm:$0xf]
    %v9033 = vld [vmem:[%s9024 + $0x20] sm:$0xf]
    %v9034 = vld [vmem:[%s9024 + $0x24] sm:$0xf]
    %v9035 = vld [vmem:[%s9024 + $0x28] sm:$0xf]
    %v9036 = vld [vmem:[%s9024 + $0x2c] sm:$0xf]
    %v9037 = vld [vmem:[%s9024 + $0x30] sm:$0xf]
    %v9038 = vld [vmem:[%s9024 + $0x34] sm:$0xf]
    %v9039 = vld [vmem:[%s9024 + $0x38] sm:$0xf]
    %v9040 = vld [vmem:[%s9024 + $0x3c] sm:$0xf]
    %v9057 = vunpack.c.l.b16 %v9025
    %v9058 = vunpack.c.l.b16 %v9026
    %v9059 = vunpack.c.l.b16 %v9027
    %v9060 = vunpack.c.l.b16 %v9028
    %v9061 = vunpack.c.l.b16 %v9029
    %v9062 = vunpack.c.l.b16 %v9030
    %v9063 = vunpack.c.l.b16 %v9031
    %v9064 = vunpack.c.l.b16 %v9032
    %v9065 = vunpack.c.l.b16 %v9033
    %v9066 = vunpack.c.l.b16 %v9034
    %v9067 = vunpack.c.l.b16 %v9035
    %v9068 = vunpack.c.l.b16 %v9036
    %v9069 = vunpack.c.l.b16 %v9037
    %v9070 = vunpack.c.l.b16 %v9038
    %v9071 = vunpack.c.l.b16 %v9039
    %v9072 = vunpack.c.l.b16 %v9040
    %v9073 = vpack.c.b16 %v9058, %v9057
    %v9074 = vpack.c.b16 %v9060, %v9059
    %v9075 = vpack.c.b16 %v9062, %v9061
    %v9076 = vpack.c.b16 %v9064, %v9063
    %v9077 = vpack.c.b16 %v9066, %v9065
    %v9078 = vpack.c.b16 %v9068, %v9067
    %v9079 = vpack.c.b16 %v9070, %v9069
    %v9080 = vpack.c.b16 %v9072, %v9071
    %9089 = vmatpush.bf16.msra.mxu0 %v9080
    %9090 = vmatpush.bf16.msra.mxu0 %v9079
    %9091 = vmatpush.bf16.msra.mxu0 %v9078
    %9092 = vmatpush.bf16.msra.mxu0 %v9077
    %9093 = vmatpush.bf16.msra.mxu0 %v9076
    %9094 = vmatpush.bf16.msra.mxu0 %v9075
    %9095 = vmatpush.bf16.msra.mxu0 %v9074
    %9096 = vmatpush.bf16.msra.mxu0 %v9073
    %9097 = vmatmul.bf16.gmra.mxu0 %v9022
    %v9098 = vpop.f32.mrf.mxu0
    %v9099 = vadd.f32 0.0, %v9098
    %v9100 = vpop.f32.mrf.mxu0
    %v9101 = vadd.f32 0.0, %v9100
    %9102 = vmatmul.bf16.gmra.mxu0 %v9023
    %v9103 = vpop.f32.mrf.mxu0
    %v9104 = vadd.f32 0.0, %v9103
    %v9105 = vpop.f32.mrf.mxu0
    %v9106 = vadd.f32 0.0, %v9105
    %9107 = vdwg.mxu0
    %v9108 = vadd.f32 %v8941, %v9099
    %v9109 = vadd.f32 %v8942, %v9101
    %v9110 = vadd.f32 %v8943, %v9104
    %v9111 = vadd.f32 %v8944, %v9106
    %v9112 = vld [vmem:[%s10] sm:$0x1]
    %v9114 = vperm.slane %v9112, 0
    %v9116 = vadd.f32 %v9108, %v9114
    %v9117 = vadd.f32 %v9109, %v9114
    %v9118 = vadd.f32 %v9110, %v9114
    %v9119 = vadd.f32 %v9111, %v9114
    %v9120 = vmax.f32 %v9116, 0.0
    %v9121 = vmax.f32 %v9117, 0.0
    %v9122 = vmax.f32 %v9118, 0.0
    %v9123 = vmax.f32 %v9119, 0.0
    %v9124 = vpack.c.bf16 %v9121, %v9120
    %v9125 = vpack.c.bf16 %v9123, %v9122
    %v9126 = vld [vmem:[#allocation10] sm:$0xff]
    %v9127 = vld [vmem:[#allocation11] sm:$0xff]
    %v9128 = vld [vmem:[%s13] sm:$0xff]
    %v9129 = vadd.s32 %v9126, 4294967295
    %v9130 = vadd.s32 %v9127, 4294967295
    %vm9131 = vcmp.ge.s32.totalorder %v9129, 0
    %vm9132 = vcmp.lt.s32.totalorder %v9129, 4
    %vm9133 = vmand %vm9131, %vm9132
    %vm9134 = vcmp.ge.s32.totalorder %v9130, 0
    %vm9135 = vmand %vm9133, %vm9134
    %vm9136 = vcmp.lt.s32.totalorder %v9130, 4
    %vm9137 = vmand %vm9135, %vm9136
    %v9138 = vmul.u32 %v9129, 4
    %v9139 = vadd.s32 %v9128, %v9138
    %v9140 = vadd.s32 %v9139, %v9130
    %9141 = vset.pattern.permute.xlu0 0
    %9142 = vperm.xlu0 %9141, %v9140
    %v9143 = vpop.permute.xlu0 %9142
    %vm9144 = vcmp.eq.s32.totalorder %v293, %v9143
    %v9145 = vsel %vm9137, 1, 0
    %9146 = vset.pattern.permute.xlu0 0
    %9147 = vperm.xlu0 %9146, %v9145
    %v9148 = vpop.permute.xlu0 %9147
    %vm9149 = vcmp.eq.s32.totalorder %v9148, 1
    %vm9150 = vmand %vm9144, %vm9149
    %v9151 = vsel %vm9150, 1.0, 0.0
    %v9152 = vpack.c.bf16 %v9151, %v9151
    %vm9153 = vcmask 261120
    %v9155 = vsel %vm9153, %v9152, 0
    %9157 = vmatpush.bf16.msra.mxu0 0
    %9158 = vmatpush.bf16.msra.mxu0 0
    %9159 = vmatpush.bf16.msra.mxu0 0
    %9160 = vmatpush.bf16.msra.mxu0 0
    %9161 = vmatpush.bf16.msra.mxu0 0
    %9162 = vmatpush.bf16.msra.mxu0 0
    %9163 = vmatpush.bf16.msra.mxu0 %v9125
    %9164 = vmatpush.bf16.msra.mxu0 %v9124
    %9165 = vmatmul.bf16.gmra.mxu0 %v9155
    %v9166 = vpop.f32.mrf.mxu0
    %v9167 = vadd.f32 0.0, %v9166
    %v9168 = vpop.f32.mrf.mxu0
    %9169 = vdwg.mxu0
    %v9170 = vpack.c.bf16 %v9167, %v9167
    %v9171 = vld [vmem:[#allocation13] sm:$0xf]
    %v9172 = vld [vmem:[#allocation13 + $0x4] sm:$0xf]
    %v9173 = vld [vmem:[#allocation13 + $0x8] sm:$0xf]
    %v9174 = vld [vmem:[#allocation13 + $0xc] sm:$0xf]
    %v9175 = vld [vmem:[#allocation13 + $0x10] sm:$0xf]
    %v9176 = vld [vmem:[#allocation13 + $0x14] sm:$0xf]
    %v9177 = vld [vmem:[#allocation13 + $0x18] sm:$0xf]
    %v9178 = vld [vmem:[#allocation13 + $0x1c] sm:$0xf]
    %v9179 = vld [vmem:[#allocation13 + $0x20] sm:$0xf]
    %v9180 = vld [vmem:[#allocation13 + $0x24] sm:$0xf]
    %v9181 = vld [vmem:[#allocation13 + $0x28] sm:$0xf]
    %v9182 = vld [vmem:[#allocation13 + $0x2c] sm:$0xf]
    %v9183 = vld [vmem:[#allocation13 + $0x30] sm:$0xf]
    %v9184 = vld [vmem:[#allocation13 + $0x34] sm:$0xf]
    %v9185 = vld [vmem:[#allocation13 + $0x38] sm:$0xf]
    %v9186 = vld [vmem:[#allocation13 + $0x3c] sm:$0xf]
    %vm9187 = vcmp.ge.s32.totalorder %v9127, 0
    %vm9188 = vmand %vm9133, %vm9187
    %vm9189 = vcmp.lt.s32.totalorder %v9127, 4
    %vm9190 = vmand %vm9188, %vm9189
    %v9191 = vadd.s32 %v9139, %v9127
    %9192 = vset.pattern.permute.xlu0 0
    %9193 = vperm.xlu0 %9192, %v9191
    %v9194 = vpop.permute.xlu0 %9193
    %vm9195 = vcmp.eq.s32.totalorder %v293, %v9194
    %v9196 = vsel %vm9190, 1, 0
    %9197 = vset.pattern.permute.xlu0 0
    %9198 = vperm.xlu0 %9197, %v9196
    %v9199 = vpop.permute.xlu0 %9198
    %vm9200 = vcmp.eq.s32.totalorder %v9199, 1
    %vm9201 = vmand %vm9195, %vm9200
    %v9202 = vsel %vm9201, 1.0, 0.0
    %v9203 = vpack.c.bf16 %v9202, %v9202
    %v9205 = vsel %vm9153, %v9203, 0
    %9207 = vmatpush.bf16.msra.mxu0 0
    %9208 = vmatpush.bf16.msra.mxu0 0
    %9209 = vmatpush.bf16.msra.mxu0 0
    %9210 = vmatpush.bf16.msra.mxu0 0
    %9211 = vmatpush.bf16.msra.mxu0 0
    %9212 = vmatpush.bf16.msra.mxu0 0
    %9213 = vmatpush.bf16.msra.mxu0 %v9125
    %9214 = vmatpush.bf16.msra.mxu0 %v9124
    %9215 = vmatmul.bf16.gmra.mxu0 %v9205
    %v9216 = vpop.f32.mrf.mxu0
    %v9217 = vadd.f32 0.0, %v9216
    %v9218 = vpop.f32.mrf.mxu0
    %9219 = vdwg.mxu0
    %v9220 = vpack.c.bf16 %v9217, %v9217
    %s9221 = scalar_lea.vmem [#allocation13], 64
    %v9222 = vld [vmem:[%s9221] sm:$0xf]
    %v9223 = vld [vmem:[%s9221 + $0x4] sm:$0xf]
    %v9224 = vld [vmem:[%s9221 + $0x8] sm:$0xf]
    %v9225 = vld [vmem:[%s9221 + $0xc] sm:$0xf]
    %v9226 = vld [vmem:[%s9221 + $0x10] sm:$0xf]
    %v9227 = vld [vmem:[%s9221 + $0x14] sm:$0xf]
    %v9228 = vld [vmem:[%s9221 + $0x18] sm:$0xf]
    %v9229 = vld [vmem:[%s9221 + $0x1c] sm:$0xf]
    %v9230 = vld [vmem:[%s9221 + $0x20] sm:$0xf]
    %v9231 = vld [vmem:[%s9221 + $0x24] sm:$0xf]
    %v9232 = vld [vmem:[%s9221 + $0x28] sm:$0xf]
    %v9233 = vld [vmem:[%s9221 + $0x2c] sm:$0xf]
    %v9234 = vld [vmem:[%s9221 + $0x30] sm:$0xf]
    %v9235 = vld [vmem:[%s9221 + $0x34] sm:$0xf]
    %v9236 = vld [vmem:[%s9221 + $0x38] sm:$0xf]
    %v9237 = vld [vmem:[%s9221 + $0x3c] sm:$0xf]
    %v9254 = vunpack.c.l.b16 %v9222
    %v9255 = vunpack.c.l.b16 %v9223
    %v9256 = vunpack.c.l.b16 %v9224
    %v9257 = vunpack.c.l.b16 %v9225
    %v9258 = vunpack.c.l.b16 %v9226
    %v9259 = vunpack.c.l.b16 %v9227
    %v9260 = vunpack.c.l.b16 %v9228
    %v9261 = vunpack.c.l.b16 %v9229
    %v9262 = vunpack.c.l.b16 %v9230
    %v9263 = vunpack.c.l.b16 %v9231
    %v9264 = vunpack.c.l.b16 %v9232
    %v9265 = vunpack.c.l.b16 %v9233
    %v9266 = vunpack.c.l.b16 %v9234
    %v9267 = vunpack.c.l.b16 %v9235
    %v9268 = vunpack.c.l.b16 %v9236
    %v9269 = vunpack.c.l.b16 %v9237
    %v9270 = vpack.c.b16 %v9255, %v9254
    %v9271 = vpack.c.b16 %v9257, %v9256
    %v9272 = vpack.c.b16 %v9259, %v9258
    %v9273 = vpack.c.b16 %v9261, %v9260
    %v9274 = vpack.c.b16 %v9263, %v9262
    %v9275 = vpack.c.b16 %v9265, %v9264
    %v9276 = vpack.c.b16 %v9267, %v9266
    %v9277 = vpack.c.b16 %v9269, %v9268
    %9286 = vmatpush.bf16.msra.mxu0 %v9277
    %9287 = vmatpush.bf16.msra.mxu0 %v9276
    %9288 = vmatpush.bf16.msra.mxu0 %v9275
    %9289 = vmatpush.bf16.msra.mxu0 %v9274
    %9290 = vmatpush.bf16.msra.mxu0 %v9273
    %9291 = vmatpush.bf16.msra.mxu0 %v9272
    %9292 = vmatpush.bf16.msra.mxu0 %v9271
    %9293 = vmatpush.bf16.msra.mxu0 %v9270
    %9294 = vmatmul.bf16.gmra.mxu0 %v9220
    %v9295 = vpop.f32.mrf.mxu0
    %v9296 = vadd.f32 0.0, %v9295
    %v9297 = vpop.f32.mrf.mxu0
    %9298 = vdwg.mxu0
    %v9315 = vunpack.c.l.b16 %v9171
    %v9316 = vunpack.c.l.b16 %v9172
    %v9317 = vunpack.c.l.b16 %v9173
    %v9318 = vunpack.c.l.b16 %v9174
    %v9319 = vunpack.c.l.b16 %v9175
    %v9320 = vunpack.c.l.b16 %v9176
    %v9321 = vunpack.c.l.b16 %v9177
    %v9322 = vunpack.c.l.b16 %v9178
    %v9323 = vunpack.c.l.b16 %v9179
    %v9324 = vunpack.c.l.b16 %v9180
    %v9325 = vunpack.c.l.b16 %v9181
    %v9326 = vunpack.c.l.b16 %v9182
    %v9327 = vunpack.c.l.b16 %v9183
    %v9328 = vunpack.c.l.b16 %v9184
    %v9329 = vunpack.c.l.b16 %v9185
    %v9330 = vunpack.c.l.b16 %v9186
    %v9331 = vpack.c.b16 %v9316, %v9315
    %v9332 = vpack.c.b16 %v9318, %v9317
    %v9333 = vpack.c.b16 %v9320, %v9319
    %v9334 = vpack.c.b16 %v9322, %v9321
    %v9335 = vpack.c.b16 %v9324, %v9323
    %v9336 = vpack.c.b16 %v9326, %v9325
    %v9337 = vpack.c.b16 %v9328, %v9327
    %v9338 = vpack.c.b16 %v9330, %v9329
    %9347 = vmatpush.bf16.msra.mxu0 %v9338
    %9348 = vmatpush.bf16.msra.mxu0 %v9337
    %9349 = vmatpush.bf16.msra.mxu0 %v9336
    %9350 = vmatpush.bf16.msra.mxu0 %v9335
    %9351 = vmatpush.bf16.msra.mxu0 %v9334
    %9352 = vmatpush.bf16.msra.mxu0 %v9333
    %9353 = vmatpush.bf16.msra.mxu0 %v9332
    %9354 = vmatpush.bf16.msra.mxu0 %v9331
    %9355 = vmatmul.bf16.gmra.mxu0 %v9170
    %v9356 = vpop.f32.mrf.mxu0
    %v9357 = vadd.f32 %v9296, %v9356
    %v9358 = vpop.f32.mrf.mxu0
    %9359 = vdwg.mxu0
    %v9360 = vadd.s32 %v9127, 1
    %vm9361 = vcmp.ge.s32.totalorder %v9360, 0
    %vm9362 = vmand %vm9133, %vm9361
    %vm9363 = vcmp.lt.s32.totalorder %v9360, 4
    %vm9364 = vmand %vm9362, %vm9363
    %v9365 = vadd.s32 %v9139, %v9360
    %9366 = vset.pattern.permute.xlu0 0
    %9367 = vperm.xlu0 %9366, %v9365
    %v9368 = vpop.permute.xlu0 %9367
    %vm9369 = vcmp.eq.s32.totalorder %v293, %v9368
    %v9370 = vsel %vm9364, 1, 0
    %9371 = vset.pattern.permute.xlu0 0
    %9372 = vperm.xlu0 %9371, %v9370
    %v9373 = vpop.permute.xlu0 %9372
    %vm9374 = vcmp.eq.s32.totalorder %v9373, 1
    %vm9375 = vmand %vm9369, %vm9374
    %v9376 = vsel %vm9375, 1.0, 0.0
    %v9377 = vpack.c.bf16 %v9376, %v9376
    %v9379 = vsel %vm9153, %v9377, 0
    %9381 = vmatpush.bf16.msra.mxu0 0
    %9382 = vmatpush.bf16.msra.mxu0 0
    %9383 = vmatpush.bf16.msra.mxu0 0
    %9384 = vmatpush.bf16.msra.mxu0 0
    %9385 = vmatpush.bf16.msra.mxu0 0
    %9386 = vmatpush.bf16.msra.mxu0 0
    %9387 = vmatpush.bf16.msra.mxu0 %v9125
    %9388 = vmatpush.bf16.msra.mxu0 %v9124
    %9389 = vmatmul.bf16.gmra.mxu0 %v9379
    %v9390 = vpop.f32.mrf.mxu0
    %v9391 = vadd.f32 0.0, %v9390
    %v9392 = vpop.f32.mrf.mxu0
    %9393 = vdwg.mxu0
    %v9394 = vpack.c.bf16 %v9391, %v9391
    %s9395 = scalar_lea.vmem [#allocation13], 128
    %v9396 = vld [vmem:[%s9395] sm:$0xf]
    %v9397 = vld [vmem:[%s9395 + $0x4] sm:$0xf]
    %v9398 = vld [vmem:[%s9395 + $0x8] sm:$0xf]
    %v9399 = vld [vmem:[%s9395 + $0xc] sm:$0xf]
    %v9400 = vld [vmem:[%s9395 + $0x10] sm:$0xf]
    %v9401 = vld [vmem:[%s9395 + $0x14] sm:$0xf]
    %v9402 = vld [vmem:[%s9395 + $0x18] sm:$0xf]
    %v9403 = vld [vmem:[%s9395 + $0x1c] sm:$0xf]
    %v9404 = vld [vmem:[%s9395 + $0x20] sm:$0xf]
    %v9405 = vld [vmem:[%s9395 + $0x24] sm:$0xf]
    %v9406 = vld [vmem:[%s9395 + $0x28] sm:$0xf]
    %v9407 = vld [vmem:[%s9395 + $0x2c] sm:$0xf]
    %v9408 = vld [vmem:[%s9395 + $0x30] sm:$0xf]
    %v9409 = vld [vmem:[%s9395 + $0x34] sm:$0xf]
    %v9410 = vld [vmem:[%s9395 + $0x38] sm:$0xf]
    %v9411 = vld [vmem:[%s9395 + $0x3c] sm:$0xf]
    %v9428 = vunpack.c.l.b16 %v9396
    %v9429 = vunpack.c.l.b16 %v9397
    %v9430 = vunpack.c.l.b16 %v9398
    %v9431 = vunpack.c.l.b16 %v9399
    %v9432 = vunpack.c.l.b16 %v9400
    %v9433 = vunpack.c.l.b16 %v9401
    %v9434 = vunpack.c.l.b16 %v9402
    %v9435 = vunpack.c.l.b16 %v9403
    %v9436 = vunpack.c.l.b16 %v9404
    %v9437 = vunpack.c.l.b16 %v9405
    %v9438 = vunpack.c.l.b16 %v9406
    %v9439 = vunpack.c.l.b16 %v9407
    %v9440 = vunpack.c.l.b16 %v9408
    %v9441 = vunpack.c.l.b16 %v9409
    %v9442 = vunpack.c.l.b16 %v9410
    %v9443 = vunpack.c.l.b16 %v9411
    %v9444 = vpack.c.b16 %v9429, %v9428
    %v9445 = vpack.c.b16 %v9431, %v9430
    %v9446 = vpack.c.b16 %v9433, %v9432
    %v9447 = vpack.c.b16 %v9435, %v9434
    %v9448 = vpack.c.b16 %v9437, %v9436
    %v9449 = vpack.c.b16 %v9439, %v9438
    %v9450 = vpack.c.b16 %v9441, %v9440
    %v9451 = vpack.c.b16 %v9443, %v9442
    %9460 = vmatpush.bf16.msra.mxu0 %v9451
    %9461 = vmatpush.bf16.msra.mxu0 %v9450
    %9462 = vmatpush.bf16.msra.mxu0 %v9449
    %9463 = vmatpush.bf16.msra.mxu0 %v9448
    %9464 = vmatpush.bf16.msra.mxu0 %v9447
    %9465 = vmatpush.bf16.msra.mxu0 %v9446
    %9466 = vmatpush.bf16.msra.mxu0 %v9445
    %9467 = vmatpush.bf16.msra.mxu0 %v9444
    %9468 = vmatmul.bf16.gmra.mxu0 %v9394
    %v9469 = vpop.f32.mrf.mxu0
    %v9470 = vadd.f32 0.0, %v9469
    %v9471 = vpop.f32.mrf.mxu0
    %9472 = vdwg.mxu0
    %v9473 = vadd.f32 %v9357, %v9470
    %vm9474 = vcmp.ge.s32.totalorder %v9126, 0
    %vm9475 = vcmp.lt.s32.totalorder %v9126, 4
    %vm9476 = vmand %vm9474, %vm9475
    %vm9477 = vmand %vm9476, %vm9134
    %vm9478 = vmand %vm9477, %vm9136
    %v9479 = vmul.u32 %v9126, 4
    %v9480 = vadd.s32 %v9128, %v9479
    %v9481 = vadd.s32 %v9480, %v9130
    %9482 = vset.pattern.permute.xlu0 0
    %9483 = vperm.xlu0 %9482, %v9481
    %v9484 = vpop.permute.xlu0 %9483
    %vm9485 = vcmp.eq.s32.totalorder %v293, %v9484
    %v9486 = vsel %vm9478, 1, 0
    %9487 = vset.pattern.permute.xlu0 0
    %9488 = vperm.xlu0 %9487, %v9486
    %v9489 = vpop.permute.xlu0 %9488
    %vm9490 = vcmp.eq.s32.totalorder %v9489, 1
    %vm9491 = vmand %vm9485, %vm9490
    %v9492 = vsel %vm9491, 1.0, 0.0
    %v9493 = vpack.c.bf16 %v9492, %v9492
    %v9495 = vsel %vm9153, %v9493, 0
    %9497 = vmatpush.bf16.msra.mxu0 0
    %9498 = vmatpush.bf16.msra.mxu0 0
    %9499 = vmatpush.bf16.msra.mxu0 0
    %9500 = vmatpush.bf16.msra.mxu0 0
    %9501 = vmatpush.bf16.msra.mxu0 0
    %9502 = vmatpush.bf16.msra.mxu0 0
    %9503 = vmatpush.bf16.msra.mxu0 %v9125
    %9504 = vmatpush.bf16.msra.mxu0 %v9124
    %9505 = vmatmul.bf16.gmra.mxu0 %v9495
    %v9506 = vpop.f32.mrf.mxu0
    %v9507 = vadd.f32 0.0, %v9506
    %v9508 = vpop.f32.mrf.mxu0
    %9509 = vdwg.mxu0
    %v9510 = vpack.c.bf16 %v9507, %v9507
    %s9511 = scalar_lea.vmem [#allocation13], 192
    %v9512 = vld [vmem:[%s9511] sm:$0xf]
    %v9513 = vld [vmem:[%s9511 + $0x4] sm:$0xf]
    %v9514 = vld [vmem:[%s9511 + $0x8] sm:$0xf]
    %v9515 = vld [vmem:[%s9511 + $0xc] sm:$0xf]
    %v9516 = vld [vmem:[%s9511 + $0x10] sm:$0xf]
    %v9517 = vld [vmem:[%s9511 + $0x14] sm:$0xf]
    %v9518 = vld [vmem:[%s9511 + $0x18] sm:$0xf]
    %v9519 = vld [vmem:[%s9511 + $0x1c] sm:$0xf]
    %v9520 = vld [vmem:[%s9511 + $0x20] sm:$0xf]
    %v9521 = vld [vmem:[%s9511 + $0x24] sm:$0xf]
    %v9522 = vld [vmem:[%s9511 + $0x28] sm:$0xf]
    %v9523 = vld [vmem:[%s9511 + $0x2c] sm:$0xf]
    %v9524 = vld [vmem:[%s9511 + $0x30] sm:$0xf]
    %v9525 = vld [vmem:[%s9511 + $0x34] sm:$0xf]
    %v9526 = vld [vmem:[%s9511 + $0x38] sm:$0xf]
    %v9527 = vld [vmem:[%s9511 + $0x3c] sm:$0xf]
    %v9544 = vunpack.c.l.b16 %v9512
    %v9545 = vunpack.c.l.b16 %v9513
    %v9546 = vunpack.c.l.b16 %v9514
    %v9547 = vunpack.c.l.b16 %v9515
    %v9548 = vunpack.c.l.b16 %v9516
    %v9549 = vunpack.c.l.b16 %v9517
    %v9550 = vunpack.c.l.b16 %v9518
    %v9551 = vunpack.c.l.b16 %v9519
    %v9552 = vunpack.c.l.b16 %v9520
    %v9553 = vunpack.c.l.b16 %v9521
    %v9554 = vunpack.c.l.b16 %v9522
    %v9555 = vunpack.c.l.b16 %v9523
    %v9556 = vunpack.c.l.b16 %v9524
    %v9557 = vunpack.c.l.b16 %v9525
    %v9558 = vunpack.c.l.b16 %v9526
    %v9559 = vunpack.c.l.b16 %v9527
    %v9560 = vpack.c.b16 %v9545, %v9544
    %v9561 = vpack.c.b16 %v9547, %v9546
    %v9562 = vpack.c.b16 %v9549, %v9548
    %v9563 = vpack.c.b16 %v9551, %v9550
    %v9564 = vpack.c.b16 %v9553, %v9552
    %v9565 = vpack.c.b16 %v9555, %v9554
    %v9566 = vpack.c.b16 %v9557, %v9556
    %v9567 = vpack.c.b16 %v9559, %v9558
    %9576 = vmatpush.bf16.msra.mxu0 %v9567
    %9577 = vmatpush.bf16.msra.mxu0 %v9566
    %9578 = vmatpush.bf16.msra.mxu0 %v9565
    %9579 = vmatpush.bf16.msra.mxu0 %v9564
    %9580 = vmatpush.bf16.msra.mxu0 %v9563
    %9581 = vmatpush.bf16.msra.mxu0 %v9562
    %9582 = vmatpush.bf16.msra.mxu0 %v9561
    %9583 = vmatpush.bf16.msra.mxu0 %v9560
    %9584 = vmatmul.bf16.gmra.mxu0 %v9510
    %v9585 = vpop.f32.mrf.mxu0
    %v9586 = vadd.f32 0.0, %v9585
    %v9587 = vpop.f32.mrf.mxu0
    %9588 = vdwg.mxu0
    %v9589 = vadd.f32 %v9473, %v9586
    %vm9590 = vmand %vm9476, %vm9187
    %vm9591 = vmand %vm9590, %vm9189
    %v9592 = vadd.s32 %v9480, %v9127
    %9593 = vset.pattern.permute.xlu0 0
    %9594 = vperm.xlu0 %9593, %v9592
    %v9595 = vpop.permute.xlu0 %9594
    %vm9596 = vcmp.eq.s32.totalorder %v293, %v9595
    %v9597 = vsel %vm9591, 1, 0
    %9598 = vset.pattern.permute.xlu0 0
    %9599 = vperm.xlu0 %9598, %v9597
    %v9600 = vpop.permute.xlu0 %9599
    %vm9601 = vcmp.eq.s32.totalorder %v9600, 1
    %vm9602 = vmand %vm9596, %vm9601
    %v9603 = vsel %vm9602, 1.0, 0.0
    %v9604 = vpack.c.bf16 %v9603, %v9603
    %v9606 = vsel %vm9153, %v9604, 0
    %9608 = vmatpush.bf16.msra.mxu0 0
    %9609 = vmatpush.bf16.msra.mxu0 0
    %9610 = vmatpush.bf16.msra.mxu0 0
    %9611 = vmatpush.bf16.msra.mxu0 0
    %9612 = vmatpush.bf16.msra.mxu0 0
    %9613 = vmatpush.bf16.msra.mxu0 0
    %9614 = vmatpush.bf16.msra.mxu0 %v9125
    %9615 = vmatpush.bf16.msra.mxu0 %v9124
    %9616 = vmatmul.bf16.gmra.mxu0 %v9606
    %v9617 = vpop.f32.mrf.mxu0
    %v9618 = vadd.f32 0.0, %v9617
    %v9619 = vpop.f32.mrf.mxu0
    %9620 = vdwg.mxu0
    %v9621 = vpack.c.bf16 %v9618, %v9618
    %s9622 = scalar_lea.vmem [#allocation13], 256
    %v9623 = vld [vmem:[%s9622] sm:$0xf]
    %v9624 = vld [vmem:[%s9622 + $0x4] sm:$0xf]
    %v9625 = vld [vmem:[%s9622 + $0x8] sm:$0xf]
    %v9626 = vld [vmem:[%s9622 + $0xc] sm:$0xf]
    %v9627 = vld [vmem:[%s9622 + $0x10] sm:$0xf]
    %v9628 = vld [vmem:[%s9622 + $0x14] sm:$0xf]
    %v9629 = vld [vmem:[%s9622 + $0x18] sm:$0xf]
    %v9630 = vld [vmem:[%s9622 + $0x1c] sm:$0xf]
    %v9631 = vld [vmem:[%s9622 + $0x20] sm:$0xf]
    %v9632 = vld [vmem:[%s9622 + $0x24] sm:$0xf]
    %v9633 = vld [vmem:[%s9622 + $0x28] sm:$0xf]
    %v9634 = vld [vmem:[%s9622 + $0x2c] sm:$0xf]
    %v9635 = vld [vmem:[%s9622 + $0x30] sm:$0xf]
    %v9636 = vld [vmem:[%s9622 + $0x34] sm:$0xf]
    %v9637 = vld [vmem:[%s9622 + $0x38] sm:$0xf]
    %v9638 = vld [vmem:[%s9622 + $0x3c] sm:$0xf]
    %v9655 = vunpack.c.l.b16 %v9623
    %v9656 = vunpack.c.l.b16 %v9624
    %v9657 = vunpack.c.l.b16 %v9625
    %v9658 = vunpack.c.l.b16 %v9626
    %v9659 = vunpack.c.l.b16 %v9627
    %v9660 = vunpack.c.l.b16 %v9628
    %v9661 = vunpack.c.l.b16 %v9629
    %v9662 = vunpack.c.l.b16 %v9630
    %v9663 = vunpack.c.l.b16 %v9631
    %v9664 = vunpack.c.l.b16 %v9632
    %v9665 = vunpack.c.l.b16 %v9633
    %v9666 = vunpack.c.l.b16 %v9634
    %v9667 = vunpack.c.l.b16 %v9635
    %v9668 = vunpack.c.l.b16 %v9636
    %v9669 = vunpack.c.l.b16 %v9637
    %v9670 = vunpack.c.l.b16 %v9638
    %v9671 = vpack.c.b16 %v9656, %v9655
    %v9672 = vpack.c.b16 %v9658, %v9657
    %v9673 = vpack.c.b16 %v9660, %v9659
    %v9674 = vpack.c.b16 %v9662, %v9661
    %v9675 = vpack.c.b16 %v9664, %v9663
    %v9676 = vpack.c.b16 %v9666, %v9665
    %v9677 = vpack.c.b16 %v9668, %v9667
    %v9678 = vpack.c.b16 %v9670, %v9669
    %9687 = vmatpush.bf16.msra.mxu0 %v9678
    %9688 = vmatpush.bf16.msra.mxu0 %v9677
    %9689 = vmatpush.bf16.msra.mxu0 %v9676
    %9690 = vmatpush.bf16.msra.mxu0 %v9675
    %9691 = vmatpush.bf16.msra.mxu0 %v9674
    %9692 = vmatpush.bf16.msra.mxu0 %v9673
    %9693 = vmatpush.bf16.msra.mxu0 %v9672
    %9694 = vmatpush.bf16.msra.mxu0 %v9671
    %9695 = vmatmul.bf16.gmra.mxu0 %v9621
    %v9696 = vpop.f32.mrf.mxu0
    %v9697 = vadd.f32 0.0, %v9696
    %v9698 = vpop.f32.mrf.mxu0
    %9699 = vdwg.mxu0
    %v9700 = vadd.f32 %v9589, %v9697
    %vm9701 = vmand %vm9476, %vm9361
    %vm9702 = vmand %vm9701, %vm9363
    %v9703 = vadd.s32 %v9480, %v9360
    %9704 = vset.pattern.permute.xlu0 0
    %9705 = vperm.xlu0 %9704, %v9703
    %v9706 = vpop.permute.xlu0 %9705
    %vm9707 = vcmp.eq.s32.totalorder %v293, %v9706
    %v9708 = vsel %vm9702, 1, 0
    %9709 = vset.pattern.permute.xlu0 0
    %9710 = vperm.xlu0 %9709, %v9708
    %v9711 = vpop.permute.xlu0 %9710
    %vm9712 = vcmp.eq.s32.totalorder %v9711, 1
    %vm9713 = vmand %vm9707, %vm9712
    %v9714 = vsel %vm9713, 1.0, 0.0
    %v9715 = vpack.c.bf16 %v9714, %v9714
    %v9717 = vsel %vm9153, %v9715, 0
    %9719 = vmatpush.bf16.msra.mxu0 0
    %9720 = vmatpush.bf16.msra.mxu0 0
    %9721 = vmatpush.bf16.msra.mxu0 0
    %9722 = vmatpush.bf16.msra.mxu0 0
    %9723 = vmatpush.bf16.msra.mxu0 0
    %9724 = vmatpush.bf16.msra.mxu0 0
    %9725 = vmatpush.bf16.msra.mxu0 %v9125
    %9726 = vmatpush.bf16.msra.mxu0 %v9124
    %9727 = vmatmul.bf16.gmra.mxu0 %v9717
    %v9728 = vpop.f32.mrf.mxu0
    %v9729 = vadd.f32 0.0, %v9728
    %v9730 = vpop.f32.mrf.mxu0
    %9731 = vdwg.mxu0
    %v9732 = vpack.c.bf16 %v9729, %v9729
    %s9733 = scalar_lea.vmem [#allocation13], 320
    %v9734 = vld [vmem:[%s9733] sm:$0xf]
    %v9735 = vld [vmem:[%s9733 + $0x4] sm:$0xf]
    %v9736 = vld [vmem:[%s9733 + $0x8] sm:$0xf]
    %v9737 = vld [vmem:[%s9733 + $0xc] sm:$0xf]
    %v9738 = vld [vmem:[%s9733 + $0x10] sm:$0xf]
    %v9739 = vld [vmem:[%s9733 + $0x14] sm:$0xf]
    %v9740 = vld [vmem:[%s9733 + $0x18] sm:$0xf]
    %v9741 = vld [vmem:[%s9733 + $0x1c] sm:$0xf]
    %v9742 = vld [vmem:[%s9733 + $0x20] sm:$0xf]
    %v9743 = vld [vmem:[%s9733 + $0x24] sm:$0xf]
    %v9744 = vld [vmem:[%s9733 + $0x28] sm:$0xf]
    %v9745 = vld [vmem:[%s9733 + $0x2c] sm:$0xf]
    %v9746 = vld [vmem:[%s9733 + $0x30] sm:$0xf]
    %v9747 = vld [vmem:[%s9733 + $0x34] sm:$0xf]
    %v9748 = vld [vmem:[%s9733 + $0x38] sm:$0xf]
    %v9749 = vld [vmem:[%s9733 + $0x3c] sm:$0xf]
    %v9766 = vunpack.c.l.b16 %v9734
    %v9767 = vunpack.c.l.b16 %v9735
    %v9768 = vunpack.c.l.b16 %v9736
    %v9769 = vunpack.c.l.b16 %v9737
    %v9770 = vunpack.c.l.b16 %v9738
    %v9771 = vunpack.c.l.b16 %v9739
    %v9772 = vunpack.c.l.b16 %v9740
    %v9773 = vunpack.c.l.b16 %v9741
    %v9774 = vunpack.c.l.b16 %v9742
    %v9775 = vunpack.c.l.b16 %v9743
    %v9776 = vunpack.c.l.b16 %v9744
    %v9777 = vunpack.c.l.b16 %v9745
    %v9778 = vunpack.c.l.b16 %v9746
    %v9779 = vunpack.c.l.b16 %v9747
    %v9780 = vunpack.c.l.b16 %v9748
    %v9781 = vunpack.c.l.b16 %v9749
    %v9782 = vpack.c.b16 %v9767, %v9766
    %v9783 = vpack.c.b16 %v9769, %v9768
    %v9784 = vpack.c.b16 %v9771, %v9770
    %v9785 = vpack.c.b16 %v9773, %v9772
    %v9786 = vpack.c.b16 %v9775, %v9774
    %v9787 = vpack.c.b16 %v9777, %v9776
    %v9788 = vpack.c.b16 %v9779, %v9778
    %v9789 = vpack.c.b16 %v9781, %v9780
    %9798 = vmatpush.bf16.msra.mxu0 %v9789
    %9799 = vmatpush.bf16.msra.mxu0 %v9788
    %9800 = vmatpush.bf16.msra.mxu0 %v9787
    %9801 = vmatpush.bf16.msra.mxu0 %v9786
    %9802 = vmatpush.bf16.msra.mxu0 %v9785
    %9803 = vmatpush.bf16.msra.mxu0 %v9784
    %9804 = vmatpush.bf16.msra.mxu0 %v9783
    %9805 = vmatpush.bf16.msra.mxu0 %v9782
    %9806 = vmatmul.bf16.gmra.mxu0 %v9732
    %v9807 = vpop.f32.mrf.mxu0
    %v9808 = vadd.f32 0.0, %v9807
    %v9809 = vpop.f32.mrf.mxu0
    %9810 = vdwg.mxu0
    %v9811 = vadd.f32 %v9700, %v9808
    %v9812 = vadd.s32 %v9126, 1
    %vm9813 = vcmp.ge.s32.totalorder %v9812, 0
    %vm9814 = vcmp.lt.s32.totalorder %v9812, 4
    %vm9815 = vmand %vm9813, %vm9814
    %vm9816 = vmand %vm9815, %vm9134
    %vm9817 = vmand %vm9816, %vm9136
    %v9818 = vmul.u32 %v9812, 4
    %v9819 = vadd.s32 %v9128, %v9818
    %v9820 = vadd.s32 %v9819, %v9130
    %9821 = vset.pattern.permute.xlu0 0
    %9822 = vperm.xlu0 %9821, %v9820
    %v9823 = vpop.permute.xlu0 %9822
    %vm9824 = vcmp.eq.s32.totalorder %v293, %v9823
    %v9825 = vsel %vm9817, 1, 0
    %9826 = vset.pattern.permute.xlu0 0
    %9827 = vperm.xlu0 %9826, %v9825
    %v9828 = vpop.permute.xlu0 %9827
    %vm9829 = vcmp.eq.s32.totalorder %v9828, 1
    %vm9830 = vmand %vm9824, %vm9829
    %v9831 = vsel %vm9830, 1.0, 0.0
    %v9832 = vpack.c.bf16 %v9831, %v9831
    %v9834 = vsel %vm9153, %v9832, 0
    %9836 = vmatpush.bf16.msra.mxu0 0
    %9837 = vmatpush.bf16.msra.mxu0 0
    %9838 = vmatpush.bf16.msra.mxu0 0
    %9839 = vmatpush.bf16.msra.mxu0 0
    %9840 = vmatpush.bf16.msra.mxu0 0
    %9841 = vmatpush.bf16.msra.mxu0 0
    %9842 = vmatpush.bf16.msra.mxu0 %v9125
    %9843 = vmatpush.bf16.msra.mxu0 %v9124
    %9844 = vmatmul.bf16.gmra.mxu0 %v9834
    %v9845 = vpop.f32.mrf.mxu0
    %v9846 = vadd.f32 0.0, %v9845
    %v9847 = vpop.f32.mrf.mxu0
    %9848 = vdwg.mxu0
    %v9849 = vpack.c.bf16 %v9846, %v9846
    %s9850 = scalar_lea.vmem [#allocation13], 384
    %v9851 = vld [vmem:[%s9850] sm:$0xf]
    %v9852 = vld [vmem:[%s9850 + $0x4] sm:$0xf]
    %v9853 = vld [vmem:[%s9850 + $0x8] sm:$0xf]
    %v9854 = vld [vmem:[%s9850 + $0xc] sm:$0xf]
    %v9855 = vld [vmem:[%s9850 + $0x10] sm:$0xf]
    %v9856 = vld [vmem:[%s9850 + $0x14] sm:$0xf]
    %v9857 = vld [vmem:[%s9850 + $0x18] sm:$0xf]
    %v9858 = vld [vmem:[%s9850 + $0x1c] sm:$0xf]
    %v9859 = vld [vmem:[%s9850 + $0x20] sm:$0xf]
    %v9860 = vld [vmem:[%s9850 + $0x24] sm:$0xf]
    %v9861 = vld [vmem:[%s9850 + $0x28] sm:$0xf]
    %v9862 = vld [vmem:[%s9850 + $0x2c] sm:$0xf]
    %v9863 = vld [vmem:[%s9850 + $0x30] sm:$0xf]
    %v9864 = vld [vmem:[%s9850 + $0x34] sm:$0xf]
    %v9865 = vld [vmem:[%s9850 + $0x38] sm:$0xf]
    %v9866 = vld [vmem:[%s9850 + $0x3c] sm:$0xf]
    %v9883 = vunpack.c.l.b16 %v9851
    %v9884 = vunpack.c.l.b16 %v9852
    %v9885 = vunpack.c.l.b16 %v9853
    %v9886 = vunpack.c.l.b16 %v9854
    %v9887 = vunpack.c.l.b16 %v9855
    %v9888 = vunpack.c.l.b16 %v9856
    %v9889 = vunpack.c.l.b16 %v9857
    %v9890 = vunpack.c.l.b16 %v9858
    %v9891 = vunpack.c.l.b16 %v9859
    %v9892 = vunpack.c.l.b16 %v9860
    %v9893 = vunpack.c.l.b16 %v9861
    %v9894 = vunpack.c.l.b16 %v9862
    %v9895 = vunpack.c.l.b16 %v9863
    %v9896 = vunpack.c.l.b16 %v9864
    %v9897 = vunpack.c.l.b16 %v9865
    %v9898 = vunpack.c.l.b16 %v9866
    %v9899 = vpack.c.b16 %v9884, %v9883
    %v9900 = vpack.c.b16 %v9886, %v9885
    %v9901 = vpack.c.b16 %v9888, %v9887
    %v9902 = vpack.c.b16 %v9890, %v9889
    %v9903 = vpack.c.b16 %v9892, %v9891
    %v9904 = vpack.c.b16 %v9894, %v9893
    %v9905 = vpack.c.b16 %v9896, %v9895
    %v9906 = vpack.c.b16 %v9898, %v9897
    %9915 = vmatpush.bf16.msra.mxu0 %v9906
    %9916 = vmatpush.bf16.msra.mxu0 %v9905
    %9917 = vmatpush.bf16.msra.mxu0 %v9904
    %9918 = vmatpush.bf16.msra.mxu0 %v9903
    %9919 = vmatpush.bf16.msra.mxu0 %v9902
    %9920 = vmatpush.bf16.msra.mxu0 %v9901
    %9921 = vmatpush.bf16.msra.mxu0 %v9900
    %9922 = vmatpush.bf16.msra.mxu0 %v9899
    %9923 = vmatmul.bf16.gmra.mxu0 %v9849
    %v9924 = vpop.f32.mrf.mxu0
    %v9925 = vadd.f32 0.0, %v9924
    %v9926 = vpop.f32.mrf.mxu0
    %9927 = vdwg.mxu0
    %v9928 = vadd.f32 %v9811, %v9925
    %vm9929 = vmand %vm9815, %vm9187
    %vm9930 = vmand %vm9929, %vm9189
    %v9931 = vadd.s32 %v9819, %v9127
    %9932 = vset.pattern.permute.xlu0 0
    %9933 = vperm.xlu0 %9932, %v9931
    %v9934 = vpop.permute.xlu0 %9933
    %vm9935 = vcmp.eq.s32.totalorder %v293, %v9934
    %v9936 = vsel %vm9930, 1, 0
    %9937 = vset.pattern.permute.xlu0 0
    %9938 = vperm.xlu0 %9937, %v9936
    %v9939 = vpop.permute.xlu0 %9938
    %vm9940 = vcmp.eq.s32.totalorder %v9939, 1
    %vm9941 = vmand %vm9935, %vm9940
    %v9942 = vsel %vm9941, 1.0, 0.0
    %v9943 = vpack.c.bf16 %v9942, %v9942
    %v9945 = vsel %vm9153, %v9943, 0
    %9947 = vmatpush.bf16.msra.mxu0 0
    %9948 = vmatpush.bf16.msra.mxu0 0
    %9949 = vmatpush.bf16.msra.mxu0 0
    %9950 = vmatpush.bf16.msra.mxu0 0
    %9951 = vmatpush.bf16.msra.mxu0 0
    %9952 = vmatpush.bf16.msra.mxu0 0
    %9953 = vmatpush.bf16.msra.mxu0 %v9125
    %9954 = vmatpush.bf16.msra.mxu0 %v9124
    %9955 = vmatmul.bf16.gmra.mxu0 %v9945
    %v9956 = vpop.f32.mrf.mxu0
    %v9957 = vadd.f32 0.0, %v9956
    %v9958 = vpop.f32.mrf.mxu0
    %9959 = vdwg.mxu0
    %v9960 = vpack.c.bf16 %v9957, %v9957
    %s9961 = scalar_lea.vmem [#allocation13], 448
    %v9962 = vld [vmem:[%s9961] sm:$0xf]
    %v9963 = vld [vmem:[%s9961 + $0x4] sm:$0xf]
    %v9964 = vld [vmem:[%s9961 + $0x8] sm:$0xf]
    %v9965 = vld [vmem:[%s9961 + $0xc] sm:$0xf]
    %v9966 = vld [vmem:[%s9961 + $0x10] sm:$0xf]
    %v9967 = vld [vmem:[%s9961 + $0x14] sm:$0xf]
    %v9968 = vld [vmem:[%s9961 + $0x18] sm:$0xf]
    %v9969 = vld [vmem:[%s9961 + $0x1c] sm:$0xf]
    %v9970 = vld [vmem:[%s9961 + $0x20] sm:$0xf]
    %v9971 = vld [vmem:[%s9961 + $0x24] sm:$0xf]
    %v9972 = vld [vmem:[%s9961 + $0x28] sm:$0xf]
    %v9973 = vld [vmem:[%s9961 + $0x2c] sm:$0xf]
    %v9974 = vld [vmem:[%s9961 + $0x30] sm:$0xf]
    %v9975 = vld [vmem:[%s9961 + $0x34] sm:$0xf]
    %v9976 = vld [vmem:[%s9961 + $0x38] sm:$0xf]
    %v9977 = vld [vmem:[%s9961 + $0x3c] sm:$0xf]
    %v9994 = vunpack.c.l.b16 %v9962
    %v9995 = vunpack.c.l.b16 %v9963
    %v9996 = vunpack.c.l.b16 %v9964
    %v9997 = vunpack.c.l.b16 %v9965
    %v9998 = vunpack.c.l.b16 %v9966
    %v9999 = vunpack.c.l.b16 %v9967
    %v10000 = vunpack.c.l.b16 %v9968
    %v10001 = vunpack.c.l.b16 %v9969
    %v10002 = vunpack.c.l.b16 %v9970
    %v10003 = vunpack.c.l.b16 %v9971
    %v10004 = vunpack.c.l.b16 %v9972
    %v10005 = vunpack.c.l.b16 %v9973
    %v10006 = vunpack.c.l.b16 %v9974
    %v10007 = vunpack.c.l.b16 %v9975
    %v10008 = vunpack.c.l.b16 %v9976
    %v10009 = vunpack.c.l.b16 %v9977
    %v10010 = vpack.c.b16 %v9995, %v9994
    %v10011 = vpack.c.b16 %v9997, %v9996
    %v10012 = vpack.c.b16 %v9999, %v9998
    %v10013 = vpack.c.b16 %v10001, %v10000
    %v10014 = vpack.c.b16 %v10003, %v10002
    %v10015 = vpack.c.b16 %v10005, %v10004
    %v10016 = vpack.c.b16 %v10007, %v10006
    %v10017 = vpack.c.b16 %v10009, %v10008
    %10026 = vmatpush.bf16.msra.mxu0 %v10017
    %10027 = vmatpush.bf16.msra.mxu0 %v10016
    %10028 = vmatpush.bf16.msra.mxu0 %v10015
    %10029 = vmatpush.bf16.msra.mxu0 %v10014
    %10030 = vmatpush.bf16.msra.mxu0 %v10013
    %10031 = vmatpush.bf16.msra.mxu0 %v10012
    %10032 = vmatpush.bf16.msra.mxu0 %v10011
    %10033 = vmatpush.bf16.msra.mxu0 %v10010
    %10034 = vmatmul.bf16.gmra.mxu0 %v9960
    %v10035 = vpop.f32.mrf.mxu0
    %v10036 = vadd.f32 0.0, %v10035
    %v10037 = vpop.f32.mrf.mxu0
    %10038 = vdwg.mxu0
    %v10039 = vadd.f32 %v9928, %v10036
    %vm10040 = vmand %vm9815, %vm9361
    %vm10041 = vmand %vm10040, %vm9363
    %v10042 = vadd.s32 %v9819, %v9360
    %10043 = vset.pattern.permute.xlu0 0
    %10044 = vperm.xlu0 %10043, %v10042
    %v10045 = vpop.permute.xlu0 %10044
    %vm10046 = vcmp.eq.s32.totalorder %v293, %v10045
    %v10047 = vsel %vm10041, 1, 0
    %10048 = vset.pattern.permute.xlu0 0
    %10049 = vperm.xlu0 %10048, %v10047
    %v10050 = vpop.permute.xlu0 %10049
    %vm10051 = vcmp.eq.s32.totalorder %v10050, 1
    %vm10052 = vmand %vm10046, %vm10051
    %v10053 = vsel %vm10052, 1.0, 0.0
    %v10054 = vpack.c.bf16 %v10053, %v10053
    %v10056 = vsel %vm9153, %v10054, 0
    %10058 = vmatpush.bf16.msra.mxu0 0
    %10059 = vmatpush.bf16.msra.mxu0 0
    %10060 = vmatpush.bf16.msra.mxu0 0
    %10061 = vmatpush.bf16.msra.mxu0 0
    %10062 = vmatpush.bf16.msra.mxu0 0
    %10063 = vmatpush.bf16.msra.mxu0 0
    %10064 = vmatpush.bf16.msra.mxu0 %v9125
    %10065 = vmatpush.bf16.msra.mxu0 %v9124
    %10066 = vmatmul.bf16.gmra.mxu0 %v10056
    %v10067 = vpop.f32.mrf.mxu0
    %v10068 = vadd.f32 0.0, %v10067
    %v10069 = vpop.f32.mrf.mxu0
    %10070 = vdwg.mxu0
    %v10071 = vpack.c.bf16 %v10068, %v10068
    %s10072 = scalar_lea.vmem [#allocation13], 512
    %v10073 = vld [vmem:[%s10072] sm:$0xf]
    %v10074 = vld [vmem:[%s10072 + $0x4] sm:$0xf]
    %v10075 = vld [vmem:[%s10072 + $0x8] sm:$0xf]
    %v10076 = vld [vmem:[%s10072 + $0xc] sm:$0xf]
    %v10077 = vld [vmem:[%s10072 + $0x10] sm:$0xf]
    %v10078 = vld [vmem:[%s10072 + $0x14] sm:$0xf]
    %v10079 = vld [vmem:[%s10072 + $0x18] sm:$0xf]
    %v10080 = vld [vmem:[%s10072 + $0x1c] sm:$0xf]
    %v10081 = vld [vmem:[%s10072 + $0x20] sm:$0xf]
    %v10082 = vld [vmem:[%s10072 + $0x24] sm:$0xf]
    %v10083 = vld [vmem:[%s10072 + $0x28] sm:$0xf]
    %v10084 = vld [vmem:[%s10072 + $0x2c] sm:$0xf]
    %v10085 = vld [vmem:[%s10072 + $0x30] sm:$0xf]
    %v10086 = vld [vmem:[%s10072 + $0x34] sm:$0xf]
    %v10087 = vld [vmem:[%s10072 + $0x38] sm:$0xf]
    %v10088 = vld [vmem:[%s10072 + $0x3c] sm:$0xf]
    %v10105 = vunpack.c.l.b16 %v10073
    %v10106 = vunpack.c.l.b16 %v10074
    %v10107 = vunpack.c.l.b16 %v10075
    %v10108 = vunpack.c.l.b16 %v10076
    %v10109 = vunpack.c.l.b16 %v10077
    %v10110 = vunpack.c.l.b16 %v10078
    %v10111 = vunpack.c.l.b16 %v10079
    %v10112 = vunpack.c.l.b16 %v10080
    %v10113 = vunpack.c.l.b16 %v10081
    %v10114 = vunpack.c.l.b16 %v10082
    %v10115 = vunpack.c.l.b16 %v10083
    %v10116 = vunpack.c.l.b16 %v10084
    %v10117 = vunpack.c.l.b16 %v10085
    %v10118 = vunpack.c.l.b16 %v10086
    %v10119 = vunpack.c.l.b16 %v10087
    %v10120 = vunpack.c.l.b16 %v10088
    %v10121 = vpack.c.b16 %v10106, %v10105
    %v10122 = vpack.c.b16 %v10108, %v10107
    %v10123 = vpack.c.b16 %v10110, %v10109
    %v10124 = vpack.c.b16 %v10112, %v10111
    %v10125 = vpack.c.b16 %v10114, %v10113
    %v10126 = vpack.c.b16 %v10116, %v10115
    %v10127 = vpack.c.b16 %v10118, %v10117
    %v10128 = vpack.c.b16 %v10120, %v10119
    %10137 = vmatpush.bf16.msra.mxu0 %v10128
    %10138 = vmatpush.bf16.msra.mxu0 %v10127
    %10139 = vmatpush.bf16.msra.mxu0 %v10126
    %10140 = vmatpush.bf16.msra.mxu0 %v10125
    %10141 = vmatpush.bf16.msra.mxu0 %v10124
    %10142 = vmatpush.bf16.msra.mxu0 %v10123
    %10143 = vmatpush.bf16.msra.mxu0 %v10122
    %10144 = vmatpush.bf16.msra.mxu0 %v10121
    %10145 = vmatmul.bf16.gmra.mxu0 %v10071
    %v10146 = vpop.f32.mrf.mxu0
    %v10147 = vadd.f32 0.0, %v10146
    %v10148 = vpop.f32.mrf.mxu0
    %10149 = vdwg.mxu0
    %v10150 = vadd.f32 %v10039, %v10147
    %v10151 = vld [vmem:[%s15] sm:$0x1]
    %v10153 = vperm.slane %v10151, 0
    %v10155 = vadd.f32 %v10150, %v10153
    %v10156 = vmax.f32 %v10155, 0.0
    %v10157 = vlaneseq
    %v10158 = vshrl.u32 %v10157, 7
    %v10159 = vmul.u32 %v10158, 4
    %vm10160 = vcmp.ge.s32.totalorder %v293, %v10159
    %v10161 = vadd.s32 %v10158, 1
    %v10162 = vmul.u32 %v10161, 4
    %vm10163 = vcmp.lt.s32.totalorder %v293, %v10162
    %vm10164 = vmand %vm10160, %vm10163
    %v10165 = vsel %vm10164, 0.25, 0.0
    %vm10166 = vcmask 64512
    %v10168 = vsel %vm10166, %v10165, 0
    %10170 = vmatpush.msra.mxu0 0.0
    %10171 = vmatpush.msra.mxu0 0.0
    %10172 = vmatpush.msra.mxu0 0.0
    %10173 = vmatpush.msra.mxu0 0.0
    %10174 = vmatpush.msra.mxu0 0.0
    %10175 = vmatpush.msra.mxu0 0.0
    %10176 = vmatpush.msra.mxu0 0.0
    %10177 = vmatpush.msra.mxu0 0.0
    %10178 = vmatpush.msra.mxu0 0.0
    %10179 = vmatpush.msra.mxu0 0.0
    %10180 = vmatpush.msra.mxu0 0.0
    %10181 = vmatpush.msra.mxu0 0.0
    %10182 = vmatpush.msra.mxu0 0.0
    %10183 = vmatpush.msra.mxu0 0.0
    %10184 = vmatpush.msra.mxu0 0.0
    %10185 = vmatpush.msra.mxu0 %v10156
    %10186 = vmatmul.f32.gmra.mxu0 %v10168
    %v10187 = vpop.f32.mrf.mxu0
    %v10188 = vadd.f32 0.0, %v10187
    %10189 = vdwg.mxu0
    %v10190 = vpack.c.bf16 %v10188, %v10188
    %v10191 = vld [vmem:[%s16] sm:$0xf]
    %v10192 = vld [vmem:[%s16 + $0x4] sm:$0xf]
    %v10193 = vld [vmem:[%s16 + $0x8] sm:$0xf]
    %v10194 = vld [vmem:[%s16 + $0xc] sm:$0xf]
    %v10195 = vld [vmem:[%s16 + $0x10] sm:$0xf]
    %v10196 = vld [vmem:[%s16 + $0x14] sm:$0xf]
    %v10197 = vld [vmem:[%s16 + $0x18] sm:$0xf]
    %v10198 = vld [vmem:[%s16 + $0x1c] sm:$0xf]
    %v10199 = vld [vmem:[%s16 + $0x20] sm:$0xf]
    %v10200 = vld [vmem:[%s16 + $0x24] sm:$0xf]
    %v10201 = vld [vmem:[%s16 + $0x28] sm:$0xf]
    %v10202 = vld [vmem:[%s16 + $0x2c] sm:$0xf]
    %v10203 = vld [vmem:[%s16 + $0x30] sm:$0xf]
    %v10204 = vld [vmem:[%s16 + $0x34] sm:$0xf]
    %v10205 = vld [vmem:[%s16 + $0x38] sm:$0xf]
    %v10206 = vld [vmem:[%s16 + $0x3c] sm:$0xf]
    %v10207 = vld [vmem:[#allocation14] sm:$0x1]
    %v10209 = vperm.slane %v10207, 0
    %v10227 = vunpack.c.l.b16 %v10191
    %v10228 = vunpack.c.l.b16 %v10192
    %v10229 = vunpack.c.l.b16 %v10193
    %v10230 = vunpack.c.l.b16 %v10194
    %v10231 = vunpack.c.l.b16 %v10195
    %v10232 = vunpack.c.l.b16 %v10196
    %v10233 = vunpack.c.l.b16 %v10197
    %v10234 = vunpack.c.l.b16 %v10198
    %v10235 = vunpack.c.l.b16 %v10199
    %v10236 = vunpack.c.l.b16 %v10200
    %v10237 = vunpack.c.l.b16 %v10201
    %v10238 = vunpack.c.l.b16 %v10202
    %v10239 = vunpack.c.l.b16 %v10203
    %v10240 = vunpack.c.l.b16 %v10204
    %v10241 = vunpack.c.l.b16 %v10205
    %v10242 = vunpack.c.l.b16 %v10206
    %v10243 = vpack.c.b16 %v10228, %v10227
    %v10244 = vpack.c.b16 %v10230, %v10229
    %v10245 = vpack.c.b16 %v10232, %v10231
    %v10246 = vpack.c.b16 %v10234, %v10233
    %v10247 = vpack.c.b16 %v10236, %v10235
    %v10248 = vpack.c.b16 %v10238, %v10237
    %v10249 = vpack.c.b16 %v10240, %v10239
    %v10250 = vpack.c.b16 %v10242, %v10241
    %10259 = vmatpush.bf16.msra.mxu0 %v10250
    %10260 = vmatpush.bf16.msra.mxu0 %v10249
    %10261 = vmatpush.bf16.msra.mxu0 %v10248
    %10262 = vmatpush.bf16.msra.mxu0 %v10247
    %10263 = vmatpush.bf16.msra.mxu0 %v10246
    %10264 = vmatpush.bf16.msra.mxu0 %v10245
    %10265 = vmatpush.bf16.msra.mxu0 %v10244
    %10266 = vmatpush.bf16.msra.mxu0 %v10243
    %10267 = vmatmul.bf16.gmra.mxu0 %v10190
    %v10268 = vpop.f32.mrf.mxu0
    %v10269 = vadd.f32 %v10209, %v10268
    %v10270 = vpop.f32.mrf.mxu0
    %10271 = vdwg.mxu0
    %10272 = vst [vmem:[#allocation16] sm:$0x3] %v10269
    // Predicated region
    $region106: #{_forward.1} parent=1 // pred_check
      _
    $region107: #{_forward.1} parent=1 // pred_check_branch
      %10274 = sbr.rel (0) target = $region109
    $region108: #{_forward.1} parent=1 // pred_region
      %10276 = vsyncadd [#allocation4], 0
      %s10278 = sshll.u32 [#allocation16], 4
      %s10279 = int_to_ptr.vmem [resolvable:$true] %s10278
      %s10280 = sshll.u32 %s18, 4
      %s10281 = int_to_ptr.hbm [resolvable:$true] %s10280
      %10283 = dma.vmem_to_hbm [thread:$0]  %s10279, 32, %s10281, [#allocation4]
    $region109: #{_forward.1} parent=1 // pred_fallthru
      _
    // Predicated region
    $region110: #{_forward.1} parent=1 // pred_check
      _
    $region111: #{_forward.1} parent=1 // pred_check_branch
      %10285 = sbr.rel (0) target = $region113
    $region112: #{_forward.1} parent=1 // pred_region
      %10287 = dma.done [#allocation4], 32
    $region113: #{_forward.1} parent=1 // pred_fallthru
      _
    %10288 = vsyncpa [#allocation3], 1
    %10289 = vsyncpa [#allocation6], 1
    %10290 = vsyncpa [#allocation9], 1
    %10291 = vsyncpa [#allocation12], 1
    %10292 = vsyncpa [#allocation15], 1
    %10293 = vsyncpa [#allocation4], 1

</llo_original>
